<compile_context>
chip_gen: v6e
topology: v6e:2x2x1
jax: 0.10.0
libtpu: 0.0.40
codegen_flags: <defaults>
</compile_context>

<pallas_src>
import jax
import jax.numpy as jnp
from jax.experimental import pallas as pl
from jax.experimental.pallas import tpu as pltpu  # noqa: F401 (kept for TPU-specific extensions)

LANES = 128


# ---------------------------------------------------------------------------
# helpers
# ---------------------------------------------------------------------------
def _round8(n):
    return (n + 7) // 8 * 8


def _full_spec(shape):
    nd = len(shape)
    return pl.BlockSpec(shape, lambda *_: (0,) * nd)


def _layer_norm2(x, g, b, eps=1e-12):
    # x: (N, D); g/b: (1, D)
    mu = jnp.mean(x, axis=-1, keepdims=True)
    var = jnp.mean((x - mu) ** 2, axis=-1, keepdims=True)
    return (x - mu) * jax.lax.rsqrt(var + eps) * g + b


# ---------------------------------------------------------------------------
# static slab layouts (shared by host-side packer and the kernel factory)
# ---------------------------------------------------------------------------
def build_layout(H0, FFN, R, C):
    R4, R2 = 4 * R, 2 * R
    mats = [('wqkv', H0, 3 * H0), ('wo', H0, H0), ('w1', H0, FFN), ('w2', FFN, H0),
            ('wih1', H0, 2 * R4), ('whh1f', R, R4), ('whh1b', R, R4),
            ('wih2', R2, 2 * R4), ('whh2f', R, R4), ('whh2b', R, R4),
            ('fcw', R2, C)]
    mat_layout, row = {}, 0
    for name, nr, nc in mats:
        mat_layout[name] = (row, nr, nc)
        row += _round8(nr)              # keep every block 8-sublane aligned
    mat_rows = _round8(row)

    vecs = [('emb_ln_g', H0), ('emb_ln_b', H0), ('bqkv', 3 * H0), ('bo', H0),
            ('ln1_g', H0), ('ln1_b', H0), ('b1', FFN), ('b2', H0),
            ('ln2_g', H0), ('ln2_b', H0), ('b1c', 2 * R4), ('b2c', 2 * R4),
            ('att_w', R2), ('fcb', C)]
    vec_layout = {name: (i, nc) for i, (name, nc) in enumerate(vecs)}
    vec_rows = _round8(len(vecs))
    return mat_layout, mat_rows, vec_layout, vec_rows


# ---------------------------------------------------------------------------
# one-time parameter preprocessing + packing (outside jit; runs once at load)
# ---------------------------------------------------------------------------
def pack_params(params, layout):
    mat_layout, mat_rows, vec_layout, vec_rows = layout
    bp, lp = params['bert'], params['lstm']

    wqkv = jnp.concatenate([bp['wq'], bp['wk'], bp['wv']], axis=1)
    bqkv = jnp.concatenate([bp['bq'], bp['bk'], bp['bv']], axis=1)
    wih1 = jnp.concatenate([lp['wih1f'], lp['wih1b']], axis=1)
    b1c = jnp.concatenate([lp['b1f'], lp['b1b']], axis=1)
    wih2 = jnp.concatenate([lp['wih2f'], lp['wih2b']], axis=1)
    b2c = jnp.concatenate([lp['b2f'], lp['b2b']], axis=1)
    # fc1 -> fc has no nonlinearity in the reference module -> exact fold
    fcw = params['fc1_w'] @ params['fc_w']
    fcb = params['fc1_b'] @ params['fc_w'] + params['fc_b']

    mat_vals = {'wqkv': wqkv, 'wo': bp['wo'], 'w1': bp['w1'], 'w2': bp['w2'],
                'wih1': wih1, 'whh1f': lp['whh1f'], 'whh1b': lp['whh1b'],
                'wih2': wih2, 'whh2f': lp['whh2f'], 'whh2b': lp['whh2b'],
                'fcw': fcw}
    vec_vals = {'emb_ln_g': params['emb_ln_g'], 'emb_ln_b': params['emb_ln_b'],
                'bqkv': bqkv, 'bo': bp['bo'],
                'ln1_g': bp['ln1_g'], 'ln1_b': bp['ln1_b'],
                'b1': bp['b1'], 'b2': bp['b2'],
                'ln2_g': bp['ln2_g'], 'ln2_b': bp['ln2_b'],
                'b1c': b1c, 'b2c': b2c,
                'att_w': params['att_w'], 'fcb': fcb}

    mat_slab = jnp.zeros((mat_rows, LANES), jnp.float32)
    for name, (r0, nr, nc) in mat_layout.items():
        mat_slab = mat_slab.at[r0:r0 + nr, 0:nc].set(mat_vals[name].reshape(nr, nc))
    vec_slab = jnp.zeros((vec_rows, LANES), jnp.float32)
    for name, (r, nc) in vec_layout.items():
        vec_slab = vec_slab.at[r:r + 1, 0:nc].set(vec_vals[name].reshape(1, nc))

    # TODO(synk): weights could additionally be cast to bf16 (MXU-native) to halve DMA bytes.
    return {'tok_emb': params['tok_emb'], 'pos_emb': params['pos_emb'],
            'mat': mat_slab, 'vec': vec_slab}


# ---------------------------------------------------------------------------
# fused kernel factory: encoder -> BiLSTM(2 layers) -> attention pool -> fc
# ---------------------------------------------------------------------------
def make_forward(B, S, H0, FFN, R, H2, C):
    R4, R2 = 4 * R, 2 * R
    layout = build_layout(H0, FFN, R, C)
    mat_layout, mat_rows, vec_layout, vec_rows = layout
    f32 = jnp.float32

    def kernel(emb_ref, mask_ref, mat_ref, vec_ref, out_ref):
        def M(name):                                   # matrix slab slice (static offsets)
            r0, nr, nc = mat_layout[name]
            return mat_ref[r0:r0 + nr, 0:nc]

        def V(name):                                   # vector slab slice (static offsets)
            r, nc = vec_layout[name]
            return vec_ref[r:r + 1, 0:nc]

        # ---------------- embedding layernorm ----------------
        x2d = emb_ref[...].reshape(B * S, H0)
        x2d = _layer_norm2(x2d, V('emb_ln_g'), V('emb_ln_b'))

        # ---------------- synthetic single-layer, single-head transformer encoder
        # TODO(synk): real BERT/ERNIE is multi-layer multi-head with pretrained weights.
        qkv = jnp.dot(x2d, M('wqkv'), preferred_element_type=f32) + V('bqkv')
        q = qkv[:, 0:H0].reshape(B, S, H0)
        k = qkv[:, H0:2 * H0].reshape(B, S, H0)
        v = qkv[:, 2 * H0:3 * H0].reshape(B, S, H0)

        scores = jnp.einsum('bqd,bkd->bqk', q, k,
                            preferred_element_type=f32) * (1.0 / (H0 ** 0.5))
        mask = mask_ref[...]                                   # (B, S) float {0,1}
        scores = scores + (mask[:, None, :] - 1.0) * 1e9       # additive attention mask
        scores = scores - jnp.max(scores, axis=-1, keepdims=True)
        e = jnp.exp(scores)
        attn = e * pl.reciprocal(jnp.sum(e, axis=-1, keepdims=True), approx=True)

        ctx2d = jnp.einsum('bqk,bkd->bqd', attn, v,
                           preferred_element_type=f32).reshape(B * S, H0)
        attn_out = jnp.dot(ctx2d, M('wo'), preferred_element_type=f32) + V('bo')
        h1 = _layer_norm2(x2d + attn_out, V('ln1_g'), V('ln1_b'))

        ffn = jax.nn.gelu(jnp.dot(h1, M('w1'), preferred_element_type=f32) + V('b1'))
        ffn = jnp.dot(ffn, M('w2'), preferred_element_type=f32) + V('b2')
        enc2d = _layer_norm2(h1 + ffn, V('ln2_g'), V('ln2_b'))        # (B*S, H0)

        # ---------------- 2-layer bidirectional LSTM (PyTorch gate order i,f,g,o)
        # TODO(synk): nn.LSTM has two biases (b_ih, b_hh); a single fused bias is used here.
        # TODO(synk): nn.LSTM inter-layer dropout is identity at eval time.
        def gate_update(g4, c):
            i_g = jax.nn.sigmoid(g4[:, 0:R])
            f_g = jax.nn.sigmoid(g4[:, R:2 * R])
            g_g = jnp.tanh(g4[:, 2 * R:3 * R])
            o_g = jax.nn.sigmoid(g4[:, 3 * R:4 * R])
            c_new = f_g * c + i_g * g_g
            return o_g * jnp.tanh(c_new), c_new

        def bidir_layer(xg, whh_f, whh_b):
            # xg: (B, S, 8R) hoisted input gates (+bias); fwd in [..., :4R], bwd in [..., 4R:]
            # Per-direction recurrent matmuls; results stay in vregs (no scratch stores,
            # no per-step concatenations on the recurrence critical path).
            h_f = jnp.zeros((B, R), f32); c_f = jnp.zeros((B, R), f32)
            h_b = jnp.zeros((B, R), f32); c_b = jnp.zeros((B, R), f32)
            hf = [None] * S
            hb = [None] * S
            for step in range(S):                          # S is static -> fully unrolled
                tf = step
                tb = S - 1 - step
                g_f = xg[:, tf, 0:R4] + jnp.dot(h_f, whh_f, preferred_element_type=f32)
                g_b = xg[:, tb, R4:2 * R4] + jnp.dot(h_b, whh_b, preferred_element_type=f32)
                h_f, c_f = gate_update(g_f, c_f)
                h_b, c_b = gate_update(g_b, c_b)
                hf[tf] = h_f
                hb[tb] = h_b
            Hfwd = jnp.stack(hf, axis=1)                   # (B, S, R)
            Hbwd = jnp.stack(hb, axis=1)                   # (B, S, R)
            return jnp.concatenate([Hfwd, Hbwd], axis=-1)  # (B, S, 2R)

        # layer 1: hoisted input projection (one matmul for all timesteps + both directions)
        xg1 = (jnp.dot(enc2d, M('wih1'), preferred_element_type=f32)
               + V('b1c')).reshape(B, S, 2 * R4)
        H1 = bidir_layer(xg1, M('whh1f'), M('whh1b'))

        # layer 2: input = layer-1 bidirectional output (still in vregs)
        xg2 = (jnp.dot(H1.reshape(B * S, R2), M('wih2'), preferred_element_type=f32)
               + V('b2c')).reshape(B, S, 2 * R4)
        Hm = bidir_layer(xg2, M('whh2f'), M('whh2b'))      # (B, S, 2R)

        # ---------------- attention pooling + relu + folded fc1·fc ----------------
        Mv = jnp.tanh(Hm)
        att_scores = jnp.sum(Mv * V('att_w').reshape(1, 1, R2), axis=-1)   # (B, S)
        att_scores = att_scores - jnp.max(att_scores, axis=1, keepdims=True)
        ea = jnp.exp(att_scores)
        alpha = ea * pl.reciprocal(jnp.sum(ea, axis=1, keepdims=True), approx=True)
        pooled = jnp.sum(Hm * alpha[:, :, None], axis=1)   # sum(H * alpha, dim=1)
        pooled = jnp.maximum(pooled, 0.0)                  # relu

        # lane-dense (B, 128) output: fcw/fcb are zero-padded past column C in the slabs
        r0, nr, _ = mat_layout['fcw']
        rb, _ = vec_layout['fcb']
        out_ref[...] = (jnp.dot(pooled, mat_ref[r0:r0 + nr, :], preferred_element_type=f32)
                        + vec_ref[rb:rb + 1, :])

    call = pl.pallas_call(
        kernel,
        out_shape=jax.ShapeDtypeStruct((B, LANES), jnp.float32),
        in_specs=[_full_spec((B, S, H0)), _full_spec((B, S)),
                  _full_spec((mat_rows, LANES)), _full_spec((vec_rows, LANES))],
        out_specs=pl.BlockSpec((B, LANES), lambda *_: (0, 0)),
    )
    # TODO(synk): for realistic batch sizes on v7x, add a grid over B with
    # dimension_semantics=("parallel",) so both TensorCores get work.

    @jax.jit
    def forward(packed, context, mask):
        # embedding lookup + positions (gather stays in plain JAX)
        emb = packed['tok_emb'][context] + packed['pos_emb'][None, :S, :]
        out_pad = call(emb, mask.astype(jnp.float32), packed['mat'], packed['vec'])
        return out_pad[:, :C]

    return forward, layout


# ---------------------------------------------------------------------------
# parameters (deterministic, synthetic)
# ---------------------------------------------------------------------------
def init_params(key, vocab, seq, h0, ffn, rnn_hidden, h2, num_classes):
    keys = iter(jax.random.split(key, 40))

    def w(shape, scale=0.05):
        return (scale * jax.random.normal(next(keys), shape)).astype(jnp.float32)

    R = rnn_hidden
    p = {
        'tok_emb': w((vocab, h0), 0.02),
        'pos_emb': w((seq, h0), 0.02),
        'emb_ln_g': jnp.ones((1, h0), jnp.float32),
        'emb_ln_b': jnp.zeros((1, h0), jnp.float32),
        'bert': {
            'wq': w((h0, h0)), 'bq': jnp.zeros((1, h0), jnp.float32),
            'wk': w((h0, h0)), 'bk': jnp.zeros((1, h0), jnp.float32),
            'wv': w((h0, h0)), 'bv': jnp.zeros((1, h0), jnp.float32),
            'wo': w((h0, h0)), 'bo': jnp.zeros((1, h0), jnp.float32),
            'ln1_g': jnp.ones((1, h0), jnp.float32), 'ln1_b': jnp.zeros((1, h0), jnp.float32),
            'w1': w((h0, ffn)), 'b1': jnp.zeros((1, ffn), jnp.float32),
            'w2': w((ffn, h0)), 'b2': jnp.zeros((1, h0), jnp.float32),
            'ln2_g': jnp.ones((1, h0), jnp.float32), 'ln2_b': jnp.zeros((1, h0), jnp.float32),
        },
        'lstm': {},
        # module init is torch.zeros(rnn_hidden*2); random here so softmax is non-trivial
        'att_w': w((1, 2 * R), 0.1),
        'fc1_w': w((2 * R, h2), 0.1), 'fc1_b': jnp.zeros((1, h2), jnp.float32),
        'fc_w': w((h2, num_classes), 0.1), 'fc_b': jnp.zeros((1, num_classes), jnp.float32),
    }
    for d in ('f', 'b'):
        p['lstm'][f'wih1{d}'] = w((h0, 4 * R), 0.1)
        p['lstm'][f'whh1{d}'] = w((R, 4 * R), 0.1)
        p['lstm'][f'b1{d}'] = w((1, 4 * R), 0.1)
        p['lstm'][f'wih2{d}'] = w((2 * R, 4 * R), 0.1)
        p['lstm'][f'whh2{d}'] = w((R, 4 * R), 0.1)
        p['lstm'][f'b2{d}'] = w((1, 4 * R), 0.1)
    return p


if __name__ == "__main__":
    B, S = 2, 8
    VOCAB = 32
    H0 = 32        # config.hidden_size (BERT hidden)
    FFN = 64
    R = 16         # config.rnn_hidden
    H2 = 16        # config.hidden_size2
    C = 4          # config.num_classes

    key = jax.random.PRNGKey(0)
    k_ctx, k_par = jax.random.split(key)

    context = jax.random.randint(k_ctx, (B, S), 0, VOCAB, dtype=jnp.int32)
    seq_len = jnp.full((B,), S, dtype=jnp.int32)
    mask = jnp.ones((B, S), jnp.float32).at[1, 6:].set(0.0)   # padded tail on example 1

    params = init_params(k_par, VOCAB, S, H0, FFN, R, H2, C)
    forward, layout = make_forward(B, S, H0, FFN, R, H2, C)
    packed = pack_params(params, layout)          # one-time host-side weight packing

    x = (context, seq_len, mask)                  # matches the torch module's x[0], x[1], x[2]
    logits = forward(packed, x[0], x[2])
    jax.block_until_ready(logits)
    assert logits.shape == (B, C)
    print("KERNEL_OK")
</pallas_src>

<mosaic_0001>
module attributes {stable_mosaic.version = 11 : i64} {
  func.func @kernel(%arg0: memref<2x8x32xf32, #tpu.memory_space<vmem>>, %arg1: memref<2x8xf32, #tpu.memory_space<vmem>>, %arg2: memref<320x128xf32, #tpu.memory_space<vmem>>, %arg3: memref<16x128xf32, #tpu.memory_space<vmem>>, %arg4: memref<2x128xf32, #tpu.memory_space<vmem>>) attributes {dimension_semantics = [], scalar_prefetch = 0 : i64, scratch_operands = 0 : i64, tpu.core_type = #tpu.core_type<tc>} {
    %c0 = arith.constant 0 : index
    %c0_0 = arith.constant 0 : index
    %c0_1 = arith.constant 0 : index
    %0 = vector.load %arg0[%c0, %c0_0, %c0_1] : memref<2x8x32xf32, #tpu.memory_space<vmem>>, vector<2x8x32xf32>
    %1 = vector.shape_cast %0 : vector<2x8x32xf32> to vector<16x32xf32>
    %c0_2 = arith.constant 0 : index
    %c0_3 = arith.constant 0 : index
    %2 = vector.load %arg3[%c0_2, %c0_3] : memref<16x128xf32, #tpu.memory_space<vmem>>, vector<1x32xf32>
    %c1 = arith.constant 1 : index
    %c0_4 = arith.constant 0 : index
    %3 = vector.load %arg3[%c1, %c0_4] : memref<16x128xf32, #tpu.memory_space<vmem>>, vector<1x32xf32>
    %cst = arith.constant dense<0.000000e+00> : vector<16xf32>
    %4 = vector.multi_reduction <add>, %1, %cst [1] : vector<16x32xf32> to vector<16xf32>
    %5 = vector.shape_cast %4 : vector<16xf32> to vector<16x1xf32>
    %cst_5 = arith.constant 3.200000e+01 : f32
    %6 = vector.broadcast %cst_5 : f32 to vector<16x1xf32>
    %7 = arith.divf %5, %6 : vector<16x1xf32>
    %8 = vector.broadcast %7 : vector<16x1xf32> to vector<16x32xf32>
    %9 = arith.subf %1, %8 : vector<16x32xf32>
    %10 = arith.mulf %9, %9 : vector<16x32xf32>
    %cst_6 = arith.constant dense<0.000000e+00> : vector<16xf32>
    %11 = vector.multi_reduction <add>, %10, %cst_6 [1] : vector<16x32xf32> to vector<16xf32>
    %12 = vector.shape_cast %11 : vector<16xf32> to vector<16x1xf32>
    %cst_7 = arith.constant 3.200000e+01 : f32
    %13 = vector.broadcast %cst_7 : f32 to vector<16x1xf32>
    %14 = arith.divf %12, %13 : vector<16x1xf32>
    %15 = vector.broadcast %7 : vector<16x1xf32> to vector<16x32xf32>
    %16 = arith.subf %1, %15 : vector<16x32xf32>
    %cst_8 = arith.constant 9.99999996E-13 : f32
    %17 = vector.broadcast %cst_8 : f32 to vector<16x1xf32>
    %18 = arith.addf %14, %17 : vector<16x1xf32>
    %19 = math.rsqrt %18 : vector<16x1xf32>
    %20 = vector.broadcast %19 : vector<16x1xf32> to vector<16x32xf32>
    %21 = arith.mulf %16, %20 : vector<16x32xf32>
    %22 = vector.broadcast %2 : vector<1x32xf32> to vector<16x32xf32>
    %23 = arith.mulf %21, %22 : vector<16x32xf32>
    %24 = vector.broadcast %3 : vector<1x32xf32> to vector<16x32xf32>
    %25 = arith.addf %23, %24 : vector<16x32xf32>
    %c0_9 = arith.constant 0 : index
    %c0_10 = arith.constant 0 : index
    %26 = vector.load %arg2[%c0_9, %c0_10] : memref<320x128xf32, #tpu.memory_space<vmem>>, vector<32x96xf32>
    %cst_11 = arith.constant dense<0.000000e+00> : vector<16x96xf32>
    %27 = tpu.matmul %25, %26, %cst_11 {dimension_numbers = #tpu.dot_dimension_numbers<[1], [0], [0], [1], [0, 0, 1, 1], [], []>} : vector<16x32xf32>, vector<32x96xf32>, vector<16x96xf32> -> vector<16x96xf32>
    %c2 = arith.constant 2 : index
    %c0_12 = arith.constant 0 : index
    %28 = vector.load %arg3[%c2, %c0_12] : memref<16x128xf32, #tpu.memory_space<vmem>>, vector<1x96xf32>
    %29 = vector.broadcast %28 : vector<1x96xf32> to vector<16x96xf32>
    %30 = arith.addf %27, %29 : vector<16x96xf32>
    %31 = vector.extract_strided_slice %30 {offsets = [0, 0], sizes = [16, 32], strides = [1, 1]} : vector<16x96xf32> to vector<16x32xf32>
    %32 = vector.shape_cast %31 : vector<16x32xf32> to vector<2x8x32xf32>
    %33 = vector.extract_strided_slice %30 {offsets = [0, 32], sizes = [16, 32], strides = [1, 1]} : vector<16x96xf32> to vector<16x32xf32>
    %34 = vector.shape_cast %33 : vector<16x32xf32> to vector<2x8x32xf32>
    %35 = vector.extract_strided_slice %30 {offsets = [0, 64], sizes = [16, 32], strides = [1, 1]} : vector<16x96xf32> to vector<16x32xf32>
    %36 = vector.shape_cast %35 : vector<16x32xf32> to vector<2x8x32xf32>
    "tpu.trace_start"() <{level = 10 : i32, message = "bqd,bkd->bqk"}> : () -> ()
    %cst_13 = arith.constant dense<0.000000e+00> : vector<2x8x8xf32>
    %37 = tpu.matmul %32, %34, %cst_13 {dimension_numbers = #tpu.dot_dimension_numbers<[2], [2], [1], [1], [0, 0, 0, 1, 1, 1], [0], [0]>} : vector<2x8x32xf32>, vector<2x8x32xf32>, vector<2x8x8xf32> -> vector<2x8x8xf32>
    "tpu.trace_stop"() : () -> ()
    %cst_14 = arith.constant 0.176776692 : f32
    %38 = vector.broadcast %cst_14 : f32 to vector<2x8x8xf32>
    %39 = arith.mulf %37, %38 : vector<2x8x8xf32>
    %c0_15 = arith.constant 0 : index
    %c0_16 = arith.constant 0 : index
    %40 = vector.load %arg1[%c0_15, %c0_16] : memref<2x8xf32, #tpu.memory_space<vmem>>, vector<2x8xf32>
    %41 = vector.shape_cast %40 : vector<2x8xf32> to vector<2x1x8xf32>
    %cst_17 = arith.constant 1.000000e+00 : f32
    %42 = vector.broadcast %cst_17 : f32 to vector<2x1x8xf32>
    %43 = arith.subf %41, %42 : vector<2x1x8xf32>
    %cst_18 = arith.constant 1.000000e+09 : f32
    %44 = vector.broadcast %cst_18 : f32 to vector<2x1x8xf32>
    %45 = arith.mulf %43, %44 : vector<2x1x8xf32>
    %46 = vector.broadcast %45 : vector<2x1x8xf32> to vector<2x8x8xf32>
    %47 = arith.addf %39, %46 : vector<2x8x8xf32>
    %cst_19 = arith.constant dense<0xFF800000> : vector<2x8xf32>
    %48 = vector.multi_reduction <maximumf>, %47, %cst_19 [2] : vector<2x8x8xf32> to vector<2x8xf32>
    %49 = vector.shape_cast %48 : vector<2x8xf32> to vector<2x8x1xf32>
    %50 = vector.broadcast %49 : vector<2x8x1xf32> to vector<2x8x8xf32>
    %51 = arith.subf %47, %50 : vector<2x8x8xf32>
    %52 = math.exp %51 : vector<2x8x8xf32>
    %cst_20 = arith.constant dense<0.000000e+00> : vector<2x8xf32>
    %53 = vector.multi_reduction <add>, %52, %cst_20 [2] : vector<2x8x8xf32> to vector<2x8xf32>
    %54 = vector.shape_cast %53 : vector<2x8xf32> to vector<2x8x1xf32>
    %55 = tpu.reciprocal %54 {approx = true} : vector<2x8x1xf32> -> vector<2x8x1xf32>
    %56 = vector.broadcast %55 : vector<2x8x1xf32> to vector<2x8x8xf32>
    %57 = arith.mulf %52, %56 : vector<2x8x8xf32>
    "tpu.trace_start"() <{level = 10 : i32, message = "bqk,bkd->bqd"}> : () -> ()
    %cst_21 = arith.constant dense<0.000000e+00> : vector<2x8x32xf32>
    %58 = tpu.matmul %57, %36, %cst_21 {dimension_numbers = #tpu.dot_dimension_numbers<[2], [1], [1], [2], [0, 0, 0, 1, 1, 2], [0], [0]>} : vector<2x8x8xf32>, vector<2x8x32xf32>, vector<2x8x32xf32> -> vector<2x8x32xf32>
    "tpu.trace_stop"() : () -> ()
    %59 = vector.shape_cast %58 : vector<2x8x32xf32> to vector<16x32xf32>
    %c32 = arith.constant 32 : index
    %c0_22 = arith.constant 0 : index
    %60 = vector.load %arg2[%c32, %c0_22] : memref<320x128xf32, #tpu.memory_space<vmem>>, vector<32x32xf32>
    %cst_23 = arith.constant dense<0.000000e+00> : vector<16x32xf32>
    %61 = tpu.matmul %59, %60, %cst_23 {dimension_numbers = #tpu.dot_dimension_numbers<[1], [0], [0], [1], [0, 0, 1, 1], [], []>} : vector<16x32xf32>, vector<32x32xf32>, vector<16x32xf32> -> vector<16x32xf32>
    %c3 = arith.constant 3 : index
    %c0_24 = arith.constant 0 : index
    %62 = vector.load %arg3[%c3, %c0_24] : memref<16x128xf32, #tpu.memory_space<vmem>>, vector<1x32xf32>
    %63 = vector.broadcast %62 : vector<1x32xf32> to vector<16x32xf32>
    %64 = arith.addf %61, %63 : vector<16x32xf32>
    %65 = arith.addf %25, %64 : vector<16x32xf32>
    %c4 = arith.constant 4 : index
    %c0_25 = arith.constant 0 : index
    %66 = vector.load %arg3[%c4, %c0_25] : memref<16x128xf32, #tpu.memory_space<vmem>>, vector<1x32xf32>
    %c5 = arith.constant 5 : index
    %c0_26 = arith.constant 0 : index
    %67 = vector.load %arg3[%c5, %c0_26] : memref<16x128xf32, #tpu.memory_space<vmem>>, vector<1x32xf32>
    %cst_27 = arith.constant dense<0.000000e+00> : vector<16xf32>
    %68 = vector.multi_reduction <add>, %65, %cst_27 [1] : vector<16x32xf32> to vector<16xf32>
    %69 = vector.shape_cast %68 : vector<16xf32> to vector<16x1xf32>
    %cst_28 = arith.constant 3.200000e+01 : f32
    %70 = vector.broadcast %cst_28 : f32 to vector<16x1xf32>
    %71 = arith.divf %69, %70 : vector<16x1xf32>
    %72 = vector.broadcast %71 : vector<16x1xf32> to vector<16x32xf32>
    %73 = arith.subf %65, %72 : vector<16x32xf32>
    %74 = arith.mulf %73, %73 : vector<16x32xf32>
    %cst_29 = arith.constant dense<0.000000e+00> : vector<16xf32>
    %75 = vector.multi_reduction <add>, %74, %cst_29 [1] : vector<16x32xf32> to vector<16xf32>
    %76 = vector.shape_cast %75 : vector<16xf32> to vector<16x1xf32>
    %cst_30 = arith.constant 3.200000e+01 : f32
    %77 = vector.broadcast %cst_30 : f32 to vector<16x1xf32>
    %78 = arith.divf %76, %77 : vector<16x1xf32>
    %79 = vector.broadcast %71 : vector<16x1xf32> to vector<16x32xf32>
    %80 = arith.subf %65, %79 : vector<16x32xf32>
    %cst_31 = arith.constant 9.99999996E-13 : f32
    %81 = vector.broadcast %cst_31 : f32 to vector<16x1xf32>
    %82 = arith.addf %78, %81 : vector<16x1xf32>
    %83 = math.rsqrt %82 : vector<16x1xf32>
    %84 = vector.broadcast %83 : vector<16x1xf32> to vector<16x32xf32>
    %85 = arith.mulf %80, %84 : vector<16x32xf32>
    %86 = vector.broadcast %66 : vector<1x32xf32> to vector<16x32xf32>
    %87 = arith.mulf %85, %86 : vector<16x32xf32>
    %88 = vector.broadcast %67 : vector<1x32xf32> to vector<16x32xf32>
    %89 = arith.addf %87, %88 : vector<16x32xf32>
    %c64 = arith.constant 64 : index
    %c0_32 = arith.constant 0 : index
    %90 = vector.load %arg2[%c64, %c0_32] : memref<320x128xf32, #tpu.memory_space<vmem>>, vector<32x64xf32>
    %cst_33 = arith.constant dense<0.000000e+00> : vector<16x64xf32>
    %91 = tpu.matmul %89, %90, %cst_33 {dimension_numbers = #tpu.dot_dimension_numbers<[1], [0], [0], [1], [0, 0, 1, 1], [], []>} : vector<16x32xf32>, vector<32x64xf32>, vector<16x64xf32> -> vector<16x64xf32>
    %c6 = arith.constant 6 : index
    %c0_34 = arith.constant 0 : index
    %92 = vector.load %arg3[%c6, %c0_34] : memref<16x128xf32, #tpu.memory_space<vmem>>, vector<1x64xf32>
    %93 = vector.broadcast %92 : vector<1x64xf32> to vector<16x64xf32>
    %94 = arith.addf %91, %93 : vector<16x64xf32>
    %95 = arith.mulf %94, %94 : vector<16x64xf32>
    %96 = arith.mulf %94, %95 : vector<16x64xf32>
    %cst_35 = arith.constant 4.471500e-02 : f32
    %97 = vector.broadcast %cst_35 : f32 to vector<16x64xf32>
    %98 = arith.mulf %97, %96 : vector<16x64xf32>
    %99 = arith.addf %94, %98 : vector<16x64xf32>
    %cst_36 = arith.constant 0.797884583 : f32
    %100 = vector.broadcast %cst_36 : f32 to vector<16x64xf32>
    %101 = arith.mulf %100, %99 : vector<16x64xf32>
    %102 = math.tanh %101 : vector<16x64xf32>
    %cst_37 = arith.constant 1.000000e+00 : f32
    %103 = vector.broadcast %cst_37 : f32 to vector<16x64xf32>
    %104 = arith.addf %103, %102 : vector<16x64xf32>
    %cst_38 = arith.constant 5.000000e-01 : f32
    %105 = vector.broadcast %cst_38 : f32 to vector<16x64xf32>
    %106 = arith.mulf %105, %104 : vector<16x64xf32>
    %107 = arith.mulf %94, %106 : vector<16x64xf32>
    %c96 = arith.constant 96 : index
    %c0_39 = arith.constant 0 : index
    %108 = vector.load %arg2[%c96, %c0_39] : memref<320x128xf32, #tpu.memory_space<vmem>>, vector<64x32xf32>
    %cst_40 = arith.constant dense<0.000000e+00> : vector<16x32xf32>
    %109 = tpu.matmul %107, %108, %cst_40 {dimension_numbers = #tpu.dot_dimension_numbers<[1], [0], [0], [1], [0, 0, 1, 1], [], []>} : vector<16x64xf32>, vector<64x32xf32>, vector<16x32xf32> -> vector<16x32xf32>
    %c7 = arith.constant 7 : index
    %c0_41 = arith.constant 0 : index
    %110 = vector.load %arg3[%c7, %c0_41] : memref<16x128xf32, #tpu.memory_space<vmem>>, vector<1x32xf32>
    %111 = vector.broadcast %110 : vector<1x32xf32> to vector<16x32xf32>
    %112 = arith.addf %109, %111 : vector<16x32xf32>
    %113 = arith.addf %89, %112 : vector<16x32xf32>
    %c8 = arith.constant 8 : index
    %c0_42 = arith.constant 0 : index
    %114 = vector.load %arg3[%c8, %c0_42] : memref<16x128xf32, #tpu.memory_space<vmem>>, vector<1x32xf32>
    %c9 = arith.constant 9 : index
    %c0_43 = arith.constant 0 : index
    %115 = vector.load %arg3[%c9, %c0_43] : memref<16x128xf32, #tpu.memory_space<vmem>>, vector<1x32xf32>
    %cst_44 = arith.constant dense<0.000000e+00> : vector<16xf32>
    %116 = vector.multi_reduction <add>, %113, %cst_44 [1] : vector<16x32xf32> to vector<16xf32>
    %117 = vector.shape_cast %116 : vector<16xf32> to vector<16x1xf32>
    %cst_45 = arith.constant 3.200000e+01 : f32
    %118 = vector.broadcast %cst_45 : f32 to vector<16x1xf32>
    %119 = arith.divf %117, %118 : vector<16x1xf32>
    %120 = vector.broadcast %119 : vector<16x1xf32> to vector<16x32xf32>
    %121 = arith.subf %113, %120 : vector<16x32xf32>
    %122 = arith.mulf %121, %121 : vector<16x32xf32>
    %cst_46 = arith.constant dense<0.000000e+00> : vector<16xf32>
    %123 = vector.multi_reduction <add>, %122, %cst_46 [1] : vector<16x32xf32> to vector<16xf32>
    %124 = vector.shape_cast %123 : vector<16xf32> to vector<16x1xf32>
    %cst_47 = arith.constant 3.200000e+01 : f32
    %125 = vector.broadcast %cst_47 : f32 to vector<16x1xf32>
    %126 = arith.divf %124, %125 : vector<16x1xf32>
    %127 = vector.broadcast %119 : vector<16x1xf32> to vector<16x32xf32>
    %128 = arith.subf %113, %127 : vector<16x32xf32>
    %cst_48 = arith.constant 9.99999996E-13 : f32
    %129 = vector.broadcast %cst_48 : f32 to vector<16x1xf32>
    %130 = arith.addf %126, %129 : vector<16x1xf32>
    %131 = math.rsqrt %130 : vector<16x1xf32>
    %132 = vector.broadcast %131 : vector<16x1xf32> to vector<16x32xf32>
    %133 = arith.mulf %128, %132 : vector<16x32xf32>
    %134 = vector.broadcast %114 : vector<1x32xf32> to vector<16x32xf32>
    %135 = arith.mulf %133, %134 : vector<16x32xf32>
    %136 = vector.broadcast %115 : vector<1x32xf32> to vector<16x32xf32>
    %137 = arith.addf %135, %136 : vector<16x32xf32>
    %c160 = arith.constant 160 : index
    %c0_49 = arith.constant 0 : index
    %138 = vector.load %arg2[%c160, %c0_49] : memref<320x128xf32, #tpu.memory_space<vmem>>, vector<32x128xf32>
    %cst_50 = arith.constant dense<0.000000e+00> : vector<16x128xf32>
    %139 = tpu.matmul %137, %138, %cst_50 {dimension_numbers = #tpu.dot_dimension_numbers<[1], [0], [0], [1], [0, 0, 1, 1], [], []>} : vector<16x32xf32>, vector<32x128xf32>, vector<16x128xf32> -> vector<16x128xf32>
    %c10 = arith.constant 10 : index
    %c0_51 = arith.constant 0 : index
    %140 = vector.load %arg3[%c10, %c0_51] : memref<16x128xf32, #tpu.memory_space<vmem>>, vector<1x128xf32>
    %141 = vector.broadcast %140 : vector<1x128xf32> to vector<16x128xf32>
    %142 = arith.addf %139, %141 : vector<16x128xf32>
    %143 = vector.shape_cast %142 : vector<16x128xf32> to vector<2x8x128xf32>
    %c192 = arith.constant 192 : index
    %c0_52 = arith.constant 0 : index
    %144 = vector.load %arg2[%c192, %c0_52] : memref<320x128xf32, #tpu.memory_space<vmem>>, vector<16x64xf32>
    %c208 = arith.constant 208 : index
    %c0_53 = arith.constant 0 : index
    %145 = vector.load %arg2[%c208, %c0_53] : memref<320x128xf32, #tpu.memory_space<vmem>>, vector<16x64xf32>
    %cst_54 = arith.constant 0.000000e+00 : f32
    %146 = vector.broadcast %cst_54 : f32 to vector<2x16xf32>
    %cst_55 = arith.constant 0.000000e+00 : f32
    %147 = vector.broadcast %cst_55 : f32 to vector<2x16xf32>
    %cst_56 = arith.constant 0.000000e+00 : f32
    %148 = vector.broadcast %cst_56 : f32 to vector<2x16xf32>
    %cst_57 = arith.constant 0.000000e+00 : f32
    %149 = vector.broadcast %cst_57 : f32 to vector<2x16xf32>
    %150 = vector.extract_strided_slice %143 {offsets = [0, 0, 0], sizes = [2, 1, 64], strides = [1, 1, 1]} : vector<2x8x128xf32> to vector<2x1x64xf32>
    %151 = vector.shape_cast %150 : vector<2x1x64xf32> to vector<2x64xf32>
    %cst_58 = arith.constant dense<0.000000e+00> : vector<2x64xf32>
    %152 = tpu.matmul %146, %144, %cst_58 {dimension_numbers = #tpu.dot_dimension_numbers<[1], [0], [0], [1], [0, 0, 1, 1], [], []>} : vector<2x16xf32>, vector<16x64xf32>, vector<2x64xf32> -> vector<2x64xf32>
    %153 = arith.addf %151, %152 : vector<2x64xf32>
    %154 = vector.extract_strided_slice %143 {offsets = [0, 7, 64], sizes = [2, 1, 64], strides = [1, 1, 1]} : vector<2x8x128xf32> to vector<2x1x64xf32>
    %155 = vector.shape_cast %154 : vector<2x1x64xf32> to vector<2x64xf32>
    %cst_59 = arith.constant dense<0.000000e+00> : vector<2x64xf32>
    %156 = tpu.matmul %148, %145, %cst_59 {dimension_numbers = #tpu.dot_dimension_numbers<[1], [0], [0], [1], [0, 0, 1, 1], [], []>} : vector<2x16xf32>, vector<16x64xf32>, vector<2x64xf32> -> vector<2x64xf32>
    %157 = arith.addf %155, %156 : vector<2x64xf32>
    %158 = vector.extract_strided_slice %153 {offsets = [0, 0], sizes = [2, 16], strides = [1, 1]} : vector<2x64xf32> to vector<2x16xf32>
    %159 = arith.negf %158 : vector<2x16xf32>
    %160 = math.exp %159 : vector<2x16xf32>
    %cst_60 = arith.constant 1.000000e+00 : f32
    %161 = vector.broadcast %cst_60 : f32 to vector<2x16xf32>
    %162 = arith.addf %161, %160 : vector<2x16xf32>
    %163 = arith.divf %161, %162 : vector<2x16xf32>
    %164 = vector.extract_strided_slice %153 {offsets = [0, 16], sizes = [2, 16], strides = [1, 1]} : vector<2x64xf32> to vector<2x16xf32>
    %165 = arith.negf %164 : vector<2x16xf32>
    %166 = math.exp %165 : vector<2x16xf32>
    %cst_61 = arith.constant 1.000000e+00 : f32
    %167 = vector.broadcast %cst_61 : f32 to vector<2x16xf32>
    %168 = arith.addf %167, %166 : vector<2x16xf32>
    %169 = arith.divf %167, %168 : vector<2x16xf32>
    %170 = vector.extract_strided_slice %153 {offsets = [0, 32], sizes = [2, 16], strides = [1, 1]} : vector<2x64xf32> to vector<2x16xf32>
    %171 = math.tanh %170 : vector<2x16xf32>
    %172 = vector.extract_strided_slice %153 {offsets = [0, 48], sizes = [2, 16], strides = [1, 1]} : vector<2x64xf32> to vector<2x16xf32>
    %173 = arith.negf %172 : vector<2x16xf32>
    %174 = math.exp %173 : vector<2x16xf32>
    %cst_62 = arith.constant 1.000000e+00 : f32
    %175 = vector.broadcast %cst_62 : f32 to vector<2x16xf32>
    %176 = arith.addf %175, %174 : vector<2x16xf32>
    %177 = arith.divf %175, %176 : vector<2x16xf32>
    %178 = arith.mulf %169, %147 : vector<2x16xf32>
    %179 = arith.mulf %163, %171 : vector<2x16xf32>
    %180 = arith.addf %178, %179 : vector<2x16xf32>
    %181 = math.tanh %180 : vector<2x16xf32>
    %182 = arith.mulf %177, %181 : vector<2x16xf32>
    %183 = vector.extract_strided_slice %157 {offsets = [0, 0], sizes = [2, 16], strides = [1, 1]} : vector<2x64xf32> to vector<2x16xf32>
    %184 = arith.negf %183 : vector<2x16xf32>
    %185 = math.exp %184 : vector<2x16xf32>
    %cst_63 = arith.constant 1.000000e+00 : f32
    %186 = vector.broadcast %cst_63 : f32 to vector<2x16xf32>
    %187 = arith.addf %186, %185 : vector<2x16xf32>
    %188 = arith.divf %186, %187 : vector<2x16xf32>
    %189 = vector.extract_strided_slice %157 {offsets = [0, 16], sizes = [2, 16], strides = [1, 1]} : vector<2x64xf32> to vector<2x16xf32>
    %190 = arith.negf %189 : vector<2x16xf32>
    %191 = math.exp %190 : vector<2x16xf32>
    %cst_64 = arith.constant 1.000000e+00 : f32
    %192 = vector.broadcast %cst_64 : f32 to vector<2x16xf32>
    %193 = arith.addf %192, %191 : vector<2x16xf32>
    %194 = arith.divf %192, %193 : vector<2x16xf32>
    %195 = vector.extract_strided_slice %157 {offsets = [0, 32], sizes = [2, 16], strides = [1, 1]} : vector<2x64xf32> to vector<2x16xf32>
    %196 = math.tanh %195 : vector<2x16xf32>
    %197 = vector.extract_strided_slice %157 {offsets = [0, 48], sizes = [2, 16], strides = [1, 1]} : vector<2x64xf32> to vector<2x16xf32>
    %198 = arith.negf %197 : vector<2x16xf32>
    %199 = math.exp %198 : vector<2x16xf32>
    %cst_65 = arith.constant 1.000000e+00 : f32
    %200 = vector.broadcast %cst_65 : f32 to vector<2x16xf32>
    %201 = arith.addf %200, %199 : vector<2x16xf32>
    %202 = arith.divf %200, %201 : vector<2x16xf32>
    %203 = arith.mulf %194, %149 : vector<2x16xf32>
    %204 = arith.mulf %188, %196 : vector<2x16xf32>
    %205 = arith.addf %203, %204 : vector<2x16xf32>
    %206 = math.tanh %205 : vector<2x16xf32>
    %207 = arith.mulf %202, %206 : vector<2x16xf32>
    %208 = vector.extract_strided_slice %143 {offsets = [0, 1, 0], sizes = [2, 1, 64], strides = [1, 1, 1]} : vector<2x8x128xf32> to vector<2x1x64xf32>
    %209 = vector.shape_cast %208 : vector<2x1x64xf32> to vector<2x64xf32>
    %cst_66 = arith.constant dense<0.000000e+00> : vector<2x64xf32>
    %210 = tpu.matmul %182, %144, %cst_66 {dimension_numbers = #tpu.dot_dimension_numbers<[1], [0], [0], [1], [0, 0, 1, 1], [], []>} : vector<2x16xf32>, vector<16x64xf32>, vector<2x64xf32> -> vector<2x64xf32>
    %211 = arith.addf %209, %210 : vector<2x64xf32>
    %212 = vector.extract_strided_slice %143 {offsets = [0, 6, 64], sizes = [2, 1, 64], strides = [1, 1, 1]} : vector<2x8x128xf32> to vector<2x1x64xf32>
    %213 = vector.shape_cast %212 : vector<2x1x64xf32> to vector<2x64xf32>
    %cst_67 = arith.constant dense<0.000000e+00> : vector<2x64xf32>
    %214 = tpu.matmul %207, %145, %cst_67 {dimension_numbers = #tpu.dot_dimension_numbers<[1], [0], [0], [1], [0, 0, 1, 1], [], []>} : vector<2x16xf32>, vector<16x64xf32>, vector<2x64xf32> -> vector<2x64xf32>
    %215 = arith.addf %213, %214 : vector<2x64xf32>
    %216 = vector.extract_strided_slice %211 {offsets = [0, 0], sizes = [2, 16], strides = [1, 1]} : vector<2x64xf32> to vector<2x16xf32>
    %217 = arith.negf %216 : vector<2x16xf32>
    %218 = math.exp %217 : vector<2x16xf32>
    %cst_68 = arith.constant 1.000000e+00 : f32
    %219 = vector.broadcast %cst_68 : f32 to vector<2x16xf32>
    %220 = arith.addf %219, %218 : vector<2x16xf32>
    %221 = arith.divf %219, %220 : vector<2x16xf32>
    %222 = vector.extract_strided_slice %211 {offsets = [0, 16], sizes = [2, 16], strides = [1, 1]} : vector<2x64xf32> to vector<2x16xf32>
    %223 = arith.negf %222 : vector<2x16xf32>
    %224 = math.exp %223 : vector<2x16xf32>
    %cst_69 = arith.constant 1.000000e+00 : f32
    %225 = vector.broadcast %cst_69 : f32 to vector<2x16xf32>
    %226 = arith.addf %225, %224 : vector<2x16xf32>
    %227 = arith.divf %225, %226 : vector<2x16xf32>
    %228 = vector.extract_strided_slice %211 {offsets = [0, 32], sizes = [2, 16], strides = [1, 1]} : vector<2x64xf32> to vector<2x16xf32>
    %229 = math.tanh %228 : vector<2x16xf32>
    %230 = vector.extract_strided_slice %211 {offsets = [0, 48], sizes = [2, 16], strides = [1, 1]} : vector<2x64xf32> to vector<2x16xf32>
    %231 = arith.negf %230 : vector<2x16xf32>
    %232 = math.exp %231 : vector<2x16xf32>
    %cst_70 = arith.constant 1.000000e+00 : f32
    %233 = vector.broadcast %cst_70 : f32 to vector<2x16xf32>
    %234 = arith.addf %233, %232 : vector<2x16xf32>
    %235 = arith.divf %233, %234 : vector<2x16xf32>
    %236 = arith.mulf %227, %180 : vector<2x16xf32>
    %237 = arith.mulf %221, %229 : vector<2x16xf32>
    %238 = arith.addf %236, %237 : vector<2x16xf32>
    %239 = math.tanh %238 : vector<2x16xf32>
    %240 = arith.mulf %235, %239 : vector<2x16xf32>
    %241 = vector.extract_strided_slice %215 {offsets = [0, 0], sizes = [2, 16], strides = [1, 1]} : vector<2x64xf32> to vector<2x16xf32>
    %242 = arith.negf %241 : vector<2x16xf32>
    %243 = math.exp %242 : vector<2x16xf32>
    %cst_71 = arith.constant 1.000000e+00 : f32
    %244 = vector.broadcast %cst_71 : f32 to vector<2x16xf32>
    %245 = arith.addf %244, %243 : vector<2x16xf32>
    %246 = arith.divf %244, %245 : vector<2x16xf32>
    %247 = vector.extract_strided_slice %215 {offsets = [0, 16], sizes = [2, 16], strides = [1, 1]} : vector<2x64xf32> to vector<2x16xf32>
    %248 = arith.negf %247 : vector<2x16xf32>
    %249 = math.exp %248 : vector<2x16xf32>
    %cst_72 = arith.constant 1.000000e+00 : f32
    %250 = vector.broadcast %cst_72 : f32 to vector<2x16xf32>
    %251 = arith.addf %250, %249 : vector<2x16xf32>
    %252 = arith.divf %250, %251 : vector<2x16xf32>
    %253 = vector.extract_strided_slice %215 {offsets = [0, 32], sizes = [2, 16], strides = [1, 1]} : vector<2x64xf32> to vector<2x16xf32>
    %254 = math.tanh %253 : vector<2x16xf32>
    %255 = vector.extract_strided_slice %215 {offsets = [0, 48], sizes = [2, 16], strides = [1, 1]} : vector<2x64xf32> to vector<2x16xf32>
    %256 = arith.negf %255 : vector<2x16xf32>
    %257 = math.exp %256 : vector<2x16xf32>
    %cst_73 = arith.constant 1.000000e+00 : f32
    %258 = vector.broadcast %cst_73 : f32 to vector<2x16xf32>
    %259 = arith.addf %258, %257 : vector<2x16xf32>
    %260 = arith.divf %258, %259 : vector<2x16xf32>
    %261 = arith.mulf %252, %205 : vector<2x16xf32>
    %262 = arith.mulf %246, %254 : vector<2x16xf32>
    %263 = arith.addf %261, %262 : vector<2x16xf32>
    %264 = math.tanh %263 : vector<2x16xf32>
    %265 = arith.mulf %260, %264 : vector<2x16xf32>
    %266 = vector.extract_strided_slice %143 {offsets = [0, 2, 0], sizes = [2, 1, 64], strides = [1, 1, 1]} : vector<2x8x128xf32> to vector<2x1x64xf32>
    %267 = vector.shape_cast %266 : vector<2x1x64xf32> to vector<2x64xf32>
    %cst_74 = arith.constant dense<0.000000e+00> : vector<2x64xf32>
    %268 = tpu.matmul %240, %144, %cst_74 {dimension_numbers = #tpu.dot_dimension_numbers<[1], [0], [0], [1], [0, 0, 1, 1], [], []>} : vector<2x16xf32>, vector<16x64xf32>, vector<2x64xf32> -> vector<2x64xf32>
    %269 = arith.addf %267, %268 : vector<2x64xf32>
    %270 = vector.extract_strided_slice %143 {offsets = [0, 5, 64], sizes = [2, 1, 64], strides = [1, 1, 1]} : vector<2x8x128xf32> to vector<2x1x64xf32>
    %271 = vector.shape_cast %270 : vector<2x1x64xf32> to vector<2x64xf32>
    %cst_75 = arith.constant dense<0.000000e+00> : vector<2x64xf32>
    %272 = tpu.matmul %265, %145, %cst_75 {dimension_numbers = #tpu.dot_dimension_numbers<[1], [0], [0], [1], [0, 0, 1, 1], [], []>} : vector<2x16xf32>, vector<16x64xf32>, vector<2x64xf32> -> vector<2x64xf32>
    %273 = arith.addf %271, %272 : vector<2x64xf32>
    %274 = vector.extract_strided_slice %269 {offsets = [0, 0], sizes = [2, 16], strides = [1, 1]} : vector<2x64xf32> to vector<2x16xf32>
    %275 = arith.negf %274 : vector<2x16xf32>
    %276 = math.exp %275 : vector<2x16xf32>
    %cst_76 = arith.constant 1.000000e+00 : f32
    %277 = vector.broadcast %cst_76 : f32 to vector<2x16xf32>
    %278 = arith.addf %277, %276 : vector<2x16xf32>
    %279 = arith.divf %277, %278 : vector<2x16xf32>
    %280 = vector.extract_strided_slice %269 {offsets = [0, 16], sizes = [2, 16], strides = [1, 1]} : vector<2x64xf32> to vector<2x16xf32>
    %281 = arith.negf %280 : vector<2x16xf32>
    %282 = math.exp %281 : vector<2x16xf32>
    %cst_77 = arith.constant 1.000000e+00 : f32
    %283 = vector.broadcast %cst_77 : f32 to vector<2x16xf32>
    %284 = arith.addf %283, %282 : vector<2x16xf32>
    %285 = arith.divf %283, %284 : vector<2x16xf32>
    %286 = vector.extract_strided_slice %269 {offsets = [0, 32], sizes = [2, 16], strides = [1, 1]} : vector<2x64xf32> to vector<2x16xf32>
    %287 = math.tanh %286 : vector<2x16xf32>
    %288 = vector.extract_strided_slice %269 {offsets = [0, 48], sizes = [2, 16], strides = [1, 1]} : vector<2x64xf32> to vector<2x16xf32>
    %289 = arith.negf %288 : vector<2x16xf32>
    %290 = math.exp %289 : vector<2x16xf32>
    %cst_78 = arith.constant 1.000000e+00 : f32
    %291 = vector.broadcast %cst_78 : f32 to vector<2x16xf32>
    %292 = arith.addf %291, %290 : vector<2x16xf32>
    %293 = arith.divf %291, %292 : vector<2x16xf32>
    %294 = arith.mulf %285, %238 : vector<2x16xf32>
    %295 = arith.mulf %279, %287 : vector<2x16xf32>
    %296 = arith.addf %294, %295 : vector<2x16xf32>
    %297 = math.tanh %296 : vector<2x16xf32>
    %298 = arith.mulf %293, %297 : vector<2x16xf32>
    %299 = vector.extract_strided_slice %273 {offsets = [0, 0], sizes = [2, 16], strides = [1, 1]} : vector<2x64xf32> to vector<2x16xf32>
    %300 = arith.negf %299 : vector<2x16xf32>
    %301 = math.exp %300 : vector<2x16xf32>
    %cst_79 = arith.constant 1.000000e+00 : f32
    %302 = vector.broadcast %cst_79 : f32 to vector<2x16xf32>
    %303 = arith.addf %302, %301 : vector<2x16xf32>
    %304 = arith.divf %302, %303 : vector<2x16xf32>
    %305 = vector.extract_strided_slice %273 {offsets = [0, 16], sizes = [2, 16], strides = [1, 1]} : vector<2x64xf32> to vector<2x16xf32>
    %306 = arith.negf %305 : vector<2x16xf32>
    %307 = math.exp %306 : vector<2x16xf32>
    %cst_80 = arith.constant 1.000000e+00 : f32
    %308 = vector.broadcast %cst_80 : f32 to vector<2x16xf32>
    %309 = arith.addf %308, %307 : vector<2x16xf32>
    %310 = arith.divf %308, %309 : vector<2x16xf32>
    %311 = vector.extract_strided_slice %273 {offsets = [0, 32], sizes = [2, 16], strides = [1, 1]} : vector<2x64xf32> to vector<2x16xf32>
    %312 = math.tanh %311 : vector<2x16xf32>
    %313 = vector.extract_strided_slice %273 {offsets = [0, 48], sizes = [2, 16], strides = [1, 1]} : vector<2x64xf32> to vector<2x16xf32>
    %314 = arith.negf %313 : vector<2x16xf32>
    %315 = math.exp %314 : vector<2x16xf32>
    %cst_81 = arith.constant 1.000000e+00 : f32
    %316 = vector.broadcast %cst_81 : f32 to vector<2x16xf32>
    %317 = arith.addf %316, %315 : vector<2x16xf32>
    %318 = arith.divf %316, %317 : vector<2x16xf32>
    %319 = arith.mulf %310, %263 : vector<2x16xf32>
    %320 = arith.mulf %304, %312 : vector<2x16xf32>
    %321 = arith.addf %319, %320 : vector<2x16xf32>
    %322 = math.tanh %321 : vector<2x16xf32>
    %323 = arith.mulf %318, %322 : vector<2x16xf32>
    %324 = vector.extract_strided_slice %143 {offsets = [0, 3, 0], sizes = [2, 1, 64], strides = [1, 1, 1]} : vector<2x8x128xf32> to vector<2x1x64xf32>
    %325 = vector.shape_cast %324 : vector<2x1x64xf32> to vector<2x64xf32>
    %cst_82 = arith.constant dense<0.000000e+00> : vector<2x64xf32>
    %326 = tpu.matmul %298, %144, %cst_82 {dimension_numbers = #tpu.dot_dimension_numbers<[1], [0], [0], [1], [0, 0, 1, 1], [], []>} : vector<2x16xf32>, vector<16x64xf32>, vector<2x64xf32> -> vector<2x64xf32>
    %327 = arith.addf %325, %326 : vector<2x64xf32>
    %328 = vector.extract_strided_slice %143 {offsets = [0, 4, 64], sizes = [2, 1, 64], strides = [1, 1, 1]} : vector<2x8x128xf32> to vector<2x1x64xf32>
    %329 = vector.shape_cast %328 : vector<2x1x64xf32> to vector<2x64xf32>
    %cst_83 = arith.constant dense<0.000000e+00> : vector<2x64xf32>
    %330 = tpu.matmul %323, %145, %cst_83 {dimension_numbers = #tpu.dot_dimension_numbers<[1], [0], [0], [1], [0, 0, 1, 1], [], []>} : vector<2x16xf32>, vector<16x64xf32>, vector<2x64xf32> -> vector<2x64xf32>
    %331 = arith.addf %329, %330 : vector<2x64xf32>
    %332 = vector.extract_strided_slice %327 {offsets = [0, 0], sizes = [2, 16], strides = [1, 1]} : vector<2x64xf32> to vector<2x16xf32>
    %333 = arith.negf %332 : vector<2x16xf32>
    %334 = math.exp %333 : vector<2x16xf32>
    %cst_84 = arith.constant 1.000000e+00 : f32
    %335 = vector.broadcast %cst_84 : f32 to vector<2x16xf32>
    %336 = arith.addf %335, %334 : vector<2x16xf32>
    %337 = arith.divf %335, %336 : vector<2x16xf32>
    %338 = vector.extract_strided_slice %327 {offsets = [0, 16], sizes = [2, 16], strides = [1, 1]} : vector<2x64xf32> to vector<2x16xf32>
    %339 = arith.negf %338 : vector<2x16xf32>
    %340 = math.exp %339 : vector<2x16xf32>
    %cst_85 = arith.constant 1.000000e+00 : f32
    %341 = vector.broadcast %cst_85 : f32 to vector<2x16xf32>
    %342 = arith.addf %341, %340 : vector<2x16xf32>
    %343 = arith.divf %341, %342 : vector<2x16xf32>
    %344 = vector.extract_strided_slice %327 {offsets = [0, 32], sizes = [2, 16], strides = [1, 1]} : vector<2x64xf32> to vector<2x16xf32>
    %345 = math.tanh %344 : vector<2x16xf32>
    %346 = vector.extract_strided_slice %327 {offsets = [0, 48], sizes = [2, 16], strides = [1, 1]} : vector<2x64xf32> to vector<2x16xf32>
    %347 = arith.negf %346 : vector<2x16xf32>
    %348 = math.exp %347 : vector<2x16xf32>
    %cst_86 = arith.constant 1.000000e+00 : f32
    %349 = vector.broadcast %cst_86 : f32 to vector<2x16xf32>
    %350 = arith.addf %349, %348 : vector<2x16xf32>
    %351 = arith.divf %349, %350 : vector<2x16xf32>
    %352 = arith.mulf %343, %296 : vector<2x16xf32>
    %353 = arith.mulf %337, %345 : vector<2x16xf32>
    %354 = arith.addf %352, %353 : vector<2x16xf32>
    %355 = math.tanh %354 : vector<2x16xf32>
    %356 = arith.mulf %351, %355 : vector<2x16xf32>
    %357 = vector.extract_strided_slice %331 {offsets = [0, 0], sizes = [2, 16], strides = [1, 1]} : vector<2x64xf32> to vector<2x16xf32>
    %358 = arith.negf %357 : vector<2x16xf32>
    %359 = math.exp %358 : vector<2x16xf32>
    %cst_87 = arith.constant 1.000000e+00 : f32
    %360 = vector.broadcast %cst_87 : f32 to vector<2x16xf32>
    %361 = arith.addf %360, %359 : vector<2x16xf32>
    %362 = arith.divf %360, %361 : vector<2x16xf32>
    %363 = vector.extract_strided_slice %331 {offsets = [0, 16], sizes = [2, 16], strides = [1, 1]} : vector<2x64xf32> to vector<2x16xf32>
    %364 = arith.negf %363 : vector<2x16xf32>
    %365 = math.exp %364 : vector<2x16xf32>
    %cst_88 = arith.constant 1.000000e+00 : f32
    %366 = vector.broadcast %cst_88 : f32 to vector<2x16xf32>
    %367 = arith.addf %366, %365 : vector<2x16xf32>
    %368 = arith.divf %366, %367 : vector<2x16xf32>
    %369 = vector.extract_strided_slice %331 {offsets = [0, 32], sizes = [2, 16], strides = [1, 1]} : vector<2x64xf32> to vector<2x16xf32>
    %370 = math.tanh %369 : vector<2x16xf32>
    %371 = vector.extract_strided_slice %331 {offsets = [0, 48], sizes = [2, 16], strides = [1, 1]} : vector<2x64xf32> to vector<2x16xf32>
    %372 = arith.negf %371 : vector<2x16xf32>
    %373 = math.exp %372 : vector<2x16xf32>
    %cst_89 = arith.constant 1.000000e+00 : f32
    %374 = vector.broadcast %cst_89 : f32 to vector<2x16xf32>
    %375 = arith.addf %374, %373 : vector<2x16xf32>
    %376 = arith.divf %374, %375 : vector<2x16xf32>
    %377 = arith.mulf %368, %321 : vector<2x16xf32>
    %378 = arith.mulf %362, %370 : vector<2x16xf32>
    %379 = arith.addf %377, %378 : vector<2x16xf32>
    %380 = math.tanh %379 : vector<2x16xf32>
    %381 = arith.mulf %376, %380 : vector<2x16xf32>
    %382 = vector.extract_strided_slice %143 {offsets = [0, 4, 0], sizes = [2, 1, 64], strides = [1, 1, 1]} : vector<2x8x128xf32> to vector<2x1x64xf32>
    %383 = vector.shape_cast %382 : vector<2x1x64xf32> to vector<2x64xf32>
    %cst_90 = arith.constant dense<0.000000e+00> : vector<2x64xf32>
    %384 = tpu.matmul %356, %144, %cst_90 {dimension_numbers = #tpu.dot_dimension_numbers<[1], [0], [0], [1], [0, 0, 1, 1], [], []>} : vector<2x16xf32>, vector<16x64xf32>, vector<2x64xf32> -> vector<2x64xf32>
    %385 = arith.addf %383, %384 : vector<2x64xf32>
    %386 = vector.extract_strided_slice %143 {offsets = [0, 3, 64], sizes = [2, 1, 64], strides = [1, 1, 1]} : vector<2x8x128xf32> to vector<2x1x64xf32>
    %387 = vector.shape_cast %386 : vector<2x1x64xf32> to vector<2x64xf32>
    %cst_91 = arith.constant dense<0.000000e+00> : vector<2x64xf32>
    %388 = tpu.matmul %381, %145, %cst_91 {dimension_numbers = #tpu.dot_dimension_numbers<[1], [0], [0], [1], [0, 0, 1, 1], [], []>} : vector<2x16xf32>, vector<16x64xf32>, vector<2x64xf32> -> vector<2x64xf32>
    %389 = arith.addf %387, %388 : vector<2x64xf32>
    %390 = vector.extract_strided_slice %385 {offsets = [0, 0], sizes = [2, 16], strides = [1, 1]} : vector<2x64xf32> to vector<2x16xf32>
    %391 = arith.negf %390 : vector<2x16xf32>
    %392 = math.exp %391 : vector<2x16xf32>
    %cst_92 = arith.constant 1.000000e+00 : f32
    %393 = vector.broadcast %cst_92 : f32 to vector<2x16xf32>
    %394 = arith.addf %393, %392 : vector<2x16xf32>
    %395 = arith.divf %393, %394 : vector<2x16xf32>
    %396 = vector.extract_strided_slice %385 {offsets = [0, 16], sizes = [2, 16], strides = [1, 1]} : vector<2x64xf32> to vector<2x16xf32>
    %397 = arith.negf %396 : vector<2x16xf32>
    %398 = math.exp %397 : vector<2x16xf32>
    %cst_93 = arith.constant 1.000000e+00 : f32
    %399 = vector.broadcast %cst_93 : f32 to vector<2x16xf32>
    %400 = arith.addf %399, %398 : vector<2x16xf32>
    %401 = arith.divf %399, %400 : vector<2x16xf32>
    %402 = vector.extract_strided_slice %385 {offsets = [0, 32], sizes = [2, 16], strides = [1, 1]} : vector<2x64xf32> to vector<2x16xf32>
    %403 = math.tanh %402 : vector<2x16xf32>
    %404 = vector.extract_strided_slice %385 {offsets = [0, 48], sizes = [2, 16], strides = [1, 1]} : vector<2x64xf32> to vector<2x16xf32>
    %405 = arith.negf %404 : vector<2x16xf32>
    %406 = math.exp %405 : vector<2x16xf32>
    %cst_94 = arith.constant 1.000000e+00 : f32
    %407 = vector.broadcast %cst_94 : f32 to vector<2x16xf32>
    %408 = arith.addf %407, %406 : vector<2x16xf32>
    %409 = arith.divf %407, %408 : vector<2x16xf32>
    %410 = arith.mulf %401, %354 : vector<2x16xf32>
    %411 = arith.mulf %395, %403 : vector<2x16xf32>
    %412 = arith.addf %410, %411 : vector<2x16xf32>
    %413 = math.tanh %412 : vector<2x16xf32>
    %414 = arith.mulf %409, %413 : vector<2x16xf32>
    %415 = vector.extract_strided_slice %389 {offsets = [0, 0], sizes = [2, 16], strides = [1, 1]} : vector<2x64xf32> to vector<2x16xf32>
    %416 = arith.negf %415 : vector<2x16xf32>
    %417 = math.exp %416 : vector<2x16xf32>
    %cst_95 = arith.constant 1.000000e+00 : f32
    %418 = vector.broadcast %cst_95 : f32 to vector<2x16xf32>
    %419 = arith.addf %418, %417 : vector<2x16xf32>
    %420 = arith.divf %418, %419 : vector<2x16xf32>
    %421 = vector.extract_strided_slice %389 {offsets = [0, 16], sizes = [2, 16], strides = [1, 1]} : vector<2x64xf32> to vector<2x16xf32>
    %422 = arith.negf %421 : vector<2x16xf32>
    %423 = math.exp %422 : vector<2x16xf32>
    %cst_96 = arith.constant 1.000000e+00 : f32
    %424 = vector.broadcast %cst_96 : f32 to vector<2x16xf32>
    %425 = arith.addf %424, %423 : vector<2x16xf32>
    %426 = arith.divf %424, %425 : vector<2x16xf32>
    %427 = vector.extract_strided_slice %389 {offsets = [0, 32], sizes = [2, 16], strides = [1, 1]} : vector<2x64xf32> to vector<2x16xf32>
    %428 = math.tanh %427 : vector<2x16xf32>
    %429 = vector.extract_strided_slice %389 {offsets = [0, 48], sizes = [2, 16], strides = [1, 1]} : vector<2x64xf32> to vector<2x16xf32>
    %430 = arith.negf %429 : vector<2x16xf32>
    %431 = math.exp %430 : vector<2x16xf32>
    %cst_97 = arith.constant 1.000000e+00 : f32
    %432 = vector.broadcast %cst_97 : f32 to vector<2x16xf32>
    %433 = arith.addf %432, %431 : vector<2x16xf32>
    %434 = arith.divf %432, %433 : vector<2x16xf32>
    %435 = arith.mulf %426, %379 : vector<2x16xf32>
    %436 = arith.mulf %420, %428 : vector<2x16xf32>
    %437 = arith.addf %435, %436 : vector<2x16xf32>
    %438 = math.tanh %437 : vector<2x16xf32>
    %439 = arith.mulf %434, %438 : vector<2x16xf32>
    %440 = vector.extract_strided_slice %143 {offsets = [0, 5, 0], sizes = [2, 1, 64], strides = [1, 1, 1]} : vector<2x8x128xf32> to vector<2x1x64xf32>
    %441 = vector.shape_cast %440 : vector<2x1x64xf32> to vector<2x64xf32>
    %cst_98 = arith.constant dense<0.000000e+00> : vector<2x64xf32>
    %442 = tpu.matmul %414, %144, %cst_98 {dimension_numbers = #tpu.dot_dimension_numbers<[1], [0], [0], [1], [0, 0, 1, 1], [], []>} : vector<2x16xf32>, vector<16x64xf32>, vector<2x64xf32> -> vector<2x64xf32>
    %443 = arith.addf %441, %442 : vector<2x64xf32>
    %444 = vector.extract_strided_slice %143 {offsets = [0, 2, 64], sizes = [2, 1, 64], strides = [1, 1, 1]} : vector<2x8x128xf32> to vector<2x1x64xf32>
    %445 = vector.shape_cast %444 : vector<2x1x64xf32> to vector<2x64xf32>
    %cst_99 = arith.constant dense<0.000000e+00> : vector<2x64xf32>
    %446 = tpu.matmul %439, %145, %cst_99 {dimension_numbers = #tpu.dot_dimension_numbers<[1], [0], [0], [1], [0, 0, 1, 1], [], []>} : vector<2x16xf32>, vector<16x64xf32>, vector<2x64xf32> -> vector<2x64xf32>
    %447 = arith.addf %445, %446 : vector<2x64xf32>
    %448 = vector.extract_strided_slice %443 {offsets = [0, 0], sizes = [2, 16], strides = [1, 1]} : vector<2x64xf32> to vector<2x16xf32>
    %449 = arith.negf %448 : vector<2x16xf32>
    %450 = math.exp %449 : vector<2x16xf32>
    %cst_100 = arith.constant 1.000000e+00 : f32
    %451 = vector.broadcast %cst_100 : f32 to vector<2x16xf32>
    %452 = arith.addf %451, %450 : vector<2x16xf32>
    %453 = arith.divf %451, %452 : vector<2x16xf32>
    %454 = vector.extract_strided_slice %443 {offsets = [0, 16], sizes = [2, 16], strides = [1, 1]} : vector<2x64xf32> to vector<2x16xf32>
    %455 = arith.negf %454 : vector<2x16xf32>
    %456 = math.exp %455 : vector<2x16xf32>
    %cst_101 = arith.constant 1.000000e+00 : f32
    %457 = vector.broadcast %cst_101 : f32 to vector<2x16xf32>
    %458 = arith.addf %457, %456 : vector<2x16xf32>
    %459 = arith.divf %457, %458 : vector<2x16xf32>
    %460 = vector.extract_strided_slice %443 {offsets = [0, 32], sizes = [2, 16], strides = [1, 1]} : vector<2x64xf32> to vector<2x16xf32>
    %461 = math.tanh %460 : vector<2x16xf32>
    %462 = vector.extract_strided_slice %443 {offsets = [0, 48], sizes = [2, 16], strides = [1, 1]} : vector<2x64xf32> to vector<2x16xf32>
    %463 = arith.negf %462 : vector<2x16xf32>
    %464 = math.exp %463 : vector<2x16xf32>
    %cst_102 = arith.constant 1.000000e+00 : f32
    %465 = vector.broadcast %cst_102 : f32 to vector<2x16xf32>
    %466 = arith.addf %465, %464 : vector<2x16xf32>
    %467 = arith.divf %465, %466 : vector<2x16xf32>
    %468 = arith.mulf %459, %412 : vector<2x16xf32>
    %469 = arith.mulf %453, %461 : vector<2x16xf32>
    %470 = arith.addf %468, %469 : vector<2x16xf32>
    %471 = math.tanh %470 : vector<2x16xf32>
    %472 = arith.mulf %467, %471 : vector<2x16xf32>
    %473 = vector.extract_strided_slice %447 {offsets = [0, 0], sizes = [2, 16], strides = [1, 1]} : vector<2x64xf32> to vector<2x16xf32>
    %474 = arith.negf %473 : vector<2x16xf32>
    %475 = math.exp %474 : vector<2x16xf32>
    %cst_103 = arith.constant 1.000000e+00 : f32
    %476 = vector.broadcast %cst_103 : f32 to vector<2x16xf32>
    %477 = arith.addf %476, %475 : vector<2x16xf32>
    %478 = arith.divf %476, %477 : vector<2x16xf32>
    %479 = vector.extract_strided_slice %447 {offsets = [0, 16], sizes = [2, 16], strides = [1, 1]} : vector<2x64xf32> to vector<2x16xf32>
    %480 = arith.negf %479 : vector<2x16xf32>
    %481 = math.exp %480 : vector<2x16xf32>
    %cst_104 = arith.constant 1.000000e+00 : f32
    %482 = vector.broadcast %cst_104 : f32 to vector<2x16xf32>
    %483 = arith.addf %482, %481 : vector<2x16xf32>
    %484 = arith.divf %482, %483 : vector<2x16xf32>
    %485 = vector.extract_strided_slice %447 {offsets = [0, 32], sizes = [2, 16], strides = [1, 1]} : vector<2x64xf32> to vector<2x16xf32>
    %486 = math.tanh %485 : vector<2x16xf32>
    %487 = vector.extract_strided_slice %447 {offsets = [0, 48], sizes = [2, 16], strides = [1, 1]} : vector<2x64xf32> to vector<2x16xf32>
    %488 = arith.negf %487 : vector<2x16xf32>
    %489 = math.exp %488 : vector<2x16xf32>
    %cst_105 = arith.constant 1.000000e+00 : f32
    %490 = vector.broadcast %cst_105 : f32 to vector<2x16xf32>
    %491 = arith.addf %490, %489 : vector<2x16xf32>
    %492 = arith.divf %490, %491 : vector<2x16xf32>
    %493 = arith.mulf %484, %437 : vector<2x16xf32>
    %494 = arith.mulf %478, %486 : vector<2x16xf32>
    %495 = arith.addf %493, %494 : vector<2x16xf32>
    %496 = math.tanh %495 : vector<2x16xf32>
    %497 = arith.mulf %492, %496 : vector<2x16xf32>
    %498 = vector.extract_strided_slice %143 {offsets = [0, 6, 0], sizes = [2, 1, 64], strides = [1, 1, 1]} : vector<2x8x128xf32> to vector<2x1x64xf32>
    %499 = vector.shape_cast %498 : vector<2x1x64xf32> to vector<2x64xf32>
    %cst_106 = arith.constant dense<0.000000e+00> : vector<2x64xf32>
    %500 = tpu.matmul %472, %144, %cst_106 {dimension_numbers = #tpu.dot_dimension_numbers<[1], [0], [0], [1], [0, 0, 1, 1], [], []>} : vector<2x16xf32>, vector<16x64xf32>, vector<2x64xf32> -> vector<2x64xf32>
    %501 = arith.addf %499, %500 : vector<2x64xf32>
    %502 = vector.extract_strided_slice %143 {offsets = [0, 1, 64], sizes = [2, 1, 64], strides = [1, 1, 1]} : vector<2x8x128xf32> to vector<2x1x64xf32>
    %503 = vector.shape_cast %502 : vector<2x1x64xf32> to vector<2x64xf32>
    %cst_107 = arith.constant dense<0.000000e+00> : vector<2x64xf32>
    %504 = tpu.matmul %497, %145, %cst_107 {dimension_numbers = #tpu.dot_dimension_numbers<[1], [0], [0], [1], [0, 0, 1, 1], [], []>} : vector<2x16xf32>, vector<16x64xf32>, vector<2x64xf32> -> vector<2x64xf32>
    %505 = arith.addf %503, %504 : vector<2x64xf32>
    %506 = vector.extract_strided_slice %501 {offsets = [0, 0], sizes = [2, 16], strides = [1, 1]} : vector<2x64xf32> to vector<2x16xf32>
    %507 = arith.negf %506 : vector<2x16xf32>
    %508 = math.exp %507 : vector<2x16xf32>
    %cst_108 = arith.constant 1.000000e+00 : f32
    %509 = vector.broadcast %cst_108 : f32 to vector<2x16xf32>
    %510 = arith.addf %509, %508 : vector<2x16xf32>
    %511 = arith.divf %509, %510 : vector<2x16xf32>
    %512 = vector.extract_strided_slice %501 {offsets = [0, 16], sizes = [2, 16], strides = [1, 1]} : vector<2x64xf32> to vector<2x16xf32>
    %513 = arith.negf %512 : vector<2x16xf32>
    %514 = math.exp %513 : vector<2x16xf32>
    %cst_109 = arith.constant 1.000000e+00 : f32
    %515 = vector.broadcast %cst_109 : f32 to vector<2x16xf32>
    %516 = arith.addf %515, %514 : vector<2x16xf32>
    %517 = arith.divf %515, %516 : vector<2x16xf32>
    %518 = vector.extract_strided_slice %501 {offsets = [0, 32], sizes = [2, 16], strides = [1, 1]} : vector<2x64xf32> to vector<2x16xf32>
    %519 = math.tanh %518 : vector<2x16xf32>
    %520 = vector.extract_strided_slice %501 {offsets = [0, 48], sizes = [2, 16], strides = [1, 1]} : vector<2x64xf32> to vector<2x16xf32>
    %521 = arith.negf %520 : vector<2x16xf32>
    %522 = math.exp %521 : vector<2x16xf32>
    %cst_110 = arith.constant 1.000000e+00 : f32
    %523 = vector.broadcast %cst_110 : f32 to vector<2x16xf32>
    %524 = arith.addf %523, %522 : vector<2x16xf32>
    %525 = arith.divf %523, %524 : vector<2x16xf32>
    %526 = arith.mulf %517, %470 : vector<2x16xf32>
    %527 = arith.mulf %511, %519 : vector<2x16xf32>
    %528 = arith.addf %526, %527 : vector<2x16xf32>
    %529 = math.tanh %528 : vector<2x16xf32>
    %530 = arith.mulf %525, %529 : vector<2x16xf32>
    %531 = vector.extract_strided_slice %505 {offsets = [0, 0], sizes = [2, 16], strides = [1, 1]} : vector<2x64xf32> to vector<2x16xf32>
    %532 = arith.negf %531 : vector<2x16xf32>
    %533 = math.exp %532 : vector<2x16xf32>
    %cst_111 = arith.constant 1.000000e+00 : f32
    %534 = vector.broadcast %cst_111 : f32 to vector<2x16xf32>
    %535 = arith.addf %534, %533 : vector<2x16xf32>
    %536 = arith.divf %534, %535 : vector<2x16xf32>
    %537 = vector.extract_strided_slice %505 {offsets = [0, 16], sizes = [2, 16], strides = [1, 1]} : vector<2x64xf32> to vector<2x16xf32>
    %538 = arith.negf %537 : vector<2x16xf32>
    %539 = math.exp %538 : vector<2x16xf32>
    %cst_112 = arith.constant 1.000000e+00 : f32
    %540 = vector.broadcast %cst_112 : f32 to vector<2x16xf32>
    %541 = arith.addf %540, %539 : vector<2x16xf32>
    %542 = arith.divf %540, %541 : vector<2x16xf32>
    %543 = vector.extract_strided_slice %505 {offsets = [0, 32], sizes = [2, 16], strides = [1, 1]} : vector<2x64xf32> to vector<2x16xf32>
    %544 = math.tanh %543 : vector<2x16xf32>
    %545 = vector.extract_strided_slice %505 {offsets = [0, 48], sizes = [2, 16], strides = [1, 1]} : vector<2x64xf32> to vector<2x16xf32>
    %546 = arith.negf %545 : vector<2x16xf32>
    %547 = math.exp %546 : vector<2x16xf32>
    %cst_113 = arith.constant 1.000000e+00 : f32
    %548 = vector.broadcast %cst_113 : f32 to vector<2x16xf32>
    %549 = arith.addf %548, %547 : vector<2x16xf32>
    %550 = arith.divf %548, %549 : vector<2x16xf32>
    %551 = arith.mulf %542, %495 : vector<2x16xf32>
    %552 = arith.mulf %536, %544 : vector<2x16xf32>
    %553 = arith.addf %551, %552 : vector<2x16xf32>
    %554 = math.tanh %553 : vector<2x16xf32>
    %555 = arith.mulf %550, %554 : vector<2x16xf32>
    %556 = vector.extract_strided_slice %143 {offsets = [0, 7, 0], sizes = [2, 1, 64], strides = [1, 1, 1]} : vector<2x8x128xf32> to vector<2x1x64xf32>
    %557 = vector.shape_cast %556 : vector<2x1x64xf32> to vector<2x64xf32>
    %cst_114 = arith.constant dense<0.000000e+00> : vector<2x64xf32>
    %558 = tpu.matmul %530, %144, %cst_114 {dimension_numbers = #tpu.dot_dimension_numbers<[1], [0], [0], [1], [0, 0, 1, 1], [], []>} : vector<2x16xf32>, vector<16x64xf32>, vector<2x64xf32> -> vector<2x64xf32>
    %559 = arith.addf %557, %558 : vector<2x64xf32>
    %560 = vector.extract_strided_slice %143 {offsets = [0, 0, 64], sizes = [2, 1, 64], strides = [1, 1, 1]} : vector<2x8x128xf32> to vector<2x1x64xf32>
    %561 = vector.shape_cast %560 : vector<2x1x64xf32> to vector<2x64xf32>
    %cst_115 = arith.constant dense<0.000000e+00> : vector<2x64xf32>
    %562 = tpu.matmul %555, %145, %cst_115 {dimension_numbers = #tpu.dot_dimension_numbers<[1], [0], [0], [1], [0, 0, 1, 1], [], []>} : vector<2x16xf32>, vector<16x64xf32>, vector<2x64xf32> -> vector<2x64xf32>
    %563 = arith.addf %561, %562 : vector<2x64xf32>
    %564 = vector.extract_strided_slice %559 {offsets = [0, 0], sizes = [2, 16], strides = [1, 1]} : vector<2x64xf32> to vector<2x16xf32>
    %565 = arith.negf %564 : vector<2x16xf32>
    %566 = math.exp %565 : vector<2x16xf32>
    %cst_116 = arith.constant 1.000000e+00 : f32
    %567 = vector.broadcast %cst_116 : f32 to vector<2x16xf32>
    %568 = arith.addf %567, %566 : vector<2x16xf32>
    %569 = arith.divf %567, %568 : vector<2x16xf32>
    %570 = vector.extract_strided_slice %559 {offsets = [0, 16], sizes = [2, 16], strides = [1, 1]} : vector<2x64xf32> to vector<2x16xf32>
    %571 = arith.negf %570 : vector<2x16xf32>
    %572 = math.exp %571 : vector<2x16xf32>
    %cst_117 = arith.constant 1.000000e+00 : f32
    %573 = vector.broadcast %cst_117 : f32 to vector<2x16xf32>
    %574 = arith.addf %573, %572 : vector<2x16xf32>
    %575 = arith.divf %573, %574 : vector<2x16xf32>
    %576 = vector.extract_strided_slice %559 {offsets = [0, 32], sizes = [2, 16], strides = [1, 1]} : vector<2x64xf32> to vector<2x16xf32>
    %577 = math.tanh %576 : vector<2x16xf32>
    %578 = vector.extract_strided_slice %559 {offsets = [0, 48], sizes = [2, 16], strides = [1, 1]} : vector<2x64xf32> to vector<2x16xf32>
    %579 = arith.negf %578 : vector<2x16xf32>
    %580 = math.exp %579 : vector<2x16xf32>
    %cst_118 = arith.constant 1.000000e+00 : f32
    %581 = vector.broadcast %cst_118 : f32 to vector<2x16xf32>
    %582 = arith.addf %581, %580 : vector<2x16xf32>
    %583 = arith.divf %581, %582 : vector<2x16xf32>
    %584 = arith.mulf %575, %528 : vector<2x16xf32>
    %585 = arith.mulf %569, %577 : vector<2x16xf32>
    %586 = arith.addf %584, %585 : vector<2x16xf32>
    %587 = math.tanh %586 : vector<2x16xf32>
    %588 = arith.mulf %583, %587 : vector<2x16xf32>
    %589 = vector.extract_strided_slice %563 {offsets = [0, 0], sizes = [2, 16], strides = [1, 1]} : vector<2x64xf32> to vector<2x16xf32>
    %590 = arith.negf %589 : vector<2x16xf32>
    %591 = math.exp %590 : vector<2x16xf32>
    %cst_119 = arith.constant 1.000000e+00 : f32
    %592 = vector.broadcast %cst_119 : f32 to vector<2x16xf32>
    %593 = arith.addf %592, %591 : vector<2x16xf32>
    %594 = arith.divf %592, %593 : vector<2x16xf32>
    %595 = vector.extract_strided_slice %563 {offsets = [0, 16], sizes = [2, 16], strides = [1, 1]} : vector<2x64xf32> to vector<2x16xf32>
    %596 = arith.negf %595 : vector<2x16xf32>
    %597 = math.exp %596 : vector<2x16xf32>
    %cst_120 = arith.constant 1.000000e+00 : f32
    %598 = vector.broadcast %cst_120 : f32 to vector<2x16xf32>
    %599 = arith.addf %598, %597 : vector<2x16xf32>
    %600 = arith.divf %598, %599 : vector<2x16xf32>
    %601 = vector.extract_strided_slice %563 {offsets = [0, 32], sizes = [2, 16], strides = [1, 1]} : vector<2x64xf32> to vector<2x16xf32>
    %602 = math.tanh %601 : vector<2x16xf32>
    %603 = vector.extract_strided_slice %563 {offsets = [0, 48], sizes = [2, 16], strides = [1, 1]} : vector<2x64xf32> to vector<2x16xf32>
    %604 = arith.negf %603 : vector<2x16xf32>
    %605 = math.exp %604 : vector<2x16xf32>
    %cst_121 = arith.constant 1.000000e+00 : f32
    %606 = vector.broadcast %cst_121 : f32 to vector<2x16xf32>
    %607 = arith.addf %606, %605 : vector<2x16xf32>
    %608 = arith.divf %606, %607 : vector<2x16xf32>
    %609 = arith.mulf %600, %553 : vector<2x16xf32>
    %610 = arith.mulf %594, %602 : vector<2x16xf32>
    %611 = arith.addf %609, %610 : vector<2x16xf32>
    %612 = math.tanh %611 : vector<2x16xf32>
    %613 = arith.mulf %608, %612 : vector<2x16xf32>
    %614 = vector.shape_cast %182 : vector<2x16xf32> to vector<2x1x16xf32>
    %615 = vector.shape_cast %240 : vector<2x16xf32> to vector<2x1x16xf32>
    %616 = vector.shape_cast %298 : vector<2x16xf32> to vector<2x1x16xf32>
    %617 = vector.shape_cast %356 : vector<2x16xf32> to vector<2x1x16xf32>
    %618 = vector.shape_cast %414 : vector<2x16xf32> to vector<2x1x16xf32>
    %619 = vector.shape_cast %472 : vector<2x16xf32> to vector<2x1x16xf32>
    %620 = vector.shape_cast %530 : vector<2x16xf32> to vector<2x1x16xf32>
    %621 = vector.shape_cast %588 : vector<2x16xf32> to vector<2x1x16xf32>
    %622 = tpu.concatenate %614, %615, %616, %617, %618, %619, %620, %621 in 1 : vector<2x1x16xf32>, vector<2x1x16xf32>, vector<2x1x16xf32>, vector<2x1x16xf32>, vector<2x1x16xf32>, vector<2x1x16xf32>, vector<2x1x16xf32>, vector<2x1x16xf32> -> vector<2x8x16xf32>
    %623 = vector.shape_cast %613 : vector<2x16xf32> to vector<2x1x16xf32>
    %624 = vector.shape_cast %555 : vector<2x16xf32> to vector<2x1x16xf32>
    %625 = vector.shape_cast %497 : vector<2x16xf32> to vector<2x1x16xf32>
    %626 = vector.shape_cast %439 : vector<2x16xf32> to vector<2x1x16xf32>
    %627 = vector.shape_cast %381 : vector<2x16xf32> to vector<2x1x16xf32>
    %628 = vector.shape_cast %323 : vector<2x16xf32> to vector<2x1x16xf32>
    %629 = vector.shape_cast %265 : vector<2x16xf32> to vector<2x1x16xf32>
    %630 = vector.shape_cast %207 : vector<2x16xf32> to vector<2x1x16xf32>
    %631 = tpu.concatenate %623, %624, %625, %626, %627, %628, %629, %630 in 1 : vector<2x1x16xf32>, vector<2x1x16xf32>, vector<2x1x16xf32>, vector<2x1x16xf32>, vector<2x1x16xf32>, vector<2x1x16xf32>, vector<2x1x16xf32>, vector<2x1x16xf32> -> vector<2x8x16xf32>
    %632 = tpu.concatenate %622, %631 in 2 : vector<2x8x16xf32>, vector<2x8x16xf32> -> vector<2x8x32xf32>
    %633 = vector.shape_cast %632 : vector<2x8x32xf32> to vector<16x32xf32>
    %c224 = arith.constant 224 : index
    %c0_122 = arith.constant 0 : index
    %634 = vector.load %arg2[%c224, %c0_122] : memref<320x128xf32, #tpu.memory_space<vmem>>, vector<32x128xf32>
    %cst_123 = arith.constant dense<0.000000e+00> : vector<16x128xf32>
    %635 = tpu.matmul %633, %634, %cst_123 {dimension_numbers = #tpu.dot_dimension_numbers<[1], [0], [0], [1], [0, 0, 1, 1], [], []>} : vector<16x32xf32>, vector<32x128xf32>, vector<16x128xf32> -> vector<16x128xf32>
    %c11 = arith.constant 11 : index
    %c0_124 = arith.constant 0 : index
    %636 = vector.load %arg3[%c11, %c0_124] : memref<16x128xf32, #tpu.memory_space<vmem>>, vector<1x128xf32>
    %637 = vector.broadcast %636 : vector<1x128xf32> to vector<16x128xf32>
    %638 = arith.addf %635, %637 : vector<16x128xf32>
    %639 = vector.shape_cast %638 : vector<16x128xf32> to vector<2x8x128xf32>
    %c256 = arith.constant 256 : index
    %c0_125 = arith.constant 0 : index
    %640 = vector.load %arg2[%c256, %c0_125] : memref<320x128xf32, #tpu.memory_space<vmem>>, vector<16x64xf32>
    %c272 = arith.constant 272 : index
    %c0_126 = arith.constant 0 : index
    %641 = vector.load %arg2[%c272, %c0_126] : memref<320x128xf32, #tpu.memory_space<vmem>>, vector<16x64xf32>
    %cst_127 = arith.constant 0.000000e+00 : f32
    %642 = vector.broadcast %cst_127 : f32 to vector<2x16xf32>
    %cst_128 = arith.constant 0.000000e+00 : f32
    %643 = vector.broadcast %cst_128 : f32 to vector<2x16xf32>
    %cst_129 = arith.constant 0.000000e+00 : f32
    %644 = vector.broadcast %cst_129 : f32 to vector<2x16xf32>
    %cst_130 = arith.constant 0.000000e+00 : f32
    %645 = vector.broadcast %cst_130 : f32 to vector<2x16xf32>
    %646 = vector.extract_strided_slice %639 {offsets = [0, 0, 0], sizes = [2, 1, 64], strides = [1, 1, 1]} : vector<2x8x128xf32> to vector<2x1x64xf32>
    %647 = vector.shape_cast %646 : vector<2x1x64xf32> to vector<2x64xf32>
    %cst_131 = arith.constant dense<0.000000e+00> : vector<2x64xf32>
    %648 = tpu.matmul %642, %640, %cst_131 {dimension_numbers = #tpu.dot_dimension_numbers<[1], [0], [0], [1], [0, 0, 1, 1], [], []>} : vector<2x16xf32>, vector<16x64xf32>, vector<2x64xf32> -> vector<2x64xf32>
    %649 = arith.addf %647, %648 : vector<2x64xf32>
    %650 = vector.extract_strided_slice %639 {offsets = [0, 7, 64], sizes = [2, 1, 64], strides = [1, 1, 1]} : vector<2x8x128xf32> to vector<2x1x64xf32>
    %651 = vector.shape_cast %650 : vector<2x1x64xf32> to vector<2x64xf32>
    %cst_132 = arith.constant dense<0.000000e+00> : vector<2x64xf32>
    %652 = tpu.matmul %644, %641, %cst_132 {dimension_numbers = #tpu.dot_dimension_numbers<[1], [0], [0], [1], [0, 0, 1, 1], [], []>} : vector<2x16xf32>, vector<16x64xf32>, vector<2x64xf32> -> vector<2x64xf32>
    %653 = arith.addf %651, %652 : vector<2x64xf32>
    %654 = vector.extract_strided_slice %649 {offsets = [0, 0], sizes = [2, 16], strides = [1, 1]} : vector<2x64xf32> to vector<2x16xf32>
    %655 = arith.negf %654 : vector<2x16xf32>
    %656 = math.exp %655 : vector<2x16xf32>
    %cst_133 = arith.constant 1.000000e+00 : f32
    %657 = vector.broadcast %cst_133 : f32 to vector<2x16xf32>
    %658 = arith.addf %657, %656 : vector<2x16xf32>
    %659 = arith.divf %657, %658 : vector<2x16xf32>
    %660 = vector.extract_strided_slice %649 {offsets = [0, 16], sizes = [2, 16], strides = [1, 1]} : vector<2x64xf32> to vector<2x16xf32>
    %661 = arith.negf %660 : vector<2x16xf32>
    %662 = math.exp %661 : vector<2x16xf32>
    %cst_134 = arith.constant 1.000000e+00 : f32
    %663 = vector.broadcast %cst_134 : f32 to vector<2x16xf32>
    %664 = arith.addf %663, %662 : vector<2x16xf32>
    %665 = arith.divf %663, %664 : vector<2x16xf32>
    %666 = vector.extract_strided_slice %649 {offsets = [0, 32], sizes = [2, 16], strides = [1, 1]} : vector<2x64xf32> to vector<2x16xf32>
    %667 = math.tanh %666 : vector<2x16xf32>
    %668 = vector.extract_strided_slice %649 {offsets = [0, 48], sizes = [2, 16], strides = [1, 1]} : vector<2x64xf32> to vector<2x16xf32>
    %669 = arith.negf %668 : vector<2x16xf32>
    %670 = math.exp %669 : vector<2x16xf32>
    %cst_135 = arith.constant 1.000000e+00 : f32
    %671 = vector.broadcast %cst_135 : f32 to vector<2x16xf32>
    %672 = arith.addf %671, %670 : vector<2x16xf32>
    %673 = arith.divf %671, %672 : vector<2x16xf32>
    %674 = arith.mulf %665, %643 : vector<2x16xf32>
    %675 = arith.mulf %659, %667 : vector<2x16xf32>
    %676 = arith.addf %674, %675 : vector<2x16xf32>
    %677 = math.tanh %676 : vector<2x16xf32>
    %678 = arith.mulf %673, %677 : vector<2x16xf32>
    %679 = vector.extract_strided_slice %653 {offsets = [0, 0], sizes = [2, 16], strides = [1, 1]} : vector<2x64xf32> to vector<2x16xf32>
    %680 = arith.negf %679 : vector<2x16xf32>
    %681 = math.exp %680 : vector<2x16xf32>
    %cst_136 = arith.constant 1.000000e+00 : f32
    %682 = vector.broadcast %cst_136 : f32 to vector<2x16xf32>
    %683 = arith.addf %682, %681 : vector<2x16xf32>
    %684 = arith.divf %682, %683 : vector<2x16xf32>
    %685 = vector.extract_strided_slice %653 {offsets = [0, 16], sizes = [2, 16], strides = [1, 1]} : vector<2x64xf32> to vector<2x16xf32>
    %686 = arith.negf %685 : vector<2x16xf32>
    %687 = math.exp %686 : vector<2x16xf32>
    %cst_137 = arith.constant 1.000000e+00 : f32
    %688 = vector.broadcast %cst_137 : f32 to vector<2x16xf32>
    %689 = arith.addf %688, %687 : vector<2x16xf32>
    %690 = arith.divf %688, %689 : vector<2x16xf32>
    %691 = vector.extract_strided_slice %653 {offsets = [0, 32], sizes = [2, 16], strides = [1, 1]} : vector<2x64xf32> to vector<2x16xf32>
    %692 = math.tanh %691 : vector<2x16xf32>
    %693 = vector.extract_strided_slice %653 {offsets = [0, 48], sizes = [2, 16], strides = [1, 1]} : vector<2x64xf32> to vector<2x16xf32>
    %694 = arith.negf %693 : vector<2x16xf32>
    %695 = math.exp %694 : vector<2x16xf32>
    %cst_138 = arith.constant 1.000000e+00 : f32
    %696 = vector.broadcast %cst_138 : f32 to vector<2x16xf32>
    %697 = arith.addf %696, %695 : vector<2x16xf32>
    %698 = arith.divf %696, %697 : vector<2x16xf32>
    %699 = arith.mulf %690, %645 : vector<2x16xf32>
    %700 = arith.mulf %684, %692 : vector<2x16xf32>
    %701 = arith.addf %699, %700 : vector<2x16xf32>
    %702 = math.tanh %701 : vector<2x16xf32>
    %703 = arith.mulf %698, %702 : vector<2x16xf32>
    %704 = vector.extract_strided_slice %639 {offsets = [0, 1, 0], sizes = [2, 1, 64], strides = [1, 1, 1]} : vector<2x8x128xf32> to vector<2x1x64xf32>
    %705 = vector.shape_cast %704 : vector<2x1x64xf32> to vector<2x64xf32>
    %cst_139 = arith.constant dense<0.000000e+00> : vector<2x64xf32>
    %706 = tpu.matmul %678, %640, %cst_139 {dimension_numbers = #tpu.dot_dimension_numbers<[1], [0], [0], [1], [0, 0, 1, 1], [], []>} : vector<2x16xf32>, vector<16x64xf32>, vector<2x64xf32> -> vector<2x64xf32>
    %707 = arith.addf %705, %706 : vector<2x64xf32>
    %708 = vector.extract_strided_slice %639 {offsets = [0, 6, 64], sizes = [2, 1, 64], strides = [1, 1, 1]} : vector<2x8x128xf32> to vector<2x1x64xf32>
    %709 = vector.shape_cast %708 : vector<2x1x64xf32> to vector<2x64xf32>
    %cst_140 = arith.constant dense<0.000000e+00> : vector<2x64xf32>
    %710 = tpu.matmul %703, %641, %cst_140 {dimension_numbers = #tpu.dot_dimension_numbers<[1], [0], [0], [1], [0, 0, 1, 1], [], []>} : vector<2x16xf32>, vector<16x64xf32>, vector<2x64xf32> -> vector<2x64xf32>
    %711 = arith.addf %709, %710 : vector<2x64xf32>
    %712 = vector.extract_strided_slice %707 {offsets = [0, 0], sizes = [2, 16], strides = [1, 1]} : vector<2x64xf32> to vector<2x16xf32>
    %713 = arith.negf %712 : vector<2x16xf32>
    %714 = math.exp %713 : vector<2x16xf32>
    %cst_141 = arith.constant 1.000000e+00 : f32
    %715 = vector.broadcast %cst_141 : f32 to vector<2x16xf32>
    %716 = arith.addf %715, %714 : vector<2x16xf32>
    %717 = arith.divf %715, %716 : vector<2x16xf32>
    %718 = vector.extract_strided_slice %707 {offsets = [0, 16], sizes = [2, 16], strides = [1, 1]} : vector<2x64xf32> to vector<2x16xf32>
    %719 = arith.negf %718 : vector<2x16xf32>
    %720 = math.exp %719 : vector<2x16xf32>
    %cst_142 = arith.constant 1.000000e+00 : f32
    %721 = vector.broadcast %cst_142 : f32 to vector<2x16xf32>
    %722 = arith.addf %721, %720 : vector<2x16xf32>
    %723 = arith.divf %721, %722 : vector<2x16xf32>
    %724 = vector.extract_strided_slice %707 {offsets = [0, 32], sizes = [2, 16], strides = [1, 1]} : vector<2x64xf32> to vector<2x16xf32>
    %725 = math.tanh %724 : vector<2x16xf32>
    %726 = vector.extract_strided_slice %707 {offsets = [0, 48], sizes = [2, 16], strides = [1, 1]} : vector<2x64xf32> to vector<2x16xf32>
    %727 = arith.negf %726 : vector<2x16xf32>
    %728 = math.exp %727 : vector<2x16xf32>
    %cst_143 = arith.constant 1.000000e+00 : f32
    %729 = vector.broadcast %cst_143 : f32 to vector<2x16xf32>
    %730 = arith.addf %729, %728 : vector<2x16xf32>
    %731 = arith.divf %729, %730 : vector<2x16xf32>
    %732 = arith.mulf %723, %676 : vector<2x16xf32>
    %733 = arith.mulf %717, %725 : vector<2x16xf32>
    %734 = arith.addf %732, %733 : vector<2x16xf32>
    %735 = math.tanh %734 : vector<2x16xf32>
    %736 = arith.mulf %731, %735 : vector<2x16xf32>
    %737 = vector.extract_strided_slice %711 {offsets = [0, 0], sizes = [2, 16], strides = [1, 1]} : vector<2x64xf32> to vector<2x16xf32>
    %738 = arith.negf %737 : vector<2x16xf32>
    %739 = math.exp %738 : vector<2x16xf32>
    %cst_144 = arith.constant 1.000000e+00 : f32
    %740 = vector.broadcast %cst_144 : f32 to vector<2x16xf32>
    %741 = arith.addf %740, %739 : vector<2x16xf32>
    %742 = arith.divf %740, %741 : vector<2x16xf32>
    %743 = vector.extract_strided_slice %711 {offsets = [0, 16], sizes = [2, 16], strides = [1, 1]} : vector<2x64xf32> to vector<2x16xf32>
    %744 = arith.negf %743 : vector<2x16xf32>
    %745 = math.exp %744 : vector<2x16xf32>
    %cst_145 = arith.constant 1.000000e+00 : f32
    %746 = vector.broadcast %cst_145 : f32 to vector<2x16xf32>
    %747 = arith.addf %746, %745 : vector<2x16xf32>
    %748 = arith.divf %746, %747 : vector<2x16xf32>
    %749 = vector.extract_strided_slice %711 {offsets = [0, 32], sizes = [2, 16], strides = [1, 1]} : vector<2x64xf32> to vector<2x16xf32>
    %750 = math.tanh %749 : vector<2x16xf32>
    %751 = vector.extract_strided_slice %711 {offsets = [0, 48], sizes = [2, 16], strides = [1, 1]} : vector<2x64xf32> to vector<2x16xf32>
    %752 = arith.negf %751 : vector<2x16xf32>
    %753 = math.exp %752 : vector<2x16xf32>
    %cst_146 = arith.constant 1.000000e+00 : f32
    %754 = vector.broadcast %cst_146 : f32 to vector<2x16xf32>
    %755 = arith.addf %754, %753 : vector<2x16xf32>
    %756 = arith.divf %754, %755 : vector<2x16xf32>
    %757 = arith.mulf %748, %701 : vector<2x16xf32>
    %758 = arith.mulf %742, %750 : vector<2x16xf32>
    %759 = arith.addf %757, %758 : vector<2x16xf32>
    %760 = math.tanh %759 : vector<2x16xf32>
    %761 = arith.mulf %756, %760 : vector<2x16xf32>
    %762 = vector.extract_strided_slice %639 {offsets = [0, 2, 0], sizes = [2, 1, 64], strides = [1, 1, 1]} : vector<2x8x128xf32> to vector<2x1x64xf32>
    %763 = vector.shape_cast %762 : vector<2x1x64xf32> to vector<2x64xf32>
    %cst_147 = arith.constant dense<0.000000e+00> : vector<2x64xf32>
    %764 = tpu.matmul %736, %640, %cst_147 {dimension_numbers = #tpu.dot_dimension_numbers<[1], [0], [0], [1], [0, 0, 1, 1], [], []>} : vector<2x16xf32>, vector<16x64xf32>, vector<2x64xf32> -> vector<2x64xf32>
    %765 = arith.addf %763, %764 : vector<2x64xf32>
    %766 = vector.extract_strided_slice %639 {offsets = [0, 5, 64], sizes = [2, 1, 64], strides = [1, 1, 1]} : vector<2x8x128xf32> to vector<2x1x64xf32>
    %767 = vector.shape_cast %766 : vector<2x1x64xf32> to vector<2x64xf32>
    %cst_148 = arith.constant dense<0.000000e+00> : vector<2x64xf32>
    %768 = tpu.matmul %761, %641, %cst_148 {dimension_numbers = #tpu.dot_dimension_numbers<[1], [0], [0], [1], [0, 0, 1, 1], [], []>} : vector<2x16xf32>, vector<16x64xf32>, vector<2x64xf32> -> vector<2x64xf32>
    %769 = arith.addf %767, %768 : vector<2x64xf32>
    %770 = vector.extract_strided_slice %765 {offsets = [0, 0], sizes = [2, 16], strides = [1, 1]} : vector<2x64xf32> to vector<2x16xf32>
    %771 = arith.negf %770 : vector<2x16xf32>
    %772 = math.exp %771 : vector<2x16xf32>
    %cst_149 = arith.constant 1.000000e+00 : f32
    %773 = vector.broadcast %cst_149 : f32 to vector<2x16xf32>
    %774 = arith.addf %773, %772 : vector<2x16xf32>
    %775 = arith.divf %773, %774 : vector<2x16xf32>
    %776 = vector.extract_strided_slice %765 {offsets = [0, 16], sizes = [2, 16], strides = [1, 1]} : vector<2x64xf32> to vector<2x16xf32>
    %777 = arith.negf %776 : vector<2x16xf32>
    %778 = math.exp %777 : vector<2x16xf32>
    %cst_150 = arith.constant 1.000000e+00 : f32
    %779 = vector.broadcast %cst_150 : f32 to vector<2x16xf32>
    %780 = arith.addf %779, %778 : vector<2x16xf32>
    %781 = arith.divf %779, %780 : vector<2x16xf32>
    %782 = vector.extract_strided_slice %765 {offsets = [0, 32], sizes = [2, 16], strides = [1, 1]} : vector<2x64xf32> to vector<2x16xf32>
    %783 = math.tanh %782 : vector<2x16xf32>
    %784 = vector.extract_strided_slice %765 {offsets = [0, 48], sizes = [2, 16], strides = [1, 1]} : vector<2x64xf32> to vector<2x16xf32>
    %785 = arith.negf %784 : vector<2x16xf32>
    %786 = math.exp %785 : vector<2x16xf32>
    %cst_151 = arith.constant 1.000000e+00 : f32
    %787 = vector.broadcast %cst_151 : f32 to vector<2x16xf32>
    %788 = arith.addf %787, %786 : vector<2x16xf32>
    %789 = arith.divf %787, %788 : vector<2x16xf32>
    %790 = arith.mulf %781, %734 : vector<2x16xf32>
    %791 = arith.mulf %775, %783 : vector<2x16xf32>
    %792 = arith.addf %790, %791 : vector<2x16xf32>
    %793 = math.tanh %792 : vector<2x16xf32>
    %794 = arith.mulf %789, %793 : vector<2x16xf32>
    %795 = vector.extract_strided_slice %769 {offsets = [0, 0], sizes = [2, 16], strides = [1, 1]} : vector<2x64xf32> to vector<2x16xf32>
    %796 = arith.negf %795 : vector<2x16xf32>
    %797 = math.exp %796 : vector<2x16xf32>
    %cst_152 = arith.constant 1.000000e+00 : f32
    %798 = vector.broadcast %cst_152 : f32 to vector<2x16xf32>
    %799 = arith.addf %798, %797 : vector<2x16xf32>
    %800 = arith.divf %798, %799 : vector<2x16xf32>
    %801 = vector.extract_strided_slice %769 {offsets = [0, 16], sizes = [2, 16], strides = [1, 1]} : vector<2x64xf32> to vector<2x16xf32>
    %802 = arith.negf %801 : vector<2x16xf32>
    %803 = math.exp %802 : vector<2x16xf32>
    %cst_153 = arith.constant 1.000000e+00 : f32
    %804 = vector.broadcast %cst_153 : f32 to vector<2x16xf32>
    %805 = arith.addf %804, %803 : vector<2x16xf32>
    %806 = arith.divf %804, %805 : vector<2x16xf32>
    %807 = vector.extract_strided_slice %769 {offsets = [0, 32], sizes = [2, 16], strides = [1, 1]} : vector<2x64xf32> to vector<2x16xf32>
    %808 = math.tanh %807 : vector<2x16xf32>
    %809 = vector.extract_strided_slice %769 {offsets = [0, 48], sizes = [2, 16], strides = [1, 1]} : vector<2x64xf32> to vector<2x16xf32>
    %810 = arith.negf %809 : vector<2x16xf32>
    %811 = math.exp %810 : vector<2x16xf32>
    %cst_154 = arith.constant 1.000000e+00 : f32
    %812 = vector.broadcast %cst_154 : f32 to vector<2x16xf32>
    %813 = arith.addf %812, %811 : vector<2x16xf32>
    %814 = arith.divf %812, %813 : vector<2x16xf32>
    %815 = arith.mulf %806, %759 : vector<2x16xf32>
    %816 = arith.mulf %800, %808 : vector<2x16xf32>
    %817 = arith.addf %815, %816 : vector<2x16xf32>
    %818 = math.tanh %817 : vector<2x16xf32>
    %819 = arith.mulf %814, %818 : vector<2x16xf32>
    %820 = vector.extract_strided_slice %639 {offsets = [0, 3, 0], sizes = [2, 1, 64], strides = [1, 1, 1]} : vector<2x8x128xf32> to vector<2x1x64xf32>
    %821 = vector.shape_cast %820 : vector<2x1x64xf32> to vector<2x64xf32>
    %cst_155 = arith.constant dense<0.000000e+00> : vector<2x64xf32>
    %822 = tpu.matmul %794, %640, %cst_155 {dimension_numbers = #tpu.dot_dimension_numbers<[1], [0], [0], [1], [0, 0, 1, 1], [], []>} : vector<2x16xf32>, vector<16x64xf32>, vector<2x64xf32> -> vector<2x64xf32>
    %823 = arith.addf %821, %822 : vector<2x64xf32>
    %824 = vector.extract_strided_slice %639 {offsets = [0, 4, 64], sizes = [2, 1, 64], strides = [1, 1, 1]} : vector<2x8x128xf32> to vector<2x1x64xf32>
    %825 = vector.shape_cast %824 : vector<2x1x64xf32> to vector<2x64xf32>
    %cst_156 = arith.constant dense<0.000000e+00> : vector<2x64xf32>
    %826 = tpu.matmul %819, %641, %cst_156 {dimension_numbers = #tpu.dot_dimension_numbers<[1], [0], [0], [1], [0, 0, 1, 1], [], []>} : vector<2x16xf32>, vector<16x64xf32>, vector<2x64xf32> -> vector<2x64xf32>
    %827 = arith.addf %825, %826 : vector<2x64xf32>
    %828 = vector.extract_strided_slice %823 {offsets = [0, 0], sizes = [2, 16], strides = [1, 1]} : vector<2x64xf32> to vector<2x16xf32>
    %829 = arith.negf %828 : vector<2x16xf32>
    %830 = math.exp %829 : vector<2x16xf32>
    %cst_157 = arith.constant 1.000000e+00 : f32
    %831 = vector.broadcast %cst_157 : f32 to vector<2x16xf32>
    %832 = arith.addf %831, %830 : vector<2x16xf32>
    %833 = arith.divf %831, %832 : vector<2x16xf32>
    %834 = vector.extract_strided_slice %823 {offsets = [0, 16], sizes = [2, 16], strides = [1, 1]} : vector<2x64xf32> to vector<2x16xf32>
    %835 = arith.negf %834 : vector<2x16xf32>
    %836 = math.exp %835 : vector<2x16xf32>
    %cst_158 = arith.constant 1.000000e+00 : f32
    %837 = vector.broadcast %cst_158 : f32 to vector<2x16xf32>
    %838 = arith.addf %837, %836 : vector<2x16xf32>
    %839 = arith.divf %837, %838 : vector<2x16xf32>
    %840 = vector.extract_strided_slice %823 {offsets = [0, 32], sizes = [2, 16], strides = [1, 1]} : vector<2x64xf32> to vector<2x16xf32>
    %841 = math.tanh %840 : vector<2x16xf32>
    %842 = vector.extract_strided_slice %823 {offsets = [0, 48], sizes = [2, 16], strides = [1, 1]} : vector<2x64xf32> to vector<2x16xf32>
    %843 = arith.negf %842 : vector<2x16xf32>
    %844 = math.exp %843 : vector<2x16xf32>
    %cst_159 = arith.constant 1.000000e+00 : f32
    %845 = vector.broadcast %cst_159 : f32 to vector<2x16xf32>
    %846 = arith.addf %845, %844 : vector<2x16xf32>
    %847 = arith.divf %845, %846 : vector<2x16xf32>
    %848 = arith.mulf %839, %792 : vector<2x16xf32>
    %849 = arith.mulf %833, %841 : vector<2x16xf32>
    %850 = arith.addf %848, %849 : vector<2x16xf32>
    %851 = math.tanh %850 : vector<2x16xf32>
    %852 = arith.mulf %847, %851 : vector<2x16xf32>
    %853 = vector.extract_strided_slice %827 {offsets = [0, 0], sizes = [2, 16], strides = [1, 1]} : vector<2x64xf32> to vector<2x16xf32>
    %854 = arith.negf %853 : vector<2x16xf32>
    %855 = math.exp %854 : vector<2x16xf32>
    %cst_160 = arith.constant 1.000000e+00 : f32
    %856 = vector.broadcast %cst_160 : f32 to vector<2x16xf32>
    %857 = arith.addf %856, %855 : vector<2x16xf32>
    %858 = arith.divf %856, %857 : vector<2x16xf32>
    %859 = vector.extract_strided_slice %827 {offsets = [0, 16], sizes = [2, 16], strides = [1, 1]} : vector<2x64xf32> to vector<2x16xf32>
    %860 = arith.negf %859 : vector<2x16xf32>
    %861 = math.exp %860 : vector<2x16xf32>
    %cst_161 = arith.constant 1.000000e+00 : f32
    %862 = vector.broadcast %cst_161 : f32 to vector<2x16xf32>
    %863 = arith.addf %862, %861 : vector<2x16xf32>
    %864 = arith.divf %862, %863 : vector<2x16xf32>
    %865 = vector.extract_strided_slice %827 {offsets = [0, 32], sizes = [2, 16], strides = [1, 1]} : vector<2x64xf32> to vector<2x16xf32>
    %866 = math.tanh %865 : vector<2x16xf32>
    %867 = vector.extract_strided_slice %827 {offsets = [0, 48], sizes = [2, 16], strides = [1, 1]} : vector<2x64xf32> to vector<2x16xf32>
    %868 = arith.negf %867 : vector<2x16xf32>
    %869 = math.exp %868 : vector<2x16xf32>
    %cst_162 = arith.constant 1.000000e+00 : f32
    %870 = vector.broadcast %cst_162 : f32 to vector<2x16xf32>
    %871 = arith.addf %870, %869 : vector<2x16xf32>
    %872 = arith.divf %870, %871 : vector<2x16xf32>
    %873 = arith.mulf %864, %817 : vector<2x16xf32>
    %874 = arith.mulf %858, %866 : vector<2x16xf32>
    %875 = arith.addf %873, %874 : vector<2x16xf32>
    %876 = math.tanh %875 : vector<2x16xf32>
    %877 = arith.mulf %872, %876 : vector<2x16xf32>
    %878 = vector.extract_strided_slice %639 {offsets = [0, 4, 0], sizes = [2, 1, 64], strides = [1, 1, 1]} : vector<2x8x128xf32> to vector<2x1x64xf32>
    %879 = vector.shape_cast %878 : vector<2x1x64xf32> to vector<2x64xf32>
    %cst_163 = arith.constant dense<0.000000e+00> : vector<2x64xf32>
    %880 = tpu.matmul %852, %640, %cst_163 {dimension_numbers = #tpu.dot_dimension_numbers<[1], [0], [0], [1], [0, 0, 1, 1], [], []>} : vector<2x16xf32>, vector<16x64xf32>, vector<2x64xf32> -> vector<2x64xf32>
    %881 = arith.addf %879, %880 : vector<2x64xf32>
    %882 = vector.extract_strided_slice %639 {offsets = [0, 3, 64], sizes = [2, 1, 64], strides = [1, 1, 1]} : vector<2x8x128xf32> to vector<2x1x64xf32>
    %883 = vector.shape_cast %882 : vector<2x1x64xf32> to vector<2x64xf32>
    %cst_164 = arith.constant dense<0.000000e+00> : vector<2x64xf32>
    %884 = tpu.matmul %877, %641, %cst_164 {dimension_numbers = #tpu.dot_dimension_numbers<[1], [0], [0], [1], [0, 0, 1, 1], [], []>} : vector<2x16xf32>, vector<16x64xf32>, vector<2x64xf32> -> vector<2x64xf32>
    %885 = arith.addf %883, %884 : vector<2x64xf32>
    %886 = vector.extract_strided_slice %881 {offsets = [0, 0], sizes = [2, 16], strides = [1, 1]} : vector<2x64xf32> to vector<2x16xf32>
    %887 = arith.negf %886 : vector<2x16xf32>
    %888 = math.exp %887 : vector<2x16xf32>
    %cst_165 = arith.constant 1.000000e+00 : f32
    %889 = vector.broadcast %cst_165 : f32 to vector<2x16xf32>
    %890 = arith.addf %889, %888 : vector<2x16xf32>
    %891 = arith.divf %889, %890 : vector<2x16xf32>
    %892 = vector.extract_strided_slice %881 {offsets = [0, 16], sizes = [2, 16], strides = [1, 1]} : vector<2x64xf32> to vector<2x16xf32>
    %893 = arith.negf %892 : vector<2x16xf32>
    %894 = math.exp %893 : vector<2x16xf32>
    %cst_166 = arith.constant 1.000000e+00 : f32
    %895 = vector.broadcast %cst_166 : f32 to vector<2x16xf32>
    %896 = arith.addf %895, %894 : vector<2x16xf32>
    %897 = arith.divf %895, %896 : vector<2x16xf32>
    %898 = vector.extract_strided_slice %881 {offsets = [0, 32], sizes = [2, 16], strides = [1, 1]} : vector<2x64xf32> to vector<2x16xf32>
    %899 = math.tanh %898 : vector<2x16xf32>
    %900 = vector.extract_strided_slice %881 {offsets = [0, 48], sizes = [2, 16], strides = [1, 1]} : vector<2x64xf32> to vector<2x16xf32>
    %901 = arith.negf %900 : vector<2x16xf32>
    %902 = math.exp %901 : vector<2x16xf32>
    %cst_167 = arith.constant 1.000000e+00 : f32
    %903 = vector.broadcast %cst_167 : f32 to vector<2x16xf32>
    %904 = arith.addf %903, %902 : vector<2x16xf32>
    %905 = arith.divf %903, %904 : vector<2x16xf32>
    %906 = arith.mulf %897, %850 : vector<2x16xf32>
    %907 = arith.mulf %891, %899 : vector<2x16xf32>
    %908 = arith.addf %906, %907 : vector<2x16xf32>
    %909 = math.tanh %908 : vector<2x16xf32>
    %910 = arith.mulf %905, %909 : vector<2x16xf32>
    %911 = vector.extract_strided_slice %885 {offsets = [0, 0], sizes = [2, 16], strides = [1, 1]} : vector<2x64xf32> to vector<2x16xf32>
    %912 = arith.negf %911 : vector<2x16xf32>
    %913 = math.exp %912 : vector<2x16xf32>
    %cst_168 = arith.constant 1.000000e+00 : f32
    %914 = vector.broadcast %cst_168 : f32 to vector<2x16xf32>
    %915 = arith.addf %914, %913 : vector<2x16xf32>
    %916 = arith.divf %914, %915 : vector<2x16xf32>
    %917 = vector.extract_strided_slice %885 {offsets = [0, 16], sizes = [2, 16], strides = [1, 1]} : vector<2x64xf32> to vector<2x16xf32>
    %918 = arith.negf %917 : vector<2x16xf32>
    %919 = math.exp %918 : vector<2x16xf32>
    %cst_169 = arith.constant 1.000000e+00 : f32
    %920 = vector.broadcast %cst_169 : f32 to vector<2x16xf32>
    %921 = arith.addf %920, %919 : vector<2x16xf32>
    %922 = arith.divf %920, %921 : vector<2x16xf32>
    %923 = vector.extract_strided_slice %885 {offsets = [0, 32], sizes = [2, 16], strides = [1, 1]} : vector<2x64xf32> to vector<2x16xf32>
    %924 = math.tanh %923 : vector<2x16xf32>
    %925 = vector.extract_strided_slice %885 {offsets = [0, 48], sizes = [2, 16], strides = [1, 1]} : vector<2x64xf32> to vector<2x16xf32>
    %926 = arith.negf %925 : vector<2x16xf32>
    %927 = math.exp %926 : vector<2x16xf32>
    %cst_170 = arith.constant 1.000000e+00 : f32
    %928 = vector.broadcast %cst_170 : f32 to vector<2x16xf32>
    %929 = arith.addf %928, %927 : vector<2x16xf32>
    %930 = arith.divf %928, %929 : vector<2x16xf32>
    %931 = arith.mulf %922, %875 : vector<2x16xf32>
    %932 = arith.mulf %916, %924 : vector<2x16xf32>
    %933 = arith.addf %931, %932 : vector<2x16xf32>
    %934 = math.tanh %933 : vector<2x16xf32>
    %935 = arith.mulf %930, %934 : vector<2x16xf32>
    %936 = vector.extract_strided_slice %639 {offsets = [0, 5, 0], sizes = [2, 1, 64], strides = [1, 1, 1]} : vector<2x8x128xf32> to vector<2x1x64xf32>
    %937 = vector.shape_cast %936 : vector<2x1x64xf32> to vector<2x64xf32>
    %cst_171 = arith.constant dense<0.000000e+00> : vector<2x64xf32>
    %938 = tpu.matmul %910, %640, %cst_171 {dimension_numbers = #tpu.dot_dimension_numbers<[1], [0], [0], [1], [0, 0, 1, 1], [], []>} : vector<2x16xf32>, vector<16x64xf32>, vector<2x64xf32> -> vector<2x64xf32>
    %939 = arith.addf %937, %938 : vector<2x64xf32>
    %940 = vector.extract_strided_slice %639 {offsets = [0, 2, 64], sizes = [2, 1, 64], strides = [1, 1, 1]} : vector<2x8x128xf32> to vector<2x1x64xf32>
    %941 = vector.shape_cast %940 : vector<2x1x64xf32> to vector<2x64xf32>
    %cst_172 = arith.constant dense<0.000000e+00> : vector<2x64xf32>
    %942 = tpu.matmul %935, %641, %cst_172 {dimension_numbers = #tpu.dot_dimension_numbers<[1], [0], [0], [1], [0, 0, 1, 1], [], []>} : vector<2x16xf32>, vector<16x64xf32>, vector<2x64xf32> -> vector<2x64xf32>
    %943 = arith.addf %941, %942 : vector<2x64xf32>
    %944 = vector.extract_strided_slice %939 {offsets = [0, 0], sizes = [2, 16], strides = [1, 1]} : vector<2x64xf32> to vector<2x16xf32>
    %945 = arith.negf %944 : vector<2x16xf32>
    %946 = math.exp %945 : vector<2x16xf32>
    %cst_173 = arith.constant 1.000000e+00 : f32
    %947 = vector.broadcast %cst_173 : f32 to vector<2x16xf32>
    %948 = arith.addf %947, %946 : vector<2x16xf32>
    %949 = arith.divf %947, %948 : vector<2x16xf32>
    %950 = vector.extract_strided_slice %939 {offsets = [0, 16], sizes = [2, 16], strides = [1, 1]} : vector<2x64xf32> to vector<2x16xf32>
    %951 = arith.negf %950 : vector<2x16xf32>
    %952 = math.exp %951 : vector<2x16xf32>
    %cst_174 = arith.constant 1.000000e+00 : f32
    %953 = vector.broadcast %cst_174 : f32 to vector<2x16xf32>
    %954 = arith.addf %953, %952 : vector<2x16xf32>
    %955 = arith.divf %953, %954 : vector<2x16xf32>
    %956 = vector.extract_strided_slice %939 {offsets = [0, 32], sizes = [2, 16], strides = [1, 1]} : vector<2x64xf32> to vector<2x16xf32>
    %957 = math.tanh %956 : vector<2x16xf32>
    %958 = vector.extract_strided_slice %939 {offsets = [0, 48], sizes = [2, 16], strides = [1, 1]} : vector<2x64xf32> to vector<2x16xf32>
    %959 = arith.negf %958 : vector<2x16xf32>
    %960 = math.exp %959 : vector<2x16xf32>
    %cst_175 = arith.constant 1.000000e+00 : f32
    %961 = vector.broadcast %cst_175 : f32 to vector<2x16xf32>
    %962 = arith.addf %961, %960 : vector<2x16xf32>
    %963 = arith.divf %961, %962 : vector<2x16xf32>
    %964 = arith.mulf %955, %908 : vector<2x16xf32>
    %965 = arith.mulf %949, %957 : vector<2x16xf32>
    %966 = arith.addf %964, %965 : vector<2x16xf32>
    %967 = math.tanh %966 : vector<2x16xf32>
    %968 = arith.mulf %963, %967 : vector<2x16xf32>
    %969 = vector.extract_strided_slice %943 {offsets = [0, 0], sizes = [2, 16], strides = [1, 1]} : vector<2x64xf32> to vector<2x16xf32>
    %970 = arith.negf %969 : vector<2x16xf32>
    %971 = math.exp %970 : vector<2x16xf32>
    %cst_176 = arith.constant 1.000000e+00 : f32
    %972 = vector.broadcast %cst_176 : f32 to vector<2x16xf32>
    %973 = arith.addf %972, %971 : vector<2x16xf32>
    %974 = arith.divf %972, %973 : vector<2x16xf32>
    %975 = vector.extract_strided_slice %943 {offsets = [0, 16], sizes = [2, 16], strides = [1, 1]} : vector<2x64xf32> to vector<2x16xf32>
    %976 = arith.negf %975 : vector<2x16xf32>
    %977 = math.exp %976 : vector<2x16xf32>
    %cst_177 = arith.constant 1.000000e+00 : f32
    %978 = vector.broadcast %cst_177 : f32 to vector<2x16xf32>
    %979 = arith.addf %978, %977 : vector<2x16xf32>
    %980 = arith.divf %978, %979 : vector<2x16xf32>
    %981 = vector.extract_strided_slice %943 {offsets = [0, 32], sizes = [2, 16], strides = [1, 1]} : vector<2x64xf32> to vector<2x16xf32>
    %982 = math.tanh %981 : vector<2x16xf32>
    %983 = vector.extract_strided_slice %943 {offsets = [0, 48], sizes = [2, 16], strides = [1, 1]} : vector<2x64xf32> to vector<2x16xf32>
    %984 = arith.negf %983 : vector<2x16xf32>
    %985 = math.exp %984 : vector<2x16xf32>
    %cst_178 = arith.constant 1.000000e+00 : f32
    %986 = vector.broadcast %cst_178 : f32 to vector<2x16xf32>
    %987 = arith.addf %986, %985 : vector<2x16xf32>
    %988 = arith.divf %986, %987 : vector<2x16xf32>
    %989 = arith.mulf %980, %933 : vector<2x16xf32>
    %990 = arith.mulf %974, %982 : vector<2x16xf32>
    %991 = arith.addf %989, %990 : vector<2x16xf32>
    %992 = math.tanh %991 : vector<2x16xf32>
    %993 = arith.mulf %988, %992 : vector<2x16xf32>
    %994 = vector.extract_strided_slice %639 {offsets = [0, 6, 0], sizes = [2, 1, 64], strides = [1, 1, 1]} : vector<2x8x128xf32> to vector<2x1x64xf32>
    %995 = vector.shape_cast %994 : vector<2x1x64xf32> to vector<2x64xf32>
    %cst_179 = arith.constant dense<0.000000e+00> : vector<2x64xf32>
    %996 = tpu.matmul %968, %640, %cst_179 {dimension_numbers = #tpu.dot_dimension_numbers<[1], [0], [0], [1], [0, 0, 1, 1], [], []>} : vector<2x16xf32>, vector<16x64xf32>, vector<2x64xf32> -> vector<2x64xf32>
    %997 = arith.addf %995, %996 : vector<2x64xf32>
    %998 = vector.extract_strided_slice %639 {offsets = [0, 1, 64], sizes = [2, 1, 64], strides = [1, 1, 1]} : vector<2x8x128xf32> to vector<2x1x64xf32>
    %999 = vector.shape_cast %998 : vector<2x1x64xf32> to vector<2x64xf32>
    %cst_180 = arith.constant dense<0.000000e+00> : vector<2x64xf32>
    %1000 = tpu.matmul %993, %641, %cst_180 {dimension_numbers = #tpu.dot_dimension_numbers<[1], [0], [0], [1], [0, 0, 1, 1], [], []>} : vector<2x16xf32>, vector<16x64xf32>, vector<2x64xf32> -> vector<2x64xf32>
    %1001 = arith.addf %999, %1000 : vector<2x64xf32>
    %1002 = vector.extract_strided_slice %997 {offsets = [0, 0], sizes = [2, 16], strides = [1, 1]} : vector<2x64xf32> to vector<2x16xf32>
    %1003 = arith.negf %1002 : vector<2x16xf32>
    %1004 = math.exp %1003 : vector<2x16xf32>
    %cst_181 = arith.constant 1.000000e+00 : f32
    %1005 = vector.broadcast %cst_181 : f32 to vector<2x16xf32>
    %1006 = arith.addf %1005, %1004 : vector<2x16xf32>
    %1007 = arith.divf %1005, %1006 : vector<2x16xf32>
    %1008 = vector.extract_strided_slice %997 {offsets = [0, 16], sizes = [2, 16], strides = [1, 1]} : vector<2x64xf32> to vector<2x16xf32>
    %1009 = arith.negf %1008 : vector<2x16xf32>
    %1010 = math.exp %1009 : vector<2x16xf32>
    %cst_182 = arith.constant 1.000000e+00 : f32
    %1011 = vector.broadcast %cst_182 : f32 to vector<2x16xf32>
    %1012 = arith.addf %1011, %1010 : vector<2x16xf32>
    %1013 = arith.divf %1011, %1012 : vector<2x16xf32>
    %1014 = vector.extract_strided_slice %997 {offsets = [0, 32], sizes = [2, 16], strides = [1, 1]} : vector<2x64xf32> to vector<2x16xf32>
    %1015 = math.tanh %1014 : vector<2x16xf32>
    %1016 = vector.extract_strided_slice %997 {offsets = [0, 48], sizes = [2, 16], strides = [1, 1]} : vector<2x64xf32> to vector<2x16xf32>
    %1017 = arith.negf %1016 : vector<2x16xf32>
    %1018 = math.exp %1017 : vector<2x16xf32>
    %cst_183 = arith.constant 1.000000e+00 : f32
    %1019 = vector.broadcast %cst_183 : f32 to vector<2x16xf32>
    %1020 = arith.addf %1019, %1018 : vector<2x16xf32>
    %1021 = arith.divf %1019, %1020 : vector<2x16xf32>
    %1022 = arith.mulf %1013, %966 : vector<2x16xf32>
    %1023 = arith.mulf %1007, %1015 : vector<2x16xf32>
    %1024 = arith.addf %1022, %1023 : vector<2x16xf32>
    %1025 = math.tanh %1024 : vector<2x16xf32>
    %1026 = arith.mulf %1021, %1025 : vector<2x16xf32>
    %1027 = vector.extract_strided_slice %1001 {offsets = [0, 0], sizes = [2, 16], strides = [1, 1]} : vector<2x64xf32> to vector<2x16xf32>
    %1028 = arith.negf %1027 : vector<2x16xf32>
    %1029 = math.exp %1028 : vector<2x16xf32>
    %cst_184 = arith.constant 1.000000e+00 : f32
    %1030 = vector.broadcast %cst_184 : f32 to vector<2x16xf32>
    %1031 = arith.addf %1030, %1029 : vector<2x16xf32>
    %1032 = arith.divf %1030, %1031 : vector<2x16xf32>
    %1033 = vector.extract_strided_slice %1001 {offsets = [0, 16], sizes = [2, 16], strides = [1, 1]} : vector<2x64xf32> to vector<2x16xf32>
    %1034 = arith.negf %1033 : vector<2x16xf32>
    %1035 = math.exp %1034 : vector<2x16xf32>
    %cst_185 = arith.constant 1.000000e+00 : f32
    %1036 = vector.broadcast %cst_185 : f32 to vector<2x16xf32>
    %1037 = arith.addf %1036, %1035 : vector<2x16xf32>
    %1038 = arith.divf %1036, %1037 : vector<2x16xf32>
    %1039 = vector.extract_strided_slice %1001 {offsets = [0, 32], sizes = [2, 16], strides = [1, 1]} : vector<2x64xf32> to vector<2x16xf32>
    %1040 = math.tanh %1039 : vector<2x16xf32>
    %1041 = vector.extract_strided_slice %1001 {offsets = [0, 48], sizes = [2, 16], strides = [1, 1]} : vector<2x64xf32> to vector<2x16xf32>
    %1042 = arith.negf %1041 : vector<2x16xf32>
    %1043 = math.exp %1042 : vector<2x16xf32>
    %cst_186 = arith.constant 1.000000e+00 : f32
    %1044 = vector.broadcast %cst_186 : f32 to vector<2x16xf32>
    %1045 = arith.addf %1044, %1043 : vector<2x16xf32>
    %1046 = arith.divf %1044, %1045 : vector<2x16xf32>
    %1047 = arith.mulf %1038, %991 : vector<2x16xf32>
    %1048 = arith.mulf %1032, %1040 : vector<2x16xf32>
    %1049 = arith.addf %1047, %1048 : vector<2x16xf32>
    %1050 = math.tanh %1049 : vector<2x16xf32>
    %1051 = arith.mulf %1046, %1050 : vector<2x16xf32>
    %1052 = vector.extract_strided_slice %639 {offsets = [0, 7, 0], sizes = [2, 1, 64], strides = [1, 1, 1]} : vector<2x8x128xf32> to vector<2x1x64xf32>
    %1053 = vector.shape_cast %1052 : vector<2x1x64xf32> to vector<2x64xf32>
    %cst_187 = arith.constant dense<0.000000e+00> : vector<2x64xf32>
    %1054 = tpu.matmul %1026, %640, %cst_187 {dimension_numbers = #tpu.dot_dimension_numbers<[1], [0], [0], [1], [0, 0, 1, 1], [], []>} : vector<2x16xf32>, vector<16x64xf32>, vector<2x64xf32> -> vector<2x64xf32>
    %1055 = arith.addf %1053, %1054 : vector<2x64xf32>
    %1056 = vector.extract_strided_slice %639 {offsets = [0, 0, 64], sizes = [2, 1, 64], strides = [1, 1, 1]} : vector<2x8x128xf32> to vector<2x1x64xf32>
    %1057 = vector.shape_cast %1056 : vector<2x1x64xf32> to vector<2x64xf32>
    %cst_188 = arith.constant dense<0.000000e+00> : vector<2x64xf32>
    %1058 = tpu.matmul %1051, %641, %cst_188 {dimension_numbers = #tpu.dot_dimension_numbers<[1], [0], [0], [1], [0, 0, 1, 1], [], []>} : vector<2x16xf32>, vector<16x64xf32>, vector<2x64xf32> -> vector<2x64xf32>
    %1059 = arith.addf %1057, %1058 : vector<2x64xf32>
    %1060 = vector.extract_strided_slice %1055 {offsets = [0, 0], sizes = [2, 16], strides = [1, 1]} : vector<2x64xf32> to vector<2x16xf32>
    %1061 = arith.negf %1060 : vector<2x16xf32>
    %1062 = math.exp %1061 : vector<2x16xf32>
    %cst_189 = arith.constant 1.000000e+00 : f32
    %1063 = vector.broadcast %cst_189 : f32 to vector<2x16xf32>
    %1064 = arith.addf %1063, %1062 : vector<2x16xf32>
    %1065 = arith.divf %1063, %1064 : vector<2x16xf32>
    %1066 = vector.extract_strided_slice %1055 {offsets = [0, 16], sizes = [2, 16], strides = [1, 1]} : vector<2x64xf32> to vector<2x16xf32>
    %1067 = arith.negf %1066 : vector<2x16xf32>
    %1068 = math.exp %1067 : vector<2x16xf32>
    %cst_190 = arith.constant 1.000000e+00 : f32
    %1069 = vector.broadcast %cst_190 : f32 to vector<2x16xf32>
    %1070 = arith.addf %1069, %1068 : vector<2x16xf32>
    %1071 = arith.divf %1069, %1070 : vector<2x16xf32>
    %1072 = vector.extract_strided_slice %1055 {offsets = [0, 32], sizes = [2, 16], strides = [1, 1]} : vector<2x64xf32> to vector<2x16xf32>
    %1073 = math.tanh %1072 : vector<2x16xf32>
    %1074 = vector.extract_strided_slice %1055 {offsets = [0, 48], sizes = [2, 16], strides = [1, 1]} : vector<2x64xf32> to vector<2x16xf32>
    %1075 = arith.negf %1074 : vector<2x16xf32>
    %1076 = math.exp %1075 : vector<2x16xf32>
    %cst_191 = arith.constant 1.000000e+00 : f32
    %1077 = vector.broadcast %cst_191 : f32 to vector<2x16xf32>
    %1078 = arith.addf %1077, %1076 : vector<2x16xf32>
    %1079 = arith.divf %1077, %1078 : vector<2x16xf32>
    %1080 = arith.mulf %1071, %1024 : vector<2x16xf32>
    %1081 = arith.mulf %1065, %1073 : vector<2x16xf32>
    %1082 = arith.addf %1080, %1081 : vector<2x16xf32>
    %1083 = math.tanh %1082 : vector<2x16xf32>
    %1084 = arith.mulf %1079, %1083 : vector<2x16xf32>
    %1085 = vector.extract_strided_slice %1059 {offsets = [0, 0], sizes = [2, 16], strides = [1, 1]} : vector<2x64xf32> to vector<2x16xf32>
    %1086 = arith.negf %1085 : vector<2x16xf32>
    %1087 = math.exp %1086 : vector<2x16xf32>
    %cst_192 = arith.constant 1.000000e+00 : f32
    %1088 = vector.broadcast %cst_192 : f32 to vector<2x16xf32>
    %1089 = arith.addf %1088, %1087 : vector<2x16xf32>
    %1090 = arith.divf %1088, %1089 : vector<2x16xf32>
    %1091 = vector.extract_strided_slice %1059 {offsets = [0, 16], sizes = [2, 16], strides = [1, 1]} : vector<2x64xf32> to vector<2x16xf32>
    %1092 = arith.negf %1091 : vector<2x16xf32>
    %1093 = math.exp %1092 : vector<2x16xf32>
    %cst_193 = arith.constant 1.000000e+00 : f32
    %1094 = vector.broadcast %cst_193 : f32 to vector<2x16xf32>
    %1095 = arith.addf %1094, %1093 : vector<2x16xf32>
    %1096 = arith.divf %1094, %1095 : vector<2x16xf32>
    %1097 = vector.extract_strided_slice %1059 {offsets = [0, 32], sizes = [2, 16], strides = [1, 1]} : vector<2x64xf32> to vector<2x16xf32>
    %1098 = math.tanh %1097 : vector<2x16xf32>
    %1099 = vector.extract_strided_slice %1059 {offsets = [0, 48], sizes = [2, 16], strides = [1, 1]} : vector<2x64xf32> to vector<2x16xf32>
    %1100 = arith.negf %1099 : vector<2x16xf32>
    %1101 = math.exp %1100 : vector<2x16xf32>
    %cst_194 = arith.constant 1.000000e+00 : f32
    %1102 = vector.broadcast %cst_194 : f32 to vector<2x16xf32>
    %1103 = arith.addf %1102, %1101 : vector<2x16xf32>
    %1104 = arith.divf %1102, %1103 : vector<2x16xf32>
    %1105 = arith.mulf %1096, %1049 : vector<2x16xf32>
    %1106 = arith.mulf %1090, %1098 : vector<2x16xf32>
    %1107 = arith.addf %1105, %1106 : vector<2x16xf32>
    %1108 = math.tanh %1107 : vector<2x16xf32>
    %1109 = arith.mulf %1104, %1108 : vector<2x16xf32>
    %1110 = vector.shape_cast %678 : vector<2x16xf32> to vector<2x1x16xf32>
    %1111 = vector.shape_cast %736 : vector<2x16xf32> to vector<2x1x16xf32>
    %1112 = vector.shape_cast %794 : vector<2x16xf32> to vector<2x1x16xf32>
    %1113 = vector.shape_cast %852 : vector<2x16xf32> to vector<2x1x16xf32>
    %1114 = vector.shape_cast %910 : vector<2x16xf32> to vector<2x1x16xf32>
    %1115 = vector.shape_cast %968 : vector<2x16xf32> to vector<2x1x16xf32>
    %1116 = vector.shape_cast %1026 : vector<2x16xf32> to vector<2x1x16xf32>
    %1117 = vector.shape_cast %1084 : vector<2x16xf32> to vector<2x1x16xf32>
    %1118 = tpu.concatenate %1110, %1111, %1112, %1113, %1114, %1115, %1116, %1117 in 1 : vector<2x1x16xf32>, vector<2x1x16xf32>, vector<2x1x16xf32>, vector<2x1x16xf32>, vector<2x1x16xf32>, vector<2x1x16xf32>, vector<2x1x16xf32>, vector<2x1x16xf32> -> vector<2x8x16xf32>
    %1119 = vector.shape_cast %1109 : vector<2x16xf32> to vector<2x1x16xf32>
    %1120 = vector.shape_cast %1051 : vector<2x16xf32> to vector<2x1x16xf32>
    %1121 = vector.shape_cast %993 : vector<2x16xf32> to vector<2x1x16xf32>
    %1122 = vector.shape_cast %935 : vector<2x16xf32> to vector<2x1x16xf32>
    %1123 = vector.shape_cast %877 : vector<2x16xf32> to vector<2x1x16xf32>
    %1124 = vector.shape_cast %819 : vector<2x16xf32> to vector<2x1x16xf32>
    %1125 = vector.shape_cast %761 : vector<2x16xf32> to vector<2x1x16xf32>
    %1126 = vector.shape_cast %703 : vector<2x16xf32> to vector<2x1x16xf32>
    %1127 = tpu.concatenate %1119, %1120, %1121, %1122, %1123, %1124, %1125, %1126 in 1 : vector<2x1x16xf32>, vector<2x1x16xf32>, vector<2x1x16xf32>, vector<2x1x16xf32>, vector<2x1x16xf32>, vector<2x1x16xf32>, vector<2x1x16xf32>, vector<2x1x16xf32> -> vector<2x8x16xf32>
    %1128 = tpu.concatenate %1118, %1127 in 2 : vector<2x8x16xf32>, vector<2x8x16xf32> -> vector<2x8x32xf32>
    %1129 = math.tanh %1128 : vector<2x8x32xf32>
    %c12 = arith.constant 12 : index
    %c0_195 = arith.constant 0 : index
    %1130 = vector.load %arg3[%c12, %c0_195] : memref<16x128xf32, #tpu.memory_space<vmem>>, vector<1x32xf32>
    %1131 = vector.shape_cast %1130 : vector<1x32xf32> to vector<1x1x32xf32>
    %1132 = vector.broadcast %1131 : vector<1x1x32xf32> to vector<2x8x32xf32>
    %1133 = arith.mulf %1129, %1132 : vector<2x8x32xf32>
    %cst_196 = arith.constant dense<0.000000e+00> : vector<2x8xf32>
    %1134 = vector.multi_reduction <add>, %1133, %cst_196 [2] : vector<2x8x32xf32> to vector<2x8xf32>
    %cst_197 = arith.constant dense<0xFF800000> : vector<2xf32>
    %1135 = vector.multi_reduction <maximumf>, %1134, %cst_197 [1] : vector<2x8xf32> to vector<2xf32>
    %1136 = vector.shape_cast %1135 : vector<2xf32> to vector<2x1xf32>
    %1137 = vector.broadcast %1136 : vector<2x1xf32> to vector<2x8xf32>
    %1138 = arith.subf %1134, %1137 : vector<2x8xf32>
    %1139 = math.exp %1138 : vector<2x8xf32>
    %cst_198 = arith.constant dense<0.000000e+00> : vector<2xf32>
    %1140 = vector.multi_reduction <add>, %1139, %cst_198 [1] : vector<2x8xf32> to vector<2xf32>
    %1141 = vector.shape_cast %1140 : vector<2xf32> to vector<2x1xf32>
    %1142 = tpu.reciprocal %1141 {approx = true} : vector<2x1xf32> -> vector<2x1xf32>
    %1143 = vector.broadcast %1142 : vector<2x1xf32> to vector<2x8xf32>
    %1144 = arith.mulf %1139, %1143 : vector<2x8xf32>
    %1145 = vector.shape_cast %1144 : vector<2x8xf32> to vector<2x8x1xf32>
    %1146 = vector.broadcast %1145 : vector<2x8x1xf32> to vector<2x8x32xf32>
    %1147 = arith.mulf %1128, %1146 : vector<2x8x32xf32>
    %cst_199 = arith.constant dense<0.000000e+00> : vector<2x32xf32>
    %1148 = vector.multi_reduction <add>, %1147, %cst_199 [1] : vector<2x8x32xf32> to vector<2x32xf32>
    %cst_200 = arith.constant 0.000000e+00 : f32
    %1149 = vector.broadcast %cst_200 : f32 to vector<2x32xf32>
    %1150 = arith.maximumf %1148, %1149 : vector<2x32xf32>
    %c288 = arith.constant 288 : index
    %c0_201 = arith.constant 0 : index
    %1151 = vector.load %arg2[%c288, %c0_201] : memref<320x128xf32, #tpu.memory_space<vmem>>, vector<32x128xf32>
    %cst_202 = arith.constant dense<0.000000e+00> : vector<2x128xf32>
    %1152 = tpu.matmul %1150, %1151, %cst_202 {dimension_numbers = #tpu.dot_dimension_numbers<[1], [0], [0], [1], [0, 0, 1, 1], [], []>} : vector<2x32xf32>, vector<32x128xf32>, vector<2x128xf32> -> vector<2x128xf32>
    %c13 = arith.constant 13 : index
    %c0_203 = arith.constant 0 : index
    %1153 = vector.load %arg3[%c13, %c0_203] : memref<16x128xf32, #tpu.memory_space<vmem>>, vector<1x128xf32>
    %1154 = vector.broadcast %1153 : vector<1x128xf32> to vector<2x128xf32>
    %1155 = arith.addf %1152, %1154 : vector<2x128xf32>
    %c0_204 = arith.constant 0 : index
    %c0_205 = arith.constant 0 : index
    %1156 = vector.load %arg4[%c0_204, %c0_205] : memref<2x128xf32, #tpu.memory_space<vmem>>, vector<2x128xf32>
    tpu.vector_store %arg4[%c0_204, %c0_205], %1155 {strides = array<i32>} : memref<2x128xf32, #tpu.memory_space<vmem>>, vector<2x128xf32>,
    return
  }
}

</mosaic_0001>

<llo_original>
// kernel: forward.1
$region0: #{forward.1}
  #allocation0 [shape = 'u32[]', space=smem, size = 0x4, offset = 0x4, fixed_abs, tag = 'smem constant byte address 0x4 - core index']
  #allocation1 [shape = 'u32[144,128]{1,0:T(1,128)}', space=vmem, size = 0x12000, scoped, tag = 'internal scratch']
  %s0 = inlined_call_operand.vmem [shape: f32[2,8,32], index: 0, kind: input, shape index: {}]
  %s1 = inlined_call_operand.vmem [shape: f32[2,8], index: 1, kind: input, shape index: {}]
  %s2 = inlined_call_operand.hbm [shape: f32[320,128], index: 2, kind: input, shape index: {}]
  %s3 = inlined_call_operand.vmem [shape: f32[16,128], index: 3, kind: input, shape index: {}]
  %s4 = inlined_call_operand.hbm [shape: f32[2,128], index: 4, kind: output, shape index: {}]
  %s5 = sld [smem:[#allocation0]]
  $region30: #{forward.1} parent=0
    _
  %s7 = ssub.s32 1, %s5
  %s8 = scalar_select 0, %s7, %s5
  $region1: #{forward.1} parent=0
    #allocation2 [shape = 'u8[163840]{0}', space=vmem, size = 0x28000, scoped, tag = 'input window, operand 2, single buffered']
    #allocation3 [shape = 's32[1]{0}', space=sflag, size = 0x4, scoped, tag = 'scoped memory for forward.1']
    #allocation4 [shape = 's32[1]{0}', space=sflag, size = 0x4, scoped, tag = 'scoped memory for forward.1']
    #allocation5 [shape = 'u8[1024]{0}', space=vmem, size = 0x400, scoped, tag = 'output window, operand 0, single buffered']
    %9 = vsyncpa [#allocation3], 0
    %10 = vsyncpa [#allocation4], 0
    // Predicated region
    $region2: #{forward.1} parent=1 // pred_check
      _
    $region3: #{forward.1} parent=1 // pred_check_branch
      %12 = sbr.rel (0) target = $region5
    $region4: #{forward.1} parent=1 // pred_region
      _
    $region5: #{forward.1} parent=1 // pred_fallthru
      _
    // Predicated region
    $region6: #{forward.1} parent=1 // pred_check
      _
    $region7: #{forward.1} parent=1 // pred_check_branch
      %14 = sbr.rel (0) target = $region9
    $region8: #{forward.1} parent=1 // pred_region
      _
    $region9: #{forward.1} parent=1 // pred_fallthru
      _
    // Predicated region
    $region10: #{forward.1} parent=1 // pred_check
      _
    $region11: #{forward.1} parent=1 // pred_check_branch
      %16 = sbr.rel (0) target = $region13
    $region12: #{forward.1} parent=1 // pred_region
      %s18 = ssub.s32 5120, 5120
      %19 = vsyncadd [#allocation3], %s18
      %s20 = sshll.u32 [#allocation2], 4
      %s21 = int_to_ptr.vmem [resolvable:$true] %s20
      %26 = dma.hbm_to_vmem [thread:$0]  %s2, 5120, %s21, [#allocation3], 128, 128, 8
    $region13: #{forward.1} parent=1 // pred_fallthru
      _
    // Predicated region
    $region14: #{forward.1} parent=1 // pred_check
      _
    $region15: #{forward.1} parent=1 // pred_check_branch
      %28 = sbr.rel (0) target = $region17
    $region16: #{forward.1} parent=1 // pred_region
      _
    $region17: #{forward.1} parent=1 // pred_fallthru
      _
    // Predicated region
    $region18: #{forward.1} parent=1 // pred_check
      _
    $region19: #{forward.1} parent=1 // pred_check_branch
      %30 = sbr.rel (0) target = $region21
    $region20: #{forward.1} parent=1 // pred_region
      %31 = dma.done [#allocation3], 5120
    $region21: #{forward.1} parent=1 // pred_fallthru
      _
    %v32 = vld [vmem:[%s0] sm:$0xff]
    %v33 = vld [vmem:[%s0 + $0x8] sm:$0xff]
    %v34 = vld [vmem:[%s3] sm:$0x1]
    %v35 = vld [vmem:[%s3 + $0x1] sm:$0x1]
    %vm36 = vcmask 261120
    %v37 = vsel %vm36, %v32, 0.0
    %38 = vadd.xlane.f32.xlu0 %v37
    %v39 = vpop.xlane.xlu0 %38
    %v40 = vsel %vm36, %v33, 0.0
    %41 = vadd.xlane.f32.xlu0 %v40
    %v42 = vpop.xlane.xlu0 %41
    %v43 = vrcp.pop 32.0
    %v44 = vmul.f32 %v39, %v43
    %v45 = vmul.f32 %v42, %v43
    %v46 = vsub.f32 %v32, %v44
    %v47 = vsub.f32 %v33, %v45
    %v48 = vmul.f32 %v46, %v46
    %v49 = vmul.f32 %v47, %v47
    %v50 = vsel %vm36, %v48, 0.0
    %51 = vadd.xlane.f32.xlu0 %v50
    %v52 = vpop.xlane.xlu0 %51
    %v53 = vsel %vm36, %v49, 0.0
    %54 = vadd.xlane.f32.xlu0 %v53
    %v55 = vpop.xlane.xlu0 %54
    %v56 = vmul.f32 %v52, %v43
    %v57 = vmul.f32 %v55, %v43
    %v58 = vadd.f32 %v56, 1e-12
    %v59 = vadd.f32 %v57, 1e-12
    %v60 = vrsqrt.pop %v58
    %v61 = vrsqrt.pop %v59
    %v62 = vmul.f32 %v46, %v60
    %v63 = vmul.f32 %v47, %v61
    %v64 = vlaneseq
    %v65 = vshrl.u32 %v64, 7
    %v66 = vsub.s32 0, %v65
    %v67 = vrot.slane %v34, %v66
    %v68 = vmul.f32 %v62, %v67
    %v69 = vmul.f32 %v63, %v67
    %v70 = vlaneseq
    %v71 = vshrl.u32 %v70, 7
    %v72 = vsub.s32 0, %v71
    %v73 = vrot.slane %v35, %v72
    %v74 = vadd.f32 %v68, %v73
    %v75 = vadd.f32 %v69, %v73
    %v76 = vld [vmem:[#allocation2] sm:$0xff]
    %v77 = vld [vmem:[#allocation2 + $0x8] sm:$0xff]
    %v78 = vld [vmem:[#allocation2 + $0x10] sm:$0xff]
    %v79 = vld [vmem:[#allocation2 + $0x18] sm:$0xff]
    %v80 = vld [vmem:[%s3 + $0x2] sm:$0x1]
    %v81 = vlaneseq
    %v82 = vshrl.u32 %v81, 7
    %v83 = vsub.s32 0, %v82
    %v84 = vrot.slane %v80, %v83
    %v86 = vsel %vm36, %v74, 0
    %v89 = vsel %vm36, %v75, 0
    %91 = vmatprep.subr.mxu0 0.0
    %92 = vmatpush1.msra.mxu0 0.0
    %93 = vmatprep.subr.mxu0 0.0
    %94 = vmatpush1.msra.mxu0 0.0
    %95 = vmatprep.subr.mxu0 0.0
    %96 = vmatpush1.msra.mxu0 0.0
    %97 = vmatprep.subr.mxu0 0.0
    %98 = vmatpush1.msra.mxu0 0.0
    %99 = vmatprep.subr.mxu0 0.0
    %100 = vmatpush1.msra.mxu0 0.0
    %101 = vmatprep.subr.mxu0 0.0
    %102 = vmatpush1.msra.mxu0 0.0
    %103 = vmatprep.subr.mxu0 0.0
    %104 = vmatpush1.msra.mxu0 0.0
    %105 = vmatprep.subr.mxu0 0.0
    %106 = vmatpush1.msra.mxu0 0.0
    %107 = vmatprep.subr.mxu0 0.0
    %108 = vmatpush1.msra.mxu0 0.0
    %109 = vmatprep.subr.mxu0 0.0
    %110 = vmatpush1.msra.mxu0 0.0
    %111 = vmatprep.subr.mxu0 0.0
    %112 = vmatpush1.msra.mxu0 0.0
    %113 = vmatprep.subr.mxu0 0.0
    %114 = vmatpush1.msra.mxu0 0.0
    %115 = vmatprep.subr.mxu0 0.0
    %116 = vmatpush1.msra.mxu0 %v79
    %117 = vmatprep.subr.mxu0 0.0
    %118 = vmatpush1.msra.mxu0 %v78
    %119 = vmatprep.subr.mxu0 0.0
    %120 = vmatpush1.msra.mxu0 %v77
    %121 = vmatprep.subr.mxu0 0.0
    %122 = vmatpush1.msra.mxu0 %v76
    %123 = vmatprep.subr.mxu0 0.0
    %124 = vmatpush2.msra.mxu0 0.0
    %125 = vmatprep.subr.mxu0 0.0
    %126 = vmatpush2.msra.mxu0 0.0
    %127 = vmatprep.subr.mxu0 0.0
    %128 = vmatpush2.msra.mxu0 0.0
    %129 = vmatprep.subr.mxu0 0.0
    %130 = vmatpush2.msra.mxu0 0.0
    %131 = vmatprep.subr.mxu0 0.0
    %132 = vmatpush2.msra.mxu0 0.0
    %133 = vmatprep.subr.mxu0 0.0
    %134 = vmatpush2.msra.mxu0 0.0
    %135 = vmatprep.subr.mxu0 0.0
    %136 = vmatpush2.msra.mxu0 0.0
    %137 = vmatprep.subr.mxu0 0.0
    %138 = vmatpush2.msra.mxu0 0.0
    %139 = vmatprep.subr.mxu0 0.0
    %140 = vmatpush2.msra.mxu0 0.0
    %141 = vmatprep.subr.mxu0 0.0
    %142 = vmatpush2.msra.mxu0 0.0
    %143 = vmatprep.subr.mxu0 0.0
    %144 = vmatpush2.msra.mxu0 0.0
    %145 = vmatprep.subr.mxu0 0.0
    %146 = vmatpush2.msra.mxu0 0.0
    %147 = vmatprep.subr.mxu0 0.0
    %148 = vmatpush2.msra.mxu0 0.0
    %149 = vmatprep.subr.mxu0 0.0
    %150 = vmatpush2.msra.mxu0 0.0
    %151 = vmatprep.subr.mxu0 0.0
    %152 = vmatpush2.msra.mxu0 0.0
    %153 = vmatprep.subr.mxu0 0.0
    %154 = vmatpush2.msra.mxu0 0.0
    %155 = vmatprep.mubr.f32.mxu0 0.0
    %156 = vmatmul.mubr.f32.gmra.mxu0 %v86
    %v157 = vpop.f32.mrf.mxu0
    %v158 = vadd.f32 %v84, %v157
    %v159 = vpop.f32.mrf.mxu0
    %160 = vmatprep.mubr.f32.mxu0 0.0
    %161 = vmatmul.mubr.f32.gmra.mxu0 %v89
    %v162 = vpop.f32.mrf.mxu0
    %v163 = vadd.f32 %v84, %v162
    %v164 = vpop.f32.mrf.mxu0
    %165 = vdwg.mxu0
    %167 = vrot.lane.b32.xlu0 %v158, 96
    %v168 = vpop.permute.xlu0 %167
    %v169 = vsel %vm36, %v158, 0
    %v171 = vsel %vm36, %v168, 0
    %173 = vmatprep.subr.mxu0 0.0
    %174 = vmatpush1.xpose.msra.mxu0 0.0
    %175 = vmatprep.subr.mxu0 0.0
    %176 = vmatpush1.xpose.msra.mxu0 0.0
    %177 = vmatprep.subr.mxu0 0.0
    %178 = vmatpush1.xpose.msra.mxu0 0.0
    %179 = vmatprep.subr.mxu0 0.0
    %180 = vmatpush1.xpose.msra.mxu0 0.0
    %181 = vmatprep.subr.mxu0 0.0
    %182 = vmatpush1.xpose.msra.mxu0 0.0
    %183 = vmatprep.subr.mxu0 0.0
    %184 = vmatpush1.xpose.msra.mxu0 0.0
    %185 = vmatprep.subr.mxu0 0.0
    %186 = vmatpush1.xpose.msra.mxu0 0.0
    %187 = vmatprep.subr.mxu0 0.0
    %188 = vmatpush1.xpose.msra.mxu0 0.0
    %189 = vmatprep.subr.mxu0 0.0
    %190 = vmatpush1.xpose.msra.mxu0 0.0
    %191 = vmatprep.subr.mxu0 0.0
    %192 = vmatpush1.xpose.msra.mxu0 0.0
    %193 = vmatprep.subr.mxu0 0.0
    %194 = vmatpush1.xpose.msra.mxu0 0.0
    %195 = vmatprep.subr.mxu0 0.0
    %196 = vmatpush1.xpose.msra.mxu0 0.0
    %197 = vmatprep.subr.mxu0 0.0
    %198 = vmatpush1.xpose.msra.mxu0 0.0
    %199 = vmatprep.subr.mxu0 0.0
    %200 = vmatpush1.xpose.msra.mxu0 0.0
    %201 = vmatprep.subr.mxu0 0.0
    %202 = vmatpush1.xpose.msra.mxu0 0.0
    %203 = vmatprep.subr.mxu0 0.0
    %204 = vmatpush1.xpose.msra.mxu0 %v171
    %205 = vmatprep.subr.mxu0 0.0
    %206 = vmatpush2.xpose.msra.mxu0 0.0
    %207 = vmatprep.subr.mxu0 0.0
    %208 = vmatpush2.xpose.msra.mxu0 0.0
    %209 = vmatprep.subr.mxu0 0.0
    %210 = vmatpush2.xpose.msra.mxu0 0.0
    %211 = vmatprep.subr.mxu0 0.0
    %212 = vmatpush2.xpose.msra.mxu0 0.0
    %213 = vmatprep.subr.mxu0 0.0
    %214 = vmatpush2.xpose.msra.mxu0 0.0
    %215 = vmatprep.subr.mxu0 0.0
    %216 = vmatpush2.xpose.msra.mxu0 0.0
    %217 = vmatprep.subr.mxu0 0.0
    %218 = vmatpush2.xpose.msra.mxu0 0.0
    %219 = vmatprep.subr.mxu0 0.0
    %220 = vmatpush2.xpose.msra.mxu0 0.0
    %221 = vmatprep.subr.mxu0 0.0
    %222 = vmatpush2.xpose.msra.mxu0 0.0
    %223 = vmatprep.subr.mxu0 0.0
    %224 = vmatpush2.xpose.msra.mxu0 0.0
    %225 = vmatprep.subr.mxu0 0.0
    %226 = vmatpush2.xpose.msra.mxu0 0.0
    %227 = vmatprep.subr.mxu0 0.0
    %228 = vmatpush2.xpose.msra.mxu0 0.0
    %229 = vmatprep.subr.mxu0 0.0
    %230 = vmatpush2.xpose.msra.mxu0 0.0
    %231 = vmatprep.subr.mxu0 0.0
    %232 = vmatpush2.xpose.msra.mxu0 0.0
    %233 = vmatprep.subr.mxu0 0.0
    %234 = vmatpush2.xpose.msra.mxu0 0.0
    %235 = vmatprep.subr.mxu0 0.0
    %236 = vmatpush2.xpose.msra.mxu0 0.0
    %237 = vmatprep.mubr.f32.mxu0 0.0
    %238 = vmatmul.mubr.f32.gmra.mxu0 %v169
    %v239 = vpop.f32.mrf.mxu0
    %v240 = vadd.f32 0.0, %v239
    %v241 = vpop.f32.mrf.mxu0
    %242 = vdwg.mxu0
    %244 = vrot.lane.b32.xlu0 %v163, 96
    %v245 = vpop.permute.xlu0 %244
    %v246 = vsel %vm36, %v163, 0
    %v248 = vsel %vm36, %v245, 0
    %250 = vmatprep.subr.mxu0 0.0
    %251 = vmatpush1.xpose.msra.mxu0 0.0
    %252 = vmatprep.subr.mxu0 0.0
    %253 = vmatpush1.xpose.msra.mxu0 0.0
    %254 = vmatprep.subr.mxu0 0.0
    %255 = vmatpush1.xpose.msra.mxu0 0.0
    %256 = vmatprep.subr.mxu0 0.0
    %257 = vmatpush1.xpose.msra.mxu0 0.0
    %258 = vmatprep.subr.mxu0 0.0
    %259 = vmatpush1.xpose.msra.mxu0 0.0
    %260 = vmatprep.subr.mxu0 0.0
    %261 = vmatpush1.xpose.msra.mxu0 0.0
    %262 = vmatprep.subr.mxu0 0.0
    %263 = vmatpush1.xpose.msra.mxu0 0.0
    %264 = vmatprep.subr.mxu0 0.0
    %265 = vmatpush1.xpose.msra.mxu0 0.0
    %266 = vmatprep.subr.mxu0 0.0
    %267 = vmatpush1.xpose.msra.mxu0 0.0
    %268 = vmatprep.subr.mxu0 0.0
    %269 = vmatpush1.xpose.msra.mxu0 0.0
    %270 = vmatprep.subr.mxu0 0.0
    %271 = vmatpush1.xpose.msra.mxu0 0.0
    %272 = vmatprep.subr.mxu0 0.0
    %273 = vmatpush1.xpose.msra.mxu0 0.0
    %274 = vmatprep.subr.mxu0 0.0
    %275 = vmatpush1.xpose.msra.mxu0 0.0
    %276 = vmatprep.subr.mxu0 0.0
    %277 = vmatpush1.xpose.msra.mxu0 0.0
    %278 = vmatprep.subr.mxu0 0.0
    %279 = vmatpush1.xpose.msra.mxu0 0.0
    %280 = vmatprep.subr.mxu0 0.0
    %281 = vmatpush1.xpose.msra.mxu0 %v248
    %282 = vmatprep.subr.mxu0 0.0
    %283 = vmatpush2.xpose.msra.mxu0 0.0
    %284 = vmatprep.subr.mxu0 0.0
    %285 = vmatpush2.xpose.msra.mxu0 0.0
    %286 = vmatprep.subr.mxu0 0.0
    %287 = vmatpush2.xpose.msra.mxu0 0.0
    %288 = vmatprep.subr.mxu0 0.0
    %289 = vmatpush2.xpose.msra.mxu0 0.0
    %290 = vmatprep.subr.mxu0 0.0
    %291 = vmatpush2.xpose.msra.mxu0 0.0
    %292 = vmatprep.subr.mxu0 0.0
    %293 = vmatpush2.xpose.msra.mxu0 0.0
    %294 = vmatprep.subr.mxu0 0.0
    %295 = vmatpush2.xpose.msra.mxu0 0.0
    %296 = vmatprep.subr.mxu0 0.0
    %297 = vmatpush2.xpose.msra.mxu0 0.0
    %298 = vmatprep.subr.mxu0 0.0
    %299 = vmatpush2.xpose.msra.mxu0 0.0
    %300 = vmatprep.subr.mxu0 0.0
    %301 = vmatpush2.xpose.msra.mxu0 0.0
    %302 = vmatprep.subr.mxu0 0.0
    %303 = vmatpush2.xpose.msra.mxu0 0.0
    %304 = vmatprep.subr.mxu0 0.0
    %305 = vmatpush2.xpose.msra.mxu0 0.0
    %306 = vmatprep.subr.mxu0 0.0
    %307 = vmatpush2.xpose.msra.mxu0 0.0
    %308 = vmatprep.subr.mxu0 0.0
    %309 = vmatpush2.xpose.msra.mxu0 0.0
    %310 = vmatprep.subr.mxu0 0.0
    %311 = vmatpush2.xpose.msra.mxu0 0.0
    %312 = vmatprep.subr.mxu0 0.0
    %313 = vmatpush2.xpose.msra.mxu0 0.0
    %314 = vmatprep.mubr.f32.mxu0 0.0
    %315 = vmatmul.mubr.f32.gmra.mxu0 %v246
    %v316 = vpop.f32.mrf.mxu0
    %v317 = vadd.f32 0.0, %v316
    %v318 = vpop.f32.mrf.mxu0
    %319 = vdwg.mxu0
    %v320 = vmul.f32 %v240, 0.17677669
    %v321 = vmul.f32 %v317, 0.17677669
    %v322 = vld [vmem:[%s1] sm:$0x3]
    %v325 = vunpack.c.l.s4 1966171168
    %v326 = vunpack.c.0.s8 %v325
    %v327 = vlaneseq
    %v328 = vshrl.u32 %v327, 7
    %v329 = vsub.s32 %v326, %v328
    %v330 = vrot.slane %v322, %v329
    %v331 = vcombine.high %v330, %v330
    %v333 = vunpack.c.l.s4 1966171168
    %v334 = vunpack.c.0.s8 %v333
    %v335 = vlaneseq
    %v336 = vshrl.u32 %v335, 7
    %v337 = vsub.s32 %v334, %v336
    %v338 = vrot.slane %v330, %v337
    %v340 = vunpack.c.l.s4 1966171168
    %v341 = vunpack.c.0.s8 %v340
    %v342 = vlaneseq
    %v343 = vshrl.u32 %v342, 7
    %v344 = vsub.s32 %v341, %v343
    %v345 = vrot.slane %v331, %v344
    %v348 = vsub.f32 %v338, 1.0
    %v349 = vsub.f32 %v345, 1.0
    %v350 = vmul.f32 %v348, 1e+09
    %v351 = vmul.f32 %v349, 1e+09
    %v354 = vlaneseq
    %v355 = vshrl.u32 %v354, 7
    %v356 = vsub.s32 0, %v355
    %v357 = vrot.slane %v350, %v356
    %v358 = vlaneseq
    %v359 = vshrl.u32 %v358, 7
    %v360 = vsub.s32 0, %v359
    %v361 = vrot.slane %v351, %v360
    %v364 = vadd.f32 %v320, %v357
    %v365 = vadd.f32 %v321, %v361
    %vm366 = vcmask 64512
    %v367 = vsel %vm366, %v364, -inf
    %368 = vmax.xlane.f32.xlu0 %v367
    %v369 = vpop.xlane.xlu0 %368
    %v370 = vsel %vm366, %v365, -inf
    %371 = vmax.xlane.f32.xlu0 %v370
    %v372 = vpop.xlane.xlu0 %371
    %v373 = vsub.f32 %v364, %v369
    %v374 = vsub.f32 %v365, %v372
    %v375 = vmul.f32 %v373, 1.442695
    %v376 = vpow.pop %v375
    %v377 = vmul.f32 %v374, 1.442695
    %v378 = vpow.pop %v377
    %v379 = vsel %vm366, %v376, 0.0
    %380 = vadd.xlane.f32.xlu0 %v379
    %v381 = vpop.xlane.xlu0 %380
    %v382 = vsel %vm366, %v378, 0.0
    %383 = vadd.xlane.f32.xlu0 %v382
    %v384 = vpop.xlane.xlu0 %383
    %v385 = vrcp.pop %v381
    %v386 = vrcp.pop %v384
    %v387 = vmul.f32 %v376, %v385
    %v388 = vmul.f32 %v378, %v386
    %389 = vrot.lane.b32.xlu0 %v158, 64
    %v390 = vpop.permute.xlu0 %389
    %v393 = vsel %vm366, %v387, 0
    %395 = vmatprep.subr.mxu0 0.0
    %396 = vmatpush1.msra.mxu0 0.0
    %397 = vmatprep.subr.mxu0 0.0
    %398 = vmatpush1.msra.mxu0 0.0
    %399 = vmatprep.subr.mxu0 0.0
    %400 = vmatpush1.msra.mxu0 0.0
    %401 = vmatprep.subr.mxu0 0.0
    %402 = vmatpush1.msra.mxu0 0.0
    %403 = vmatprep.subr.mxu0 0.0
    %404 = vmatpush1.msra.mxu0 0.0
    %405 = vmatprep.subr.mxu0 0.0
    %406 = vmatpush1.msra.mxu0 0.0
    %407 = vmatprep.subr.mxu0 0.0
    %408 = vmatpush1.msra.mxu0 0.0
    %409 = vmatprep.subr.mxu0 0.0
    %410 = vmatpush1.msra.mxu0 0.0
    %411 = vmatprep.subr.mxu0 0.0
    %412 = vmatpush1.msra.mxu0 0.0
    %413 = vmatprep.subr.mxu0 0.0
    %414 = vmatpush1.msra.mxu0 0.0
    %415 = vmatprep.subr.mxu0 0.0
    %416 = vmatpush1.msra.mxu0 0.0
    %417 = vmatprep.subr.mxu0 0.0
    %418 = vmatpush1.msra.mxu0 0.0
    %419 = vmatprep.subr.mxu0 0.0
    %420 = vmatpush1.msra.mxu0 0.0
    %421 = vmatprep.subr.mxu0 0.0
    %422 = vmatpush1.msra.mxu0 0.0
    %423 = vmatprep.subr.mxu0 0.0
    %424 = vmatpush1.msra.mxu0 0.0
    %425 = vmatprep.subr.mxu0 0.0
    %426 = vmatpush1.msra.mxu0 %v390
    %427 = vmatprep.subr.mxu0 0.0
    %428 = vmatpush2.msra.mxu0 0.0
    %429 = vmatprep.subr.mxu0 0.0
    %430 = vmatpush2.msra.mxu0 0.0
    %431 = vmatprep.subr.mxu0 0.0
    %432 = vmatpush2.msra.mxu0 0.0
    %433 = vmatprep.subr.mxu0 0.0
    %434 = vmatpush2.msra.mxu0 0.0
    %435 = vmatprep.subr.mxu0 0.0
    %436 = vmatpush2.msra.mxu0 0.0
    %437 = vmatprep.subr.mxu0 0.0
    %438 = vmatpush2.msra.mxu0 0.0
    %439 = vmatprep.subr.mxu0 0.0
    %440 = vmatpush2.msra.mxu0 0.0
    %441 = vmatprep.subr.mxu0 0.0
    %442 = vmatpush2.msra.mxu0 0.0
    %443 = vmatprep.subr.mxu0 0.0
    %444 = vmatpush2.msra.mxu0 0.0
    %445 = vmatprep.subr.mxu0 0.0
    %446 = vmatpush2.msra.mxu0 0.0
    %447 = vmatprep.subr.mxu0 0.0
    %448 = vmatpush2.msra.mxu0 0.0
    %449 = vmatprep.subr.mxu0 0.0
    %450 = vmatpush2.msra.mxu0 0.0
    %451 = vmatprep.subr.mxu0 0.0
    %452 = vmatpush2.msra.mxu0 0.0
    %453 = vmatprep.subr.mxu0 0.0
    %454 = vmatpush2.msra.mxu0 0.0
    %455 = vmatprep.subr.mxu0 0.0
    %456 = vmatpush2.msra.mxu0 0.0
    %457 = vmatprep.subr.mxu0 0.0
    %458 = vmatpush2.msra.mxu0 0.0
    %459 = vmatprep.mubr.f32.mxu0 0.0
    %460 = vmatmul.mubr.f32.gmra.mxu0 %v393
    %v461 = vpop.f32.mrf.mxu0
    %v462 = vadd.f32 0.0, %v461
    %v463 = vpop.f32.mrf.mxu0
    %464 = vdwg.mxu0
    %465 = vrot.lane.b32.xlu0 %v163, 64
    %v466 = vpop.permute.xlu0 %465
    %v469 = vsel %vm366, %v388, 0
    %471 = vmatprep.subr.mxu0 0.0
    %472 = vmatpush1.msra.mxu0 0.0
    %473 = vmatprep.subr.mxu0 0.0
    %474 = vmatpush1.msra.mxu0 0.0
    %475 = vmatprep.subr.mxu0 0.0
    %476 = vmatpush1.msra.mxu0 0.0
    %477 = vmatprep.subr.mxu0 0.0
    %478 = vmatpush1.msra.mxu0 0.0
    %479 = vmatprep.subr.mxu0 0.0
    %480 = vmatpush1.msra.mxu0 0.0
    %481 = vmatprep.subr.mxu0 0.0
    %482 = vmatpush1.msra.mxu0 0.0
    %483 = vmatprep.subr.mxu0 0.0
    %484 = vmatpush1.msra.mxu0 0.0
    %485 = vmatprep.subr.mxu0 0.0
    %486 = vmatpush1.msra.mxu0 0.0
    %487 = vmatprep.subr.mxu0 0.0
    %488 = vmatpush1.msra.mxu0 0.0
    %489 = vmatprep.subr.mxu0 0.0
    %490 = vmatpush1.msra.mxu0 0.0
    %491 = vmatprep.subr.mxu0 0.0
    %492 = vmatpush1.msra.mxu0 0.0
    %493 = vmatprep.subr.mxu0 0.0
    %494 = vmatpush1.msra.mxu0 0.0
    %495 = vmatprep.subr.mxu0 0.0
    %496 = vmatpush1.msra.mxu0 0.0
    %497 = vmatprep.subr.mxu0 0.0
    %498 = vmatpush1.msra.mxu0 0.0
    %499 = vmatprep.subr.mxu0 0.0
    %500 = vmatpush1.msra.mxu0 0.0
    %501 = vmatprep.subr.mxu0 0.0
    %502 = vmatpush1.msra.mxu0 %v466
    %503 = vmatprep.subr.mxu0 0.0
    %504 = vmatpush2.msra.mxu0 0.0
    %505 = vmatprep.subr.mxu0 0.0
    %506 = vmatpush2.msra.mxu0 0.0
    %507 = vmatprep.subr.mxu0 0.0
    %508 = vmatpush2.msra.mxu0 0.0
    %509 = vmatprep.subr.mxu0 0.0
    %510 = vmatpush2.msra.mxu0 0.0
    %511 = vmatprep.subr.mxu0 0.0
    %512 = vmatpush2.msra.mxu0 0.0
    %513 = vmatprep.subr.mxu0 0.0
    %514 = vmatpush2.msra.mxu0 0.0
    %515 = vmatprep.subr.mxu0 0.0
    %516 = vmatpush2.msra.mxu0 0.0
    %517 = vmatprep.subr.mxu0 0.0
    %518 = vmatpush2.msra.mxu0 0.0
    %519 = vmatprep.subr.mxu0 0.0
    %520 = vmatpush2.msra.mxu0 0.0
    %521 = vmatprep.subr.mxu0 0.0
    %522 = vmatpush2.msra.mxu0 0.0
    %523 = vmatprep.subr.mxu0 0.0
    %524 = vmatpush2.msra.mxu0 0.0
    %525 = vmatprep.subr.mxu0 0.0
    %526 = vmatpush2.msra.mxu0 0.0
    %527 = vmatprep.subr.mxu0 0.0
    %528 = vmatpush2.msra.mxu0 0.0
    %529 = vmatprep.subr.mxu0 0.0
    %530 = vmatpush2.msra.mxu0 0.0
    %531 = vmatprep.subr.mxu0 0.0
    %532 = vmatpush2.msra.mxu0 0.0
    %533 = vmatprep.subr.mxu0 0.0
    %534 = vmatpush2.msra.mxu0 0.0
    %535 = vmatprep.mubr.f32.mxu0 0.0
    %536 = vmatmul.mubr.f32.gmra.mxu0 %v469
    %v537 = vpop.f32.mrf.mxu0
    %v538 = vadd.f32 0.0, %v537
    %v539 = vpop.f32.mrf.mxu0
    %540 = vdwg.mxu0
    %v541 = vld [vmem:[#allocation2 + $0x20] sm:$0xff]
    %v542 = vld [vmem:[#allocation2 + $0x28] sm:$0xff]
    %v543 = vld [vmem:[#allocation2 + $0x30] sm:$0xff]
    %v544 = vld [vmem:[#allocation2 + $0x38] sm:$0xff]
    %v545 = vld [vmem:[%s3 + $0x3] sm:$0x1]
    %v546 = vlaneseq
    %v547 = vshrl.u32 %v546, 7
    %v548 = vsub.s32 0, %v547
    %v549 = vrot.slane %v545, %v548
    %v551 = vsel %vm36, %v462, 0
    %v554 = vsel %vm36, %v538, 0
    %556 = vmatprep.subr.mxu0 0.0
    %557 = vmatpush1.msra.mxu0 0.0
    %558 = vmatprep.subr.mxu0 0.0
    %559 = vmatpush1.msra.mxu0 0.0
    %560 = vmatprep.subr.mxu0 0.0
    %561 = vmatpush1.msra.mxu0 0.0
    %562 = vmatprep.subr.mxu0 0.0
    %563 = vmatpush1.msra.mxu0 0.0
    %564 = vmatprep.subr.mxu0 0.0
    %565 = vmatpush1.msra.mxu0 0.0
    %566 = vmatprep.subr.mxu0 0.0
    %567 = vmatpush1.msra.mxu0 0.0
    %568 = vmatprep.subr.mxu0 0.0
    %569 = vmatpush1.msra.mxu0 0.0
    %570 = vmatprep.subr.mxu0 0.0
    %571 = vmatpush1.msra.mxu0 0.0
    %572 = vmatprep.subr.mxu0 0.0
    %573 = vmatpush1.msra.mxu0 0.0
    %574 = vmatprep.subr.mxu0 0.0
    %575 = vmatpush1.msra.mxu0 0.0
    %576 = vmatprep.subr.mxu0 0.0
    %577 = vmatpush1.msra.mxu0 0.0
    %578 = vmatprep.subr.mxu0 0.0
    %579 = vmatpush1.msra.mxu0 0.0
    %580 = vmatprep.subr.mxu0 0.0
    %581 = vmatpush1.msra.mxu0 %v544
    %582 = vmatprep.subr.mxu0 0.0
    %583 = vmatpush1.msra.mxu0 %v543
    %584 = vmatprep.subr.mxu0 0.0
    %585 = vmatpush1.msra.mxu0 %v542
    %586 = vmatprep.subr.mxu0 0.0
    %587 = vmatpush1.msra.mxu0 %v541
    %588 = vmatprep.subr.mxu0 0.0
    %589 = vmatpush2.msra.mxu0 0.0
    %590 = vmatprep.subr.mxu0 0.0
    %591 = vmatpush2.msra.mxu0 0.0
    %592 = vmatprep.subr.mxu0 0.0
    %593 = vmatpush2.msra.mxu0 0.0
    %594 = vmatprep.subr.mxu0 0.0
    %595 = vmatpush2.msra.mxu0 0.0
    %596 = vmatprep.subr.mxu0 0.0
    %597 = vmatpush2.msra.mxu0 0.0
    %598 = vmatprep.subr.mxu0 0.0
    %599 = vmatpush2.msra.mxu0 0.0
    %600 = vmatprep.subr.mxu0 0.0
    %601 = vmatpush2.msra.mxu0 0.0
    %602 = vmatprep.subr.mxu0 0.0
    %603 = vmatpush2.msra.mxu0 0.0
    %604 = vmatprep.subr.mxu0 0.0
    %605 = vmatpush2.msra.mxu0 0.0
    %606 = vmatprep.subr.mxu0 0.0
    %607 = vmatpush2.msra.mxu0 0.0
    %608 = vmatprep.subr.mxu0 0.0
    %609 = vmatpush2.msra.mxu0 0.0
    %610 = vmatprep.subr.mxu0 0.0
    %611 = vmatpush2.msra.mxu0 0.0
    %612 = vmatprep.subr.mxu0 0.0
    %613 = vmatpush2.msra.mxu0 0.0
    %614 = vmatprep.subr.mxu0 0.0
    %615 = vmatpush2.msra.mxu0 0.0
    %616 = vmatprep.subr.mxu0 0.0
    %617 = vmatpush2.msra.mxu0 0.0
    %618 = vmatprep.subr.mxu0 0.0
    %619 = vmatpush2.msra.mxu0 0.0
    %620 = vmatprep.mubr.f32.mxu0 0.0
    %621 = vmatmul.mubr.f32.gmra.mxu0 %v551
    %v622 = vpop.f32.mrf.mxu0
    %v623 = vadd.f32 %v549, %v622
    %v624 = vpop.f32.mrf.mxu0
    %625 = vmatprep.mubr.f32.mxu0 0.0
    %626 = vmatmul.mubr.f32.gmra.mxu0 %v554
    %v627 = vpop.f32.mrf.mxu0
    %v628 = vadd.f32 %v549, %v627
    %v629 = vpop.f32.mrf.mxu0
    %630 = vdwg.mxu0
    %v631 = vadd.f32 %v74, %v623
    %v632 = vadd.f32 %v75, %v628
    %v633 = vld [vmem:[%s3 + $0x4] sm:$0x1]
    %v634 = vld [vmem:[%s3 + $0x5] sm:$0x1]
    %v635 = vsel %vm36, %v631, 0.0
    %636 = vadd.xlane.f32.xlu0 %v635
    %v637 = vpop.xlane.xlu0 %636
    %v638 = vsel %vm36, %v632, 0.0
    %639 = vadd.xlane.f32.xlu0 %v638
    %v640 = vpop.xlane.xlu0 %639
    %v641 = vmul.f32 %v637, %v43
    %v642 = vmul.f32 %v640, %v43
    %v643 = vsub.f32 %v631, %v641
    %v644 = vsub.f32 %v632, %v642
    %v645 = vmul.f32 %v643, %v643
    %v646 = vmul.f32 %v644, %v644
    %v647 = vsel %vm36, %v645, 0.0
    %648 = vadd.xlane.f32.xlu0 %v647
    %v649 = vpop.xlane.xlu0 %648
    %v650 = vsel %vm36, %v646, 0.0
    %651 = vadd.xlane.f32.xlu0 %v650
    %v652 = vpop.xlane.xlu0 %651
    %v653 = vmul.f32 %v649, %v43
    %v654 = vmul.f32 %v652, %v43
    %v655 = vadd.f32 %v653, 1e-12
    %v656 = vadd.f32 %v654, 1e-12
    %v657 = vrsqrt.pop %v655
    %v658 = vrsqrt.pop %v656
    %v659 = vmul.f32 %v643, %v657
    %v660 = vmul.f32 %v644, %v658
    %v661 = vlaneseq
    %v662 = vshrl.u32 %v661, 7
    %v663 = vsub.s32 0, %v662
    %v664 = vrot.slane %v633, %v663
    %v665 = vmul.f32 %v659, %v664
    %v666 = vmul.f32 %v660, %v664
    %v667 = vlaneseq
    %v668 = vshrl.u32 %v667, 7
    %v669 = vsub.s32 0, %v668
    %v670 = vrot.slane %v634, %v669
    %v671 = vadd.f32 %v665, %v670
    %v672 = vadd.f32 %v666, %v670
    %v673 = vld [vmem:[#allocation2 + $0x40] sm:$0xff]
    %v674 = vld [vmem:[#allocation2 + $0x48] sm:$0xff]
    %v675 = vld [vmem:[#allocation2 + $0x50] sm:$0xff]
    %v676 = vld [vmem:[#allocation2 + $0x58] sm:$0xff]
    %v677 = vld [vmem:[%s3 + $0x6] sm:$0x1]
    %v678 = vlaneseq
    %v679 = vshrl.u32 %v678, 7
    %v680 = vsub.s32 0, %v679
    %v681 = vrot.slane %v677, %v680
    %v683 = vsel %vm36, %v671, 0
    %v686 = vsel %vm36, %v672, 0
    %688 = vmatprep.subr.mxu0 0.0
    %689 = vmatpush1.msra.mxu0 0.0
    %690 = vmatprep.subr.mxu0 0.0
    %691 = vmatpush1.msra.mxu0 0.0
    %692 = vmatprep.subr.mxu0 0.0
    %693 = vmatpush1.msra.mxu0 0.0
    %694 = vmatprep.subr.mxu0 0.0
    %695 = vmatpush1.msra.mxu0 0.0
    %696 = vmatprep.subr.mxu0 0.0
    %697 = vmatpush1.msra.mxu0 0.0
    %698 = vmatprep.subr.mxu0 0.0
    %699 = vmatpush1.msra.mxu0 0.0
    %700 = vmatprep.subr.mxu0 0.0
    %701 = vmatpush1.msra.mxu0 0.0
    %702 = vmatprep.subr.mxu0 0.0
    %703 = vmatpush1.msra.mxu0 0.0
    %704 = vmatprep.subr.mxu0 0.0
    %705 = vmatpush1.msra.mxu0 0.0
    %706 = vmatprep.subr.mxu0 0.0
    %707 = vmatpush1.msra.mxu0 0.0
    %708 = vmatprep.subr.mxu0 0.0
    %709 = vmatpush1.msra.mxu0 0.0
    %710 = vmatprep.subr.mxu0 0.0
    %711 = vmatpush1.msra.mxu0 0.0
    %712 = vmatprep.subr.mxu0 0.0
    %713 = vmatpush1.msra.mxu0 %v676
    %714 = vmatprep.subr.mxu0 0.0
    %715 = vmatpush1.msra.mxu0 %v675
    %716 = vmatprep.subr.mxu0 0.0
    %717 = vmatpush1.msra.mxu0 %v674
    %718 = vmatprep.subr.mxu0 0.0
    %719 = vmatpush1.msra.mxu0 %v673
    %720 = vmatprep.subr.mxu0 0.0
    %721 = vmatpush2.msra.mxu0 0.0
    %722 = vmatprep.subr.mxu0 0.0
    %723 = vmatpush2.msra.mxu0 0.0
    %724 = vmatprep.subr.mxu0 0.0
    %725 = vmatpush2.msra.mxu0 0.0
    %726 = vmatprep.subr.mxu0 0.0
    %727 = vmatpush2.msra.mxu0 0.0
    %728 = vmatprep.subr.mxu0 0.0
    %729 = vmatpush2.msra.mxu0 0.0
    %730 = vmatprep.subr.mxu0 0.0
    %731 = vmatpush2.msra.mxu0 0.0
    %732 = vmatprep.subr.mxu0 0.0
    %733 = vmatpush2.msra.mxu0 0.0
    %734 = vmatprep.subr.mxu0 0.0
    %735 = vmatpush2.msra.mxu0 0.0
    %736 = vmatprep.subr.mxu0 0.0
    %737 = vmatpush2.msra.mxu0 0.0
    %738 = vmatprep.subr.mxu0 0.0
    %739 = vmatpush2.msra.mxu0 0.0
    %740 = vmatprep.subr.mxu0 0.0
    %741 = vmatpush2.msra.mxu0 0.0
    %742 = vmatprep.subr.mxu0 0.0
    %743 = vmatpush2.msra.mxu0 0.0
    %744 = vmatprep.subr.mxu0 0.0
    %745 = vmatpush2.msra.mxu0 0.0
    %746 = vmatprep.subr.mxu0 0.0
    %747 = vmatpush2.msra.mxu0 0.0
    %748 = vmatprep.subr.mxu0 0.0
    %749 = vmatpush2.msra.mxu0 0.0
    %750 = vmatprep.subr.mxu0 0.0
    %751 = vmatpush2.msra.mxu0 0.0
    %752 = vmatprep.mubr.f32.mxu0 0.0
    %753 = vmatmul.mubr.f32.gmra.mxu0 %v683
    %v754 = vpop.f32.mrf.mxu0
    %v755 = vadd.f32 %v681, %v754
    %v756 = vpop.f32.mrf.mxu0
    %757 = vmatprep.mubr.f32.mxu0 0.0
    %758 = vmatmul.mubr.f32.gmra.mxu0 %v686
    %v759 = vpop.f32.mrf.mxu0
    %v760 = vadd.f32 %v681, %v759
    %v761 = vpop.f32.mrf.mxu0
    %762 = vdwg.mxu0
    %v763 = vmul.f32 %v755, %v755
    %v764 = vmul.f32 %v760, %v760
    %v765 = vmul.f32 %v755, %v763
    %v766 = vmul.f32 %v760, %v764
    %v767 = vmul.f32 %v765, 0.044715
    %v768 = vmul.f32 %v766, 0.044715
    %v769 = vadd.f32 %v755, %v767
    %v770 = vadd.f32 %v760, %v768
    %v771 = vmul.f32 %v769, 0.7978846
    %v772 = vmul.f32 %v770, 0.7978846
    %v773 = vtanh.pop %v771
    %v774 = vtanh.pop %v772
    %v775 = vadd.f32 %v773, 1.0
    %v776 = vadd.f32 %v774, 1.0
    %v777 = vmul.f32 %v775, 0.5
    %v778 = vmul.f32 %v776, 0.5
    %v779 = vmul.f32 %v755, %v777
    %v780 = vmul.f32 %v760, %v778
    %v781 = vld [vmem:[#allocation2 + $0x60] sm:$0xff]
    %v782 = vld [vmem:[#allocation2 + $0x68] sm:$0xff]
    %v783 = vld [vmem:[#allocation2 + $0x70] sm:$0xff]
    %v784 = vld [vmem:[#allocation2 + $0x78] sm:$0xff]
    %v785 = vld [vmem:[#allocation2 + $0x80] sm:$0xff]
    %v786 = vld [vmem:[#allocation2 + $0x88] sm:$0xff]
    %v787 = vld [vmem:[#allocation2 + $0x90] sm:$0xff]
    %v788 = vld [vmem:[#allocation2 + $0x98] sm:$0xff]
    %v789 = vld [vmem:[%s3 + $0x7] sm:$0x1]
    %v790 = vlaneseq
    %v791 = vshrl.u32 %v790, 7
    %v792 = vsub.s32 0, %v791
    %v793 = vrot.slane %v789, %v792
    %vm794 = vcmask 523264
    %v796 = vsel %vm794, %v779, 0
    %v799 = vsel %vm794, %v780, 0
    %801 = vmatprep.subr.mxu0 0.0
    %802 = vmatpush1.msra.mxu0 0.0
    %803 = vmatprep.subr.mxu0 0.0
    %804 = vmatpush1.msra.mxu0 0.0
    %805 = vmatprep.subr.mxu0 0.0
    %806 = vmatpush1.msra.mxu0 0.0
    %807 = vmatprep.subr.mxu0 0.0
    %808 = vmatpush1.msra.mxu0 0.0
    %809 = vmatprep.subr.mxu0 0.0
    %810 = vmatpush1.msra.mxu0 0.0
    %811 = vmatprep.subr.mxu0 0.0
    %812 = vmatpush1.msra.mxu0 0.0
    %813 = vmatprep.subr.mxu0 0.0
    %814 = vmatpush1.msra.mxu0 0.0
    %815 = vmatprep.subr.mxu0 0.0
    %816 = vmatpush1.msra.mxu0 0.0
    %817 = vmatprep.subr.mxu0 0.0
    %818 = vmatpush1.msra.mxu0 %v788
    %819 = vmatprep.subr.mxu0 0.0
    %820 = vmatpush1.msra.mxu0 %v787
    %821 = vmatprep.subr.mxu0 0.0
    %822 = vmatpush1.msra.mxu0 %v786
    %823 = vmatprep.subr.mxu0 0.0
    %824 = vmatpush1.msra.mxu0 %v785
    %825 = vmatprep.subr.mxu0 0.0
    %826 = vmatpush1.msra.mxu0 %v784
    %827 = vmatprep.subr.mxu0 0.0
    %828 = vmatpush1.msra.mxu0 %v783
    %829 = vmatprep.subr.mxu0 0.0
    %830 = vmatpush1.msra.mxu0 %v782
    %831 = vmatprep.subr.mxu0 0.0
    %832 = vmatpush1.msra.mxu0 %v781
    %833 = vmatprep.subr.mxu0 0.0
    %834 = vmatpush2.msra.mxu0 0.0
    %835 = vmatprep.subr.mxu0 0.0
    %836 = vmatpush2.msra.mxu0 0.0
    %837 = vmatprep.subr.mxu0 0.0
    %838 = vmatpush2.msra.mxu0 0.0
    %839 = vmatprep.subr.mxu0 0.0
    %840 = vmatpush2.msra.mxu0 0.0
    %841 = vmatprep.subr.mxu0 0.0
    %842 = vmatpush2.msra.mxu0 0.0
    %843 = vmatprep.subr.mxu0 0.0
    %844 = vmatpush2.msra.mxu0 0.0
    %845 = vmatprep.subr.mxu0 0.0
    %846 = vmatpush2.msra.mxu0 0.0
    %847 = vmatprep.subr.mxu0 0.0
    %848 = vmatpush2.msra.mxu0 0.0
    %849 = vmatprep.subr.mxu0 0.0
    %850 = vmatpush2.msra.mxu0 0.0
    %851 = vmatprep.subr.mxu0 0.0
    %852 = vmatpush2.msra.mxu0 0.0
    %853 = vmatprep.subr.mxu0 0.0
    %854 = vmatpush2.msra.mxu0 0.0
    %855 = vmatprep.subr.mxu0 0.0
    %856 = vmatpush2.msra.mxu0 0.0
    %857 = vmatprep.subr.mxu0 0.0
    %858 = vmatpush2.msra.mxu0 0.0
    %859 = vmatprep.subr.mxu0 0.0
    %860 = vmatpush2.msra.mxu0 0.0
    %861 = vmatprep.subr.mxu0 0.0
    %862 = vmatpush2.msra.mxu0 0.0
    %863 = vmatprep.subr.mxu0 0.0
    %864 = vmatpush2.msra.mxu0 0.0
    %865 = vmatprep.mubr.f32.mxu0 0.0
    %866 = vmatmul.mubr.f32.gmra.mxu0 %v796
    %v867 = vpop.f32.mrf.mxu0
    %v868 = vadd.f32 %v793, %v867
    %v869 = vpop.f32.mrf.mxu0
    %870 = vmatprep.mubr.f32.mxu0 0.0
    %871 = vmatmul.mubr.f32.gmra.mxu0 %v799
    %v872 = vpop.f32.mrf.mxu0
    %v873 = vadd.f32 %v793, %v872
    %v874 = vpop.f32.mrf.mxu0
    %875 = vdwg.mxu0
    %v876 = vadd.f32 %v671, %v868
    %v877 = vadd.f32 %v672, %v873
    %v878 = vld [vmem:[%s3 + $0x8] sm:$0x1]
    %v879 = vld [vmem:[%s3 + $0x9] sm:$0x1]
    %v880 = vsel %vm36, %v876, 0.0
    %881 = vadd.xlane.f32.xlu0 %v880
    %v882 = vpop.xlane.xlu0 %881
    %v883 = vsel %vm36, %v877, 0.0
    %884 = vadd.xlane.f32.xlu0 %v883
    %v885 = vpop.xlane.xlu0 %884
    %v886 = vmul.f32 %v882, %v43
    %v887 = vmul.f32 %v885, %v43
    %v888 = vsub.f32 %v876, %v886
    %v889 = vsub.f32 %v877, %v887
    %v890 = vmul.f32 %v888, %v888
    %v891 = vmul.f32 %v889, %v889
    %v892 = vsel %vm36, %v890, 0.0
    %893 = vadd.xlane.f32.xlu0 %v892
    %v894 = vpop.xlane.xlu0 %893
    %v895 = vsel %vm36, %v891, 0.0
    %896 = vadd.xlane.f32.xlu0 %v895
    %v897 = vpop.xlane.xlu0 %896
    %v898 = vmul.f32 %v894, %v43
    %v899 = vmul.f32 %v897, %v43
    %v900 = vadd.f32 %v898, 1e-12
    %v901 = vadd.f32 %v899, 1e-12
    %v902 = vrsqrt.pop %v900
    %v903 = vrsqrt.pop %v901
    %v904 = vmul.f32 %v888, %v902
    %v905 = vmul.f32 %v889, %v903
    %v906 = vlaneseq
    %v907 = vshrl.u32 %v906, 7
    %v908 = vsub.s32 0, %v907
    %v909 = vrot.slane %v878, %v908
    %v910 = vmul.f32 %v904, %v909
    %v911 = vmul.f32 %v905, %v909
    %v912 = vlaneseq
    %v913 = vshrl.u32 %v912, 7
    %v914 = vsub.s32 0, %v913
    %v915 = vrot.slane %v879, %v914
    %v916 = vadd.f32 %v910, %v915
    %v917 = vadd.f32 %v911, %v915
    %v918 = vld [vmem:[#allocation2 + $0xa0] sm:$0xff]
    %v919 = vld [vmem:[#allocation2 + $0xa8] sm:$0xff]
    %v920 = vld [vmem:[#allocation2 + $0xb0] sm:$0xff]
    %v921 = vld [vmem:[#allocation2 + $0xb8] sm:$0xff]
    %v922 = vld [vmem:[%s3 + $0xa] sm:$0x1]
    %v923 = vlaneseq
    %v924 = vshrl.u32 %v923, 7
    %v925 = vsub.s32 0, %v924
    %v926 = vrot.slane %v922, %v925
    %v928 = vsel %vm36, %v916, 0
    %v931 = vsel %vm36, %v917, 0
    %933 = vmatprep.subr.mxu0 0.0
    %934 = vmatpush1.msra.mxu0 0.0
    %935 = vmatprep.subr.mxu0 0.0
    %936 = vmatpush1.msra.mxu0 0.0
    %937 = vmatprep.subr.mxu0 0.0
    %938 = vmatpush1.msra.mxu0 0.0
    %939 = vmatprep.subr.mxu0 0.0
    %940 = vmatpush1.msra.mxu0 0.0
    %941 = vmatprep.subr.mxu0 0.0
    %942 = vmatpush1.msra.mxu0 0.0
    %943 = vmatprep.subr.mxu0 0.0
    %944 = vmatpush1.msra.mxu0 0.0
    %945 = vmatprep.subr.mxu0 0.0
    %946 = vmatpush1.msra.mxu0 0.0
    %947 = vmatprep.subr.mxu0 0.0
    %948 = vmatpush1.msra.mxu0 0.0
    %949 = vmatprep.subr.mxu0 0.0
    %950 = vmatpush1.msra.mxu0 0.0
    %951 = vmatprep.subr.mxu0 0.0
    %952 = vmatpush1.msra.mxu0 0.0
    %953 = vmatprep.subr.mxu0 0.0
    %954 = vmatpush1.msra.mxu0 0.0
    %955 = vmatprep.subr.mxu0 0.0
    %956 = vmatpush1.msra.mxu0 0.0
    %957 = vmatprep.subr.mxu0 0.0
    %958 = vmatpush1.msra.mxu0 %v921
    %959 = vmatprep.subr.mxu0 0.0
    %960 = vmatpush1.msra.mxu0 %v920
    %961 = vmatprep.subr.mxu0 0.0
    %962 = vmatpush1.msra.mxu0 %v919
    %963 = vmatprep.subr.mxu0 0.0
    %964 = vmatpush1.msra.mxu0 %v918
    %965 = vmatprep.subr.mxu0 0.0
    %966 = vmatpush2.msra.mxu0 0.0
    %967 = vmatprep.subr.mxu0 0.0
    %968 = vmatpush2.msra.mxu0 0.0
    %969 = vmatprep.subr.mxu0 0.0
    %970 = vmatpush2.msra.mxu0 0.0
    %971 = vmatprep.subr.mxu0 0.0
    %972 = vmatpush2.msra.mxu0 0.0
    %973 = vmatprep.subr.mxu0 0.0
    %974 = vmatpush2.msra.mxu0 0.0
    %975 = vmatprep.subr.mxu0 0.0
    %976 = vmatpush2.msra.mxu0 0.0
    %977 = vmatprep.subr.mxu0 0.0
    %978 = vmatpush2.msra.mxu0 0.0
    %979 = vmatprep.subr.mxu0 0.0
    %980 = vmatpush2.msra.mxu0 0.0
    %981 = vmatprep.subr.mxu0 0.0
    %982 = vmatpush2.msra.mxu0 0.0
    %983 = vmatprep.subr.mxu0 0.0
    %984 = vmatpush2.msra.mxu0 0.0
    %985 = vmatprep.subr.mxu0 0.0
    %986 = vmatpush2.msra.mxu0 0.0
    %987 = vmatprep.subr.mxu0 0.0
    %988 = vmatpush2.msra.mxu0 0.0
    %989 = vmatprep.subr.mxu0 0.0
    %990 = vmatpush2.msra.mxu0 0.0
    %991 = vmatprep.subr.mxu0 0.0
    %992 = vmatpush2.msra.mxu0 0.0
    %993 = vmatprep.subr.mxu0 0.0
    %994 = vmatpush2.msra.mxu0 0.0
    %995 = vmatprep.subr.mxu0 0.0
    %996 = vmatpush2.msra.mxu0 0.0
    %997 = vmatprep.mubr.f32.mxu0 0.0
    %998 = vmatmul.mubr.f32.gmra.mxu0 %v928
    %v999 = vpop.f32.mrf.mxu0
    %v1000 = vadd.f32 %v926, %v999
    %v1001 = vpop.f32.mrf.mxu0
    %1002 = vmatprep.mubr.f32.mxu0 0.0
    %1003 = vmatmul.mubr.f32.gmra.mxu0 %v931
    %v1004 = vpop.f32.mrf.mxu0
    %v1005 = vadd.f32 %v926, %v1004
    %v1006 = vpop.f32.mrf.mxu0
    %1007 = vdwg.mxu0
    %v1008 = vld [vmem:[#allocation2 + $0xc0] sm:$0xff]
    %v1009 = vld [vmem:[#allocation2 + $0xc8] sm:$0xff]
    %v1010 = vld [vmem:[#allocation2 + $0xd0] sm:$0xff]
    %v1011 = vld [vmem:[#allocation2 + $0xd8] sm:$0xff]
    %vm1012 = vcmask 130048
    %v1014 = vsel %vm1012, 0.0, 0
    %1016 = vmatprep.subr.mxu0 0.0
    %1017 = vmatpush1.msra.mxu0 0.0
    %1018 = vmatprep.subr.mxu0 0.0
    %1019 = vmatpush1.msra.mxu0 0.0
    %1020 = vmatprep.subr.mxu0 0.0
    %1021 = vmatpush1.msra.mxu0 0.0
    %1022 = vmatprep.subr.mxu0 0.0
    %1023 = vmatpush1.msra.mxu0 0.0
    %1024 = vmatprep.subr.mxu0 0.0
    %1025 = vmatpush1.msra.mxu0 0.0
    %1026 = vmatprep.subr.mxu0 0.0
    %1027 = vmatpush1.msra.mxu0 0.0
    %1028 = vmatprep.subr.mxu0 0.0
    %1029 = vmatpush1.msra.mxu0 0.0
    %1030 = vmatprep.subr.mxu0 0.0
    %1031 = vmatpush1.msra.mxu0 0.0
    %1032 = vmatprep.subr.mxu0 0.0
    %1033 = vmatpush1.msra.mxu0 0.0
    %1034 = vmatprep.subr.mxu0 0.0
    %1035 = vmatpush1.msra.mxu0 0.0
    %1036 = vmatprep.subr.mxu0 0.0
    %1037 = vmatpush1.msra.mxu0 0.0
    %1038 = vmatprep.subr.mxu0 0.0
    %1039 = vmatpush1.msra.mxu0 0.0
    %1040 = vmatprep.subr.mxu0 0.0
    %1041 = vmatpush1.msra.mxu0 0.0
    %1042 = vmatprep.subr.mxu0 0.0
    %1043 = vmatpush1.msra.mxu0 0.0
    %1044 = vmatprep.subr.mxu0 0.0
    %1045 = vmatpush1.msra.mxu0 %v1009
    %1046 = vmatprep.subr.mxu0 0.0
    %1047 = vmatpush1.msra.mxu0 %v1008
    %1048 = vmatprep.subr.mxu0 0.0
    %1049 = vmatpush2.msra.mxu0 0.0
    %1050 = vmatprep.subr.mxu0 0.0
    %1051 = vmatpush2.msra.mxu0 0.0
    %1052 = vmatprep.subr.mxu0 0.0
    %1053 = vmatpush2.msra.mxu0 0.0
    %1054 = vmatprep.subr.mxu0 0.0
    %1055 = vmatpush2.msra.mxu0 0.0
    %1056 = vmatprep.subr.mxu0 0.0
    %1057 = vmatpush2.msra.mxu0 0.0
    %1058 = vmatprep.subr.mxu0 0.0
    %1059 = vmatpush2.msra.mxu0 0.0
    %1060 = vmatprep.subr.mxu0 0.0
    %1061 = vmatpush2.msra.mxu0 0.0
    %1062 = vmatprep.subr.mxu0 0.0
    %1063 = vmatpush2.msra.mxu0 0.0
    %1064 = vmatprep.subr.mxu0 0.0
    %1065 = vmatpush2.msra.mxu0 0.0
    %1066 = vmatprep.subr.mxu0 0.0
    %1067 = vmatpush2.msra.mxu0 0.0
    %1068 = vmatprep.subr.mxu0 0.0
    %1069 = vmatpush2.msra.mxu0 0.0
    %1070 = vmatprep.subr.mxu0 0.0
    %1071 = vmatpush2.msra.mxu0 0.0
    %1072 = vmatprep.subr.mxu0 0.0
    %1073 = vmatpush2.msra.mxu0 0.0
    %1074 = vmatprep.subr.mxu0 0.0
    %1075 = vmatpush2.msra.mxu0 0.0
    %1076 = vmatprep.subr.mxu0 0.0
    %1077 = vmatpush2.msra.mxu0 0.0
    %1078 = vmatprep.subr.mxu0 0.0
    %1079 = vmatpush2.msra.mxu0 0.0
    %1080 = vmatprep.mubr.f32.mxu0 0.0
    %1081 = vmatmul.mubr.f32.gmra.mxu0 %v1014
    %v1082 = vpop.f32.mrf.mxu0
    %v1083 = vadd.f32 0.0, %v1082
    %v1084 = vpop.f32.mrf.mxu0
    %1085 = vdwg.mxu0
    %v1087 = vrot.slane %v1083, 1
    %v1090 = vadd.f32 %v1000, %v1083
    %v1091 = vadd.f32 %v1005, %v1087
    %1092 = vmatprep.subr.mxu0 0.0
    %1093 = vmatpush1.msra.mxu0 0.0
    %1094 = vmatprep.subr.mxu0 0.0
    %1095 = vmatpush1.msra.mxu0 0.0
    %1096 = vmatprep.subr.mxu0 0.0
    %1097 = vmatpush1.msra.mxu0 0.0
    %1098 = vmatprep.subr.mxu0 0.0
    %1099 = vmatpush1.msra.mxu0 0.0
    %1100 = vmatprep.subr.mxu0 0.0
    %1101 = vmatpush1.msra.mxu0 0.0
    %1102 = vmatprep.subr.mxu0 0.0
    %1103 = vmatpush1.msra.mxu0 0.0
    %1104 = vmatprep.subr.mxu0 0.0
    %1105 = vmatpush1.msra.mxu0 0.0
    %1106 = vmatprep.subr.mxu0 0.0
    %1107 = vmatpush1.msra.mxu0 0.0
    %1108 = vmatprep.subr.mxu0 0.0
    %1109 = vmatpush1.msra.mxu0 0.0
    %1110 = vmatprep.subr.mxu0 0.0
    %1111 = vmatpush1.msra.mxu0 0.0
    %1112 = vmatprep.subr.mxu0 0.0
    %1113 = vmatpush1.msra.mxu0 0.0
    %1114 = vmatprep.subr.mxu0 0.0
    %1115 = vmatpush1.msra.mxu0 0.0
    %1116 = vmatprep.subr.mxu0 0.0
    %1117 = vmatpush1.msra.mxu0 0.0
    %1118 = vmatprep.subr.mxu0 0.0
    %1119 = vmatpush1.msra.mxu0 0.0
    %1120 = vmatprep.subr.mxu0 0.0
    %1121 = vmatpush1.msra.mxu0 %v1011
    %1122 = vmatprep.subr.mxu0 0.0
    %1123 = vmatpush1.msra.mxu0 %v1010
    %1124 = vmatprep.subr.mxu0 0.0
    %1125 = vmatpush2.msra.mxu0 0.0
    %1126 = vmatprep.subr.mxu0 0.0
    %1127 = vmatpush2.msra.mxu0 0.0
    %1128 = vmatprep.subr.mxu0 0.0
    %1129 = vmatpush2.msra.mxu0 0.0
    %1130 = vmatprep.subr.mxu0 0.0
    %1131 = vmatpush2.msra.mxu0 0.0
    %1132 = vmatprep.subr.mxu0 0.0
    %1133 = vmatpush2.msra.mxu0 0.0
    %1134 = vmatprep.subr.mxu0 0.0
    %1135 = vmatpush2.msra.mxu0 0.0
    %1136 = vmatprep.subr.mxu0 0.0
    %1137 = vmatpush2.msra.mxu0 0.0
    %1138 = vmatprep.subr.mxu0 0.0
    %1139 = vmatpush2.msra.mxu0 0.0
    %1140 = vmatprep.subr.mxu0 0.0
    %1141 = vmatpush2.msra.mxu0 0.0
    %1142 = vmatprep.subr.mxu0 0.0
    %1143 = vmatpush2.msra.mxu0 0.0
    %1144 = vmatprep.subr.mxu0 0.0
    %1145 = vmatpush2.msra.mxu0 0.0
    %1146 = vmatprep.subr.mxu0 0.0
    %1147 = vmatpush2.msra.mxu0 0.0
    %1148 = vmatprep.subr.mxu0 0.0
    %1149 = vmatpush2.msra.mxu0 0.0
    %1150 = vmatprep.subr.mxu0 0.0
    %1151 = vmatpush2.msra.mxu0 0.0
    %1152 = vmatprep.subr.mxu0 0.0
    %1153 = vmatpush2.msra.mxu0 0.0
    %1154 = vmatprep.subr.mxu0 0.0
    %1155 = vmatpush2.msra.mxu0 0.0
    %1156 = vmatprep.mubr.f32.mxu0 0.0
    %1157 = vmatmul.mubr.f32.gmra.mxu0 %v1014
    %v1158 = vpop.f32.mrf.mxu0
    %v1159 = vadd.f32 0.0, %v1158
    %v1160 = vpop.f32.mrf.mxu0
    %1161 = vdwg.mxu0
    %v1163 = vrot.slane %v1159, 1
    %v1164 = vrot.slane %v1159, 2
    %1165 = vrot.lane.b32.xlu0 %v1163, 64
    %v1166 = vpop.permute.xlu0 %1165
    %1167 = vrot.lane.b32.xlu0 %v1164, 64
    %v1168 = vpop.permute.xlu0 %1167
    %v1171 = vadd.f32 %v1000, %v1166
    %v1172 = vadd.f32 %v1005, %v1168
    %v1173 = vxor.u32 %v1090, 2147483648
    %v1174 = vxor.u32 %v1091, 2147483648
    %v1175 = vmul.f32 %v1173, 1.442695
    %v1176 = vpow.pop %v1175
    %v1177 = vmul.f32 %v1174, 1.442695
    %v1178 = vpow.pop %v1177
    %v1179 = vadd.f32 %v1176, 1.0
    %v1180 = vadd.f32 %v1178, 1.0
    %v1181 = vrcp.pop %v1179
    %v1182 = vmul.f32 1.0, %v1181
    %v1183 = vrcp.pop %v1180
    %v1184 = vmul.f32 1.0, %v1183
    %v1185 = vtanh.pop %v1090
    %v1186 = vtanh.pop %v1091
    %v1187 = vmul.f32 %v1182, 0.0
    %v1188 = vmul.f32 %v1184, 0.0
    %1191 = vrot.lane.b32.xlu0 %v1185, 96
    %v1192 = vpop.permute.xlu0 %1191
    %1193 = vrot.lane.b32.xlu0 %v1186, 96
    %v1194 = vpop.permute.xlu0 %1193
    %v1197 = vmul.f32 %v1182, %v1192
    %v1198 = vmul.f32 %v1184, %v1194
    %1201 = vrot.lane.b32.xlu0 %v1197, 16
    %v1202 = vpop.permute.xlu0 %1201
    %1203 = vrot.lane.b32.xlu0 %v1198, 16
    %v1204 = vpop.permute.xlu0 %1203
    %v1207 = vadd.f32 %v1187, %v1202
    %v1208 = vadd.f32 %v1188, %v1204
    %v1209 = vtanh.pop %v1207
    %v1210 = vtanh.pop %v1208
    %1213 = vrot.lane.b32.xlu0 %v1209, 32
    %v1214 = vpop.permute.xlu0 %1213
    %1215 = vrot.lane.b32.xlu0 %v1210, 32
    %v1216 = vpop.permute.xlu0 %1215
    %v1219 = vmul.f32 %v1182, %v1214
    %v1220 = vmul.f32 %v1184, %v1216
    %v1221 = vxor.u32 %v1171, 2147483648
    %v1222 = vxor.u32 %v1172, 2147483648
    %v1223 = vmul.f32 %v1221, 1.442695
    %v1224 = vpow.pop %v1223
    %v1225 = vmul.f32 %v1222, 1.442695
    %v1226 = vpow.pop %v1225
    %v1227 = vadd.f32 %v1224, 1.0
    %v1228 = vadd.f32 %v1226, 1.0
    %v1229 = vrcp.pop %v1227
    %v1230 = vmul.f32 1.0, %v1229
    %v1231 = vrcp.pop %v1228
    %v1232 = vmul.f32 1.0, %v1231
    %v1233 = vtanh.pop %v1171
    %v1234 = vtanh.pop %v1172
    %v1235 = vmul.f32 %v1230, 0.0
    %v1236 = vmul.f32 %v1232, 0.0
    %1239 = vrot.lane.b32.xlu0 %v1233, 96
    %v1240 = vpop.permute.xlu0 %1239
    %1241 = vrot.lane.b32.xlu0 %v1234, 96
    %v1242 = vpop.permute.xlu0 %1241
    %v1245 = vmul.f32 %v1230, %v1240
    %v1246 = vmul.f32 %v1232, %v1242
    %1249 = vrot.lane.b32.xlu0 %v1245, 16
    %v1250 = vpop.permute.xlu0 %1249
    %1251 = vrot.lane.b32.xlu0 %v1246, 16
    %v1252 = vpop.permute.xlu0 %1251
    %v1255 = vadd.f32 %v1235, %v1250
    %v1256 = vadd.f32 %v1236, %v1252
    %v1257 = vtanh.pop %v1255
    %v1258 = vtanh.pop %v1256
    %1261 = vrot.lane.b32.xlu0 %v1257, 32
    %v1262 = vpop.permute.xlu0 %1261
    %1263 = vrot.lane.b32.xlu0 %v1258, 32
    %v1264 = vpop.permute.xlu0 %1263
    %v1267 = vmul.f32 %v1230, %v1262
    %v1268 = vmul.f32 %v1232, %v1264
    %v1271 = vrot.slane %v1220, 7
    %vm1272 = vcmask 1041409
    %v1273 = vsel %vm1272, %v1271, %v1219
    %1274 = vrot.lane.b32.xlu0 %v1273, 80
    %v1275 = vpop.permute.xlu0 %1274
    %v1276 = vsel %vm1012, %v1275, 0
    %1278 = vmatprep.subr.mxu0 0.0
    %1279 = vmatpush1.msra.mxu0 0.0
    %1280 = vmatprep.subr.mxu0 0.0
    %1281 = vmatpush1.msra.mxu0 0.0
    %1282 = vmatprep.subr.mxu0 0.0
    %1283 = vmatpush1.msra.mxu0 0.0
    %1284 = vmatprep.subr.mxu0 0.0
    %1285 = vmatpush1.msra.mxu0 0.0
    %1286 = vmatprep.subr.mxu0 0.0
    %1287 = vmatpush1.msra.mxu0 0.0
    %1288 = vmatprep.subr.mxu0 0.0
    %1289 = vmatpush1.msra.mxu0 0.0
    %1290 = vmatprep.subr.mxu0 0.0
    %1291 = vmatpush1.msra.mxu0 0.0
    %1292 = vmatprep.subr.mxu0 0.0
    %1293 = vmatpush1.msra.mxu0 0.0
    %1294 = vmatprep.subr.mxu0 0.0
    %1295 = vmatpush1.msra.mxu0 0.0
    %1296 = vmatprep.subr.mxu0 0.0
    %1297 = vmatpush1.msra.mxu0 0.0
    %1298 = vmatprep.subr.mxu0 0.0
    %1299 = vmatpush1.msra.mxu0 0.0
    %1300 = vmatprep.subr.mxu0 0.0
    %1301 = vmatpush1.msra.mxu0 0.0
    %1302 = vmatprep.subr.mxu0 0.0
    %1303 = vmatpush1.msra.mxu0 0.0
    %1304 = vmatprep.subr.mxu0 0.0
    %1305 = vmatpush1.msra.mxu0 0.0
    %1306 = vmatprep.subr.mxu0 0.0
    %1307 = vmatpush1.msra.mxu0 %v1009
    %1308 = vmatprep.subr.mxu0 0.0
    %1309 = vmatpush1.msra.mxu0 %v1008
    %1310 = vmatprep.subr.mxu0 0.0
    %1311 = vmatpush2.msra.mxu0 0.0
    %1312 = vmatprep.subr.mxu0 0.0
    %1313 = vmatpush2.msra.mxu0 0.0
    %1314 = vmatprep.subr.mxu0 0.0
    %1315 = vmatpush2.msra.mxu0 0.0
    %1316 = vmatprep.subr.mxu0 0.0
    %1317 = vmatpush2.msra.mxu0 0.0
    %1318 = vmatprep.subr.mxu0 0.0
    %1319 = vmatpush2.msra.mxu0 0.0
    %1320 = vmatprep.subr.mxu0 0.0
    %1321 = vmatpush2.msra.mxu0 0.0
    %1322 = vmatprep.subr.mxu0 0.0
    %1323 = vmatpush2.msra.mxu0 0.0
    %1324 = vmatprep.subr.mxu0 0.0
    %1325 = vmatpush2.msra.mxu0 0.0
    %1326 = vmatprep.subr.mxu0 0.0
    %1327 = vmatpush2.msra.mxu0 0.0
    %1328 = vmatprep.subr.mxu0 0.0
    %1329 = vmatpush2.msra.mxu0 0.0
    %1330 = vmatprep.subr.mxu0 0.0
    %1331 = vmatpush2.msra.mxu0 0.0
    %1332 = vmatprep.subr.mxu0 0.0
    %1333 = vmatpush2.msra.mxu0 0.0
    %1334 = vmatprep.subr.mxu0 0.0
    %1335 = vmatpush2.msra.mxu0 0.0
    %1336 = vmatprep.subr.mxu0 0.0
    %1337 = vmatpush2.msra.mxu0 0.0
    %1338 = vmatprep.subr.mxu0 0.0
    %1339 = vmatpush2.msra.mxu0 0.0
    %1340 = vmatprep.subr.mxu0 0.0
    %1341 = vmatpush2.msra.mxu0 0.0
    %1342 = vmatprep.mubr.f32.mxu0 0.0
    %1343 = vmatmul.mubr.f32.gmra.mxu0 %v1276
    %v1344 = vpop.f32.mrf.mxu0
    %v1345 = vadd.f32 0.0, %v1344
    %v1346 = vpop.f32.mrf.mxu0
    %1347 = vdwg.mxu0
    %v1349 = vrot.slane %v1345, 7
    %v1352 = vadd.f32 %v1000, %v1349
    %v1353 = vadd.f32 %v1005, %v1345
    %v1356 = vrot.slane %v1267, 7
    %v1357 = vrot.slane %v1268, 6
    %v1358 = vsel %vm1272, %v1357, %v1356
    %1359 = vrot.lane.b32.xlu0 %v1358, 16
    %v1360 = vpop.permute.xlu0 %1359
    %v1361 = vsel %vm1012, %v1360, 0
    %1363 = vmatprep.subr.mxu0 0.0
    %1364 = vmatpush1.msra.mxu0 0.0
    %1365 = vmatprep.subr.mxu0 0.0
    %1366 = vmatpush1.msra.mxu0 0.0
    %1367 = vmatprep.subr.mxu0 0.0
    %1368 = vmatpush1.msra.mxu0 0.0
    %1369 = vmatprep.subr.mxu0 0.0
    %1370 = vmatpush1.msra.mxu0 0.0
    %1371 = vmatprep.subr.mxu0 0.0
    %1372 = vmatpush1.msra.mxu0 0.0
    %1373 = vmatprep.subr.mxu0 0.0
    %1374 = vmatpush1.msra.mxu0 0.0
    %1375 = vmatprep.subr.mxu0 0.0
    %1376 = vmatpush1.msra.mxu0 0.0
    %1377 = vmatprep.subr.mxu0 0.0
    %1378 = vmatpush1.msra.mxu0 0.0
    %1379 = vmatprep.subr.mxu0 0.0
    %1380 = vmatpush1.msra.mxu0 0.0
    %1381 = vmatprep.subr.mxu0 0.0
    %1382 = vmatpush1.msra.mxu0 0.0
    %1383 = vmatprep.subr.mxu0 0.0
    %1384 = vmatpush1.msra.mxu0 0.0
    %1385 = vmatprep.subr.mxu0 0.0
    %1386 = vmatpush1.msra.mxu0 0.0
    %1387 = vmatprep.subr.mxu0 0.0
    %1388 = vmatpush1.msra.mxu0 0.0
    %1389 = vmatprep.subr.mxu0 0.0
    %1390 = vmatpush1.msra.mxu0 0.0
    %1391 = vmatprep.subr.mxu0 0.0
    %1392 = vmatpush1.msra.mxu0 %v1011
    %1393 = vmatprep.subr.mxu0 0.0
    %1394 = vmatpush1.msra.mxu0 %v1010
    %1395 = vmatprep.subr.mxu0 0.0
    %1396 = vmatpush2.msra.mxu0 0.0
    %1397 = vmatprep.subr.mxu0 0.0
    %1398 = vmatpush2.msra.mxu0 0.0
    %1399 = vmatprep.subr.mxu0 0.0
    %1400 = vmatpush2.msra.mxu0 0.0
    %1401 = vmatprep.subr.mxu0 0.0
    %1402 = vmatpush2.msra.mxu0 0.0
    %1403 = vmatprep.subr.mxu0 0.0
    %1404 = vmatpush2.msra.mxu0 0.0
    %1405 = vmatprep.subr.mxu0 0.0
    %1406 = vmatpush2.msra.mxu0 0.0
    %1407 = vmatprep.subr.mxu0 0.0
    %1408 = vmatpush2.msra.mxu0 0.0
    %1409 = vmatprep.subr.mxu0 0.0
    %1410 = vmatpush2.msra.mxu0 0.0
    %1411 = vmatprep.subr.mxu0 0.0
    %1412 = vmatpush2.msra.mxu0 0.0
    %1413 = vmatprep.subr.mxu0 0.0
    %1414 = vmatpush2.msra.mxu0 0.0
    %1415 = vmatprep.subr.mxu0 0.0
    %1416 = vmatpush2.msra.mxu0 0.0
    %1417 = vmatprep.subr.mxu0 0.0
    %1418 = vmatpush2.msra.mxu0 0.0
    %1419 = vmatprep.subr.mxu0 0.0
    %1420 = vmatpush2.msra.mxu0 0.0
    %1421 = vmatprep.subr.mxu0 0.0
    %1422 = vmatpush2.msra.mxu0 0.0
    %1423 = vmatprep.subr.mxu0 0.0
    %1424 = vmatpush2.msra.mxu0 0.0
    %1425 = vmatprep.subr.mxu0 0.0
    %1426 = vmatpush2.msra.mxu0 0.0
    %1427 = vmatprep.mubr.f32.mxu0 0.0
    %1428 = vmatmul.mubr.f32.gmra.mxu0 %v1361
    %v1429 = vpop.f32.mrf.mxu0
    %v1430 = vadd.f32 0.0, %v1429
    %v1431 = vpop.f32.mrf.mxu0
    %1432 = vdwg.mxu0
    %v1434 = vrot.slane %v1430, 2
    %v1435 = vrot.slane %v1430, 3
    %1436 = vrot.lane.b32.xlu0 %v1434, 64
    %v1437 = vpop.permute.xlu0 %1436
    %1438 = vrot.lane.b32.xlu0 %v1435, 64
    %v1439 = vpop.permute.xlu0 %1438
    %v1442 = vadd.f32 %v1000, %v1437
    %v1443 = vadd.f32 %v1005, %v1439
    %v1444 = vxor.u32 %v1352, 2147483648
    %v1445 = vxor.u32 %v1353, 2147483648
    %v1446 = vmul.f32 %v1444, 1.442695
    %v1447 = vpow.pop %v1446
    %v1448 = vmul.f32 %v1445, 1.442695
    %v1449 = vpow.pop %v1448
    %v1450 = vadd.f32 %v1447, 1.0
    %v1451 = vadd.f32 %v1449, 1.0
    %v1452 = vrcp.pop %v1450
    %v1453 = vmul.f32 1.0, %v1452
    %v1454 = vrcp.pop %v1451
    %v1455 = vmul.f32 1.0, %v1454
    %v1456 = vtanh.pop %v1352
    %v1457 = vtanh.pop %v1353
    %v1460 = vrot.slane %v1207, 7
    %v1461 = vrot.slane %v1208, 7
    %v1464 = vmul.f32 %v1453, %v1460
    %v1465 = vmul.f32 %v1455, %v1461
    %1468 = vrot.lane.b32.xlu0 %v1456, 96
    %v1469 = vpop.permute.xlu0 %1468
    %1470 = vrot.lane.b32.xlu0 %v1457, 96
    %v1471 = vpop.permute.xlu0 %1470
    %v1474 = vmul.f32 %v1453, %v1469
    %v1475 = vmul.f32 %v1455, %v1471
    %1478 = vrot.lane.b32.xlu0 %v1474, 16
    %v1479 = vpop.permute.xlu0 %1478
    %1480 = vrot.lane.b32.xlu0 %v1475, 16
    %v1481 = vpop.permute.xlu0 %1480
    %v1484 = vadd.f32 %v1464, %v1479
    %v1485 = vadd.f32 %v1465, %v1481
    %v1486 = vtanh.pop %v1484
    %v1487 = vtanh.pop %v1485
    %1490 = vrot.lane.b32.xlu0 %v1486, 32
    %v1491 = vpop.permute.xlu0 %1490
    %1492 = vrot.lane.b32.xlu0 %v1487, 32
    %v1493 = vpop.permute.xlu0 %1492
    %v1496 = vmul.f32 %v1453, %v1491
    %v1497 = vmul.f32 %v1455, %v1493
    %v1498 = vxor.u32 %v1442, 2147483648
    %v1499 = vxor.u32 %v1443, 2147483648
    %v1500 = vmul.f32 %v1498, 1.442695
    %v1501 = vpow.pop %v1500
    %v1502 = vmul.f32 %v1499, 1.442695
    %v1503 = vpow.pop %v1502
    %v1504 = vadd.f32 %v1501, 1.0
    %v1505 = vadd.f32 %v1503, 1.0
    %v1506 = vrcp.pop %v1504
    %v1507 = vmul.f32 1.0, %v1506
    %v1508 = vrcp.pop %v1505
    %v1509 = vmul.f32 1.0, %v1508
    %v1510 = vtanh.pop %v1442
    %v1511 = vtanh.pop %v1443
    %v1514 = vrot.slane %v1255, 1
    %v1515 = vrot.slane %v1256, 1
    %v1518 = vmul.f32 %v1507, %v1514
    %v1519 = vmul.f32 %v1509, %v1515
    %1522 = vrot.lane.b32.xlu0 %v1510, 96
    %v1523 = vpop.permute.xlu0 %1522
    %1524 = vrot.lane.b32.xlu0 %v1511, 96
    %v1525 = vpop.permute.xlu0 %1524
    %v1528 = vmul.f32 %v1507, %v1523
    %v1529 = vmul.f32 %v1509, %v1525
    %1532 = vrot.lane.b32.xlu0 %v1528, 16
    %v1533 = vpop.permute.xlu0 %1532
    %1534 = vrot.lane.b32.xlu0 %v1529, 16
    %v1535 = vpop.permute.xlu0 %1534
    %v1538 = vadd.f32 %v1518, %v1533
    %v1539 = vadd.f32 %v1519, %v1535
    %v1540 = vtanh.pop %v1538
    %v1541 = vtanh.pop %v1539
    %1544 = vrot.lane.b32.xlu0 %v1540, 32
    %v1545 = vpop.permute.xlu0 %1544
    %1546 = vrot.lane.b32.xlu0 %v1541, 32
    %v1547 = vpop.permute.xlu0 %1546
    %v1550 = vmul.f32 %v1507, %v1545
    %v1551 = vmul.f32 %v1509, %v1547
    %v1554 = vrot.slane %v1496, 1
    %v1555 = vsel %vm1272, %v1497, %v1554
    %1556 = vrot.lane.b32.xlu0 %v1555, 80
    %v1557 = vpop.permute.xlu0 %1556
    %v1558 = vsel %vm1012, %v1557, 0
    %1560 = vmatprep.subr.mxu0 0.0
    %1561 = vmatpush1.msra.mxu0 0.0
    %1562 = vmatprep.subr.mxu0 0.0
    %1563 = vmatpush1.msra.mxu0 0.0
    %1564 = vmatprep.subr.mxu0 0.0
    %1565 = vmatpush1.msra.mxu0 0.0
    %1566 = vmatprep.subr.mxu0 0.0
    %1567 = vmatpush1.msra.mxu0 0.0
    %1568 = vmatprep.subr.mxu0 0.0
    %1569 = vmatpush1.msra.mxu0 0.0
    %1570 = vmatprep.subr.mxu0 0.0
    %1571 = vmatpush1.msra.mxu0 0.0
    %1572 = vmatprep.subr.mxu0 0.0
    %1573 = vmatpush1.msra.mxu0 0.0
    %1574 = vmatprep.subr.mxu0 0.0
    %1575 = vmatpush1.msra.mxu0 0.0
    %1576 = vmatprep.subr.mxu0 0.0
    %1577 = vmatpush1.msra.mxu0 0.0
    %1578 = vmatprep.subr.mxu0 0.0
    %1579 = vmatpush1.msra.mxu0 0.0
    %1580 = vmatprep.subr.mxu0 0.0
    %1581 = vmatpush1.msra.mxu0 0.0
    %1582 = vmatprep.subr.mxu0 0.0
    %1583 = vmatpush1.msra.mxu0 0.0
    %1584 = vmatprep.subr.mxu0 0.0
    %1585 = vmatpush1.msra.mxu0 0.0
    %1586 = vmatprep.subr.mxu0 0.0
    %1587 = vmatpush1.msra.mxu0 0.0
    %1588 = vmatprep.subr.mxu0 0.0
    %1589 = vmatpush1.msra.mxu0 %v1009
    %1590 = vmatprep.subr.mxu0 0.0
    %1591 = vmatpush1.msra.mxu0 %v1008
    %1592 = vmatprep.subr.mxu0 0.0
    %1593 = vmatpush2.msra.mxu0 0.0
    %1594 = vmatprep.subr.mxu0 0.0
    %1595 = vmatpush2.msra.mxu0 0.0
    %1596 = vmatprep.subr.mxu0 0.0
    %1597 = vmatpush2.msra.mxu0 0.0
    %1598 = vmatprep.subr.mxu0 0.0
    %1599 = vmatpush2.msra.mxu0 0.0
    %1600 = vmatprep.subr.mxu0 0.0
    %1601 = vmatpush2.msra.mxu0 0.0
    %1602 = vmatprep.subr.mxu0 0.0
    %1603 = vmatpush2.msra.mxu0 0.0
    %1604 = vmatprep.subr.mxu0 0.0
    %1605 = vmatpush2.msra.mxu0 0.0
    %1606 = vmatprep.subr.mxu0 0.0
    %1607 = vmatpush2.msra.mxu0 0.0
    %1608 = vmatprep.subr.mxu0 0.0
    %1609 = vmatpush2.msra.mxu0 0.0
    %1610 = vmatprep.subr.mxu0 0.0
    %1611 = vmatpush2.msra.mxu0 0.0
    %1612 = vmatprep.subr.mxu0 0.0
    %1613 = vmatpush2.msra.mxu0 0.0
    %1614 = vmatprep.subr.mxu0 0.0
    %1615 = vmatpush2.msra.mxu0 0.0
    %1616 = vmatprep.subr.mxu0 0.0
    %1617 = vmatpush2.msra.mxu0 0.0
    %1618 = vmatprep.subr.mxu0 0.0
    %1619 = vmatpush2.msra.mxu0 0.0
    %1620 = vmatprep.subr.mxu0 0.0
    %1621 = vmatpush2.msra.mxu0 0.0
    %1622 = vmatprep.subr.mxu0 0.0
    %1623 = vmatpush2.msra.mxu0 0.0
    %1624 = vmatprep.mubr.f32.mxu0 0.0
    %1625 = vmatmul.mubr.f32.gmra.mxu0 %v1558
    %v1626 = vpop.f32.mrf.mxu0
    %v1627 = vadd.f32 0.0, %v1626
    %v1628 = vpop.f32.mrf.mxu0
    %1629 = vdwg.mxu0
    %v1631 = vrot.slane %v1627, 6
    %v1632 = vrot.slane %v1627, 7
    %v1635 = vadd.f32 %v1000, %v1631
    %v1636 = vadd.f32 %v1005, %v1632
    %v1639 = vrot.slane %v1550, 6
    %v1640 = vrot.slane %v1551, 5
    %v1641 = vsel %vm1272, %v1640, %v1639
    %1642 = vrot.lane.b32.xlu0 %v1641, 16
    %v1643 = vpop.permute.xlu0 %1642
    %v1644 = vsel %vm1012, %v1643, 0
    %1646 = vmatprep.subr.mxu0 0.0
    %1647 = vmatpush1.msra.mxu0 0.0
    %1648 = vmatprep.subr.mxu0 0.0
    %1649 = vmatpush1.msra.mxu0 0.0
    %1650 = vmatprep.subr.mxu0 0.0
    %1651 = vmatpush1.msra.mxu0 0.0
    %1652 = vmatprep.subr.mxu0 0.0
    %1653 = vmatpush1.msra.mxu0 0.0
    %1654 = vmatprep.subr.mxu0 0.0
    %1655 = vmatpush1.msra.mxu0 0.0
    %1656 = vmatprep.subr.mxu0 0.0
    %1657 = vmatpush1.msra.mxu0 0.0
    %1658 = vmatprep.subr.mxu0 0.0
    %1659 = vmatpush1.msra.mxu0 0.0
    %1660 = vmatprep.subr.mxu0 0.0
    %1661 = vmatpush1.msra.mxu0 0.0
    %1662 = vmatprep.subr.mxu0 0.0
    %1663 = vmatpush1.msra.mxu0 0.0
    %1664 = vmatprep.subr.mxu0 0.0
    %1665 = vmatpush1.msra.mxu0 0.0
    %1666 = vmatprep.subr.mxu0 0.0
    %1667 = vmatpush1.msra.mxu0 0.0
    %1668 = vmatprep.subr.mxu0 0.0
    %1669 = vmatpush1.msra.mxu0 0.0
    %1670 = vmatprep.subr.mxu0 0.0
    %1671 = vmatpush1.msra.mxu0 0.0
    %1672 = vmatprep.subr.mxu0 0.0
    %1673 = vmatpush1.msra.mxu0 0.0
    %1674 = vmatprep.subr.mxu0 0.0
    %1675 = vmatpush1.msra.mxu0 %v1011
    %1676 = vmatprep.subr.mxu0 0.0
    %1677 = vmatpush1.msra.mxu0 %v1010
    %1678 = vmatprep.subr.mxu0 0.0
    %1679 = vmatpush2.msra.mxu0 0.0
    %1680 = vmatprep.subr.mxu0 0.0
    %1681 = vmatpush2.msra.mxu0 0.0
    %1682 = vmatprep.subr.mxu0 0.0
    %1683 = vmatpush2.msra.mxu0 0.0
    %1684 = vmatprep.subr.mxu0 0.0
    %1685 = vmatpush2.msra.mxu0 0.0
    %1686 = vmatprep.subr.mxu0 0.0
    %1687 = vmatpush2.msra.mxu0 0.0
    %1688 = vmatprep.subr.mxu0 0.0
    %1689 = vmatpush2.msra.mxu0 0.0
    %1690 = vmatprep.subr.mxu0 0.0
    %1691 = vmatpush2.msra.mxu0 0.0
    %1692 = vmatprep.subr.mxu0 0.0
    %1693 = vmatpush2.msra.mxu0 0.0
    %1694 = vmatprep.subr.mxu0 0.0
    %1695 = vmatpush2.msra.mxu0 0.0
    %1696 = vmatprep.subr.mxu0 0.0
    %1697 = vmatpush2.msra.mxu0 0.0
    %1698 = vmatprep.subr.mxu0 0.0
    %1699 = vmatpush2.msra.mxu0 0.0
    %1700 = vmatprep.subr.mxu0 0.0
    %1701 = vmatpush2.msra.mxu0 0.0
    %1702 = vmatprep.subr.mxu0 0.0
    %1703 = vmatpush2.msra.mxu0 0.0
    %1704 = vmatprep.subr.mxu0 0.0
    %1705 = vmatpush2.msra.mxu0 0.0
    %1706 = vmatprep.subr.mxu0 0.0
    %1707 = vmatpush2.msra.mxu0 0.0
    %1708 = vmatprep.subr.mxu0 0.0
    %1709 = vmatpush2.msra.mxu0 0.0
    %1710 = vmatprep.mubr.f32.mxu0 0.0
    %1711 = vmatmul.mubr.f32.gmra.mxu0 %v1644
    %v1712 = vpop.f32.mrf.mxu0
    %v1713 = vadd.f32 0.0, %v1712
    %v1714 = vpop.f32.mrf.mxu0
    %1715 = vdwg.mxu0
    %v1717 = vrot.slane %v1713, 3
    %v1718 = vrot.slane %v1713, 4
    %1719 = vrot.lane.b32.xlu0 %v1717, 64
    %v1720 = vpop.permute.xlu0 %1719
    %1721 = vrot.lane.b32.xlu0 %v1718, 64
    %v1722 = vpop.permute.xlu0 %1721
    %v1725 = vadd.f32 %v1000, %v1720
    %v1726 = vadd.f32 %v1005, %v1722
    %v1727 = vxor.u32 %v1635, 2147483648
    %v1728 = vxor.u32 %v1636, 2147483648
    %v1729 = vmul.f32 %v1727, 1.442695
    %v1730 = vpow.pop %v1729
    %v1731 = vmul.f32 %v1728, 1.442695
    %v1732 = vpow.pop %v1731
    %v1733 = vadd.f32 %v1730, 1.0
    %v1734 = vadd.f32 %v1732, 1.0
    %v1735 = vrcp.pop %v1733
    %v1736 = vmul.f32 1.0, %v1735
    %v1737 = vrcp.pop %v1734
    %v1738 = vmul.f32 1.0, %v1737
    %v1739 = vtanh.pop %v1635
    %v1740 = vtanh.pop %v1636
    %v1743 = vrot.slane %v1484, 7
    %v1744 = vrot.slane %v1485, 7
    %v1747 = vmul.f32 %v1736, %v1743
    %v1748 = vmul.f32 %v1738, %v1744
    %1751 = vrot.lane.b32.xlu0 %v1739, 96
    %v1752 = vpop.permute.xlu0 %1751
    %1753 = vrot.lane.b32.xlu0 %v1740, 96
    %v1754 = vpop.permute.xlu0 %1753
    %v1757 = vmul.f32 %v1736, %v1752
    %v1758 = vmul.f32 %v1738, %v1754
    %1761 = vrot.lane.b32.xlu0 %v1757, 16
    %v1762 = vpop.permute.xlu0 %1761
    %1763 = vrot.lane.b32.xlu0 %v1758, 16
    %v1764 = vpop.permute.xlu0 %1763
    %v1767 = vadd.f32 %v1747, %v1762
    %v1768 = vadd.f32 %v1748, %v1764
    %v1769 = vtanh.pop %v1767
    %v1770 = vtanh.pop %v1768
    %1773 = vrot.lane.b32.xlu0 %v1769, 32
    %v1774 = vpop.permute.xlu0 %1773
    %1775 = vrot.lane.b32.xlu0 %v1770, 32
    %v1776 = vpop.permute.xlu0 %1775
    %v1779 = vmul.f32 %v1736, %v1774
    %v1780 = vmul.f32 %v1738, %v1776
    %v1781 = vxor.u32 %v1725, 2147483648
    %v1782 = vxor.u32 %v1726, 2147483648
    %v1783 = vmul.f32 %v1781, 1.442695
    %v1784 = vpow.pop %v1783
    %v1785 = vmul.f32 %v1782, 1.442695
    %v1786 = vpow.pop %v1785
    %v1787 = vadd.f32 %v1784, 1.0
    %v1788 = vadd.f32 %v1786, 1.0
    %v1789 = vrcp.pop %v1787
    %v1790 = vmul.f32 1.0, %v1789
    %v1791 = vrcp.pop %v1788
    %v1792 = vmul.f32 1.0, %v1791
    %v1793 = vtanh.pop %v1725
    %v1794 = vtanh.pop %v1726
    %v1797 = vrot.slane %v1538, 1
    %v1798 = vrot.slane %v1539, 1
    %v1801 = vmul.f32 %v1790, %v1797
    %v1802 = vmul.f32 %v1792, %v1798
    %1805 = vrot.lane.b32.xlu0 %v1793, 96
    %v1806 = vpop.permute.xlu0 %1805
    %1807 = vrot.lane.b32.xlu0 %v1794, 96
    %v1808 = vpop.permute.xlu0 %1807
    %v1811 = vmul.f32 %v1790, %v1806
    %v1812 = vmul.f32 %v1792, %v1808
    %1815 = vrot.lane.b32.xlu0 %v1811, 16
    %v1816 = vpop.permute.xlu0 %1815
    %1817 = vrot.lane.b32.xlu0 %v1812, 16
    %v1818 = vpop.permute.xlu0 %1817
    %v1821 = vadd.f32 %v1801, %v1816
    %v1822 = vadd.f32 %v1802, %v1818
    %v1823 = vtanh.pop %v1821
    %v1824 = vtanh.pop %v1822
    %1827 = vrot.lane.b32.xlu0 %v1823, 32
    %v1828 = vpop.permute.xlu0 %1827
    %1829 = vrot.lane.b32.xlu0 %v1824, 32
    %v1830 = vpop.permute.xlu0 %1829
    %v1833 = vmul.f32 %v1790, %v1828
    %v1834 = vmul.f32 %v1792, %v1830
    %v1837 = vrot.slane %v1779, 2
    %v1838 = vrot.slane %v1780, 1
    %v1839 = vsel %vm1272, %v1838, %v1837
    %1840 = vrot.lane.b32.xlu0 %v1839, 80
    %v1841 = vpop.permute.xlu0 %1840
    %v1842 = vsel %vm1012, %v1841, 0
    %1844 = vmatprep.subr.mxu0 0.0
    %1845 = vmatpush1.msra.mxu0 0.0
    %1846 = vmatprep.subr.mxu0 0.0
    %1847 = vmatpush1.msra.mxu0 0.0
    %1848 = vmatprep.subr.mxu0 0.0
    %1849 = vmatpush1.msra.mxu0 0.0
    %1850 = vmatprep.subr.mxu0 0.0
    %1851 = vmatpush1.msra.mxu0 0.0
    %1852 = vmatprep.subr.mxu0 0.0
    %1853 = vmatpush1.msra.mxu0 0.0
    %1854 = vmatprep.subr.mxu0 0.0
    %1855 = vmatpush1.msra.mxu0 0.0
    %1856 = vmatprep.subr.mxu0 0.0
    %1857 = vmatpush1.msra.mxu0 0.0
    %1858 = vmatprep.subr.mxu0 0.0
    %1859 = vmatpush1.msra.mxu0 0.0
    %1860 = vmatprep.subr.mxu0 0.0
    %1861 = vmatpush1.msra.mxu0 0.0
    %1862 = vmatprep.subr.mxu0 0.0
    %1863 = vmatpush1.msra.mxu0 0.0
    %1864 = vmatprep.subr.mxu0 0.0
    %1865 = vmatpush1.msra.mxu0 0.0
    %1866 = vmatprep.subr.mxu0 0.0
    %1867 = vmatpush1.msra.mxu0 0.0
    %1868 = vmatprep.subr.mxu0 0.0
    %1869 = vmatpush1.msra.mxu0 0.0
    %1870 = vmatprep.subr.mxu0 0.0
    %1871 = vmatpush1.msra.mxu0 0.0
    %1872 = vmatprep.subr.mxu0 0.0
    %1873 = vmatpush1.msra.mxu0 %v1009
    %1874 = vmatprep.subr.mxu0 0.0
    %1875 = vmatpush1.msra.mxu0 %v1008
    %1876 = vmatprep.subr.mxu0 0.0
    %1877 = vmatpush2.msra.mxu0 0.0
    %1878 = vmatprep.subr.mxu0 0.0
    %1879 = vmatpush2.msra.mxu0 0.0
    %1880 = vmatprep.subr.mxu0 0.0
    %1881 = vmatpush2.msra.mxu0 0.0
    %1882 = vmatprep.subr.mxu0 0.0
    %1883 = vmatpush2.msra.mxu0 0.0
    %1884 = vmatprep.subr.mxu0 0.0
    %1885 = vmatpush2.msra.mxu0 0.0
    %1886 = vmatprep.subr.mxu0 0.0
    %1887 = vmatpush2.msra.mxu0 0.0
    %1888 = vmatprep.subr.mxu0 0.0
    %1889 = vmatpush2.msra.mxu0 0.0
    %1890 = vmatprep.subr.mxu0 0.0
    %1891 = vmatpush2.msra.mxu0 0.0
    %1892 = vmatprep.subr.mxu0 0.0
    %1893 = vmatpush2.msra.mxu0 0.0
    %1894 = vmatprep.subr.mxu0 0.0
    %1895 = vmatpush2.msra.mxu0 0.0
    %1896 = vmatprep.subr.mxu0 0.0
    %1897 = vmatpush2.msra.mxu0 0.0
    %1898 = vmatprep.subr.mxu0 0.0
    %1899 = vmatpush2.msra.mxu0 0.0
    %1900 = vmatprep.subr.mxu0 0.0
    %1901 = vmatpush2.msra.mxu0 0.0
    %1902 = vmatprep.subr.mxu0 0.0
    %1903 = vmatpush2.msra.mxu0 0.0
    %1904 = vmatprep.subr.mxu0 0.0
    %1905 = vmatpush2.msra.mxu0 0.0
    %1906 = vmatprep.subr.mxu0 0.0
    %1907 = vmatpush2.msra.mxu0 0.0
    %1908 = vmatprep.mubr.f32.mxu0 0.0
    %1909 = vmatmul.mubr.f32.gmra.mxu0 %v1842
    %v1910 = vpop.f32.mrf.mxu0
    %v1911 = vadd.f32 0.0, %v1910
    %v1912 = vpop.f32.mrf.mxu0
    %1913 = vdwg.mxu0
    %v1915 = vrot.slane %v1911, 5
    %v1916 = vrot.slane %v1911, 6
    %v1919 = vadd.f32 %v1000, %v1915
    %v1920 = vadd.f32 %v1005, %v1916
    %v1923 = vrot.slane %v1833, 5
    %v1924 = vrot.slane %v1834, 4
    %v1925 = vsel %vm1272, %v1924, %v1923
    %1926 = vrot.lane.b32.xlu0 %v1925, 16
    %v1927 = vpop.permute.xlu0 %1926
    %v1928 = vsel %vm1012, %v1927, 0
    %1930 = vmatprep.subr.mxu0 0.0
    %1931 = vmatpush1.msra.mxu0 0.0
    %1932 = vmatprep.subr.mxu0 0.0
    %1933 = vmatpush1.msra.mxu0 0.0
    %1934 = vmatprep.subr.mxu0 0.0
    %1935 = vmatpush1.msra.mxu0 0.0
    %1936 = vmatprep.subr.mxu0 0.0
    %1937 = vmatpush1.msra.mxu0 0.0
    %1938 = vmatprep.subr.mxu0 0.0
    %1939 = vmatpush1.msra.mxu0 0.0
    %1940 = vmatprep.subr.mxu0 0.0
    %1941 = vmatpush1.msra.mxu0 0.0
    %1942 = vmatprep.subr.mxu0 0.0
    %1943 = vmatpush1.msra.mxu0 0.0
    %1944 = vmatprep.subr.mxu0 0.0
    %1945 = vmatpush1.msra.mxu0 0.0
    %1946 = vmatprep.subr.mxu0 0.0
    %1947 = vmatpush1.msra.mxu0 0.0
    %1948 = vmatprep.subr.mxu0 0.0
    %1949 = vmatpush1.msra.mxu0 0.0
    %1950 = vmatprep.subr.mxu0 0.0
    %1951 = vmatpush1.msra.mxu0 0.0
    %1952 = vmatprep.subr.mxu0 0.0
    %1953 = vmatpush1.msra.mxu0 0.0
    %1954 = vmatprep.subr.mxu0 0.0
    %1955 = vmatpush1.msra.mxu0 0.0
    %1956 = vmatprep.subr.mxu0 0.0
    %1957 = vmatpush1.msra.mxu0 0.0
    %1958 = vmatprep.subr.mxu0 0.0
    %1959 = vmatpush1.msra.mxu0 %v1011
    %1960 = vmatprep.subr.mxu0 0.0
    %1961 = vmatpush1.msra.mxu0 %v1010
    %1962 = vmatprep.subr.mxu0 0.0
    %1963 = vmatpush2.msra.mxu0 0.0
    %1964 = vmatprep.subr.mxu0 0.0
    %1965 = vmatpush2.msra.mxu0 0.0
    %1966 = vmatprep.subr.mxu0 0.0
    %1967 = vmatpush2.msra.mxu0 0.0
    %1968 = vmatprep.subr.mxu0 0.0
    %1969 = vmatpush2.msra.mxu0 0.0
    %1970 = vmatprep.subr.mxu0 0.0
    %1971 = vmatpush2.msra.mxu0 0.0
    %1972 = vmatprep.subr.mxu0 0.0
    %1973 = vmatpush2.msra.mxu0 0.0
    %1974 = vmatprep.subr.mxu0 0.0
    %1975 = vmatpush2.msra.mxu0 0.0
    %1976 = vmatprep.subr.mxu0 0.0
    %1977 = vmatpush2.msra.mxu0 0.0
    %1978 = vmatprep.subr.mxu0 0.0
    %1979 = vmatpush2.msra.mxu0 0.0
    %1980 = vmatprep.subr.mxu0 0.0
    %1981 = vmatpush2.msra.mxu0 0.0
    %1982 = vmatprep.subr.mxu0 0.0
    %1983 = vmatpush2.msra.mxu0 0.0
    %1984 = vmatprep.subr.mxu0 0.0
    %1985 = vmatpush2.msra.mxu0 0.0
    %1986 = vmatprep.subr.mxu0 0.0
    %1987 = vmatpush2.msra.mxu0 0.0
    %1988 = vmatprep.subr.mxu0 0.0
    %1989 = vmatpush2.msra.mxu0 0.0
    %1990 = vmatprep.subr.mxu0 0.0
    %1991 = vmatpush2.msra.mxu0 0.0
    %1992 = vmatprep.subr.mxu0 0.0
    %1993 = vmatpush2.msra.mxu0 0.0
    %1994 = vmatprep.mubr.f32.mxu0 0.0
    %1995 = vmatmul.mubr.f32.gmra.mxu0 %v1928
    %v1996 = vpop.f32.mrf.mxu0
    %v1997 = vadd.f32 0.0, %v1996
    %v1998 = vpop.f32.mrf.mxu0
    %1999 = vdwg.mxu0
    %v2001 = vrot.slane %v1997, 4
    %v2002 = vrot.slane %v1997, 5
    %2003 = vrot.lane.b32.xlu0 %v2001, 64
    %v2004 = vpop.permute.xlu0 %2003
    %2005 = vrot.lane.b32.xlu0 %v2002, 64
    %v2006 = vpop.permute.xlu0 %2005
    %v2009 = vadd.f32 %v1000, %v2004
    %v2010 = vadd.f32 %v1005, %v2006
    %v2011 = vxor.u32 %v1919, 2147483648
    %v2012 = vxor.u32 %v1920, 2147483648
    %v2013 = vmul.f32 %v2011, 1.442695
    %v2014 = vpow.pop %v2013
    %v2015 = vmul.f32 %v2012, 1.442695
    %v2016 = vpow.pop %v2015
    %v2017 = vadd.f32 %v2014, 1.0
    %v2018 = vadd.f32 %v2016, 1.0
    %v2019 = vrcp.pop %v2017
    %v2020 = vmul.f32 1.0, %v2019
    %v2021 = vrcp.pop %v2018
    %v2022 = vmul.f32 1.0, %v2021
    %v2023 = vtanh.pop %v1919
    %v2024 = vtanh.pop %v1920
    %v2027 = vrot.slane %v1767, 7
    %v2028 = vrot.slane %v1768, 7
    %v2031 = vmul.f32 %v2020, %v2027
    %v2032 = vmul.f32 %v2022, %v2028
    %2035 = vrot.lane.b32.xlu0 %v2023, 96
    %v2036 = vpop.permute.xlu0 %2035
    %2037 = vrot.lane.b32.xlu0 %v2024, 96
    %v2038 = vpop.permute.xlu0 %2037
    %v2041 = vmul.f32 %v2020, %v2036
    %v2042 = vmul.f32 %v2022, %v2038
    %2045 = vrot.lane.b32.xlu0 %v2041, 16
    %v2046 = vpop.permute.xlu0 %2045
    %2047 = vrot.lane.b32.xlu0 %v2042, 16
    %v2048 = vpop.permute.xlu0 %2047
    %v2051 = vadd.f32 %v2031, %v2046
    %v2052 = vadd.f32 %v2032, %v2048
    %v2053 = vtanh.pop %v2051
    %v2054 = vtanh.pop %v2052
    %2057 = vrot.lane.b32.xlu0 %v2053, 32
    %v2058 = vpop.permute.xlu0 %2057
    %2059 = vrot.lane.b32.xlu0 %v2054, 32
    %v2060 = vpop.permute.xlu0 %2059
    %v2063 = vmul.f32 %v2020, %v2058
    %v2064 = vmul.f32 %v2022, %v2060
    %v2065 = vxor.u32 %v2009, 2147483648
    %v2066 = vxor.u32 %v2010, 2147483648
    %v2067 = vmul.f32 %v2065, 1.442695
    %v2068 = vpow.pop %v2067
    %v2069 = vmul.f32 %v2066, 1.442695
    %v2070 = vpow.pop %v2069
    %v2071 = vadd.f32 %v2068, 1.0
    %v2072 = vadd.f32 %v2070, 1.0
    %v2073 = vrcp.pop %v2071
    %v2074 = vmul.f32 1.0, %v2073
    %v2075 = vrcp.pop %v2072
    %v2076 = vmul.f32 1.0, %v2075
    %v2077 = vtanh.pop %v2009
    %v2078 = vtanh.pop %v2010
    %v2081 = vrot.slane %v1821, 1
    %v2082 = vrot.slane %v1822, 1
    %v2085 = vmul.f32 %v2074, %v2081
    %v2086 = vmul.f32 %v2076, %v2082
    %2089 = vrot.lane.b32.xlu0 %v2077, 96
    %v2090 = vpop.permute.xlu0 %2089
    %2091 = vrot.lane.b32.xlu0 %v2078, 96
    %v2092 = vpop.permute.xlu0 %2091
    %v2095 = vmul.f32 %v2074, %v2090
    %v2096 = vmul.f32 %v2076, %v2092
    %2099 = vrot.lane.b32.xlu0 %v2095, 16
    %v2100 = vpop.permute.xlu0 %2099
    %2101 = vrot.lane.b32.xlu0 %v2096, 16
    %v2102 = vpop.permute.xlu0 %2101
    %v2105 = vadd.f32 %v2085, %v2100
    %v2106 = vadd.f32 %v2086, %v2102
    %v2107 = vtanh.pop %v2105
    %v2108 = vtanh.pop %v2106
    %2111 = vrot.lane.b32.xlu0 %v2107, 32
    %v2112 = vpop.permute.xlu0 %2111
    %2113 = vrot.lane.b32.xlu0 %v2108, 32
    %v2114 = vpop.permute.xlu0 %2113
    %v2117 = vmul.f32 %v2074, %v2112
    %v2118 = vmul.f32 %v2076, %v2114
    %v2121 = vrot.slane %v2063, 3
    %v2122 = vrot.slane %v2064, 2
    %v2123 = vsel %vm1272, %v2122, %v2121
    %2124 = vrot.lane.b32.xlu0 %v2123, 80
    %v2125 = vpop.permute.xlu0 %2124
    %v2126 = vsel %vm1012, %v2125, 0
    %2128 = vmatprep.subr.mxu0 0.0
    %2129 = vmatpush1.msra.mxu0 0.0
    %2130 = vmatprep.subr.mxu0 0.0
    %2131 = vmatpush1.msra.mxu0 0.0
    %2132 = vmatprep.subr.mxu0 0.0
    %2133 = vmatpush1.msra.mxu0 0.0
    %2134 = vmatprep.subr.mxu0 0.0
    %2135 = vmatpush1.msra.mxu0 0.0
    %2136 = vmatprep.subr.mxu0 0.0
    %2137 = vmatpush1.msra.mxu0 0.0
    %2138 = vmatprep.subr.mxu0 0.0
    %2139 = vmatpush1.msra.mxu0 0.0
    %2140 = vmatprep.subr.mxu0 0.0
    %2141 = vmatpush1.msra.mxu0 0.0
    %2142 = vmatprep.subr.mxu0 0.0
    %2143 = vmatpush1.msra.mxu0 0.0
    %2144 = vmatprep.subr.mxu0 0.0
    %2145 = vmatpush1.msra.mxu0 0.0
    %2146 = vmatprep.subr.mxu0 0.0
    %2147 = vmatpush1.msra.mxu0 0.0
    %2148 = vmatprep.subr.mxu0 0.0
    %2149 = vmatpush1.msra.mxu0 0.0
    %2150 = vmatprep.subr.mxu0 0.0
    %2151 = vmatpush1.msra.mxu0 0.0
    %2152 = vmatprep.subr.mxu0 0.0
    %2153 = vmatpush1.msra.mxu0 0.0
    %2154 = vmatprep.subr.mxu0 0.0
    %2155 = vmatpush1.msra.mxu0 0.0
    %2156 = vmatprep.subr.mxu0 0.0
    %2157 = vmatpush1.msra.mxu0 %v1009
    %2158 = vmatprep.subr.mxu0 0.0
    %2159 = vmatpush1.msra.mxu0 %v1008
    %2160 = vmatprep.subr.mxu0 0.0
    %2161 = vmatpush2.msra.mxu0 0.0
    %2162 = vmatprep.subr.mxu0 0.0
    %2163 = vmatpush2.msra.mxu0 0.0
    %2164 = vmatprep.subr.mxu0 0.0
    %2165 = vmatpush2.msra.mxu0 0.0
    %2166 = vmatprep.subr.mxu0 0.0
    %2167 = vmatpush2.msra.mxu0 0.0
    %2168 = vmatprep.subr.mxu0 0.0
    %2169 = vmatpush2.msra.mxu0 0.0
    %2170 = vmatprep.subr.mxu0 0.0
    %2171 = vmatpush2.msra.mxu0 0.0
    %2172 = vmatprep.subr.mxu0 0.0
    %2173 = vmatpush2.msra.mxu0 0.0
    %2174 = vmatprep.subr.mxu0 0.0
    %2175 = vmatpush2.msra.mxu0 0.0
    %2176 = vmatprep.subr.mxu0 0.0
    %2177 = vmatpush2.msra.mxu0 0.0
    %2178 = vmatprep.subr.mxu0 0.0
    %2179 = vmatpush2.msra.mxu0 0.0
    %2180 = vmatprep.subr.mxu0 0.0
    %2181 = vmatpush2.msra.mxu0 0.0
    %2182 = vmatprep.subr.mxu0 0.0
    %2183 = vmatpush2.msra.mxu0 0.0
    %2184 = vmatprep.subr.mxu0 0.0
    %2185 = vmatpush2.msra.mxu0 0.0
    %2186 = vmatprep.subr.mxu0 0.0
    %2187 = vmatpush2.msra.mxu0 0.0
    %2188 = vmatprep.subr.mxu0 0.0
    %2189 = vmatpush2.msra.mxu0 0.0
    %2190 = vmatprep.subr.mxu0 0.0
    %2191 = vmatpush2.msra.mxu0 0.0
    %2192 = vmatprep.mubr.f32.mxu0 0.0
    %2193 = vmatmul.mubr.f32.gmra.mxu0 %v2126
    %v2194 = vpop.f32.mrf.mxu0
    %v2195 = vadd.f32 0.0, %v2194
    %v2196 = vpop.f32.mrf.mxu0
    %2197 = vdwg.mxu0
    %v2199 = vrot.slane %v2195, 4
    %v2200 = vrot.slane %v2195, 5
    %v2203 = vadd.f32 %v1000, %v2199
    %v2204 = vadd.f32 %v1005, %v2200
    %v2207 = vrot.slane %v2117, 4
    %v2208 = vrot.slane %v2118, 3
    %v2209 = vsel %vm1272, %v2208, %v2207
    %2210 = vrot.lane.b32.xlu0 %v2209, 16
    %v2211 = vpop.permute.xlu0 %2210
    %v2212 = vsel %vm1012, %v2211, 0
    %2214 = vmatprep.subr.mxu0 0.0
    %2215 = vmatpush1.msra.mxu0 0.0
    %2216 = vmatprep.subr.mxu0 0.0
    %2217 = vmatpush1.msra.mxu0 0.0
    %2218 = vmatprep.subr.mxu0 0.0
    %2219 = vmatpush1.msra.mxu0 0.0
    %2220 = vmatprep.subr.mxu0 0.0
    %2221 = vmatpush1.msra.mxu0 0.0
    %2222 = vmatprep.subr.mxu0 0.0
    %2223 = vmatpush1.msra.mxu0 0.0
    %2224 = vmatprep.subr.mxu0 0.0
    %2225 = vmatpush1.msra.mxu0 0.0
    %2226 = vmatprep.subr.mxu0 0.0
    %2227 = vmatpush1.msra.mxu0 0.0
    %2228 = vmatprep.subr.mxu0 0.0
    %2229 = vmatpush1.msra.mxu0 0.0
    %2230 = vmatprep.subr.mxu0 0.0
    %2231 = vmatpush1.msra.mxu0 0.0
    %2232 = vmatprep.subr.mxu0 0.0
    %2233 = vmatpush1.msra.mxu0 0.0
    %2234 = vmatprep.subr.mxu0 0.0
    %2235 = vmatpush1.msra.mxu0 0.0
    %2236 = vmatprep.subr.mxu0 0.0
    %2237 = vmatpush1.msra.mxu0 0.0
    %2238 = vmatprep.subr.mxu0 0.0
    %2239 = vmatpush1.msra.mxu0 0.0
    %2240 = vmatprep.subr.mxu0 0.0
    %2241 = vmatpush1.msra.mxu0 0.0
    %2242 = vmatprep.subr.mxu0 0.0
    %2243 = vmatpush1.msra.mxu0 %v1011
    %2244 = vmatprep.subr.mxu0 0.0
    %2245 = vmatpush1.msra.mxu0 %v1010
    %2246 = vmatprep.subr.mxu0 0.0
    %2247 = vmatpush2.msra.mxu0 0.0
    %2248 = vmatprep.subr.mxu0 0.0
    %2249 = vmatpush2.msra.mxu0 0.0
    %2250 = vmatprep.subr.mxu0 0.0
    %2251 = vmatpush2.msra.mxu0 0.0
    %2252 = vmatprep.subr.mxu0 0.0
    %2253 = vmatpush2.msra.mxu0 0.0
    %2254 = vmatprep.subr.mxu0 0.0
    %2255 = vmatpush2.msra.mxu0 0.0
    %2256 = vmatprep.subr.mxu0 0.0
    %2257 = vmatpush2.msra.mxu0 0.0
    %2258 = vmatprep.subr.mxu0 0.0
    %2259 = vmatpush2.msra.mxu0 0.0
    %2260 = vmatprep.subr.mxu0 0.0
    %2261 = vmatpush2.msra.mxu0 0.0
    %2262 = vmatprep.subr.mxu0 0.0
    %2263 = vmatpush2.msra.mxu0 0.0
    %2264 = vmatprep.subr.mxu0 0.0
    %2265 = vmatpush2.msra.mxu0 0.0
    %2266 = vmatprep.subr.mxu0 0.0
    %2267 = vmatpush2.msra.mxu0 0.0
    %2268 = vmatprep.subr.mxu0 0.0
    %2269 = vmatpush2.msra.mxu0 0.0
    %2270 = vmatprep.subr.mxu0 0.0
    %2271 = vmatpush2.msra.mxu0 0.0
    %2272 = vmatprep.subr.mxu0 0.0
    %2273 = vmatpush2.msra.mxu0 0.0
    %2274 = vmatprep.subr.mxu0 0.0
    %2275 = vmatpush2.msra.mxu0 0.0
    %2276 = vmatprep.subr.mxu0 0.0
    %2277 = vmatpush2.msra.mxu0 0.0
    %2278 = vmatprep.mubr.f32.mxu0 0.0
    %2279 = vmatmul.mubr.f32.gmra.mxu0 %v2212
    %v2280 = vpop.f32.mrf.mxu0
    %v2281 = vadd.f32 0.0, %v2280
    %v2282 = vpop.f32.mrf.mxu0
    %2283 = vdwg.mxu0
    %v2285 = vrot.slane %v2281, 5
    %v2286 = vrot.slane %v2281, 6
    %2287 = vrot.lane.b32.xlu0 %v2285, 64
    %v2288 = vpop.permute.xlu0 %2287
    %2289 = vrot.lane.b32.xlu0 %v2286, 64
    %v2290 = vpop.permute.xlu0 %2289
    %v2293 = vadd.f32 %v1000, %v2288
    %v2294 = vadd.f32 %v1005, %v2290
    %v2295 = vxor.u32 %v2203, 2147483648
    %v2296 = vxor.u32 %v2204, 2147483648
    %v2297 = vmul.f32 %v2295, 1.442695
    %v2298 = vpow.pop %v2297
    %v2299 = vmul.f32 %v2296, 1.442695
    %v2300 = vpow.pop %v2299
    %v2301 = vadd.f32 %v2298, 1.0
    %v2302 = vadd.f32 %v2300, 1.0
    %v2303 = vrcp.pop %v2301
    %v2304 = vmul.f32 1.0, %v2303
    %v2305 = vrcp.pop %v2302
    %v2306 = vmul.f32 1.0, %v2305
    %v2307 = vtanh.pop %v2203
    %v2308 = vtanh.pop %v2204
    %v2311 = vrot.slane %v2051, 7
    %v2312 = vrot.slane %v2052, 7
    %v2315 = vmul.f32 %v2304, %v2311
    %v2316 = vmul.f32 %v2306, %v2312
    %2319 = vrot.lane.b32.xlu0 %v2307, 96
    %v2320 = vpop.permute.xlu0 %2319
    %2321 = vrot.lane.b32.xlu0 %v2308, 96
    %v2322 = vpop.permute.xlu0 %2321
    %v2325 = vmul.f32 %v2304, %v2320
    %v2326 = vmul.f32 %v2306, %v2322
    %2329 = vrot.lane.b32.xlu0 %v2325, 16
    %v2330 = vpop.permute.xlu0 %2329
    %2331 = vrot.lane.b32.xlu0 %v2326, 16
    %v2332 = vpop.permute.xlu0 %2331
    %v2335 = vadd.f32 %v2315, %v2330
    %v2336 = vadd.f32 %v2316, %v2332
    %v2337 = vtanh.pop %v2335
    %v2338 = vtanh.pop %v2336
    %2341 = vrot.lane.b32.xlu0 %v2337, 32
    %v2342 = vpop.permute.xlu0 %2341
    %2343 = vrot.lane.b32.xlu0 %v2338, 32
    %v2344 = vpop.permute.xlu0 %2343
    %v2347 = vmul.f32 %v2304, %v2342
    %v2348 = vmul.f32 %v2306, %v2344
    %v2349 = vxor.u32 %v2293, 2147483648
    %v2350 = vxor.u32 %v2294, 2147483648
    %v2351 = vmul.f32 %v2349, 1.442695
    %v2352 = vpow.pop %v2351
    %v2353 = vmul.f32 %v2350, 1.442695
    %v2354 = vpow.pop %v2353
    %v2355 = vadd.f32 %v2352, 1.0
    %v2356 = vadd.f32 %v2354, 1.0
    %v2357 = vrcp.pop %v2355
    %v2358 = vmul.f32 1.0, %v2357
    %v2359 = vrcp.pop %v2356
    %v2360 = vmul.f32 1.0, %v2359
    %v2361 = vtanh.pop %v2293
    %v2362 = vtanh.pop %v2294
    %v2365 = vrot.slane %v2105, 1
    %v2366 = vrot.slane %v2106, 1
    %v2369 = vmul.f32 %v2358, %v2365
    %v2370 = vmul.f32 %v2360, %v2366
    %2373 = vrot.lane.b32.xlu0 %v2361, 96
    %v2374 = vpop.permute.xlu0 %2373
    %2375 = vrot.lane.b32.xlu0 %v2362, 96
    %v2376 = vpop.permute.xlu0 %2375
    %v2379 = vmul.f32 %v2358, %v2374
    %v2380 = vmul.f32 %v2360, %v2376
    %2383 = vrot.lane.b32.xlu0 %v2379, 16
    %v2384 = vpop.permute.xlu0 %2383
    %2385 = vrot.lane.b32.xlu0 %v2380, 16
    %v2386 = vpop.permute.xlu0 %2385
    %v2389 = vadd.f32 %v2369, %v2384
    %v2390 = vadd.f32 %v2370, %v2386
    %v2391 = vtanh.pop %v2389
    %v2392 = vtanh.pop %v2390
    %2395 = vrot.lane.b32.xlu0 %v2391, 32
    %v2396 = vpop.permute.xlu0 %2395
    %2397 = vrot.lane.b32.xlu0 %v2392, 32
    %v2398 = vpop.permute.xlu0 %2397
    %v2401 = vmul.f32 %v2358, %v2396
    %v2402 = vmul.f32 %v2360, %v2398
    %v2405 = vrot.slane %v2347, 4
    %v2406 = vrot.slane %v2348, 3
    %v2407 = vsel %vm1272, %v2406, %v2405
    %2408 = vrot.lane.b32.xlu0 %v2407, 80
    %v2409 = vpop.permute.xlu0 %2408
    %v2410 = vsel %vm1012, %v2409, 0
    %2412 = vmatprep.subr.mxu0 0.0
    %2413 = vmatpush1.msra.mxu0 0.0
    %2414 = vmatprep.subr.mxu0 0.0
    %2415 = vmatpush1.msra.mxu0 0.0
    %2416 = vmatprep.subr.mxu0 0.0
    %2417 = vmatpush1.msra.mxu0 0.0
    %2418 = vmatprep.subr.mxu0 0.0
    %2419 = vmatpush1.msra.mxu0 0.0
    %2420 = vmatprep.subr.mxu0 0.0
    %2421 = vmatpush1.msra.mxu0 0.0
    %2422 = vmatprep.subr.mxu0 0.0
    %2423 = vmatpush1.msra.mxu0 0.0
    %2424 = vmatprep.subr.mxu0 0.0
    %2425 = vmatpush1.msra.mxu0 0.0
    %2426 = vmatprep.subr.mxu0 0.0
    %2427 = vmatpush1.msra.mxu0 0.0
    %2428 = vmatprep.subr.mxu0 0.0
    %2429 = vmatpush1.msra.mxu0 0.0
    %2430 = vmatprep.subr.mxu0 0.0
    %2431 = vmatpush1.msra.mxu0 0.0
    %2432 = vmatprep.subr.mxu0 0.0
    %2433 = vmatpush1.msra.mxu0 0.0
    %2434 = vmatprep.subr.mxu0 0.0
    %2435 = vmatpush1.msra.mxu0 0.0
    %2436 = vmatprep.subr.mxu0 0.0
    %2437 = vmatpush1.msra.mxu0 0.0
    %2438 = vmatprep.subr.mxu0 0.0
    %2439 = vmatpush1.msra.mxu0 0.0
    %2440 = vmatprep.subr.mxu0 0.0
    %2441 = vmatpush1.msra.mxu0 %v1009
    %2442 = vmatprep.subr.mxu0 0.0
    %2443 = vmatpush1.msra.mxu0 %v1008
    %2444 = vmatprep.subr.mxu0 0.0
    %2445 = vmatpush2.msra.mxu0 0.0
    %2446 = vmatprep.subr.mxu0 0.0
    %2447 = vmatpush2.msra.mxu0 0.0
    %2448 = vmatprep.subr.mxu0 0.0
    %2449 = vmatpush2.msra.mxu0 0.0
    %2450 = vmatprep.subr.mxu0 0.0
    %2451 = vmatpush2.msra.mxu0 0.0
    %2452 = vmatprep.subr.mxu0 0.0
    %2453 = vmatpush2.msra.mxu0 0.0
    %2454 = vmatprep.subr.mxu0 0.0
    %2455 = vmatpush2.msra.mxu0 0.0
    %2456 = vmatprep.subr.mxu0 0.0
    %2457 = vmatpush2.msra.mxu0 0.0
    %2458 = vmatprep.subr.mxu0 0.0
    %2459 = vmatpush2.msra.mxu0 0.0
    %2460 = vmatprep.subr.mxu0 0.0
    %2461 = vmatpush2.msra.mxu0 0.0
    %2462 = vmatprep.subr.mxu0 0.0
    %2463 = vmatpush2.msra.mxu0 0.0
    %2464 = vmatprep.subr.mxu0 0.0
    %2465 = vmatpush2.msra.mxu0 0.0
    %2466 = vmatprep.subr.mxu0 0.0
    %2467 = vmatpush2.msra.mxu0 0.0
    %2468 = vmatprep.subr.mxu0 0.0
    %2469 = vmatpush2.msra.mxu0 0.0
    %2470 = vmatprep.subr.mxu0 0.0
    %2471 = vmatpush2.msra.mxu0 0.0
    %2472 = vmatprep.subr.mxu0 0.0
    %2473 = vmatpush2.msra.mxu0 0.0
    %2474 = vmatprep.subr.mxu0 0.0
    %2475 = vmatpush2.msra.mxu0 0.0
    %2476 = vmatprep.mubr.f32.mxu0 0.0
    %2477 = vmatmul.mubr.f32.gmra.mxu0 %v2410
    %v2478 = vpop.f32.mrf.mxu0
    %v2479 = vadd.f32 0.0, %v2478
    %v2480 = vpop.f32.mrf.mxu0
    %2481 = vdwg.mxu0
    %v2483 = vrot.slane %v2479, 3
    %v2484 = vrot.slane %v2479, 4
    %v2487 = vadd.f32 %v1000, %v2483
    %v2488 = vadd.f32 %v1005, %v2484
    %v2491 = vrot.slane %v2401, 3
    %v2492 = vrot.slane %v2402, 2
    %v2493 = vsel %vm1272, %v2492, %v2491
    %2494 = vrot.lane.b32.xlu0 %v2493, 16
    %v2495 = vpop.permute.xlu0 %2494
    %v2496 = vsel %vm1012, %v2495, 0
    %2498 = vmatprep.subr.mxu0 0.0
    %2499 = vmatpush1.msra.mxu0 0.0
    %2500 = vmatprep.subr.mxu0 0.0
    %2501 = vmatpush1.msra.mxu0 0.0
    %2502 = vmatprep.subr.mxu0 0.0
    %2503 = vmatpush1.msra.mxu0 0.0
    %2504 = vmatprep.subr.mxu0 0.0
    %2505 = vmatpush1.msra.mxu0 0.0
    %2506 = vmatprep.subr.mxu0 0.0
    %2507 = vmatpush1.msra.mxu0 0.0
    %2508 = vmatprep.subr.mxu0 0.0
    %2509 = vmatpush1.msra.mxu0 0.0
    %2510 = vmatprep.subr.mxu0 0.0
    %2511 = vmatpush1.msra.mxu0 0.0
    %2512 = vmatprep.subr.mxu0 0.0
    %2513 = vmatpush1.msra.mxu0 0.0
    %2514 = vmatprep.subr.mxu0 0.0
    %2515 = vmatpush1.msra.mxu0 0.0
    %2516 = vmatprep.subr.mxu0 0.0
    %2517 = vmatpush1.msra.mxu0 0.0
    %2518 = vmatprep.subr.mxu0 0.0
    %2519 = vmatpush1.msra.mxu0 0.0
    %2520 = vmatprep.subr.mxu0 0.0
    %2521 = vmatpush1.msra.mxu0 0.0
    %2522 = vmatprep.subr.mxu0 0.0
    %2523 = vmatpush1.msra.mxu0 0.0
    %2524 = vmatprep.subr.mxu0 0.0
    %2525 = vmatpush1.msra.mxu0 0.0
    %2526 = vmatprep.subr.mxu0 0.0
    %2527 = vmatpush1.msra.mxu0 %v1011
    %2528 = vmatprep.subr.mxu0 0.0
    %2529 = vmatpush1.msra.mxu0 %v1010
    %2530 = vmatprep.subr.mxu0 0.0
    %2531 = vmatpush2.msra.mxu0 0.0
    %2532 = vmatprep.subr.mxu0 0.0
    %2533 = vmatpush2.msra.mxu0 0.0
    %2534 = vmatprep.subr.mxu0 0.0
    %2535 = vmatpush2.msra.mxu0 0.0
    %2536 = vmatprep.subr.mxu0 0.0
    %2537 = vmatpush2.msra.mxu0 0.0
    %2538 = vmatprep.subr.mxu0 0.0
    %2539 = vmatpush2.msra.mxu0 0.0
    %2540 = vmatprep.subr.mxu0 0.0
    %2541 = vmatpush2.msra.mxu0 0.0
    %2542 = vmatprep.subr.mxu0 0.0
    %2543 = vmatpush2.msra.mxu0 0.0
    %2544 = vmatprep.subr.mxu0 0.0
    %2545 = vmatpush2.msra.mxu0 0.0
    %2546 = vmatprep.subr.mxu0 0.0
    %2547 = vmatpush2.msra.mxu0 0.0
    %2548 = vmatprep.subr.mxu0 0.0
    %2549 = vmatpush2.msra.mxu0 0.0
    %2550 = vmatprep.subr.mxu0 0.0
    %2551 = vmatpush2.msra.mxu0 0.0
    %2552 = vmatprep.subr.mxu0 0.0
    %2553 = vmatpush2.msra.mxu0 0.0
    %2554 = vmatprep.subr.mxu0 0.0
    %2555 = vmatpush2.msra.mxu0 0.0
    %2556 = vmatprep.subr.mxu0 0.0
    %2557 = vmatpush2.msra.mxu0 0.0
    %2558 = vmatprep.subr.mxu0 0.0
    %2559 = vmatpush2.msra.mxu0 0.0
    %2560 = vmatprep.subr.mxu0 0.0
    %2561 = vmatpush2.msra.mxu0 0.0
    %2562 = vmatprep.mubr.f32.mxu0 0.0
    %2563 = vmatmul.mubr.f32.gmra.mxu0 %v2496
    %v2564 = vpop.f32.mrf.mxu0
    %v2565 = vadd.f32 0.0, %v2564
    %v2566 = vpop.f32.mrf.mxu0
    %2567 = vdwg.mxu0
    %v2569 = vrot.slane %v2565, 6
    %v2570 = vrot.slane %v2565, 7
    %2571 = vrot.lane.b32.xlu0 %v2569, 64
    %v2572 = vpop.permute.xlu0 %2571
    %2573 = vrot.lane.b32.xlu0 %v2570, 64
    %v2574 = vpop.permute.xlu0 %2573
    %v2577 = vadd.f32 %v1000, %v2572
    %v2578 = vadd.f32 %v1005, %v2574
    %v2579 = vxor.u32 %v2487, 2147483648
    %v2580 = vxor.u32 %v2488, 2147483648
    %v2581 = vmul.f32 %v2579, 1.442695
    %v2582 = vpow.pop %v2581
    %v2583 = vmul.f32 %v2580, 1.442695
    %v2584 = vpow.pop %v2583
    %v2585 = vadd.f32 %v2582, 1.0
    %v2586 = vadd.f32 %v2584, 1.0
    %v2587 = vrcp.pop %v2585
    %v2588 = vmul.f32 1.0, %v2587
    %v2589 = vrcp.pop %v2586
    %v2590 = vmul.f32 1.0, %v2589
    %v2591 = vtanh.pop %v2487
    %v2592 = vtanh.pop %v2488
    %v2595 = vrot.slane %v2335, 7
    %v2596 = vrot.slane %v2336, 7
    %v2599 = vmul.f32 %v2588, %v2595
    %v2600 = vmul.f32 %v2590, %v2596
    %2603 = vrot.lane.b32.xlu0 %v2591, 96
    %v2604 = vpop.permute.xlu0 %2603
    %2605 = vrot.lane.b32.xlu0 %v2592, 96
    %v2606 = vpop.permute.xlu0 %2605
    %v2609 = vmul.f32 %v2588, %v2604
    %v2610 = vmul.f32 %v2590, %v2606
    %2613 = vrot.lane.b32.xlu0 %v2609, 16
    %v2614 = vpop.permute.xlu0 %2613
    %2615 = vrot.lane.b32.xlu0 %v2610, 16
    %v2616 = vpop.permute.xlu0 %2615
    %v2619 = vadd.f32 %v2599, %v2614
    %v2620 = vadd.f32 %v2600, %v2616
    %v2621 = vtanh.pop %v2619
    %v2622 = vtanh.pop %v2620
    %2625 = vrot.lane.b32.xlu0 %v2621, 32
    %v2626 = vpop.permute.xlu0 %2625
    %2627 = vrot.lane.b32.xlu0 %v2622, 32
    %v2628 = vpop.permute.xlu0 %2627
    %v2631 = vmul.f32 %v2588, %v2626
    %v2632 = vmul.f32 %v2590, %v2628
    %v2633 = vxor.u32 %v2577, 2147483648
    %v2634 = vxor.u32 %v2578, 2147483648
    %v2635 = vmul.f32 %v2633, 1.442695
    %v2636 = vpow.pop %v2635
    %v2637 = vmul.f32 %v2634, 1.442695
    %v2638 = vpow.pop %v2637
    %v2639 = vadd.f32 %v2636, 1.0
    %v2640 = vadd.f32 %v2638, 1.0
    %v2641 = vrcp.pop %v2639
    %v2642 = vmul.f32 1.0, %v2641
    %v2643 = vrcp.pop %v2640
    %v2644 = vmul.f32 1.0, %v2643
    %v2645 = vtanh.pop %v2577
    %v2646 = vtanh.pop %v2578
    %v2649 = vrot.slane %v2389, 1
    %v2650 = vrot.slane %v2390, 1
    %v2653 = vmul.f32 %v2642, %v2649
    %v2654 = vmul.f32 %v2644, %v2650
    %2657 = vrot.lane.b32.xlu0 %v2645, 96
    %v2658 = vpop.permute.xlu0 %2657
    %2659 = vrot.lane.b32.xlu0 %v2646, 96
    %v2660 = vpop.permute.xlu0 %2659
    %v2663 = vmul.f32 %v2642, %v2658
    %v2664 = vmul.f32 %v2644, %v2660
    %2667 = vrot.lane.b32.xlu0 %v2663, 16
    %v2668 = vpop.permute.xlu0 %2667
    %2669 = vrot.lane.b32.xlu0 %v2664, 16
    %v2670 = vpop.permute.xlu0 %2669
    %v2673 = vadd.f32 %v2653, %v2668
    %v2674 = vadd.f32 %v2654, %v2670
    %v2675 = vtanh.pop %v2673
    %v2676 = vtanh.pop %v2674
    %2679 = vrot.lane.b32.xlu0 %v2675, 32
    %v2680 = vpop.permute.xlu0 %2679
    %2681 = vrot.lane.b32.xlu0 %v2676, 32
    %v2682 = vpop.permute.xlu0 %2681
    %v2685 = vmul.f32 %v2642, %v2680
    %v2686 = vmul.f32 %v2644, %v2682
    %v2689 = vrot.slane %v2631, 5
    %v2690 = vrot.slane %v2632, 4
    %v2691 = vsel %vm1272, %v2690, %v2689
    %2692 = vrot.lane.b32.xlu0 %v2691, 80
    %v2693 = vpop.permute.xlu0 %2692
    %v2694 = vsel %vm1012, %v2693, 0
    %2696 = vmatprep.subr.mxu0 0.0
    %2697 = vmatpush1.msra.mxu0 0.0
    %2698 = vmatprep.subr.mxu0 0.0
    %2699 = vmatpush1.msra.mxu0 0.0
    %2700 = vmatprep.subr.mxu0 0.0
    %2701 = vmatpush1.msra.mxu0 0.0
    %2702 = vmatprep.subr.mxu0 0.0
    %2703 = vmatpush1.msra.mxu0 0.0
    %2704 = vmatprep.subr.mxu0 0.0
    %2705 = vmatpush1.msra.mxu0 0.0
    %2706 = vmatprep.subr.mxu0 0.0
    %2707 = vmatpush1.msra.mxu0 0.0
    %2708 = vmatprep.subr.mxu0 0.0
    %2709 = vmatpush1.msra.mxu0 0.0
    %2710 = vmatprep.subr.mxu0 0.0
    %2711 = vmatpush1.msra.mxu0 0.0
    %2712 = vmatprep.subr.mxu0 0.0
    %2713 = vmatpush1.msra.mxu0 0.0
    %2714 = vmatprep.subr.mxu0 0.0
    %2715 = vmatpush1.msra.mxu0 0.0
    %2716 = vmatprep.subr.mxu0 0.0
    %2717 = vmatpush1.msra.mxu0 0.0
    %2718 = vmatprep.subr.mxu0 0.0
    %2719 = vmatpush1.msra.mxu0 0.0
    %2720 = vmatprep.subr.mxu0 0.0
    %2721 = vmatpush1.msra.mxu0 0.0
    %2722 = vmatprep.subr.mxu0 0.0
    %2723 = vmatpush1.msra.mxu0 0.0
    %2724 = vmatprep.subr.mxu0 0.0
    %2725 = vmatpush1.msra.mxu0 %v1009
    %2726 = vmatprep.subr.mxu0 0.0
    %2727 = vmatpush1.msra.mxu0 %v1008
    %2728 = vmatprep.subr.mxu0 0.0
    %2729 = vmatpush2.msra.mxu0 0.0
    %2730 = vmatprep.subr.mxu0 0.0
    %2731 = vmatpush2.msra.mxu0 0.0
    %2732 = vmatprep.subr.mxu0 0.0
    %2733 = vmatpush2.msra.mxu0 0.0
    %2734 = vmatprep.subr.mxu0 0.0
    %2735 = vmatpush2.msra.mxu0 0.0
    %2736 = vmatprep.subr.mxu0 0.0
    %2737 = vmatpush2.msra.mxu0 0.0
    %2738 = vmatprep.subr.mxu0 0.0
    %2739 = vmatpush2.msra.mxu0 0.0
    %2740 = vmatprep.subr.mxu0 0.0
    %2741 = vmatpush2.msra.mxu0 0.0
    %2742 = vmatprep.subr.mxu0 0.0
    %2743 = vmatpush2.msra.mxu0 0.0
    %2744 = vmatprep.subr.mxu0 0.0
    %2745 = vmatpush2.msra.mxu0 0.0
    %2746 = vmatprep.subr.mxu0 0.0
    %2747 = vmatpush2.msra.mxu0 0.0
    %2748 = vmatprep.subr.mxu0 0.0
    %2749 = vmatpush2.msra.mxu0 0.0
    %2750 = vmatprep.subr.mxu0 0.0
    %2751 = vmatpush2.msra.mxu0 0.0
    %2752 = vmatprep.subr.mxu0 0.0
    %2753 = vmatpush2.msra.mxu0 0.0
    %2754 = vmatprep.subr.mxu0 0.0
    %2755 = vmatpush2.msra.mxu0 0.0
    %2756 = vmatprep.subr.mxu0 0.0
    %2757 = vmatpush2.msra.mxu0 0.0
    %2758 = vmatprep.subr.mxu0 0.0
    %2759 = vmatpush2.msra.mxu0 0.0
    %2760 = vmatprep.mubr.f32.mxu0 0.0
    %2761 = vmatmul.mubr.f32.gmra.mxu0 %v2694
    %v2762 = vpop.f32.mrf.mxu0
    %v2763 = vadd.f32 0.0, %v2762
    %v2764 = vpop.f32.mrf.mxu0
    %2765 = vdwg.mxu0
    %v2767 = vrot.slane %v2763, 2
    %v2768 = vrot.slane %v2763, 3
    %v2771 = vadd.f32 %v1000, %v2767
    %v2772 = vadd.f32 %v1005, %v2768
    %v2775 = vrot.slane %v2685, 2
    %v2776 = vrot.slane %v2686, 1
    %v2777 = vsel %vm1272, %v2776, %v2775
    %2778 = vrot.lane.b32.xlu0 %v2777, 16
    %v2779 = vpop.permute.xlu0 %2778
    %v2780 = vsel %vm1012, %v2779, 0
    %2782 = vmatprep.subr.mxu0 0.0
    %2783 = vmatpush1.msra.mxu0 0.0
    %2784 = vmatprep.subr.mxu0 0.0
    %2785 = vmatpush1.msra.mxu0 0.0
    %2786 = vmatprep.subr.mxu0 0.0
    %2787 = vmatpush1.msra.mxu0 0.0
    %2788 = vmatprep.subr.mxu0 0.0
    %2789 = vmatpush1.msra.mxu0 0.0
    %2790 = vmatprep.subr.mxu0 0.0
    %2791 = vmatpush1.msra.mxu0 0.0
    %2792 = vmatprep.subr.mxu0 0.0
    %2793 = vmatpush1.msra.mxu0 0.0
    %2794 = vmatprep.subr.mxu0 0.0
    %2795 = vmatpush1.msra.mxu0 0.0
    %2796 = vmatprep.subr.mxu0 0.0
    %2797 = vmatpush1.msra.mxu0 0.0
    %2798 = vmatprep.subr.mxu0 0.0
    %2799 = vmatpush1.msra.mxu0 0.0
    %2800 = vmatprep.subr.mxu0 0.0
    %2801 = vmatpush1.msra.mxu0 0.0
    %2802 = vmatprep.subr.mxu0 0.0
    %2803 = vmatpush1.msra.mxu0 0.0
    %2804 = vmatprep.subr.mxu0 0.0
    %2805 = vmatpush1.msra.mxu0 0.0
    %2806 = vmatprep.subr.mxu0 0.0
    %2807 = vmatpush1.msra.mxu0 0.0
    %2808 = vmatprep.subr.mxu0 0.0
    %2809 = vmatpush1.msra.mxu0 0.0
    %2810 = vmatprep.subr.mxu0 0.0
    %2811 = vmatpush1.msra.mxu0 %v1011
    %2812 = vmatprep.subr.mxu0 0.0
    %2813 = vmatpush1.msra.mxu0 %v1010
    %2814 = vmatprep.subr.mxu0 0.0
    %2815 = vmatpush2.msra.mxu0 0.0
    %2816 = vmatprep.subr.mxu0 0.0
    %2817 = vmatpush2.msra.mxu0 0.0
    %2818 = vmatprep.subr.mxu0 0.0
    %2819 = vmatpush2.msra.mxu0 0.0
    %2820 = vmatprep.subr.mxu0 0.0
    %2821 = vmatpush2.msra.mxu0 0.0
    %2822 = vmatprep.subr.mxu0 0.0
    %2823 = vmatpush2.msra.mxu0 0.0
    %2824 = vmatprep.subr.mxu0 0.0
    %2825 = vmatpush2.msra.mxu0 0.0
    %2826 = vmatprep.subr.mxu0 0.0
    %2827 = vmatpush2.msra.mxu0 0.0
    %2828 = vmatprep.subr.mxu0 0.0
    %2829 = vmatpush2.msra.mxu0 0.0
    %2830 = vmatprep.subr.mxu0 0.0
    %2831 = vmatpush2.msra.mxu0 0.0
    %2832 = vmatprep.subr.mxu0 0.0
    %2833 = vmatpush2.msra.mxu0 0.0
    %2834 = vmatprep.subr.mxu0 0.0
    %2835 = vmatpush2.msra.mxu0 0.0
    %2836 = vmatprep.subr.mxu0 0.0
    %2837 = vmatpush2.msra.mxu0 0.0
    %2838 = vmatprep.subr.mxu0 0.0
    %2839 = vmatpush2.msra.mxu0 0.0
    %2840 = vmatprep.subr.mxu0 0.0
    %2841 = vmatpush2.msra.mxu0 0.0
    %2842 = vmatprep.subr.mxu0 0.0
    %2843 = vmatpush2.msra.mxu0 0.0
    %2844 = vmatprep.subr.mxu0 0.0
    %2845 = vmatpush2.msra.mxu0 0.0
    %2846 = vmatprep.mubr.f32.mxu0 0.0
    %2847 = vmatmul.mubr.f32.gmra.mxu0 %v2780
    %v2848 = vpop.f32.mrf.mxu0
    %v2849 = vadd.f32 0.0, %v2848
    %v2850 = vpop.f32.mrf.mxu0
    %2851 = vdwg.mxu0
    %v2853 = vrot.slane %v2849, 7
    %2854 = vrot.lane.b32.xlu0 %v2853, 64
    %v2855 = vpop.permute.xlu0 %2854
    %2856 = vrot.lane.b32.xlu0 %v2849, 64
    %v2857 = vpop.permute.xlu0 %2856
    %v2860 = vadd.f32 %v1000, %v2855
    %v2861 = vadd.f32 %v1005, %v2857
    %v2862 = vxor.u32 %v2771, 2147483648
    %v2863 = vxor.u32 %v2772, 2147483648
    %v2864 = vmul.f32 %v2862, 1.442695
    %v2865 = vpow.pop %v2864
    %v2866 = vmul.f32 %v2863, 1.442695
    %v2867 = vpow.pop %v2866
    %v2868 = vadd.f32 %v2865, 1.0
    %v2869 = vadd.f32 %v2867, 1.0
    %v2870 = vrcp.pop %v2868
    %v2871 = vmul.f32 1.0, %v2870
    %v2872 = vrcp.pop %v2869
    %v2873 = vmul.f32 1.0, %v2872
    %v2874 = vtanh.pop %v2771
    %v2875 = vtanh.pop %v2772
    %v2878 = vrot.slane %v2619, 7
    %v2879 = vrot.slane %v2620, 7
    %v2882 = vmul.f32 %v2871, %v2878
    %v2883 = vmul.f32 %v2873, %v2879
    %2886 = vrot.lane.b32.xlu0 %v2874, 96
    %v2887 = vpop.permute.xlu0 %2886
    %2888 = vrot.lane.b32.xlu0 %v2875, 96
    %v2889 = vpop.permute.xlu0 %2888
    %v2892 = vmul.f32 %v2871, %v2887
    %v2893 = vmul.f32 %v2873, %v2889
    %2896 = vrot.lane.b32.xlu0 %v2892, 16
    %v2897 = vpop.permute.xlu0 %2896
    %2898 = vrot.lane.b32.xlu0 %v2893, 16
    %v2899 = vpop.permute.xlu0 %2898
    %v2902 = vadd.f32 %v2882, %v2897
    %v2903 = vadd.f32 %v2883, %v2899
    %v2904 = vtanh.pop %v2902
    %v2905 = vtanh.pop %v2903
    %2908 = vrot.lane.b32.xlu0 %v2904, 32
    %v2909 = vpop.permute.xlu0 %2908
    %2910 = vrot.lane.b32.xlu0 %v2905, 32
    %v2911 = vpop.permute.xlu0 %2910
    %v2914 = vmul.f32 %v2871, %v2909
    %v2915 = vmul.f32 %v2873, %v2911
    %v2916 = vxor.u32 %v2860, 2147483648
    %v2917 = vxor.u32 %v2861, 2147483648
    %v2918 = vmul.f32 %v2916, 1.442695
    %v2919 = vpow.pop %v2918
    %v2920 = vmul.f32 %v2917, 1.442695
    %v2921 = vpow.pop %v2920
    %v2922 = vadd.f32 %v2919, 1.0
    %v2923 = vadd.f32 %v2921, 1.0
    %v2924 = vrcp.pop %v2922
    %v2925 = vmul.f32 1.0, %v2924
    %v2926 = vrcp.pop %v2923
    %v2927 = vmul.f32 1.0, %v2926
    %v2928 = vtanh.pop %v2860
    %v2929 = vtanh.pop %v2861
    %v2932 = vrot.slane %v2673, 1
    %v2933 = vrot.slane %v2674, 1
    %v2936 = vmul.f32 %v2925, %v2932
    %v2937 = vmul.f32 %v2927, %v2933
    %2940 = vrot.lane.b32.xlu0 %v2928, 96
    %v2941 = vpop.permute.xlu0 %2940
    %2942 = vrot.lane.b32.xlu0 %v2929, 96
    %v2943 = vpop.permute.xlu0 %2942
    %v2946 = vmul.f32 %v2925, %v2941
    %v2947 = vmul.f32 %v2927, %v2943
    %2950 = vrot.lane.b32.xlu0 %v2946, 16
    %v2951 = vpop.permute.xlu0 %2950
    %2952 = vrot.lane.b32.xlu0 %v2947, 16
    %v2953 = vpop.permute.xlu0 %2952
    %v2956 = vadd.f32 %v2936, %v2951
    %v2957 = vadd.f32 %v2937, %v2953
    %v2958 = vtanh.pop %v2956
    %v2959 = vtanh.pop %v2957
    %2962 = vrot.lane.b32.xlu0 %v2958, 32
    %v2963 = vpop.permute.xlu0 %2962
    %2964 = vrot.lane.b32.xlu0 %v2959, 32
    %v2965 = vpop.permute.xlu0 %2964
    %v2968 = vmul.f32 %v2925, %v2963
    %v2969 = vmul.f32 %v2927, %v2965
    %v2972 = vrot.slane %v2914, 6
    %v2973 = vrot.slane %v2915, 5
    %v2974 = vsel %vm1272, %v2973, %v2972
    %2975 = vrot.lane.b32.xlu0 %v2974, 80
    %v2976 = vpop.permute.xlu0 %2975
    %v2977 = vsel %vm1012, %v2976, 0
    %2979 = vmatprep.subr.mxu0 0.0
    %2980 = vmatpush1.msra.mxu0 0.0
    %2981 = vmatprep.subr.mxu0 0.0
    %2982 = vmatpush1.msra.mxu0 0.0
    %2983 = vmatprep.subr.mxu0 0.0
    %2984 = vmatpush1.msra.mxu0 0.0
    %2985 = vmatprep.subr.mxu0 0.0
    %2986 = vmatpush1.msra.mxu0 0.0
    %2987 = vmatprep.subr.mxu0 0.0
    %2988 = vmatpush1.msra.mxu0 0.0
    %2989 = vmatprep.subr.mxu0 0.0
    %2990 = vmatpush1.msra.mxu0 0.0
    %2991 = vmatprep.subr.mxu0 0.0
    %2992 = vmatpush1.msra.mxu0 0.0
    %2993 = vmatprep.subr.mxu0 0.0
    %2994 = vmatpush1.msra.mxu0 0.0
    %2995 = vmatprep.subr.mxu0 0.0
    %2996 = vmatpush1.msra.mxu0 0.0
    %2997 = vmatprep.subr.mxu0 0.0
    %2998 = vmatpush1.msra.mxu0 0.0
    %2999 = vmatprep.subr.mxu0 0.0
    %3000 = vmatpush1.msra.mxu0 0.0
    %3001 = vmatprep.subr.mxu0 0.0
    %3002 = vmatpush1.msra.mxu0 0.0
    %3003 = vmatprep.subr.mxu0 0.0
    %3004 = vmatpush1.msra.mxu0 0.0
    %3005 = vmatprep.subr.mxu0 0.0
    %3006 = vmatpush1.msra.mxu0 0.0
    %3007 = vmatprep.subr.mxu0 0.0
    %3008 = vmatpush1.msra.mxu0 %v1009
    %3009 = vmatprep.subr.mxu0 0.0
    %3010 = vmatpush1.msra.mxu0 %v1008
    %3011 = vmatprep.subr.mxu0 0.0
    %3012 = vmatpush2.msra.mxu0 0.0
    %3013 = vmatprep.subr.mxu0 0.0
    %3014 = vmatpush2.msra.mxu0 0.0
    %3015 = vmatprep.subr.mxu0 0.0
    %3016 = vmatpush2.msra.mxu0 0.0
    %3017 = vmatprep.subr.mxu0 0.0
    %3018 = vmatpush2.msra.mxu0 0.0
    %3019 = vmatprep.subr.mxu0 0.0
    %3020 = vmatpush2.msra.mxu0 0.0
    %3021 = vmatprep.subr.mxu0 0.0
    %3022 = vmatpush2.msra.mxu0 0.0
    %3023 = vmatprep.subr.mxu0 0.0
    %3024 = vmatpush2.msra.mxu0 0.0
    %3025 = vmatprep.subr.mxu0 0.0
    %3026 = vmatpush2.msra.mxu0 0.0
    %3027 = vmatprep.subr.mxu0 0.0
    %3028 = vmatpush2.msra.mxu0 0.0
    %3029 = vmatprep.subr.mxu0 0.0
    %3030 = vmatpush2.msra.mxu0 0.0
    %3031 = vmatprep.subr.mxu0 0.0
    %3032 = vmatpush2.msra.mxu0 0.0
    %3033 = vmatprep.subr.mxu0 0.0
    %3034 = vmatpush2.msra.mxu0 0.0
    %3035 = vmatprep.subr.mxu0 0.0
    %3036 = vmatpush2.msra.mxu0 0.0
    %3037 = vmatprep.subr.mxu0 0.0
    %3038 = vmatpush2.msra.mxu0 0.0
    %3039 = vmatprep.subr.mxu0 0.0
    %3040 = vmatpush2.msra.mxu0 0.0
    %3041 = vmatprep.subr.mxu0 0.0
    %3042 = vmatpush2.msra.mxu0 0.0
    %3043 = vmatprep.mubr.f32.mxu0 0.0
    %3044 = vmatmul.mubr.f32.gmra.mxu0 %v2977
    %v3045 = vpop.f32.mrf.mxu0
    %v3046 = vadd.f32 0.0, %v3045
    %v3047 = vpop.f32.mrf.mxu0
    %3048 = vdwg.mxu0
    %v3050 = vrot.slane %v3046, 1
    %v3051 = vrot.slane %v3046, 2
    %v3054 = vadd.f32 %v1000, %v3050
    %v3055 = vadd.f32 %v1005, %v3051
    %v3058 = vrot.slane %v2968, 1
    %v3059 = vsel %vm1272, %v2969, %v3058
    %3060 = vrot.lane.b32.xlu0 %v3059, 16
    %v3061 = vpop.permute.xlu0 %3060
    %v3062 = vsel %vm1012, %v3061, 0
    %3064 = vmatprep.subr.mxu0 0.0
    %3065 = vmatpush1.msra.mxu0 0.0
    %3066 = vmatprep.subr.mxu0 0.0
    %3067 = vmatpush1.msra.mxu0 0.0
    %3068 = vmatprep.subr.mxu0 0.0
    %3069 = vmatpush1.msra.mxu0 0.0
    %3070 = vmatprep.subr.mxu0 0.0
    %3071 = vmatpush1.msra.mxu0 0.0
    %3072 = vmatprep.subr.mxu0 0.0
    %3073 = vmatpush1.msra.mxu0 0.0
    %3074 = vmatprep.subr.mxu0 0.0
    %3075 = vmatpush1.msra.mxu0 0.0
    %3076 = vmatprep.subr.mxu0 0.0
    %3077 = vmatpush1.msra.mxu0 0.0
    %3078 = vmatprep.subr.mxu0 0.0
    %3079 = vmatpush1.msra.mxu0 0.0
    %3080 = vmatprep.subr.mxu0 0.0
    %3081 = vmatpush1.msra.mxu0 0.0
    %3082 = vmatprep.subr.mxu0 0.0
    %3083 = vmatpush1.msra.mxu0 0.0
    %3084 = vmatprep.subr.mxu0 0.0
    %3085 = vmatpush1.msra.mxu0 0.0
    %3086 = vmatprep.subr.mxu0 0.0
    %3087 = vmatpush1.msra.mxu0 0.0
    %3088 = vmatprep.subr.mxu0 0.0
    %3089 = vmatpush1.msra.mxu0 0.0
    %3090 = vmatprep.subr.mxu0 0.0
    %3091 = vmatpush1.msra.mxu0 0.0
    %3092 = vmatprep.subr.mxu0 0.0
    %3093 = vmatpush1.msra.mxu0 %v1011
    %3094 = vmatprep.subr.mxu0 0.0
    %3095 = vmatpush1.msra.mxu0 %v1010
    %3096 = vmatprep.subr.mxu0 0.0
    %3097 = vmatpush2.msra.mxu0 0.0
    %3098 = vmatprep.subr.mxu0 0.0
    %3099 = vmatpush2.msra.mxu0 0.0
    %3100 = vmatprep.subr.mxu0 0.0
    %3101 = vmatpush2.msra.mxu0 0.0
    %3102 = vmatprep.subr.mxu0 0.0
    %3103 = vmatpush2.msra.mxu0 0.0
    %3104 = vmatprep.subr.mxu0 0.0
    %3105 = vmatpush2.msra.mxu0 0.0
    %3106 = vmatprep.subr.mxu0 0.0
    %3107 = vmatpush2.msra.mxu0 0.0
    %3108 = vmatprep.subr.mxu0 0.0
    %3109 = vmatpush2.msra.mxu0 0.0
    %3110 = vmatprep.subr.mxu0 0.0
    %3111 = vmatpush2.msra.mxu0 0.0
    %3112 = vmatprep.subr.mxu0 0.0
    %3113 = vmatpush2.msra.mxu0 0.0
    %3114 = vmatprep.subr.mxu0 0.0
    %3115 = vmatpush2.msra.mxu0 0.0
    %3116 = vmatprep.subr.mxu0 0.0
    %3117 = vmatpush2.msra.mxu0 0.0
    %3118 = vmatprep.subr.mxu0 0.0
    %3119 = vmatpush2.msra.mxu0 0.0
    %3120 = vmatprep.subr.mxu0 0.0
    %3121 = vmatpush2.msra.mxu0 0.0
    %3122 = vmatprep.subr.mxu0 0.0
    %3123 = vmatpush2.msra.mxu0 0.0
    %3124 = vmatprep.subr.mxu0 0.0
    %3125 = vmatpush2.msra.mxu0 0.0
    %3126 = vmatprep.subr.mxu0 0.0
    %3127 = vmatpush2.msra.mxu0 0.0
    %3128 = vmatprep.mubr.f32.mxu0 0.0
    %3129 = vmatmul.mubr.f32.gmra.mxu0 %v3062
    %v3130 = vpop.f32.mrf.mxu0
    %v3131 = vadd.f32 0.0, %v3130
    %v3132 = vpop.f32.mrf.mxu0
    %3133 = vdwg.mxu0
    %v3135 = vrot.slane %v3131, 1
    %3136 = vrot.lane.b32.xlu0 %v3131, 64
    %v3137 = vpop.permute.xlu0 %3136
    %3138 = vrot.lane.b32.xlu0 %v3135, 64
    %v3139 = vpop.permute.xlu0 %3138
    %v3142 = vadd.f32 %v1000, %v3137
    %v3143 = vadd.f32 %v1005, %v3139
    %v3144 = vxor.u32 %v3054, 2147483648
    %v3145 = vxor.u32 %v3055, 2147483648
    %v3146 = vmul.f32 %v3144, 1.442695
    %v3147 = vpow.pop %v3146
    %v3148 = vmul.f32 %v3145, 1.442695
    %v3149 = vpow.pop %v3148
    %v3150 = vadd.f32 %v3147, 1.0
    %v3151 = vadd.f32 %v3149, 1.0
    %v3152 = vrcp.pop %v3150
    %v3153 = vmul.f32 1.0, %v3152
    %v3154 = vrcp.pop %v3151
    %v3155 = vmul.f32 1.0, %v3154
    %v3156 = vtanh.pop %v3054
    %v3157 = vtanh.pop %v3055
    %v3160 = vrot.slane %v2902, 7
    %v3161 = vrot.slane %v2903, 7
    %v3164 = vmul.f32 %v3153, %v3160
    %v3165 = vmul.f32 %v3155, %v3161
    %3168 = vrot.lane.b32.xlu0 %v3156, 96
    %v3169 = vpop.permute.xlu0 %3168
    %3170 = vrot.lane.b32.xlu0 %v3157, 96
    %v3171 = vpop.permute.xlu0 %3170
    %v3174 = vmul.f32 %v3153, %v3169
    %v3175 = vmul.f32 %v3155, %v3171
    %3178 = vrot.lane.b32.xlu0 %v3174, 16
    %v3179 = vpop.permute.xlu0 %3178
    %3180 = vrot.lane.b32.xlu0 %v3175, 16
    %v3181 = vpop.permute.xlu0 %3180
    %v3184 = vadd.f32 %v3164, %v3179
    %v3185 = vadd.f32 %v3165, %v3181
    %v3186 = vtanh.pop %v3184
    %v3187 = vtanh.pop %v3185
    %3190 = vrot.lane.b32.xlu0 %v3186, 32
    %v3191 = vpop.permute.xlu0 %3190
    %3192 = vrot.lane.b32.xlu0 %v3187, 32
    %v3193 = vpop.permute.xlu0 %3192
    %v3196 = vmul.f32 %v3153, %v3191
    %v3197 = vmul.f32 %v3155, %v3193
    %v3198 = vxor.u32 %v3142, 2147483648
    %v3199 = vxor.u32 %v3143, 2147483648
    %v3200 = vmul.f32 %v3198, 1.442695
    %v3201 = vpow.pop %v3200
    %v3202 = vmul.f32 %v3199, 1.442695
    %v3203 = vpow.pop %v3202
    %v3204 = vadd.f32 %v3201, 1.0
    %v3205 = vadd.f32 %v3203, 1.0
    %v3206 = vrcp.pop %v3204
    %v3207 = vmul.f32 1.0, %v3206
    %v3208 = vrcp.pop %v3205
    %v3209 = vmul.f32 1.0, %v3208
    %v3210 = vtanh.pop %v3142
    %v3211 = vtanh.pop %v3143
    %v3214 = vrot.slane %v2956, 1
    %v3215 = vrot.slane %v2957, 1
    %v3218 = vmul.f32 %v3207, %v3214
    %v3219 = vmul.f32 %v3209, %v3215
    %3222 = vrot.lane.b32.xlu0 %v3210, 96
    %v3223 = vpop.permute.xlu0 %3222
    %3224 = vrot.lane.b32.xlu0 %v3211, 96
    %v3225 = vpop.permute.xlu0 %3224
    %v3228 = vmul.f32 %v3207, %v3223
    %v3229 = vmul.f32 %v3209, %v3225
    %3232 = vrot.lane.b32.xlu0 %v3228, 16
    %v3233 = vpop.permute.xlu0 %3232
    %3234 = vrot.lane.b32.xlu0 %v3229, 16
    %v3235 = vpop.permute.xlu0 %3234
    %v3238 = vadd.f32 %v3218, %v3233
    %v3239 = vadd.f32 %v3219, %v3235
    %v3240 = vtanh.pop %v3238
    %v3241 = vtanh.pop %v3239
    %3244 = vrot.lane.b32.xlu0 %v3240, 32
    %v3245 = vpop.permute.xlu0 %3244
    %3246 = vrot.lane.b32.xlu0 %v3241, 32
    %v3247 = vpop.permute.xlu0 %3246
    %v3250 = vmul.f32 %v3207, %v3245
    %v3251 = vmul.f32 %v3209, %v3247
    %vm3252 = vcmask 1040384
    %v3253 = vsel %vm3252, %v1219, %v1496
    %v3254 = vsel %vm3252, %v1220, %v1497
    %vm3255 = vcmask 1041408
    %v3256 = vsel %vm3255, %v3253, %v1779
    %v3257 = vsel %vm3255, %v3254, %v1780
    %vm3258 = vcmask 1042432
    %v3259 = vsel %vm3258, %v3256, %v2063
    %v3260 = vsel %vm3258, %v3257, %v2064
    %vm3261 = vcmask 1043456
    %v3262 = vsel %vm3261, %v3259, %v2347
    %v3263 = vsel %vm3261, %v3260, %v2348
    %vm3264 = vcmask 1044480
    %v3265 = vsel %vm3264, %v3262, %v2631
    %v3266 = vsel %vm3264, %v3263, %v2632
    %vm3267 = vcmask 1045504
    %v3268 = vsel %vm3267, %v3265, %v2914
    %v3269 = vsel %vm3267, %v3266, %v2915
    %vm3270 = vcmask 1046528
    %v3271 = vsel %vm3270, %v3268, %v3196
    %v3272 = vsel %vm3270, %v3269, %v3197
    %v3273 = vsel %vm3252, %v3250, %v2968
    %v3274 = vsel %vm3252, %v3251, %v2969
    %v3275 = vsel %vm3255, %v3273, %v2685
    %v3276 = vsel %vm3255, %v3274, %v2686
    %v3277 = vsel %vm3258, %v3275, %v2401
    %v3278 = vsel %vm3258, %v3276, %v2402
    %v3279 = vsel %vm3261, %v3277, %v2117
    %v3280 = vsel %vm3261, %v3278, %v2118
    %v3281 = vsel %vm3264, %v3279, %v1833
    %v3282 = vsel %vm3264, %v3280, %v1834
    %v3283 = vsel %vm3267, %v3281, %v1550
    %v3284 = vsel %vm3267, %v3282, %v1551
    %v3285 = vsel %vm3270, %v3283, %v1267
    %v3286 = vsel %vm3270, %v3284, %v1268
    %3289 = vrot.lane.b32.xlu0 %v3271, 80
    %v3290 = vpop.permute.xlu0 %3289
    %3291 = vrot.lane.b32.xlu0 %v3272, 80
    %v3292 = vpop.permute.xlu0 %3291
    %3297 = vrot.lane.b32.xlu0 %v3285, 32
    %v3298 = vpop.permute.xlu0 %3297
    %3299 = vrot.lane.b32.xlu0 %v3286, 32
    %v3300 = vpop.permute.xlu0 %3299
    %v3303 = vsel %vm1012, %v3290, %v3298
    %v3304 = vsel %vm1012, %v3292, %v3300
    %v3305 = vld [vmem:[#allocation2 + $0xe0] sm:$0xff]
    %v3306 = vld [vmem:[#allocation2 + $0xe8] sm:$0xff]
    %v3307 = vld [vmem:[#allocation2 + $0xf0] sm:$0xff]
    %v3308 = vld [vmem:[#allocation2 + $0xf8] sm:$0xff]
    %v3309 = vld [vmem:[%s3 + $0xb] sm:$0x1]
    %v3310 = vlaneseq
    %v3311 = vshrl.u32 %v3310, 7
    %v3312 = vsub.s32 0, %v3311
    %v3313 = vrot.slane %v3309, %v3312
    %v3315 = vsel %vm36, %v3303, 0
    %v3318 = vsel %vm36, %v3304, 0
    %3320 = vmatprep.subr.mxu0 0.0
    %3321 = vmatpush1.msra.mxu0 0.0
    %3322 = vmatprep.subr.mxu0 0.0
    %3323 = vmatpush1.msra.mxu0 0.0
    %3324 = vmatprep.subr.mxu0 0.0
    %3325 = vmatpush1.msra.mxu0 0.0
    %3326 = vmatprep.subr.mxu0 0.0
    %3327 = vmatpush1.msra.mxu0 0.0
    %3328 = vmatprep.subr.mxu0 0.0
    %3329 = vmatpush1.msra.mxu0 0.0
    %3330 = vmatprep.subr.mxu0 0.0
    %3331 = vmatpush1.msra.mxu0 0.0
    %3332 = vmatprep.subr.mxu0 0.0
    %3333 = vmatpush1.msra.mxu0 0.0
    %3334 = vmatprep.subr.mxu0 0.0
    %3335 = vmatpush1.msra.mxu0 0.0
    %3336 = vmatprep.subr.mxu0 0.0
    %3337 = vmatpush1.msra.mxu0 0.0
    %3338 = vmatprep.subr.mxu0 0.0
    %3339 = vmatpush1.msra.mxu0 0.0
    %3340 = vmatprep.subr.mxu0 0.0
    %3341 = vmatpush1.msra.mxu0 0.0
    %3342 = vmatprep.subr.mxu0 0.0
    %3343 = vmatpush1.msra.mxu0 0.0
    %3344 = vmatprep.subr.mxu0 0.0
    %3345 = vmatpush1.msra.mxu0 %v3308
    %3346 = vmatprep.subr.mxu0 0.0
    %3347 = vmatpush1.msra.mxu0 %v3307
    %3348 = vmatprep.subr.mxu0 0.0
    %3349 = vmatpush1.msra.mxu0 %v3306
    %3350 = vmatprep.subr.mxu0 0.0
    %3351 = vmatpush1.msra.mxu0 %v3305
    %3352 = vmatprep.subr.mxu0 0.0
    %3353 = vmatpush2.msra.mxu0 0.0
    %3354 = vmatprep.subr.mxu0 0.0
    %3355 = vmatpush2.msra.mxu0 0.0
    %3356 = vmatprep.subr.mxu0 0.0
    %3357 = vmatpush2.msra.mxu0 0.0
    %3358 = vmatprep.subr.mxu0 0.0
    %3359 = vmatpush2.msra.mxu0 0.0
    %3360 = vmatprep.subr.mxu0 0.0
    %3361 = vmatpush2.msra.mxu0 0.0
    %3362 = vmatprep.subr.mxu0 0.0
    %3363 = vmatpush2.msra.mxu0 0.0
    %3364 = vmatprep.subr.mxu0 0.0
    %3365 = vmatpush2.msra.mxu0 0.0
    %3366 = vmatprep.subr.mxu0 0.0
    %3367 = vmatpush2.msra.mxu0 0.0
    %3368 = vmatprep.subr.mxu0 0.0
    %3369 = vmatpush2.msra.mxu0 0.0
    %3370 = vmatprep.subr.mxu0 0.0
    %3371 = vmatpush2.msra.mxu0 0.0
    %3372 = vmatprep.subr.mxu0 0.0
    %3373 = vmatpush2.msra.mxu0 0.0
    %3374 = vmatprep.subr.mxu0 0.0
    %3375 = vmatpush2.msra.mxu0 0.0
    %3376 = vmatprep.subr.mxu0 0.0
    %3377 = vmatpush2.msra.mxu0 0.0
    %3378 = vmatprep.subr.mxu0 0.0
    %3379 = vmatpush2.msra.mxu0 0.0
    %3380 = vmatprep.subr.mxu0 0.0
    %3381 = vmatpush2.msra.mxu0 0.0
    %3382 = vmatprep.subr.mxu0 0.0
    %3383 = vmatpush2.msra.mxu0 0.0
    %3384 = vmatprep.mubr.f32.mxu0 0.0
    %3385 = vmatmul.mubr.f32.gmra.mxu0 %v3315
    %v3386 = vpop.f32.mrf.mxu0
    %v3387 = vadd.f32 %v3313, %v3386
    %v3388 = vpop.f32.mrf.mxu0
    %3389 = vmatprep.mubr.f32.mxu0 0.0
    %3390 = vmatmul.mubr.f32.gmra.mxu0 %v3318
    %v3391 = vpop.f32.mrf.mxu0
    %v3392 = vadd.f32 %v3313, %v3391
    %v3393 = vpop.f32.mrf.mxu0
    %3394 = vdwg.mxu0
    %v3395 = vld [vmem:[#allocation2 + $0x100] sm:$0xff]
    %v3396 = vld [vmem:[#allocation2 + $0x108] sm:$0xff]
    %v3397 = vld [vmem:[#allocation2 + $0x110] sm:$0xff]
    %v3398 = vld [vmem:[#allocation2 + $0x118] sm:$0xff]
    %3399 = vmatprep.subr.mxu0 0.0
    %3400 = vmatpush1.msra.mxu0 0.0
    %3401 = vmatprep.subr.mxu0 0.0
    %3402 = vmatpush1.msra.mxu0 0.0
    %3403 = vmatprep.subr.mxu0 0.0
    %3404 = vmatpush1.msra.mxu0 0.0
    %3405 = vmatprep.subr.mxu0 0.0
    %3406 = vmatpush1.msra.mxu0 0.0
    %3407 = vmatprep.subr.mxu0 0.0
    %3408 = vmatpush1.msra.mxu0 0.0
    %3409 = vmatprep.subr.mxu0 0.0
    %3410 = vmatpush1.msra.mxu0 0.0
    %3411 = vmatprep.subr.mxu0 0.0
    %3412 = vmatpush1.msra.mxu0 0.0
    %3413 = vmatprep.subr.mxu0 0.0
    %3414 = vmatpush1.msra.mxu0 0.0
    %3415 = vmatprep.subr.mxu0 0.0
    %3416 = vmatpush1.msra.mxu0 0.0
    %3417 = vmatprep.subr.mxu0 0.0
    %3418 = vmatpush1.msra.mxu0 0.0
    %3419 = vmatprep.subr.mxu0 0.0
    %3420 = vmatpush1.msra.mxu0 0.0
    %3421 = vmatprep.subr.mxu0 0.0
    %3422 = vmatpush1.msra.mxu0 0.0
    %3423 = vmatprep.subr.mxu0 0.0
    %3424 = vmatpush1.msra.mxu0 0.0
    %3425 = vmatprep.subr.mxu0 0.0
    %3426 = vmatpush1.msra.mxu0 0.0
    %3427 = vmatprep.subr.mxu0 0.0
    %3428 = vmatpush1.msra.mxu0 %v3396
    %3429 = vmatprep.subr.mxu0 0.0
    %3430 = vmatpush1.msra.mxu0 %v3395
    %3431 = vmatprep.subr.mxu0 0.0
    %3432 = vmatpush2.msra.mxu0 0.0
    %3433 = vmatprep.subr.mxu0 0.0
    %3434 = vmatpush2.msra.mxu0 0.0
    %3435 = vmatprep.subr.mxu0 0.0
    %3436 = vmatpush2.msra.mxu0 0.0
    %3437 = vmatprep.subr.mxu0 0.0
    %3438 = vmatpush2.msra.mxu0 0.0
    %3439 = vmatprep.subr.mxu0 0.0
    %3440 = vmatpush2.msra.mxu0 0.0
    %3441 = vmatprep.subr.mxu0 0.0
    %3442 = vmatpush2.msra.mxu0 0.0
    %3443 = vmatprep.subr.mxu0 0.0
    %3444 = vmatpush2.msra.mxu0 0.0
    %3445 = vmatprep.subr.mxu0 0.0
    %3446 = vmatpush2.msra.mxu0 0.0
    %3447 = vmatprep.subr.mxu0 0.0
    %3448 = vmatpush2.msra.mxu0 0.0
    %3449 = vmatprep.subr.mxu0 0.0
    %3450 = vmatpush2.msra.mxu0 0.0
    %3451 = vmatprep.subr.mxu0 0.0
    %3452 = vmatpush2.msra.mxu0 0.0
    %3453 = vmatprep.subr.mxu0 0.0
    %3454 = vmatpush2.msra.mxu0 0.0
    %3455 = vmatprep.subr.mxu0 0.0
    %3456 = vmatpush2.msra.mxu0 0.0
    %3457 = vmatprep.subr.mxu0 0.0
    %3458 = vmatpush2.msra.mxu0 0.0
    %3459 = vmatprep.subr.mxu0 0.0
    %3460 = vmatpush2.msra.mxu0 0.0
    %3461 = vmatprep.subr.mxu0 0.0
    %3462 = vmatpush2.msra.mxu0 0.0
    %3463 = vmatprep.mubr.f32.mxu0 0.0
    %3464 = vmatmul.mubr.f32.gmra.mxu0 %v1014
    %v3465 = vpop.f32.mrf.mxu0
    %v3466 = vadd.f32 0.0, %v3465
    %v3467 = vpop.f32.mrf.mxu0
    %3468 = vdwg.mxu0
    %v3470 = vrot.slane %v3466, 1
    %v3473 = vadd.f32 %v3387, %v3466
    %v3474 = vadd.f32 %v3392, %v3470
    %3475 = vmatprep.subr.mxu0 0.0
    %3476 = vmatpush1.msra.mxu0 0.0
    %3477 = vmatprep.subr.mxu0 0.0
    %3478 = vmatpush1.msra.mxu0 0.0
    %3479 = vmatprep.subr.mxu0 0.0
    %3480 = vmatpush1.msra.mxu0 0.0
    %3481 = vmatprep.subr.mxu0 0.0
    %3482 = vmatpush1.msra.mxu0 0.0
    %3483 = vmatprep.subr.mxu0 0.0
    %3484 = vmatpush1.msra.mxu0 0.0
    %3485 = vmatprep.subr.mxu0 0.0
    %3486 = vmatpush1.msra.mxu0 0.0
    %3487 = vmatprep.subr.mxu0 0.0
    %3488 = vmatpush1.msra.mxu0 0.0
    %3489 = vmatprep.subr.mxu0 0.0
    %3490 = vmatpush1.msra.mxu0 0.0
    %3491 = vmatprep.subr.mxu0 0.0
    %3492 = vmatpush1.msra.mxu0 0.0
    %3493 = vmatprep.subr.mxu0 0.0
    %3494 = vmatpush1.msra.mxu0 0.0
    %3495 = vmatprep.subr.mxu0 0.0
    %3496 = vmatpush1.msra.mxu0 0.0
    %3497 = vmatprep.subr.mxu0 0.0
    %3498 = vmatpush1.msra.mxu0 0.0
    %3499 = vmatprep.subr.mxu0 0.0
    %3500 = vmatpush1.msra.mxu0 0.0
    %3501 = vmatprep.subr.mxu0 0.0
    %3502 = vmatpush1.msra.mxu0 0.0
    %3503 = vmatprep.subr.mxu0 0.0
    %3504 = vmatpush1.msra.mxu0 %v3398
    %3505 = vmatprep.subr.mxu0 0.0
    %3506 = vmatpush1.msra.mxu0 %v3397
    %3507 = vmatprep.subr.mxu0 0.0
    %3508 = vmatpush2.msra.mxu0 0.0
    %3509 = vmatprep.subr.mxu0 0.0
    %3510 = vmatpush2.msra.mxu0 0.0
    %3511 = vmatprep.subr.mxu0 0.0
    %3512 = vmatpush2.msra.mxu0 0.0
    %3513 = vmatprep.subr.mxu0 0.0
    %3514 = vmatpush2.msra.mxu0 0.0
    %3515 = vmatprep.subr.mxu0 0.0
    %3516 = vmatpush2.msra.mxu0 0.0
    %3517 = vmatprep.subr.mxu0 0.0
    %3518 = vmatpush2.msra.mxu0 0.0
    %3519 = vmatprep.subr.mxu0 0.0
    %3520 = vmatpush2.msra.mxu0 0.0
    %3521 = vmatprep.subr.mxu0 0.0
    %3522 = vmatpush2.msra.mxu0 0.0
    %3523 = vmatprep.subr.mxu0 0.0
    %3524 = vmatpush2.msra.mxu0 0.0
    %3525 = vmatprep.subr.mxu0 0.0
    %3526 = vmatpush2.msra.mxu0 0.0
    %3527 = vmatprep.subr.mxu0 0.0
    %3528 = vmatpush2.msra.mxu0 0.0
    %3529 = vmatprep.subr.mxu0 0.0
    %3530 = vmatpush2.msra.mxu0 0.0
    %3531 = vmatprep.subr.mxu0 0.0
    %3532 = vmatpush2.msra.mxu0 0.0
    %3533 = vmatprep.subr.mxu0 0.0
    %3534 = vmatpush2.msra.mxu0 0.0
    %3535 = vmatprep.subr.mxu0 0.0
    %3536 = vmatpush2.msra.mxu0 0.0
    %3537 = vmatprep.subr.mxu0 0.0
    %3538 = vmatpush2.msra.mxu0 0.0
    %3539 = vmatprep.mubr.f32.mxu0 0.0
    %3540 = vmatmul.mubr.f32.gmra.mxu0 %v1014
    %v3541 = vpop.f32.mrf.mxu0
    %v3542 = vadd.f32 0.0, %v3541
    %v3543 = vpop.f32.mrf.mxu0
    %3544 = vdwg.mxu0
    %v3546 = vrot.slane %v3542, 1
    %v3547 = vrot.slane %v3542, 2
    %3548 = vrot.lane.b32.xlu0 %v3546, 64
    %v3549 = vpop.permute.xlu0 %3548
    %3550 = vrot.lane.b32.xlu0 %v3547, 64
    %v3551 = vpop.permute.xlu0 %3550
    %v3554 = vadd.f32 %v3387, %v3549
    %v3555 = vadd.f32 %v3392, %v3551
    %v3556 = vxor.u32 %v3473, 2147483648
    %v3557 = vxor.u32 %v3474, 2147483648
    %v3558 = vmul.f32 %v3556, 1.442695
    %v3559 = vpow.pop %v3558
    %v3560 = vmul.f32 %v3557, 1.442695
    %v3561 = vpow.pop %v3560
    %v3562 = vadd.f32 %v3559, 1.0
    %v3563 = vadd.f32 %v3561, 1.0
    %v3564 = vrcp.pop %v3562
    %v3565 = vmul.f32 1.0, %v3564
    %v3566 = vrcp.pop %v3563
    %v3567 = vmul.f32 1.0, %v3566
    %v3568 = vtanh.pop %v3473
    %v3569 = vtanh.pop %v3474
    %v3570 = vmul.f32 %v3565, 0.0
    %v3571 = vmul.f32 %v3567, 0.0
    %3574 = vrot.lane.b32.xlu0 %v3568, 96
    %v3575 = vpop.permute.xlu0 %3574
    %3576 = vrot.lane.b32.xlu0 %v3569, 96
    %v3577 = vpop.permute.xlu0 %3576
    %v3580 = vmul.f32 %v3565, %v3575
    %v3581 = vmul.f32 %v3567, %v3577
    %3584 = vrot.lane.b32.xlu0 %v3580, 16
    %v3585 = vpop.permute.xlu0 %3584
    %3586 = vrot.lane.b32.xlu0 %v3581, 16
    %v3587 = vpop.permute.xlu0 %3586
    %v3590 = vadd.f32 %v3570, %v3585
    %v3591 = vadd.f32 %v3571, %v3587
    %v3592 = vtanh.pop %v3590
    %v3593 = vtanh.pop %v3591
    %3596 = vrot.lane.b32.xlu0 %v3592, 32
    %v3597 = vpop.permute.xlu0 %3596
    %3598 = vrot.lane.b32.xlu0 %v3593, 32
    %v3599 = vpop.permute.xlu0 %3598
    %v3602 = vmul.f32 %v3565, %v3597
    %v3603 = vmul.f32 %v3567, %v3599
    %v3604 = vxor.u32 %v3554, 2147483648
    %v3605 = vxor.u32 %v3555, 2147483648
    %v3606 = vmul.f32 %v3604, 1.442695
    %v3607 = vpow.pop %v3606
    %v3608 = vmul.f32 %v3605, 1.442695
    %v3609 = vpow.pop %v3608
    %v3610 = vadd.f32 %v3607, 1.0
    %v3611 = vadd.f32 %v3609, 1.0
    %v3612 = vrcp.pop %v3610
    %v3613 = vmul.f32 1.0, %v3612
    %v3614 = vrcp.pop %v3611
    %v3615 = vmul.f32 1.0, %v3614
    %v3616 = vtanh.pop %v3554
    %v3617 = vtanh.pop %v3555
    %v3618 = vmul.f32 %v3613, 0.0
    %v3619 = vmul.f32 %v3615, 0.0
    %3622 = vrot.lane.b32.xlu0 %v3616, 96
    %v3623 = vpop.permute.xlu0 %3622
    %3624 = vrot.lane.b32.xlu0 %v3617, 96
    %v3625 = vpop.permute.xlu0 %3624
    %v3628 = vmul.f32 %v3613, %v3623
    %v3629 = vmul.f32 %v3615, %v3625
    %3632 = vrot.lane.b32.xlu0 %v3628, 16
    %v3633 = vpop.permute.xlu0 %3632
    %3634 = vrot.lane.b32.xlu0 %v3629, 16
    %v3635 = vpop.permute.xlu0 %3634
    %v3638 = vadd.f32 %v3618, %v3633
    %v3639 = vadd.f32 %v3619, %v3635
    %v3640 = vtanh.pop %v3638
    %v3641 = vtanh.pop %v3639
    %3644 = vrot.lane.b32.xlu0 %v3640, 32
    %v3645 = vpop.permute.xlu0 %3644
    %3646 = vrot.lane.b32.xlu0 %v3641, 32
    %v3647 = vpop.permute.xlu0 %3646
    %v3650 = vmul.f32 %v3613, %v3645
    %v3651 = vmul.f32 %v3615, %v3647
    %v3654 = vrot.slane %v3603, 7
    %v3655 = vsel %vm1272, %v3654, %v3602
    %3656 = vrot.lane.b32.xlu0 %v3655, 80
    %v3657 = vpop.permute.xlu0 %3656
    %v3658 = vsel %vm1012, %v3657, 0
    %3660 = vmatprep.subr.mxu0 0.0
    %3661 = vmatpush1.msra.mxu0 0.0
    %3662 = vmatprep.subr.mxu0 0.0
    %3663 = vmatpush1.msra.mxu0 0.0
    %3664 = vmatprep.subr.mxu0 0.0
    %3665 = vmatpush1.msra.mxu0 0.0
    %3666 = vmatprep.subr.mxu0 0.0
    %3667 = vmatpush1.msra.mxu0 0.0
    %3668 = vmatprep.subr.mxu0 0.0
    %3669 = vmatpush1.msra.mxu0 0.0
    %3670 = vmatprep.subr.mxu0 0.0
    %3671 = vmatpush1.msra.mxu0 0.0
    %3672 = vmatprep.subr.mxu0 0.0
    %3673 = vmatpush1.msra.mxu0 0.0
    %3674 = vmatprep.subr.mxu0 0.0
    %3675 = vmatpush1.msra.mxu0 0.0
    %3676 = vmatprep.subr.mxu0 0.0
    %3677 = vmatpush1.msra.mxu0 0.0
    %3678 = vmatprep.subr.mxu0 0.0
    %3679 = vmatpush1.msra.mxu0 0.0
    %3680 = vmatprep.subr.mxu0 0.0
    %3681 = vmatpush1.msra.mxu0 0.0
    %3682 = vmatprep.subr.mxu0 0.0
    %3683 = vmatpush1.msra.mxu0 0.0
    %3684 = vmatprep.subr.mxu0 0.0
    %3685 = vmatpush1.msra.mxu0 0.0
    %3686 = vmatprep.subr.mxu0 0.0
    %3687 = vmatpush1.msra.mxu0 0.0
    %3688 = vmatprep.subr.mxu0 0.0
    %3689 = vmatpush1.msra.mxu0 %v3396
    %3690 = vmatprep.subr.mxu0 0.0
    %3691 = vmatpush1.msra.mxu0 %v3395
    %3692 = vmatprep.subr.mxu0 0.0
    %3693 = vmatpush2.msra.mxu0 0.0
    %3694 = vmatprep.subr.mxu0 0.0
    %3695 = vmatpush2.msra.mxu0 0.0
    %3696 = vmatprep.subr.mxu0 0.0
    %3697 = vmatpush2.msra.mxu0 0.0
    %3698 = vmatprep.subr.mxu0 0.0
    %3699 = vmatpush2.msra.mxu0 0.0
    %3700 = vmatprep.subr.mxu0 0.0
    %3701 = vmatpush2.msra.mxu0 0.0
    %3702 = vmatprep.subr.mxu0 0.0
    %3703 = vmatpush2.msra.mxu0 0.0
    %3704 = vmatprep.subr.mxu0 0.0
    %3705 = vmatpush2.msra.mxu0 0.0
    %3706 = vmatprep.subr.mxu0 0.0
    %3707 = vmatpush2.msra.mxu0 0.0
    %3708 = vmatprep.subr.mxu0 0.0
    %3709 = vmatpush2.msra.mxu0 0.0
    %3710 = vmatprep.subr.mxu0 0.0
    %3711 = vmatpush2.msra.mxu0 0.0
    %3712 = vmatprep.subr.mxu0 0.0
    %3713 = vmatpush2.msra.mxu0 0.0
    %3714 = vmatprep.subr.mxu0 0.0
    %3715 = vmatpush2.msra.mxu0 0.0
    %3716 = vmatprep.subr.mxu0 0.0
    %3717 = vmatpush2.msra.mxu0 0.0
    %3718 = vmatprep.subr.mxu0 0.0
    %3719 = vmatpush2.msra.mxu0 0.0
    %3720 = vmatprep.subr.mxu0 0.0
    %3721 = vmatpush2.msra.mxu0 0.0
    %3722 = vmatprep.subr.mxu0 0.0
    %3723 = vmatpush2.msra.mxu0 0.0
    %3724 = vmatprep.mubr.f32.mxu0 0.0
    %3725 = vmatmul.mubr.f32.gmra.mxu0 %v3658
    %v3726 = vpop.f32.mrf.mxu0
    %v3727 = vadd.f32 0.0, %v3726
    %v3728 = vpop.f32.mrf.mxu0
    %3729 = vdwg.mxu0
    %v3731 = vrot.slane %v3727, 7
    %v3734 = vadd.f32 %v3387, %v3731
    %v3735 = vadd.f32 %v3392, %v3727
    %v3738 = vrot.slane %v3650, 7
    %v3739 = vrot.slane %v3651, 6
    %v3740 = vsel %vm1272, %v3739, %v3738
    %3741 = vrot.lane.b32.xlu0 %v3740, 16
    %v3742 = vpop.permute.xlu0 %3741
    %v3743 = vsel %vm1012, %v3742, 0
    %3745 = vmatprep.subr.mxu0 0.0
    %3746 = vmatpush1.msra.mxu0 0.0
    %3747 = vmatprep.subr.mxu0 0.0
    %3748 = vmatpush1.msra.mxu0 0.0
    %3749 = vmatprep.subr.mxu0 0.0
    %3750 = vmatpush1.msra.mxu0 0.0
    %3751 = vmatprep.subr.mxu0 0.0
    %3752 = vmatpush1.msra.mxu0 0.0
    %3753 = vmatprep.subr.mxu0 0.0
    %3754 = vmatpush1.msra.mxu0 0.0
    %3755 = vmatprep.subr.mxu0 0.0
    %3756 = vmatpush1.msra.mxu0 0.0
    %3757 = vmatprep.subr.mxu0 0.0
    %3758 = vmatpush1.msra.mxu0 0.0
    %3759 = vmatprep.subr.mxu0 0.0
    %3760 = vmatpush1.msra.mxu0 0.0
    %3761 = vmatprep.subr.mxu0 0.0
    %3762 = vmatpush1.msra.mxu0 0.0
    %3763 = vmatprep.subr.mxu0 0.0
    %3764 = vmatpush1.msra.mxu0 0.0
    %3765 = vmatprep.subr.mxu0 0.0
    %3766 = vmatpush1.msra.mxu0 0.0
    %3767 = vmatprep.subr.mxu0 0.0
    %3768 = vmatpush1.msra.mxu0 0.0
    %3769 = vmatprep.subr.mxu0 0.0
    %3770 = vmatpush1.msra.mxu0 0.0
    %3771 = vmatprep.subr.mxu0 0.0
    %3772 = vmatpush1.msra.mxu0 0.0
    %3773 = vmatprep.subr.mxu0 0.0
    %3774 = vmatpush1.msra.mxu0 %v3398
    %3775 = vmatprep.subr.mxu0 0.0
    %3776 = vmatpush1.msra.mxu0 %v3397
    %3777 = vmatprep.subr.mxu0 0.0
    %3778 = vmatpush2.msra.mxu0 0.0
    %3779 = vmatprep.subr.mxu0 0.0
    %3780 = vmatpush2.msra.mxu0 0.0
    %3781 = vmatprep.subr.mxu0 0.0
    %3782 = vmatpush2.msra.mxu0 0.0
    %3783 = vmatprep.subr.mxu0 0.0
    %3784 = vmatpush2.msra.mxu0 0.0
    %3785 = vmatprep.subr.mxu0 0.0
    %3786 = vmatpush2.msra.mxu0 0.0
    %3787 = vmatprep.subr.mxu0 0.0
    %3788 = vmatpush2.msra.mxu0 0.0
    %3789 = vmatprep.subr.mxu0 0.0
    %3790 = vmatpush2.msra.mxu0 0.0
    %3791 = vmatprep.subr.mxu0 0.0
    %3792 = vmatpush2.msra.mxu0 0.0
    %3793 = vmatprep.subr.mxu0 0.0
    %3794 = vmatpush2.msra.mxu0 0.0
    %3795 = vmatprep.subr.mxu0 0.0
    %3796 = vmatpush2.msra.mxu0 0.0
    %3797 = vmatprep.subr.mxu0 0.0
    %3798 = vmatpush2.msra.mxu0 0.0
    %3799 = vmatprep.subr.mxu0 0.0
    %3800 = vmatpush2.msra.mxu0 0.0
    %3801 = vmatprep.subr.mxu0 0.0
    %3802 = vmatpush2.msra.mxu0 0.0
    %3803 = vmatprep.subr.mxu0 0.0
    %3804 = vmatpush2.msra.mxu0 0.0
    %3805 = vmatprep.subr.mxu0 0.0
    %3806 = vmatpush2.msra.mxu0 0.0
    %3807 = vmatprep.subr.mxu0 0.0
    %3808 = vmatpush2.msra.mxu0 0.0
    %3809 = vmatprep.mubr.f32.mxu0 0.0
    %3810 = vmatmul.mubr.f32.gmra.mxu0 %v3743
    %v3811 = vpop.f32.mrf.mxu0
    %v3812 = vadd.f32 0.0, %v3811
    %v3813 = vpop.f32.mrf.mxu0
    %3814 = vdwg.mxu0
    %v3816 = vrot.slane %v3812, 2
    %v3817 = vrot.slane %v3812, 3
    %3818 = vrot.lane.b32.xlu0 %v3816, 64
    %v3819 = vpop.permute.xlu0 %3818
    %3820 = vrot.lane.b32.xlu0 %v3817, 64
    %v3821 = vpop.permute.xlu0 %3820
    %v3824 = vadd.f32 %v3387, %v3819
    %v3825 = vadd.f32 %v3392, %v3821
    %v3826 = vxor.u32 %v3734, 2147483648
    %v3827 = vxor.u32 %v3735, 2147483648
    %v3828 = vmul.f32 %v3826, 1.442695
    %v3829 = vpow.pop %v3828
    %v3830 = vmul.f32 %v3827, 1.442695
    %v3831 = vpow.pop %v3830
    %v3832 = vadd.f32 %v3829, 1.0
    %v3833 = vadd.f32 %v3831, 1.0
    %v3834 = vrcp.pop %v3832
    %v3835 = vmul.f32 1.0, %v3834
    %v3836 = vrcp.pop %v3833
    %v3837 = vmul.f32 1.0, %v3836
    %v3838 = vtanh.pop %v3734
    %v3839 = vtanh.pop %v3735
    %v3842 = vrot.slane %v3590, 7
    %v3843 = vrot.slane %v3591, 7
    %v3846 = vmul.f32 %v3835, %v3842
    %v3847 = vmul.f32 %v3837, %v3843
    %3850 = vrot.lane.b32.xlu0 %v3838, 96
    %v3851 = vpop.permute.xlu0 %3850
    %3852 = vrot.lane.b32.xlu0 %v3839, 96
    %v3853 = vpop.permute.xlu0 %3852
    %v3856 = vmul.f32 %v3835, %v3851
    %v3857 = vmul.f32 %v3837, %v3853
    %3860 = vrot.lane.b32.xlu0 %v3856, 16
    %v3861 = vpop.permute.xlu0 %3860
    %3862 = vrot.lane.b32.xlu0 %v3857, 16
    %v3863 = vpop.permute.xlu0 %3862
    %v3866 = vadd.f32 %v3846, %v3861
    %v3867 = vadd.f32 %v3847, %v3863
    %v3868 = vtanh.pop %v3866
    %v3869 = vtanh.pop %v3867
    %3872 = vrot.lane.b32.xlu0 %v3868, 32
    %v3873 = vpop.permute.xlu0 %3872
    %3874 = vrot.lane.b32.xlu0 %v3869, 32
    %v3875 = vpop.permute.xlu0 %3874
    %v3878 = vmul.f32 %v3835, %v3873
    %v3879 = vmul.f32 %v3837, %v3875
    %v3880 = vxor.u32 %v3824, 2147483648
    %v3881 = vxor.u32 %v3825, 2147483648
    %v3882 = vmul.f32 %v3880, 1.442695
    %v3883 = vpow.pop %v3882
    %v3884 = vmul.f32 %v3881, 1.442695
    %v3885 = vpow.pop %v3884
    %v3886 = vadd.f32 %v3883, 1.0
    %v3887 = vadd.f32 %v3885, 1.0
    %v3888 = vrcp.pop %v3886
    %v3889 = vmul.f32 1.0, %v3888
    %v3890 = vrcp.pop %v3887
    %v3891 = vmul.f32 1.0, %v3890
    %v3892 = vtanh.pop %v3824
    %v3893 = vtanh.pop %v3825
    %v3896 = vrot.slane %v3638, 1
    %v3897 = vrot.slane %v3639, 1
    %v3900 = vmul.f32 %v3889, %v3896
    %v3901 = vmul.f32 %v3891, %v3897
    %3904 = vrot.lane.b32.xlu0 %v3892, 96
    %v3905 = vpop.permute.xlu0 %3904
    %3906 = vrot.lane.b32.xlu0 %v3893, 96
    %v3907 = vpop.permute.xlu0 %3906
    %v3910 = vmul.f32 %v3889, %v3905
    %v3911 = vmul.f32 %v3891, %v3907
    %3914 = vrot.lane.b32.xlu0 %v3910, 16
    %v3915 = vpop.permute.xlu0 %3914
    %3916 = vrot.lane.b32.xlu0 %v3911, 16
    %v3917 = vpop.permute.xlu0 %3916
    %v3920 = vadd.f32 %v3900, %v3915
    %v3921 = vadd.f32 %v3901, %v3917
    %v3922 = vtanh.pop %v3920
    %v3923 = vtanh.pop %v3921
    %3926 = vrot.lane.b32.xlu0 %v3922, 32
    %v3927 = vpop.permute.xlu0 %3926
    %3928 = vrot.lane.b32.xlu0 %v3923, 32
    %v3929 = vpop.permute.xlu0 %3928
    %v3932 = vmul.f32 %v3889, %v3927
    %v3933 = vmul.f32 %v3891, %v3929
    %v3936 = vrot.slane %v3878, 1
    %v3937 = vsel %vm1272, %v3879, %v3936
    %3938 = vrot.lane.b32.xlu0 %v3937, 80
    %v3939 = vpop.permute.xlu0 %3938
    %v3940 = vsel %vm1012, %v3939, 0
    %3942 = vmatprep.subr.mxu0 0.0
    %3943 = vmatpush1.msra.mxu0 0.0
    %3944 = vmatprep.subr.mxu0 0.0
    %3945 = vmatpush1.msra.mxu0 0.0
    %3946 = vmatprep.subr.mxu0 0.0
    %3947 = vmatpush1.msra.mxu0 0.0
    %3948 = vmatprep.subr.mxu0 0.0
    %3949 = vmatpush1.msra.mxu0 0.0
    %3950 = vmatprep.subr.mxu0 0.0
    %3951 = vmatpush1.msra.mxu0 0.0
    %3952 = vmatprep.subr.mxu0 0.0
    %3953 = vmatpush1.msra.mxu0 0.0
    %3954 = vmatprep.subr.mxu0 0.0
    %3955 = vmatpush1.msra.mxu0 0.0
    %3956 = vmatprep.subr.mxu0 0.0
    %3957 = vmatpush1.msra.mxu0 0.0
    %3958 = vmatprep.subr.mxu0 0.0
    %3959 = vmatpush1.msra.mxu0 0.0
    %3960 = vmatprep.subr.mxu0 0.0
    %3961 = vmatpush1.msra.mxu0 0.0
    %3962 = vmatprep.subr.mxu0 0.0
    %3963 = vmatpush1.msra.mxu0 0.0
    %3964 = vmatprep.subr.mxu0 0.0
    %3965 = vmatpush1.msra.mxu0 0.0
    %3966 = vmatprep.subr.mxu0 0.0
    %3967 = vmatpush1.msra.mxu0 0.0
    %3968 = vmatprep.subr.mxu0 0.0
    %3969 = vmatpush1.msra.mxu0 0.0
    %3970 = vmatprep.subr.mxu0 0.0
    %3971 = vmatpush1.msra.mxu0 %v3396
    %3972 = vmatprep.subr.mxu0 0.0
    %3973 = vmatpush1.msra.mxu0 %v3395
    %3974 = vmatprep.subr.mxu0 0.0
    %3975 = vmatpush2.msra.mxu0 0.0
    %3976 = vmatprep.subr.mxu0 0.0
    %3977 = vmatpush2.msra.mxu0 0.0
    %3978 = vmatprep.subr.mxu0 0.0
    %3979 = vmatpush2.msra.mxu0 0.0
    %3980 = vmatprep.subr.mxu0 0.0
    %3981 = vmatpush2.msra.mxu0 0.0
    %3982 = vmatprep.subr.mxu0 0.0
    %3983 = vmatpush2.msra.mxu0 0.0
    %3984 = vmatprep.subr.mxu0 0.0
    %3985 = vmatpush2.msra.mxu0 0.0
    %3986 = vmatprep.subr.mxu0 0.0
    %3987 = vmatpush2.msra.mxu0 0.0
    %3988 = vmatprep.subr.mxu0 0.0
    %3989 = vmatpush2.msra.mxu0 0.0
    %3990 = vmatprep.subr.mxu0 0.0
    %3991 = vmatpush2.msra.mxu0 0.0
    %3992 = vmatprep.subr.mxu0 0.0
    %3993 = vmatpush2.msra.mxu0 0.0
    %3994 = vmatprep.subr.mxu0 0.0
    %3995 = vmatpush2.msra.mxu0 0.0
    %3996 = vmatprep.subr.mxu0 0.0
    %3997 = vmatpush2.msra.mxu0 0.0
    %3998 = vmatprep.subr.mxu0 0.0
    %3999 = vmatpush2.msra.mxu0 0.0
    %4000 = vmatprep.subr.mxu0 0.0
    %4001 = vmatpush2.msra.mxu0 0.0
    %4002 = vmatprep.subr.mxu0 0.0
    %4003 = vmatpush2.msra.mxu0 0.0
    %4004 = vmatprep.subr.mxu0 0.0
    %4005 = vmatpush2.msra.mxu0 0.0
    %4006 = vmatprep.mubr.f32.mxu0 0.0
    %4007 = vmatmul.mubr.f32.gmra.mxu0 %v3940
    %v4008 = vpop.f32.mrf.mxu0
    %v4009 = vadd.f32 0.0, %v4008
    %v4010 = vpop.f32.mrf.mxu0
    %4011 = vdwg.mxu0
    %v4013 = vrot.slane %v4009, 6
    %v4014 = vrot.slane %v4009, 7
    %v4017 = vadd.f32 %v3387, %v4013
    %v4018 = vadd.f32 %v3392, %v4014
    %v4021 = vrot.slane %v3932, 6
    %v4022 = vrot.slane %v3933, 5
    %v4023 = vsel %vm1272, %v4022, %v4021
    %4024 = vrot.lane.b32.xlu0 %v4023, 16
    %v4025 = vpop.permute.xlu0 %4024
    %v4026 = vsel %vm1012, %v4025, 0
    %4028 = vmatprep.subr.mxu0 0.0
    %4029 = vmatpush1.msra.mxu0 0.0
    %4030 = vmatprep.subr.mxu0 0.0
    %4031 = vmatpush1.msra.mxu0 0.0
    %4032 = vmatprep.subr.mxu0 0.0
    %4033 = vmatpush1.msra.mxu0 0.0
    %4034 = vmatprep.subr.mxu0 0.0
    %4035 = vmatpush1.msra.mxu0 0.0
    %4036 = vmatprep.subr.mxu0 0.0
    %4037 = vmatpush1.msra.mxu0 0.0
    %4038 = vmatprep.subr.mxu0 0.0
    %4039 = vmatpush1.msra.mxu0 0.0
    %4040 = vmatprep.subr.mxu0 0.0
    %4041 = vmatpush1.msra.mxu0 0.0
    %4042 = vmatprep.subr.mxu0 0.0
    %4043 = vmatpush1.msra.mxu0 0.0
    %4044 = vmatprep.subr.mxu0 0.0
    %4045 = vmatpush1.msra.mxu0 0.0
    %4046 = vmatprep.subr.mxu0 0.0
    %4047 = vmatpush1.msra.mxu0 0.0
    %4048 = vmatprep.subr.mxu0 0.0
    %4049 = vmatpush1.msra.mxu0 0.0
    %4050 = vmatprep.subr.mxu0 0.0
    %4051 = vmatpush1.msra.mxu0 0.0
    %4052 = vmatprep.subr.mxu0 0.0
    %4053 = vmatpush1.msra.mxu0 0.0
    %4054 = vmatprep.subr.mxu0 0.0
    %4055 = vmatpush1.msra.mxu0 0.0
    %4056 = vmatprep.subr.mxu0 0.0
    %4057 = vmatpush1.msra.mxu0 %v3398
    %4058 = vmatprep.subr.mxu0 0.0
    %4059 = vmatpush1.msra.mxu0 %v3397
    %4060 = vmatprep.subr.mxu0 0.0
    %4061 = vmatpush2.msra.mxu0 0.0
    %4062 = vmatprep.subr.mxu0 0.0
    %4063 = vmatpush2.msra.mxu0 0.0
    %4064 = vmatprep.subr.mxu0 0.0
    %4065 = vmatpush2.msra.mxu0 0.0
    %4066 = vmatprep.subr.mxu0 0.0
    %4067 = vmatpush2.msra.mxu0 0.0
    %4068 = vmatprep.subr.mxu0 0.0
    %4069 = vmatpush2.msra.mxu0 0.0
    %4070 = vmatprep.subr.mxu0 0.0
    %4071 = vmatpush2.msra.mxu0 0.0
    %4072 = vmatprep.subr.mxu0 0.0
    %4073 = vmatpush2.msra.mxu0 0.0
    %4074 = vmatprep.subr.mxu0 0.0
    %4075 = vmatpush2.msra.mxu0 0.0
    %4076 = vmatprep.subr.mxu0 0.0
    %4077 = vmatpush2.msra.mxu0 0.0
    %4078 = vmatprep.subr.mxu0 0.0
    %4079 = vmatpush2.msra.mxu0 0.0
    %4080 = vmatprep.subr.mxu0 0.0
    %4081 = vmatpush2.msra.mxu0 0.0
    %4082 = vmatprep.subr.mxu0 0.0
    %4083 = vmatpush2.msra.mxu0 0.0
    %4084 = vmatprep.subr.mxu0 0.0
    %4085 = vmatpush2.msra.mxu0 0.0
    %4086 = vmatprep.subr.mxu0 0.0
    %4087 = vmatpush2.msra.mxu0 0.0
    %4088 = vmatprep.subr.mxu0 0.0
    %4089 = vmatpush2.msra.mxu0 0.0
    %4090 = vmatprep.subr.mxu0 0.0
    %4091 = vmatpush2.msra.mxu0 0.0
    %4092 = vmatprep.mubr.f32.mxu0 0.0
    %4093 = vmatmul.mubr.f32.gmra.mxu0 %v4026
    %v4094 = vpop.f32.mrf.mxu0
    %v4095 = vadd.f32 0.0, %v4094
    %v4096 = vpop.f32.mrf.mxu0
    %4097 = vdwg.mxu0
    %v4099 = vrot.slane %v4095, 3
    %v4100 = vrot.slane %v4095, 4
    %4101 = vrot.lane.b32.xlu0 %v4099, 64
    %v4102 = vpop.permute.xlu0 %4101
    %4103 = vrot.lane.b32.xlu0 %v4100, 64
    %v4104 = vpop.permute.xlu0 %4103
    %v4107 = vadd.f32 %v3387, %v4102
    %v4108 = vadd.f32 %v3392, %v4104
    %v4109 = vxor.u32 %v4017, 2147483648
    %v4110 = vxor.u32 %v4018, 2147483648
    %v4111 = vmul.f32 %v4109, 1.442695
    %v4112 = vpow.pop %v4111
    %v4113 = vmul.f32 %v4110, 1.442695
    %v4114 = vpow.pop %v4113
    %v4115 = vadd.f32 %v4112, 1.0
    %v4116 = vadd.f32 %v4114, 1.0
    %v4117 = vrcp.pop %v4115
    %v4118 = vmul.f32 1.0, %v4117
    %v4119 = vrcp.pop %v4116
    %v4120 = vmul.f32 1.0, %v4119
    %v4121 = vtanh.pop %v4017
    %v4122 = vtanh.pop %v4018
    %v4125 = vrot.slane %v3866, 7
    %v4126 = vrot.slane %v3867, 7
    %v4129 = vmul.f32 %v4118, %v4125
    %v4130 = vmul.f32 %v4120, %v4126
    %4133 = vrot.lane.b32.xlu0 %v4121, 96
    %v4134 = vpop.permute.xlu0 %4133
    %4135 = vrot.lane.b32.xlu0 %v4122, 96
    %v4136 = vpop.permute.xlu0 %4135
    %v4139 = vmul.f32 %v4118, %v4134
    %v4140 = vmul.f32 %v4120, %v4136
    %4143 = vrot.lane.b32.xlu0 %v4139, 16
    %v4144 = vpop.permute.xlu0 %4143
    %4145 = vrot.lane.b32.xlu0 %v4140, 16
    %v4146 = vpop.permute.xlu0 %4145
    %v4149 = vadd.f32 %v4129, %v4144
    %v4150 = vadd.f32 %v4130, %v4146
    %v4151 = vtanh.pop %v4149
    %v4152 = vtanh.pop %v4150
    %4155 = vrot.lane.b32.xlu0 %v4151, 32
    %v4156 = vpop.permute.xlu0 %4155
    %4157 = vrot.lane.b32.xlu0 %v4152, 32
    %v4158 = vpop.permute.xlu0 %4157
    %v4161 = vmul.f32 %v4118, %v4156
    %v4162 = vmul.f32 %v4120, %v4158
    %v4163 = vxor.u32 %v4107, 2147483648
    %v4164 = vxor.u32 %v4108, 2147483648
    %v4165 = vmul.f32 %v4163, 1.442695
    %v4166 = vpow.pop %v4165
    %v4167 = vmul.f32 %v4164, 1.442695
    %v4168 = vpow.pop %v4167
    %v4169 = vadd.f32 %v4166, 1.0
    %v4170 = vadd.f32 %v4168, 1.0
    %v4171 = vrcp.pop %v4169
    %v4172 = vmul.f32 1.0, %v4171
    %v4173 = vrcp.pop %v4170
    %v4174 = vmul.f32 1.0, %v4173
    %v4175 = vtanh.pop %v4107
    %v4176 = vtanh.pop %v4108
    %v4179 = vrot.slane %v3920, 1
    %v4180 = vrot.slane %v3921, 1
    %v4183 = vmul.f32 %v4172, %v4179
    %v4184 = vmul.f32 %v4174, %v4180
    %4187 = vrot.lane.b32.xlu0 %v4175, 96
    %v4188 = vpop.permute.xlu0 %4187
    %4189 = vrot.lane.b32.xlu0 %v4176, 96
    %v4190 = vpop.permute.xlu0 %4189
    %v4193 = vmul.f32 %v4172, %v4188
    %v4194 = vmul.f32 %v4174, %v4190
    %4197 = vrot.lane.b32.xlu0 %v4193, 16
    %v4198 = vpop.permute.xlu0 %4197
    %4199 = vrot.lane.b32.xlu0 %v4194, 16
    %v4200 = vpop.permute.xlu0 %4199
    %v4203 = vadd.f32 %v4183, %v4198
    %v4204 = vadd.f32 %v4184, %v4200
    %v4205 = vtanh.pop %v4203
    %v4206 = vtanh.pop %v4204
    %4209 = vrot.lane.b32.xlu0 %v4205, 32
    %v4210 = vpop.permute.xlu0 %4209
    %4211 = vrot.lane.b32.xlu0 %v4206, 32
    %v4212 = vpop.permute.xlu0 %4211
    %v4215 = vmul.f32 %v4172, %v4210
    %v4216 = vmul.f32 %v4174, %v4212
    %v4219 = vrot.slane %v4161, 2
    %v4220 = vrot.slane %v4162, 1
    %v4221 = vsel %vm1272, %v4220, %v4219
    %4222 = vrot.lane.b32.xlu0 %v4221, 80
    %v4223 = vpop.permute.xlu0 %4222
    %v4224 = vsel %vm1012, %v4223, 0
    %4226 = vmatprep.subr.mxu0 0.0
    %4227 = vmatpush1.msra.mxu0 0.0
    %4228 = vmatprep.subr.mxu0 0.0
    %4229 = vmatpush1.msra.mxu0 0.0
    %4230 = vmatprep.subr.mxu0 0.0
    %4231 = vmatpush1.msra.mxu0 0.0
    %4232 = vmatprep.subr.mxu0 0.0
    %4233 = vmatpush1.msra.mxu0 0.0
    %4234 = vmatprep.subr.mxu0 0.0
    %4235 = vmatpush1.msra.mxu0 0.0
    %4236 = vmatprep.subr.mxu0 0.0
    %4237 = vmatpush1.msra.mxu0 0.0
    %4238 = vmatprep.subr.mxu0 0.0
    %4239 = vmatpush1.msra.mxu0 0.0
    %4240 = vmatprep.subr.mxu0 0.0
    %4241 = vmatpush1.msra.mxu0 0.0
    %4242 = vmatprep.subr.mxu0 0.0
    %4243 = vmatpush1.msra.mxu0 0.0
    %4244 = vmatprep.subr.mxu0 0.0
    %4245 = vmatpush1.msra.mxu0 0.0
    %4246 = vmatprep.subr.mxu0 0.0
    %4247 = vmatpush1.msra.mxu0 0.0
    %4248 = vmatprep.subr.mxu0 0.0
    %4249 = vmatpush1.msra.mxu0 0.0
    %4250 = vmatprep.subr.mxu0 0.0
    %4251 = vmatpush1.msra.mxu0 0.0
    %4252 = vmatprep.subr.mxu0 0.0
    %4253 = vmatpush1.msra.mxu0 0.0
    %4254 = vmatprep.subr.mxu0 0.0
    %4255 = vmatpush1.msra.mxu0 %v3396
    %4256 = vmatprep.subr.mxu0 0.0
    %4257 = vmatpush1.msra.mxu0 %v3395
    %4258 = vmatprep.subr.mxu0 0.0
    %4259 = vmatpush2.msra.mxu0 0.0
    %4260 = vmatprep.subr.mxu0 0.0
    %4261 = vmatpush2.msra.mxu0 0.0
    %4262 = vmatprep.subr.mxu0 0.0
    %4263 = vmatpush2.msra.mxu0 0.0
    %4264 = vmatprep.subr.mxu0 0.0
    %4265 = vmatpush2.msra.mxu0 0.0
    %4266 = vmatprep.subr.mxu0 0.0
    %4267 = vmatpush2.msra.mxu0 0.0
    %4268 = vmatprep.subr.mxu0 0.0
    %4269 = vmatpush2.msra.mxu0 0.0
    %4270 = vmatprep.subr.mxu0 0.0
    %4271 = vmatpush2.msra.mxu0 0.0
    %4272 = vmatprep.subr.mxu0 0.0
    %4273 = vmatpush2.msra.mxu0 0.0
    %4274 = vmatprep.subr.mxu0 0.0
    %4275 = vmatpush2.msra.mxu0 0.0
    %4276 = vmatprep.subr.mxu0 0.0
    %4277 = vmatpush2.msra.mxu0 0.0
    %4278 = vmatprep.subr.mxu0 0.0
    %4279 = vmatpush2.msra.mxu0 0.0
    %4280 = vmatprep.subr.mxu0 0.0
    %4281 = vmatpush2.msra.mxu0 0.0
    %4282 = vmatprep.subr.mxu0 0.0
    %4283 = vmatpush2.msra.mxu0 0.0
    %4284 = vmatprep.subr.mxu0 0.0
    %4285 = vmatpush2.msra.mxu0 0.0
    %4286 = vmatprep.subr.mxu0 0.0
    %4287 = vmatpush2.msra.mxu0 0.0
    %4288 = vmatprep.subr.mxu0 0.0
    %4289 = vmatpush2.msra.mxu0 0.0
    %4290 = vmatprep.mubr.f32.mxu0 0.0
    %4291 = vmatmul.mubr.f32.gmra.mxu0 %v4224
    %v4292 = vpop.f32.mrf.mxu0
    %v4293 = vadd.f32 0.0, %v4292
    %v4294 = vpop.f32.mrf.mxu0
    %4295 = vdwg.mxu0
    %v4297 = vrot.slane %v4293, 5
    %v4298 = vrot.slane %v4293, 6
    %v4301 = vadd.f32 %v3387, %v4297
    %v4302 = vadd.f32 %v3392, %v4298
    %v4305 = vrot.slane %v4215, 5
    %v4306 = vrot.slane %v4216, 4
    %v4307 = vsel %vm1272, %v4306, %v4305
    %4308 = vrot.lane.b32.xlu0 %v4307, 16
    %v4309 = vpop.permute.xlu0 %4308
    %v4310 = vsel %vm1012, %v4309, 0
    %4312 = vmatprep.subr.mxu0 0.0
    %4313 = vmatpush1.msra.mxu0 0.0
    %4314 = vmatprep.subr.mxu0 0.0
    %4315 = vmatpush1.msra.mxu0 0.0
    %4316 = vmatprep.subr.mxu0 0.0
    %4317 = vmatpush1.msra.mxu0 0.0
    %4318 = vmatprep.subr.mxu0 0.0
    %4319 = vmatpush1.msra.mxu0 0.0
    %4320 = vmatprep.subr.mxu0 0.0
    %4321 = vmatpush1.msra.mxu0 0.0
    %4322 = vmatprep.subr.mxu0 0.0
    %4323 = vmatpush1.msra.mxu0 0.0
    %4324 = vmatprep.subr.mxu0 0.0
    %4325 = vmatpush1.msra.mxu0 0.0
    %4326 = vmatprep.subr.mxu0 0.0
    %4327 = vmatpush1.msra.mxu0 0.0
    %4328 = vmatprep.subr.mxu0 0.0
    %4329 = vmatpush1.msra.mxu0 0.0
    %4330 = vmatprep.subr.mxu0 0.0
    %4331 = vmatpush1.msra.mxu0 0.0
    %4332 = vmatprep.subr.mxu0 0.0
    %4333 = vmatpush1.msra.mxu0 0.0
    %4334 = vmatprep.subr.mxu0 0.0
    %4335 = vmatpush1.msra.mxu0 0.0
    %4336 = vmatprep.subr.mxu0 0.0
    %4337 = vmatpush1.msra.mxu0 0.0
    %4338 = vmatprep.subr.mxu0 0.0
    %4339 = vmatpush1.msra.mxu0 0.0
    %4340 = vmatprep.subr.mxu0 0.0
    %4341 = vmatpush1.msra.mxu0 %v3398
    %4342 = vmatprep.subr.mxu0 0.0
    %4343 = vmatpush1.msra.mxu0 %v3397
    %4344 = vmatprep.subr.mxu0 0.0
    %4345 = vmatpush2.msra.mxu0 0.0
    %4346 = vmatprep.subr.mxu0 0.0
    %4347 = vmatpush2.msra.mxu0 0.0
    %4348 = vmatprep.subr.mxu0 0.0
    %4349 = vmatpush2.msra.mxu0 0.0
    %4350 = vmatprep.subr.mxu0 0.0
    %4351 = vmatpush2.msra.mxu0 0.0
    %4352 = vmatprep.subr.mxu0 0.0
    %4353 = vmatpush2.msra.mxu0 0.0
    %4354 = vmatprep.subr.mxu0 0.0
    %4355 = vmatpush2.msra.mxu0 0.0
    %4356 = vmatprep.subr.mxu0 0.0
    %4357 = vmatpush2.msra.mxu0 0.0
    %4358 = vmatprep.subr.mxu0 0.0
    %4359 = vmatpush2.msra.mxu0 0.0
    %4360 = vmatprep.subr.mxu0 0.0
    %4361 = vmatpush2.msra.mxu0 0.0
    %4362 = vmatprep.subr.mxu0 0.0
    %4363 = vmatpush2.msra.mxu0 0.0
    %4364 = vmatprep.subr.mxu0 0.0
    %4365 = vmatpush2.msra.mxu0 0.0
    %4366 = vmatprep.subr.mxu0 0.0
    %4367 = vmatpush2.msra.mxu0 0.0
    %4368 = vmatprep.subr.mxu0 0.0
    %4369 = vmatpush2.msra.mxu0 0.0
    %4370 = vmatprep.subr.mxu0 0.0
    %4371 = vmatpush2.msra.mxu0 0.0
    %4372 = vmatprep.subr.mxu0 0.0
    %4373 = vmatpush2.msra.mxu0 0.0
    %4374 = vmatprep.subr.mxu0 0.0
    %4375 = vmatpush2.msra.mxu0 0.0
    %4376 = vmatprep.mubr.f32.mxu0 0.0
    %4377 = vmatmul.mubr.f32.gmra.mxu0 %v4310
    %v4378 = vpop.f32.mrf.mxu0
    %v4379 = vadd.f32 0.0, %v4378
    %v4380 = vpop.f32.mrf.mxu0
    %4381 = vdwg.mxu0
    %v4383 = vrot.slane %v4379, 4
    %v4384 = vrot.slane %v4379, 5
    %4385 = vrot.lane.b32.xlu0 %v4383, 64
    %v4386 = vpop.permute.xlu0 %4385
    %4387 = vrot.lane.b32.xlu0 %v4384, 64
    %v4388 = vpop.permute.xlu0 %4387
    %v4391 = vadd.f32 %v3387, %v4386
    %v4392 = vadd.f32 %v3392, %v4388
    %v4393 = vxor.u32 %v4301, 2147483648
    %v4394 = vxor.u32 %v4302, 2147483648
    %v4395 = vmul.f32 %v4393, 1.442695
    %v4396 = vpow.pop %v4395
    %v4397 = vmul.f32 %v4394, 1.442695
    %v4398 = vpow.pop %v4397
    %v4399 = vadd.f32 %v4396, 1.0
    %v4400 = vadd.f32 %v4398, 1.0
    %v4401 = vrcp.pop %v4399
    %v4402 = vmul.f32 1.0, %v4401
    %v4403 = vrcp.pop %v4400
    %v4404 = vmul.f32 1.0, %v4403
    %v4405 = vtanh.pop %v4301
    %v4406 = vtanh.pop %v4302
    %v4409 = vrot.slane %v4149, 7
    %v4410 = vrot.slane %v4150, 7
    %v4413 = vmul.f32 %v4402, %v4409
    %v4414 = vmul.f32 %v4404, %v4410
    %4417 = vrot.lane.b32.xlu0 %v4405, 96
    %v4418 = vpop.permute.xlu0 %4417
    %4419 = vrot.lane.b32.xlu0 %v4406, 96
    %v4420 = vpop.permute.xlu0 %4419
    %v4423 = vmul.f32 %v4402, %v4418
    %v4424 = vmul.f32 %v4404, %v4420
    %4427 = vrot.lane.b32.xlu0 %v4423, 16
    %v4428 = vpop.permute.xlu0 %4427
    %4429 = vrot.lane.b32.xlu0 %v4424, 16
    %v4430 = vpop.permute.xlu0 %4429
    %v4433 = vadd.f32 %v4413, %v4428
    %v4434 = vadd.f32 %v4414, %v4430
    %v4435 = vtanh.pop %v4433
    %v4436 = vtanh.pop %v4434
    %4439 = vrot.lane.b32.xlu0 %v4435, 32
    %v4440 = vpop.permute.xlu0 %4439
    %4441 = vrot.lane.b32.xlu0 %v4436, 32
    %v4442 = vpop.permute.xlu0 %4441
    %v4445 = vmul.f32 %v4402, %v4440
    %v4446 = vmul.f32 %v4404, %v4442
    %v4447 = vxor.u32 %v4391, 2147483648
    %v4448 = vxor.u32 %v4392, 2147483648
    %v4449 = vmul.f32 %v4447, 1.442695
    %v4450 = vpow.pop %v4449
    %v4451 = vmul.f32 %v4448, 1.442695
    %v4452 = vpow.pop %v4451
    %v4453 = vadd.f32 %v4450, 1.0
    %v4454 = vadd.f32 %v4452, 1.0
    %v4455 = vrcp.pop %v4453
    %v4456 = vmul.f32 1.0, %v4455
    %v4457 = vrcp.pop %v4454
    %v4458 = vmul.f32 1.0, %v4457
    %v4459 = vtanh.pop %v4391
    %v4460 = vtanh.pop %v4392
    %v4463 = vrot.slane %v4203, 1
    %v4464 = vrot.slane %v4204, 1
    %v4467 = vmul.f32 %v4456, %v4463
    %v4468 = vmul.f32 %v4458, %v4464
    %4471 = vrot.lane.b32.xlu0 %v4459, 96
    %v4472 = vpop.permute.xlu0 %4471
    %4473 = vrot.lane.b32.xlu0 %v4460, 96
    %v4474 = vpop.permute.xlu0 %4473
    %v4477 = vmul.f32 %v4456, %v4472
    %v4478 = vmul.f32 %v4458, %v4474
    %4481 = vrot.lane.b32.xlu0 %v4477, 16
    %v4482 = vpop.permute.xlu0 %4481
    %4483 = vrot.lane.b32.xlu0 %v4478, 16
    %v4484 = vpop.permute.xlu0 %4483
    %v4487 = vadd.f32 %v4467, %v4482
    %v4488 = vadd.f32 %v4468, %v4484
    %v4489 = vtanh.pop %v4487
    %v4490 = vtanh.pop %v4488
    %4493 = vrot.lane.b32.xlu0 %v4489, 32
    %v4494 = vpop.permute.xlu0 %4493
    %4495 = vrot.lane.b32.xlu0 %v4490, 32
    %v4496 = vpop.permute.xlu0 %4495
    %v4499 = vmul.f32 %v4456, %v4494
    %v4500 = vmul.f32 %v4458, %v4496
    %v4503 = vrot.slane %v4445, 3
    %v4504 = vrot.slane %v4446, 2
    %v4505 = vsel %vm1272, %v4504, %v4503
    %4506 = vrot.lane.b32.xlu0 %v4505, 80
    %v4507 = vpop.permute.xlu0 %4506
    %v4508 = vsel %vm1012, %v4507, 0
    %4510 = vmatprep.subr.mxu0 0.0
    %4511 = vmatpush1.msra.mxu0 0.0
    %4512 = vmatprep.subr.mxu0 0.0
    %4513 = vmatpush1.msra.mxu0 0.0
    %4514 = vmatprep.subr.mxu0 0.0
    %4515 = vmatpush1.msra.mxu0 0.0
    %4516 = vmatprep.subr.mxu0 0.0
    %4517 = vmatpush1.msra.mxu0 0.0
    %4518 = vmatprep.subr.mxu0 0.0
    %4519 = vmatpush1.msra.mxu0 0.0
    %4520 = vmatprep.subr.mxu0 0.0
    %4521 = vmatpush1.msra.mxu0 0.0
    %4522 = vmatprep.subr.mxu0 0.0
    %4523 = vmatpush1.msra.mxu0 0.0
    %4524 = vmatprep.subr.mxu0 0.0
    %4525 = vmatpush1.msra.mxu0 0.0
    %4526 = vmatprep.subr.mxu0 0.0
    %4527 = vmatpush1.msra.mxu0 0.0
    %4528 = vmatprep.subr.mxu0 0.0
    %4529 = vmatpush1.msra.mxu0 0.0
    %4530 = vmatprep.subr.mxu0 0.0
    %4531 = vmatpush1.msra.mxu0 0.0
    %4532 = vmatprep.subr.mxu0 0.0
    %4533 = vmatpush1.msra.mxu0 0.0
    %4534 = vmatprep.subr.mxu0 0.0
    %4535 = vmatpush1.msra.mxu0 0.0
    %4536 = vmatprep.subr.mxu0 0.0
    %4537 = vmatpush1.msra.mxu0 0.0
    %4538 = vmatprep.subr.mxu0 0.0
    %4539 = vmatpush1.msra.mxu0 %v3396
    %4540 = vmatprep.subr.mxu0 0.0
    %4541 = vmatpush1.msra.mxu0 %v3395
    %4542 = vmatprep.subr.mxu0 0.0
    %4543 = vmatpush2.msra.mxu0 0.0
    %4544 = vmatprep.subr.mxu0 0.0
    %4545 = vmatpush2.msra.mxu0 0.0
    %4546 = vmatprep.subr.mxu0 0.0
    %4547 = vmatpush2.msra.mxu0 0.0
    %4548 = vmatprep.subr.mxu0 0.0
    %4549 = vmatpush2.msra.mxu0 0.0
    %4550 = vmatprep.subr.mxu0 0.0
    %4551 = vmatpush2.msra.mxu0 0.0
    %4552 = vmatprep.subr.mxu0 0.0
    %4553 = vmatpush2.msra.mxu0 0.0
    %4554 = vmatprep.subr.mxu0 0.0
    %4555 = vmatpush2.msra.mxu0 0.0
    %4556 = vmatprep.subr.mxu0 0.0
    %4557 = vmatpush2.msra.mxu0 0.0
    %4558 = vmatprep.subr.mxu0 0.0
    %4559 = vmatpush2.msra.mxu0 0.0
    %4560 = vmatprep.subr.mxu0 0.0
    %4561 = vmatpush2.msra.mxu0 0.0
    %4562 = vmatprep.subr.mxu0 0.0
    %4563 = vmatpush2.msra.mxu0 0.0
    %4564 = vmatprep.subr.mxu0 0.0
    %4565 = vmatpush2.msra.mxu0 0.0
    %4566 = vmatprep.subr.mxu0 0.0
    %4567 = vmatpush2.msra.mxu0 0.0
    %4568 = vmatprep.subr.mxu0 0.0
    %4569 = vmatpush2.msra.mxu0 0.0
    %4570 = vmatprep.subr.mxu0 0.0
    %4571 = vmatpush2.msra.mxu0 0.0
    %4572 = vmatprep.subr.mxu0 0.0
    %4573 = vmatpush2.msra.mxu0 0.0
    %4574 = vmatprep.mubr.f32.mxu0 0.0
    %4575 = vmatmul.mubr.f32.gmra.mxu0 %v4508
    %v4576 = vpop.f32.mrf.mxu0
    %v4577 = vadd.f32 0.0, %v4576
    %v4578 = vpop.f32.mrf.mxu0
    %4579 = vdwg.mxu0
    %v4581 = vrot.slane %v4577, 4
    %v4582 = vrot.slane %v4577, 5
    %v4585 = vadd.f32 %v3387, %v4581
    %v4586 = vadd.f32 %v3392, %v4582
    %v4589 = vrot.slane %v4499, 4
    %v4590 = vrot.slane %v4500, 3
    %v4591 = vsel %vm1272, %v4590, %v4589
    %4592 = vrot.lane.b32.xlu0 %v4591, 16
    %v4593 = vpop.permute.xlu0 %4592
    %v4594 = vsel %vm1012, %v4593, 0
    %4596 = vmatprep.subr.mxu0 0.0
    %4597 = vmatpush1.msra.mxu0 0.0
    %4598 = vmatprep.subr.mxu0 0.0
    %4599 = vmatpush1.msra.mxu0 0.0
    %4600 = vmatprep.subr.mxu0 0.0
    %4601 = vmatpush1.msra.mxu0 0.0
    %4602 = vmatprep.subr.mxu0 0.0
    %4603 = vmatpush1.msra.mxu0 0.0
    %4604 = vmatprep.subr.mxu0 0.0
    %4605 = vmatpush1.msra.mxu0 0.0
    %4606 = vmatprep.subr.mxu0 0.0
    %4607 = vmatpush1.msra.mxu0 0.0
    %4608 = vmatprep.subr.mxu0 0.0
    %4609 = vmatpush1.msra.mxu0 0.0
    %4610 = vmatprep.subr.mxu0 0.0
    %4611 = vmatpush1.msra.mxu0 0.0
    %4612 = vmatprep.subr.mxu0 0.0
    %4613 = vmatpush1.msra.mxu0 0.0
    %4614 = vmatprep.subr.mxu0 0.0
    %4615 = vmatpush1.msra.mxu0 0.0
    %4616 = vmatprep.subr.mxu0 0.0
    %4617 = vmatpush1.msra.mxu0 0.0
    %4618 = vmatprep.subr.mxu0 0.0
    %4619 = vmatpush1.msra.mxu0 0.0
    %4620 = vmatprep.subr.mxu0 0.0
    %4621 = vmatpush1.msra.mxu0 0.0
    %4622 = vmatprep.subr.mxu0 0.0
    %4623 = vmatpush1.msra.mxu0 0.0
    %4624 = vmatprep.subr.mxu0 0.0
    %4625 = vmatpush1.msra.mxu0 %v3398
    %4626 = vmatprep.subr.mxu0 0.0
    %4627 = vmatpush1.msra.mxu0 %v3397
    %4628 = vmatprep.subr.mxu0 0.0
    %4629 = vmatpush2.msra.mxu0 0.0
    %4630 = vmatprep.subr.mxu0 0.0
    %4631 = vmatpush2.msra.mxu0 0.0
    %4632 = vmatprep.subr.mxu0 0.0
    %4633 = vmatpush2.msra.mxu0 0.0
    %4634 = vmatprep.subr.mxu0 0.0
    %4635 = vmatpush2.msra.mxu0 0.0
    %4636 = vmatprep.subr.mxu0 0.0
    %4637 = vmatpush2.msra.mxu0 0.0
    %4638 = vmatprep.subr.mxu0 0.0
    %4639 = vmatpush2.msra.mxu0 0.0
    %4640 = vmatprep.subr.mxu0 0.0
    %4641 = vmatpush2.msra.mxu0 0.0
    %4642 = vmatprep.subr.mxu0 0.0
    %4643 = vmatpush2.msra.mxu0 0.0
    %4644 = vmatprep.subr.mxu0 0.0
    %4645 = vmatpush2.msra.mxu0 0.0
    %4646 = vmatprep.subr.mxu0 0.0
    %4647 = vmatpush2.msra.mxu0 0.0
    %4648 = vmatprep.subr.mxu0 0.0
    %4649 = vmatpush2.msra.mxu0 0.0
    %4650 = vmatprep.subr.mxu0 0.0
    %4651 = vmatpush2.msra.mxu0 0.0
    %4652 = vmatprep.subr.mxu0 0.0
    %4653 = vmatpush2.msra.mxu0 0.0
    %4654 = vmatprep.subr.mxu0 0.0
    %4655 = vmatpush2.msra.mxu0 0.0
    %4656 = vmatprep.subr.mxu0 0.0
    %4657 = vmatpush2.msra.mxu0 0.0
    %4658 = vmatprep.subr.mxu0 0.0
    %4659 = vmatpush2.msra.mxu0 0.0
    %4660 = vmatprep.mubr.f32.mxu0 0.0
    %4661 = vmatmul.mubr.f32.gmra.mxu0 %v4594
    %v4662 = vpop.f32.mrf.mxu0
    %v4663 = vadd.f32 0.0, %v4662
    %v4664 = vpop.f32.mrf.mxu0
    %4665 = vdwg.mxu0
    %v4667 = vrot.slane %v4663, 5
    %v4668 = vrot.slane %v4663, 6
    %4669 = vrot.lane.b32.xlu0 %v4667, 64
    %v4670 = vpop.permute.xlu0 %4669
    %4671 = vrot.lane.b32.xlu0 %v4668, 64
    %v4672 = vpop.permute.xlu0 %4671
    %v4675 = vadd.f32 %v3387, %v4670
    %v4676 = vadd.f32 %v3392, %v4672
    %v4677 = vxor.u32 %v4585, 2147483648
    %v4678 = vxor.u32 %v4586, 2147483648
    %v4679 = vmul.f32 %v4677, 1.442695
    %v4680 = vpow.pop %v4679
    %v4681 = vmul.f32 %v4678, 1.442695
    %v4682 = vpow.pop %v4681
    %v4683 = vadd.f32 %v4680, 1.0
    %v4684 = vadd.f32 %v4682, 1.0
    %v4685 = vrcp.pop %v4683
    %v4686 = vmul.f32 1.0, %v4685
    %v4687 = vrcp.pop %v4684
    %v4688 = vmul.f32 1.0, %v4687
    %v4689 = vtanh.pop %v4585
    %v4690 = vtanh.pop %v4586
    %v4693 = vrot.slane %v4433, 7
    %v4694 = vrot.slane %v4434, 7
    %v4697 = vmul.f32 %v4686, %v4693
    %v4698 = vmul.f32 %v4688, %v4694
    %4701 = vrot.lane.b32.xlu0 %v4689, 96
    %v4702 = vpop.permute.xlu0 %4701
    %4703 = vrot.lane.b32.xlu0 %v4690, 96
    %v4704 = vpop.permute.xlu0 %4703
    %v4707 = vmul.f32 %v4686, %v4702
    %v4708 = vmul.f32 %v4688, %v4704
    %4711 = vrot.lane.b32.xlu0 %v4707, 16
    %v4712 = vpop.permute.xlu0 %4711
    %4713 = vrot.lane.b32.xlu0 %v4708, 16
    %v4714 = vpop.permute.xlu0 %4713
    %v4717 = vadd.f32 %v4697, %v4712
    %v4718 = vadd.f32 %v4698, %v4714
    %v4719 = vtanh.pop %v4717
    %v4720 = vtanh.pop %v4718
    %4723 = vrot.lane.b32.xlu0 %v4719, 32
    %v4724 = vpop.permute.xlu0 %4723
    %4725 = vrot.lane.b32.xlu0 %v4720, 32
    %v4726 = vpop.permute.xlu0 %4725
    %v4729 = vmul.f32 %v4686, %v4724
    %v4730 = vmul.f32 %v4688, %v4726
    %v4731 = vxor.u32 %v4675, 2147483648
    %v4732 = vxor.u32 %v4676, 2147483648
    %v4733 = vmul.f32 %v4731, 1.442695
    %v4734 = vpow.pop %v4733
    %v4735 = vmul.f32 %v4732, 1.442695
    %v4736 = vpow.pop %v4735
    %v4737 = vadd.f32 %v4734, 1.0
    %v4738 = vadd.f32 %v4736, 1.0
    %v4739 = vrcp.pop %v4737
    %v4740 = vmul.f32 1.0, %v4739
    %v4741 = vrcp.pop %v4738
    %v4742 = vmul.f32 1.0, %v4741
    %v4743 = vtanh.pop %v4675
    %v4744 = vtanh.pop %v4676
    %v4747 = vrot.slane %v4487, 1
    %v4748 = vrot.slane %v4488, 1
    %v4751 = vmul.f32 %v4740, %v4747
    %v4752 = vmul.f32 %v4742, %v4748
    %4755 = vrot.lane.b32.xlu0 %v4743, 96
    %v4756 = vpop.permute.xlu0 %4755
    %4757 = vrot.lane.b32.xlu0 %v4744, 96
    %v4758 = vpop.permute.xlu0 %4757
    %v4761 = vmul.f32 %v4740, %v4756
    %v4762 = vmul.f32 %v4742, %v4758
    %4765 = vrot.lane.b32.xlu0 %v4761, 16
    %v4766 = vpop.permute.xlu0 %4765
    %4767 = vrot.lane.b32.xlu0 %v4762, 16
    %v4768 = vpop.permute.xlu0 %4767
    %v4771 = vadd.f32 %v4751, %v4766
    %v4772 = vadd.f32 %v4752, %v4768
    %v4773 = vtanh.pop %v4771
    %v4774 = vtanh.pop %v4772
    %4777 = vrot.lane.b32.xlu0 %v4773, 32
    %v4778 = vpop.permute.xlu0 %4777
    %4779 = vrot.lane.b32.xlu0 %v4774, 32
    %v4780 = vpop.permute.xlu0 %4779
    %v4783 = vmul.f32 %v4740, %v4778
    %v4784 = vmul.f32 %v4742, %v4780
    %v4787 = vrot.slane %v4729, 4
    %v4788 = vrot.slane %v4730, 3
    %v4789 = vsel %vm1272, %v4788, %v4787
    %4790 = vrot.lane.b32.xlu0 %v4789, 80
    %v4791 = vpop.permute.xlu0 %4790
    %v4792 = vsel %vm1012, %v4791, 0
    %4794 = vmatprep.subr.mxu0 0.0
    %4795 = vmatpush1.msra.mxu0 0.0
    %4796 = vmatprep.subr.mxu0 0.0
    %4797 = vmatpush1.msra.mxu0 0.0
    %4798 = vmatprep.subr.mxu0 0.0
    %4799 = vmatpush1.msra.mxu0 0.0
    %4800 = vmatprep.subr.mxu0 0.0
    %4801 = vmatpush1.msra.mxu0 0.0
    %4802 = vmatprep.subr.mxu0 0.0
    %4803 = vmatpush1.msra.mxu0 0.0
    %4804 = vmatprep.subr.mxu0 0.0
    %4805 = vmatpush1.msra.mxu0 0.0
    %4806 = vmatprep.subr.mxu0 0.0
    %4807 = vmatpush1.msra.mxu0 0.0
    %4808 = vmatprep.subr.mxu0 0.0
    %4809 = vmatpush1.msra.mxu0 0.0
    %4810 = vmatprep.subr.mxu0 0.0
    %4811 = vmatpush1.msra.mxu0 0.0
    %4812 = vmatprep.subr.mxu0 0.0
    %4813 = vmatpush1.msra.mxu0 0.0
    %4814 = vmatprep.subr.mxu0 0.0
    %4815 = vmatpush1.msra.mxu0 0.0
    %4816 = vmatprep.subr.mxu0 0.0
    %4817 = vmatpush1.msra.mxu0 0.0
    %4818 = vmatprep.subr.mxu0 0.0
    %4819 = vmatpush1.msra.mxu0 0.0
    %4820 = vmatprep.subr.mxu0 0.0
    %4821 = vmatpush1.msra.mxu0 0.0
    %4822 = vmatprep.subr.mxu0 0.0
    %4823 = vmatpush1.msra.mxu0 %v3396
    %4824 = vmatprep.subr.mxu0 0.0
    %4825 = vmatpush1.msra.mxu0 %v3395
    %4826 = vmatprep.subr.mxu0 0.0
    %4827 = vmatpush2.msra.mxu0 0.0
    %4828 = vmatprep.subr.mxu0 0.0
    %4829 = vmatpush2.msra.mxu0 0.0
    %4830 = vmatprep.subr.mxu0 0.0
    %4831 = vmatpush2.msra.mxu0 0.0
    %4832 = vmatprep.subr.mxu0 0.0
    %4833 = vmatpush2.msra.mxu0 0.0
    %4834 = vmatprep.subr.mxu0 0.0
    %4835 = vmatpush2.msra.mxu0 0.0
    %4836 = vmatprep.subr.mxu0 0.0
    %4837 = vmatpush2.msra.mxu0 0.0
    %4838 = vmatprep.subr.mxu0 0.0
    %4839 = vmatpush2.msra.mxu0 0.0
    %4840 = vmatprep.subr.mxu0 0.0
    %4841 = vmatpush2.msra.mxu0 0.0
    %4842 = vmatprep.subr.mxu0 0.0
    %4843 = vmatpush2.msra.mxu0 0.0
    %4844 = vmatprep.subr.mxu0 0.0
    %4845 = vmatpush2.msra.mxu0 0.0
    %4846 = vmatprep.subr.mxu0 0.0
    %4847 = vmatpush2.msra.mxu0 0.0
    %4848 = vmatprep.subr.mxu0 0.0
    %4849 = vmatpush2.msra.mxu0 0.0
    %4850 = vmatprep.subr.mxu0 0.0
    %4851 = vmatpush2.msra.mxu0 0.0
    %4852 = vmatprep.subr.mxu0 0.0
    %4853 = vmatpush2.msra.mxu0 0.0
    %4854 = vmatprep.subr.mxu0 0.0
    %4855 = vmatpush2.msra.mxu0 0.0
    %4856 = vmatprep.subr.mxu0 0.0
    %4857 = vmatpush2.msra.mxu0 0.0
    %4858 = vmatprep.mubr.f32.mxu0 0.0
    %4859 = vmatmul.mubr.f32.gmra.mxu0 %v4792
    %v4860 = vpop.f32.mrf.mxu0
    %v4861 = vadd.f32 0.0, %v4860
    %v4862 = vpop.f32.mrf.mxu0
    %4863 = vdwg.mxu0
    %v4865 = vrot.slane %v4861, 3
    %v4866 = vrot.slane %v4861, 4
    %v4869 = vadd.f32 %v3387, %v4865
    %v4870 = vadd.f32 %v3392, %v4866
    %v4873 = vrot.slane %v4783, 3
    %v4874 = vrot.slane %v4784, 2
    %v4875 = vsel %vm1272, %v4874, %v4873
    %4876 = vrot.lane.b32.xlu0 %v4875, 16
    %v4877 = vpop.permute.xlu0 %4876
    %v4878 = vsel %vm1012, %v4877, 0
    %4880 = vmatprep.subr.mxu0 0.0
    %4881 = vmatpush1.msra.mxu0 0.0
    %4882 = vmatprep.subr.mxu0 0.0
    %4883 = vmatpush1.msra.mxu0 0.0
    %4884 = vmatprep.subr.mxu0 0.0
    %4885 = vmatpush1.msra.mxu0 0.0
    %4886 = vmatprep.subr.mxu0 0.0
    %4887 = vmatpush1.msra.mxu0 0.0
    %4888 = vmatprep.subr.mxu0 0.0
    %4889 = vmatpush1.msra.mxu0 0.0
    %4890 = vmatprep.subr.mxu0 0.0
    %4891 = vmatpush1.msra.mxu0 0.0
    %4892 = vmatprep.subr.mxu0 0.0
    %4893 = vmatpush1.msra.mxu0 0.0
    %4894 = vmatprep.subr.mxu0 0.0
    %4895 = vmatpush1.msra.mxu0 0.0
    %4896 = vmatprep.subr.mxu0 0.0
    %4897 = vmatpush1.msra.mxu0 0.0
    %4898 = vmatprep.subr.mxu0 0.0
    %4899 = vmatpush1.msra.mxu0 0.0
    %4900 = vmatprep.subr.mxu0 0.0
    %4901 = vmatpush1.msra.mxu0 0.0
    %4902 = vmatprep.subr.mxu0 0.0
    %4903 = vmatpush1.msra.mxu0 0.0
    %4904 = vmatprep.subr.mxu0 0.0
    %4905 = vmatpush1.msra.mxu0 0.0
    %4906 = vmatprep.subr.mxu0 0.0
    %4907 = vmatpush1.msra.mxu0 0.0
    %4908 = vmatprep.subr.mxu0 0.0
    %4909 = vmatpush1.msra.mxu0 %v3398
    %4910 = vmatprep.subr.mxu0 0.0
    %4911 = vmatpush1.msra.mxu0 %v3397
    %4912 = vmatprep.subr.mxu0 0.0
    %4913 = vmatpush2.msra.mxu0 0.0
    %4914 = vmatprep.subr.mxu0 0.0
    %4915 = vmatpush2.msra.mxu0 0.0
    %4916 = vmatprep.subr.mxu0 0.0
    %4917 = vmatpush2.msra.mxu0 0.0
    %4918 = vmatprep.subr.mxu0 0.0
    %4919 = vmatpush2.msra.mxu0 0.0
    %4920 = vmatprep.subr.mxu0 0.0
    %4921 = vmatpush2.msra.mxu0 0.0
    %4922 = vmatprep.subr.mxu0 0.0
    %4923 = vmatpush2.msra.mxu0 0.0
    %4924 = vmatprep.subr.mxu0 0.0
    %4925 = vmatpush2.msra.mxu0 0.0
    %4926 = vmatprep.subr.mxu0 0.0
    %4927 = vmatpush2.msra.mxu0 0.0
    %4928 = vmatprep.subr.mxu0 0.0
    %4929 = vmatpush2.msra.mxu0 0.0
    %4930 = vmatprep.subr.mxu0 0.0
    %4931 = vmatpush2.msra.mxu0 0.0
    %4932 = vmatprep.subr.mxu0 0.0
    %4933 = vmatpush2.msra.mxu0 0.0
    %4934 = vmatprep.subr.mxu0 0.0
    %4935 = vmatpush2.msra.mxu0 0.0
    %4936 = vmatprep.subr.mxu0 0.0
    %4937 = vmatpush2.msra.mxu0 0.0
    %4938 = vmatprep.subr.mxu0 0.0
    %4939 = vmatpush2.msra.mxu0 0.0
    %4940 = vmatprep.subr.mxu0 0.0
    %4941 = vmatpush2.msra.mxu0 0.0
    %4942 = vmatprep.subr.mxu0 0.0
    %4943 = vmatpush2.msra.mxu0 0.0
    %4944 = vmatprep.mubr.f32.mxu0 0.0
    %4945 = vmatmul.mubr.f32.gmra.mxu0 %v4878
    %v4946 = vpop.f32.mrf.mxu0
    %v4947 = vadd.f32 0.0, %v4946
    %v4948 = vpop.f32.mrf.mxu0
    %4949 = vdwg.mxu0
    %v4951 = vrot.slane %v4947, 6
    %v4952 = vrot.slane %v4947, 7
    %4953 = vrot.lane.b32.xlu0 %v4951, 64
    %v4954 = vpop.permute.xlu0 %4953
    %4955 = vrot.lane.b32.xlu0 %v4952, 64
    %v4956 = vpop.permute.xlu0 %4955
    %v4959 = vadd.f32 %v3387, %v4954
    %v4960 = vadd.f32 %v3392, %v4956
    %v4961 = vxor.u32 %v4869, 2147483648
    %v4962 = vxor.u32 %v4870, 2147483648
    %v4963 = vmul.f32 %v4961, 1.442695
    %v4964 = vpow.pop %v4963
    %v4965 = vmul.f32 %v4962, 1.442695
    %v4966 = vpow.pop %v4965
    %v4967 = vadd.f32 %v4964, 1.0
    %v4968 = vadd.f32 %v4966, 1.0
    %v4969 = vrcp.pop %v4967
    %v4970 = vmul.f32 1.0, %v4969
    %v4971 = vrcp.pop %v4968
    %v4972 = vmul.f32 1.0, %v4971
    %v4973 = vtanh.pop %v4869
    %v4974 = vtanh.pop %v4870
    %v4977 = vrot.slane %v4717, 7
    %v4978 = vrot.slane %v4718, 7
    %v4981 = vmul.f32 %v4970, %v4977
    %v4982 = vmul.f32 %v4972, %v4978
    %4985 = vrot.lane.b32.xlu0 %v4973, 96
    %v4986 = vpop.permute.xlu0 %4985
    %4987 = vrot.lane.b32.xlu0 %v4974, 96
    %v4988 = vpop.permute.xlu0 %4987
    %v4991 = vmul.f32 %v4970, %v4986
    %v4992 = vmul.f32 %v4972, %v4988
    %4995 = vrot.lane.b32.xlu0 %v4991, 16
    %v4996 = vpop.permute.xlu0 %4995
    %4997 = vrot.lane.b32.xlu0 %v4992, 16
    %v4998 = vpop.permute.xlu0 %4997
    %v5001 = vadd.f32 %v4981, %v4996
    %v5002 = vadd.f32 %v4982, %v4998
    %v5003 = vtanh.pop %v5001
    %v5004 = vtanh.pop %v5002
    %5007 = vrot.lane.b32.xlu0 %v5003, 32
    %v5008 = vpop.permute.xlu0 %5007
    %5009 = vrot.lane.b32.xlu0 %v5004, 32
    %v5010 = vpop.permute.xlu0 %5009
    %v5013 = vmul.f32 %v4970, %v5008
    %v5014 = vmul.f32 %v4972, %v5010
    %v5015 = vxor.u32 %v4959, 2147483648
    %v5016 = vxor.u32 %v4960, 2147483648
    %v5017 = vmul.f32 %v5015, 1.442695
    %v5018 = vpow.pop %v5017
    %v5019 = vmul.f32 %v5016, 1.442695
    %v5020 = vpow.pop %v5019
    %v5021 = vadd.f32 %v5018, 1.0
    %v5022 = vadd.f32 %v5020, 1.0
    %v5023 = vrcp.pop %v5021
    %v5024 = vmul.f32 1.0, %v5023
    %v5025 = vrcp.pop %v5022
    %v5026 = vmul.f32 1.0, %v5025
    %v5027 = vtanh.pop %v4959
    %v5028 = vtanh.pop %v4960
    %v5031 = vrot.slane %v4771, 1
    %v5032 = vrot.slane %v4772, 1
    %v5035 = vmul.f32 %v5024, %v5031
    %v5036 = vmul.f32 %v5026, %v5032
    %5039 = vrot.lane.b32.xlu0 %v5027, 96
    %v5040 = vpop.permute.xlu0 %5039
    %5041 = vrot.lane.b32.xlu0 %v5028, 96
    %v5042 = vpop.permute.xlu0 %5041
    %v5045 = vmul.f32 %v5024, %v5040
    %v5046 = vmul.f32 %v5026, %v5042
    %5049 = vrot.lane.b32.xlu0 %v5045, 16
    %v5050 = vpop.permute.xlu0 %5049
    %5051 = vrot.lane.b32.xlu0 %v5046, 16
    %v5052 = vpop.permute.xlu0 %5051
    %v5055 = vadd.f32 %v5035, %v5050
    %v5056 = vadd.f32 %v5036, %v5052
    %v5057 = vtanh.pop %v5055
    %v5058 = vtanh.pop %v5056
    %5061 = vrot.lane.b32.xlu0 %v5057, 32
    %v5062 = vpop.permute.xlu0 %5061
    %5063 = vrot.lane.b32.xlu0 %v5058, 32
    %v5064 = vpop.permute.xlu0 %5063
    %v5067 = vmul.f32 %v5024, %v5062
    %v5068 = vmul.f32 %v5026, %v5064
    %v5071 = vrot.slane %v5013, 5
    %v5072 = vrot.slane %v5014, 4
    %v5073 = vsel %vm1272, %v5072, %v5071
    %5074 = vrot.lane.b32.xlu0 %v5073, 80
    %v5075 = vpop.permute.xlu0 %5074
    %v5076 = vsel %vm1012, %v5075, 0
    %5078 = vmatprep.subr.mxu0 0.0
    %5079 = vmatpush1.msra.mxu0 0.0
    %5080 = vmatprep.subr.mxu0 0.0
    %5081 = vmatpush1.msra.mxu0 0.0
    %5082 = vmatprep.subr.mxu0 0.0
    %5083 = vmatpush1.msra.mxu0 0.0
    %5084 = vmatprep.subr.mxu0 0.0
    %5085 = vmatpush1.msra.mxu0 0.0
    %5086 = vmatprep.subr.mxu0 0.0
    %5087 = vmatpush1.msra.mxu0 0.0
    %5088 = vmatprep.subr.mxu0 0.0
    %5089 = vmatpush1.msra.mxu0 0.0
    %5090 = vmatprep.subr.mxu0 0.0
    %5091 = vmatpush1.msra.mxu0 0.0
    %5092 = vmatprep.subr.mxu0 0.0
    %5093 = vmatpush1.msra.mxu0 0.0
    %5094 = vmatprep.subr.mxu0 0.0
    %5095 = vmatpush1.msra.mxu0 0.0
    %5096 = vmatprep.subr.mxu0 0.0
    %5097 = vmatpush1.msra.mxu0 0.0
    %5098 = vmatprep.subr.mxu0 0.0
    %5099 = vmatpush1.msra.mxu0 0.0
    %5100 = vmatprep.subr.mxu0 0.0
    %5101 = vmatpush1.msra.mxu0 0.0
    %5102 = vmatprep.subr.mxu0 0.0
    %5103 = vmatpush1.msra.mxu0 0.0
    %5104 = vmatprep.subr.mxu0 0.0
    %5105 = vmatpush1.msra.mxu0 0.0
    %5106 = vmatprep.subr.mxu0 0.0
    %5107 = vmatpush1.msra.mxu0 %v3396
    %5108 = vmatprep.subr.mxu0 0.0
    %5109 = vmatpush1.msra.mxu0 %v3395
    %5110 = vmatprep.subr.mxu0 0.0
    %5111 = vmatpush2.msra.mxu0 0.0
    %5112 = vmatprep.subr.mxu0 0.0
    %5113 = vmatpush2.msra.mxu0 0.0
    %5114 = vmatprep.subr.mxu0 0.0
    %5115 = vmatpush2.msra.mxu0 0.0
    %5116 = vmatprep.subr.mxu0 0.0
    %5117 = vmatpush2.msra.mxu0 0.0
    %5118 = vmatprep.subr.mxu0 0.0
    %5119 = vmatpush2.msra.mxu0 0.0
    %5120 = vmatprep.subr.mxu0 0.0
    %5121 = vmatpush2.msra.mxu0 0.0
    %5122 = vmatprep.subr.mxu0 0.0
    %5123 = vmatpush2.msra.mxu0 0.0
    %5124 = vmatprep.subr.mxu0 0.0
    %5125 = vmatpush2.msra.mxu0 0.0
    %5126 = vmatprep.subr.mxu0 0.0
    %5127 = vmatpush2.msra.mxu0 0.0
    %5128 = vmatprep.subr.mxu0 0.0
    %5129 = vmatpush2.msra.mxu0 0.0
    %5130 = vmatprep.subr.mxu0 0.0
    %5131 = vmatpush2.msra.mxu0 0.0
    %5132 = vmatprep.subr.mxu0 0.0
    %5133 = vmatpush2.msra.mxu0 0.0
    %5134 = vmatprep.subr.mxu0 0.0
    %5135 = vmatpush2.msra.mxu0 0.0
    %5136 = vmatprep.subr.mxu0 0.0
    %5137 = vmatpush2.msra.mxu0 0.0
    %5138 = vmatprep.subr.mxu0 0.0
    %5139 = vmatpush2.msra.mxu0 0.0
    %5140 = vmatprep.subr.mxu0 0.0
    %5141 = vmatpush2.msra.mxu0 0.0
    %5142 = vmatprep.mubr.f32.mxu0 0.0
    %5143 = vmatmul.mubr.f32.gmra.mxu0 %v5076
    %v5144 = vpop.f32.mrf.mxu0
    %v5145 = vadd.f32 0.0, %v5144
    %v5146 = vpop.f32.mrf.mxu0
    %5147 = vdwg.mxu0
    %v5149 = vrot.slane %v5145, 2
    %v5150 = vrot.slane %v5145, 3
    %v5153 = vadd.f32 %v3387, %v5149
    %v5154 = vadd.f32 %v3392, %v5150
    %v5157 = vrot.slane %v5067, 2
    %v5158 = vrot.slane %v5068, 1
    %v5159 = vsel %vm1272, %v5158, %v5157
    %5160 = vrot.lane.b32.xlu0 %v5159, 16
    %v5161 = vpop.permute.xlu0 %5160
    %v5162 = vsel %vm1012, %v5161, 0
    %5164 = vmatprep.subr.mxu0 0.0
    %5165 = vmatpush1.msra.mxu0 0.0
    %5166 = vmatprep.subr.mxu0 0.0
    %5167 = vmatpush1.msra.mxu0 0.0
    %5168 = vmatprep.subr.mxu0 0.0
    %5169 = vmatpush1.msra.mxu0 0.0
    %5170 = vmatprep.subr.mxu0 0.0
    %5171 = vmatpush1.msra.mxu0 0.0
    %5172 = vmatprep.subr.mxu0 0.0
    %5173 = vmatpush1.msra.mxu0 0.0
    %5174 = vmatprep.subr.mxu0 0.0
    %5175 = vmatpush1.msra.mxu0 0.0
    %5176 = vmatprep.subr.mxu0 0.0
    %5177 = vmatpush1.msra.mxu0 0.0
    %5178 = vmatprep.subr.mxu0 0.0
    %5179 = vmatpush1.msra.mxu0 0.0
    %5180 = vmatprep.subr.mxu0 0.0
    %5181 = vmatpush1.msra.mxu0 0.0
    %5182 = vmatprep.subr.mxu0 0.0
    %5183 = vmatpush1.msra.mxu0 0.0
    %5184 = vmatprep.subr.mxu0 0.0
    %5185 = vmatpush1.msra.mxu0 0.0
    %5186 = vmatprep.subr.mxu0 0.0
    %5187 = vmatpush1.msra.mxu0 0.0
    %5188 = vmatprep.subr.mxu0 0.0
    %5189 = vmatpush1.msra.mxu0 0.0
    %5190 = vmatprep.subr.mxu0 0.0
    %5191 = vmatpush1.msra.mxu0 0.0
    %5192 = vmatprep.subr.mxu0 0.0
    %5193 = vmatpush1.msra.mxu0 %v3398
    %5194 = vmatprep.subr.mxu0 0.0
    %5195 = vmatpush1.msra.mxu0 %v3397
    %5196 = vmatprep.subr.mxu0 0.0
    %5197 = vmatpush2.msra.mxu0 0.0
    %5198 = vmatprep.subr.mxu0 0.0
    %5199 = vmatpush2.msra.mxu0 0.0
    %5200 = vmatprep.subr.mxu0 0.0
    %5201 = vmatpush2.msra.mxu0 0.0
    %5202 = vmatprep.subr.mxu0 0.0
    %5203 = vmatpush2.msra.mxu0 0.0
    %5204 = vmatprep.subr.mxu0 0.0
    %5205 = vmatpush2.msra.mxu0 0.0
    %5206 = vmatprep.subr.mxu0 0.0
    %5207 = vmatpush2.msra.mxu0 0.0
    %5208 = vmatprep.subr.mxu0 0.0
    %5209 = vmatpush2.msra.mxu0 0.0
    %5210 = vmatprep.subr.mxu0 0.0
    %5211 = vmatpush2.msra.mxu0 0.0
    %5212 = vmatprep.subr.mxu0 0.0
    %5213 = vmatpush2.msra.mxu0 0.0
    %5214 = vmatprep.subr.mxu0 0.0
    %5215 = vmatpush2.msra.mxu0 0.0
    %5216 = vmatprep.subr.mxu0 0.0
    %5217 = vmatpush2.msra.mxu0 0.0
    %5218 = vmatprep.subr.mxu0 0.0
    %5219 = vmatpush2.msra.mxu0 0.0
    %5220 = vmatprep.subr.mxu0 0.0
    %5221 = vmatpush2.msra.mxu0 0.0
    %5222 = vmatprep.subr.mxu0 0.0
    %5223 = vmatpush2.msra.mxu0 0.0
    %5224 = vmatprep.subr.mxu0 0.0
    %5225 = vmatpush2.msra.mxu0 0.0
    %5226 = vmatprep.subr.mxu0 0.0
    %5227 = vmatpush2.msra.mxu0 0.0
    %5228 = vmatprep.mubr.f32.mxu0 0.0
    %5229 = vmatmul.mubr.f32.gmra.mxu0 %v5162
    %v5230 = vpop.f32.mrf.mxu0
    %v5231 = vadd.f32 0.0, %v5230
    %v5232 = vpop.f32.mrf.mxu0
    %5233 = vdwg.mxu0
    %v5235 = vrot.slane %v5231, 7
    %5236 = vrot.lane.b32.xlu0 %v5235, 64
    %v5237 = vpop.permute.xlu0 %5236
    %5238 = vrot.lane.b32.xlu0 %v5231, 64
    %v5239 = vpop.permute.xlu0 %5238
    %v5242 = vadd.f32 %v3387, %v5237
    %v5243 = vadd.f32 %v3392, %v5239
    %v5244 = vxor.u32 %v5153, 2147483648
    %v5245 = vxor.u32 %v5154, 2147483648
    %v5246 = vmul.f32 %v5244, 1.442695
    %v5247 = vpow.pop %v5246
    %v5248 = vmul.f32 %v5245, 1.442695
    %v5249 = vpow.pop %v5248
    %v5250 = vadd.f32 %v5247, 1.0
    %v5251 = vadd.f32 %v5249, 1.0
    %v5252 = vrcp.pop %v5250
    %v5253 = vmul.f32 1.0, %v5252
    %v5254 = vrcp.pop %v5251
    %v5255 = vmul.f32 1.0, %v5254
    %v5256 = vtanh.pop %v5153
    %v5257 = vtanh.pop %v5154
    %v5260 = vrot.slane %v5001, 7
    %v5261 = vrot.slane %v5002, 7
    %v5264 = vmul.f32 %v5253, %v5260
    %v5265 = vmul.f32 %v5255, %v5261
    %5268 = vrot.lane.b32.xlu0 %v5256, 96
    %v5269 = vpop.permute.xlu0 %5268
    %5270 = vrot.lane.b32.xlu0 %v5257, 96
    %v5271 = vpop.permute.xlu0 %5270
    %v5274 = vmul.f32 %v5253, %v5269
    %v5275 = vmul.f32 %v5255, %v5271
    %5278 = vrot.lane.b32.xlu0 %v5274, 16
    %v5279 = vpop.permute.xlu0 %5278
    %5280 = vrot.lane.b32.xlu0 %v5275, 16
    %v5281 = vpop.permute.xlu0 %5280
    %v5284 = vadd.f32 %v5264, %v5279
    %v5285 = vadd.f32 %v5265, %v5281
    %v5286 = vtanh.pop %v5284
    %v5287 = vtanh.pop %v5285
    %5290 = vrot.lane.b32.xlu0 %v5286, 32
    %v5291 = vpop.permute.xlu0 %5290
    %5292 = vrot.lane.b32.xlu0 %v5287, 32
    %v5293 = vpop.permute.xlu0 %5292
    %v5296 = vmul.f32 %v5253, %v5291
    %v5297 = vmul.f32 %v5255, %v5293
    %v5298 = vxor.u32 %v5242, 2147483648
    %v5299 = vxor.u32 %v5243, 2147483648
    %v5300 = vmul.f32 %v5298, 1.442695
    %v5301 = vpow.pop %v5300
    %v5302 = vmul.f32 %v5299, 1.442695
    %v5303 = vpow.pop %v5302
    %v5304 = vadd.f32 %v5301, 1.0
    %v5305 = vadd.f32 %v5303, 1.0
    %v5306 = vrcp.pop %v5304
    %v5307 = vmul.f32 1.0, %v5306
    %v5308 = vrcp.pop %v5305
    %v5309 = vmul.f32 1.0, %v5308
    %v5310 = vtanh.pop %v5242
    %v5311 = vtanh.pop %v5243
    %v5314 = vrot.slane %v5055, 1
    %v5315 = vrot.slane %v5056, 1
    %v5318 = vmul.f32 %v5307, %v5314
    %v5319 = vmul.f32 %v5309, %v5315
    %5322 = vrot.lane.b32.xlu0 %v5310, 96
    %v5323 = vpop.permute.xlu0 %5322
    %5324 = vrot.lane.b32.xlu0 %v5311, 96
    %v5325 = vpop.permute.xlu0 %5324
    %v5328 = vmul.f32 %v5307, %v5323
    %v5329 = vmul.f32 %v5309, %v5325
    %5332 = vrot.lane.b32.xlu0 %v5328, 16
    %v5333 = vpop.permute.xlu0 %5332
    %5334 = vrot.lane.b32.xlu0 %v5329, 16
    %v5335 = vpop.permute.xlu0 %5334
    %v5338 = vadd.f32 %v5318, %v5333
    %v5339 = vadd.f32 %v5319, %v5335
    %v5340 = vtanh.pop %v5338
    %v5341 = vtanh.pop %v5339
    %5344 = vrot.lane.b32.xlu0 %v5340, 32
    %v5345 = vpop.permute.xlu0 %5344
    %5346 = vrot.lane.b32.xlu0 %v5341, 32
    %v5347 = vpop.permute.xlu0 %5346
    %v5350 = vmul.f32 %v5307, %v5345
    %v5351 = vmul.f32 %v5309, %v5347
    %v5354 = vrot.slane %v5296, 6
    %v5355 = vrot.slane %v5297, 5
    %v5356 = vsel %vm1272, %v5355, %v5354
    %5357 = vrot.lane.b32.xlu0 %v5356, 80
    %v5358 = vpop.permute.xlu0 %5357
    %v5359 = vsel %vm1012, %v5358, 0
    %5361 = vmatprep.subr.mxu0 0.0
    %5362 = vmatpush1.msra.mxu0 0.0
    %5363 = vmatprep.subr.mxu0 0.0
    %5364 = vmatpush1.msra.mxu0 0.0
    %5365 = vmatprep.subr.mxu0 0.0
    %5366 = vmatpush1.msra.mxu0 0.0
    %5367 = vmatprep.subr.mxu0 0.0
    %5368 = vmatpush1.msra.mxu0 0.0
    %5369 = vmatprep.subr.mxu0 0.0
    %5370 = vmatpush1.msra.mxu0 0.0
    %5371 = vmatprep.subr.mxu0 0.0
    %5372 = vmatpush1.msra.mxu0 0.0
    %5373 = vmatprep.subr.mxu0 0.0
    %5374 = vmatpush1.msra.mxu0 0.0
    %5375 = vmatprep.subr.mxu0 0.0
    %5376 = vmatpush1.msra.mxu0 0.0
    %5377 = vmatprep.subr.mxu0 0.0
    %5378 = vmatpush1.msra.mxu0 0.0
    %5379 = vmatprep.subr.mxu0 0.0
    %5380 = vmatpush1.msra.mxu0 0.0
    %5381 = vmatprep.subr.mxu0 0.0
    %5382 = vmatpush1.msra.mxu0 0.0
    %5383 = vmatprep.subr.mxu0 0.0
    %5384 = vmatpush1.msra.mxu0 0.0
    %5385 = vmatprep.subr.mxu0 0.0
    %5386 = vmatpush1.msra.mxu0 0.0
    %5387 = vmatprep.subr.mxu0 0.0
    %5388 = vmatpush1.msra.mxu0 0.0
    %5389 = vmatprep.subr.mxu0 0.0
    %5390 = vmatpush1.msra.mxu0 %v3396
    %5391 = vmatprep.subr.mxu0 0.0
    %5392 = vmatpush1.msra.mxu0 %v3395
    %5393 = vmatprep.subr.mxu0 0.0
    %5394 = vmatpush2.msra.mxu0 0.0
    %5395 = vmatprep.subr.mxu0 0.0
    %5396 = vmatpush2.msra.mxu0 0.0
    %5397 = vmatprep.subr.mxu0 0.0
    %5398 = vmatpush2.msra.mxu0 0.0
    %5399 = vmatprep.subr.mxu0 0.0
    %5400 = vmatpush2.msra.mxu0 0.0
    %5401 = vmatprep.subr.mxu0 0.0
    %5402 = vmatpush2.msra.mxu0 0.0
    %5403 = vmatprep.subr.mxu0 0.0
    %5404 = vmatpush2.msra.mxu0 0.0
    %5405 = vmatprep.subr.mxu0 0.0
    %5406 = vmatpush2.msra.mxu0 0.0
    %5407 = vmatprep.subr.mxu0 0.0
    %5408 = vmatpush2.msra.mxu0 0.0
    %5409 = vmatprep.subr.mxu0 0.0
    %5410 = vmatpush2.msra.mxu0 0.0
    %5411 = vmatprep.subr.mxu0 0.0
    %5412 = vmatpush2.msra.mxu0 0.0
    %5413 = vmatprep.subr.mxu0 0.0
    %5414 = vmatpush2.msra.mxu0 0.0
    %5415 = vmatprep.subr.mxu0 0.0
    %5416 = vmatpush2.msra.mxu0 0.0
    %5417 = vmatprep.subr.mxu0 0.0
    %5418 = vmatpush2.msra.mxu0 0.0
    %5419 = vmatprep.subr.mxu0 0.0
    %5420 = vmatpush2.msra.mxu0 0.0
    %5421 = vmatprep.subr.mxu0 0.0
    %5422 = vmatpush2.msra.mxu0 0.0
    %5423 = vmatprep.subr.mxu0 0.0
    %5424 = vmatpush2.msra.mxu0 0.0
    %5425 = vmatprep.mubr.f32.mxu0 0.0
    %5426 = vmatmul.mubr.f32.gmra.mxu0 %v5359
    %v5427 = vpop.f32.mrf.mxu0
    %v5428 = vadd.f32 0.0, %v5427
    %v5429 = vpop.f32.mrf.mxu0
    %5430 = vdwg.mxu0
    %v5432 = vrot.slane %v5428, 1
    %v5433 = vrot.slane %v5428, 2
    %v5436 = vadd.f32 %v3387, %v5432
    %v5437 = vadd.f32 %v3392, %v5433
    %v5440 = vrot.slane %v5350, 1
    %v5441 = vsel %vm1272, %v5351, %v5440
    %5442 = vrot.lane.b32.xlu0 %v5441, 16
    %v5443 = vpop.permute.xlu0 %5442
    %v5444 = vsel %vm1012, %v5443, 0
    %5446 = vmatprep.subr.mxu0 0.0
    %5447 = vmatpush1.msra.mxu0 0.0
    %5448 = vmatprep.subr.mxu0 0.0
    %5449 = vmatpush1.msra.mxu0 0.0
    %5450 = vmatprep.subr.mxu0 0.0
    %5451 = vmatpush1.msra.mxu0 0.0
    %5452 = vmatprep.subr.mxu0 0.0
    %5453 = vmatpush1.msra.mxu0 0.0
    %5454 = vmatprep.subr.mxu0 0.0
    %5455 = vmatpush1.msra.mxu0 0.0
    %5456 = vmatprep.subr.mxu0 0.0
    %5457 = vmatpush1.msra.mxu0 0.0
    %5458 = vmatprep.subr.mxu0 0.0
    %5459 = vmatpush1.msra.mxu0 0.0
    %5460 = vmatprep.subr.mxu0 0.0
    %5461 = vmatpush1.msra.mxu0 0.0
    %5462 = vmatprep.subr.mxu0 0.0
    %5463 = vmatpush1.msra.mxu0 0.0
    %5464 = vmatprep.subr.mxu0 0.0
    %5465 = vmatpush1.msra.mxu0 0.0
    %5466 = vmatprep.subr.mxu0 0.0
    %5467 = vmatpush1.msra.mxu0 0.0
    %5468 = vmatprep.subr.mxu0 0.0
    %5469 = vmatpush1.msra.mxu0 0.0
    %5470 = vmatprep.subr.mxu0 0.0
    %5471 = vmatpush1.msra.mxu0 0.0
    %5472 = vmatprep.subr.mxu0 0.0
    %5473 = vmatpush1.msra.mxu0 0.0
    %5474 = vmatprep.subr.mxu0 0.0
    %5475 = vmatpush1.msra.mxu0 %v3398
    %5476 = vmatprep.subr.mxu0 0.0
    %5477 = vmatpush1.msra.mxu0 %v3397
    %5478 = vmatprep.subr.mxu0 0.0
    %5479 = vmatpush2.msra.mxu0 0.0
    %5480 = vmatprep.subr.mxu0 0.0
    %5481 = vmatpush2.msra.mxu0 0.0
    %5482 = vmatprep.subr.mxu0 0.0
    %5483 = vmatpush2.msra.mxu0 0.0
    %5484 = vmatprep.subr.mxu0 0.0
    %5485 = vmatpush2.msra.mxu0 0.0
    %5486 = vmatprep.subr.mxu0 0.0
    %5487 = vmatpush2.msra.mxu0 0.0
    %5488 = vmatprep.subr.mxu0 0.0
    %5489 = vmatpush2.msra.mxu0 0.0
    %5490 = vmatprep.subr.mxu0 0.0
    %5491 = vmatpush2.msra.mxu0 0.0
    %5492 = vmatprep.subr.mxu0 0.0
    %5493 = vmatpush2.msra.mxu0 0.0
    %5494 = vmatprep.subr.mxu0 0.0
    %5495 = vmatpush2.msra.mxu0 0.0
    %5496 = vmatprep.subr.mxu0 0.0
    %5497 = vmatpush2.msra.mxu0 0.0
    %5498 = vmatprep.subr.mxu0 0.0
    %5499 = vmatpush2.msra.mxu0 0.0
    %5500 = vmatprep.subr.mxu0 0.0
    %5501 = vmatpush2.msra.mxu0 0.0
    %5502 = vmatprep.subr.mxu0 0.0
    %5503 = vmatpush2.msra.mxu0 0.0
    %5504 = vmatprep.subr.mxu0 0.0
    %5505 = vmatpush2.msra.mxu0 0.0
    %5506 = vmatprep.subr.mxu0 0.0
    %5507 = vmatpush2.msra.mxu0 0.0
    %5508 = vmatprep.subr.mxu0 0.0
    %5509 = vmatpush2.msra.mxu0 0.0
    %5510 = vmatprep.mubr.f32.mxu0 0.0
    %5511 = vmatmul.mubr.f32.gmra.mxu0 %v5444
    %v5512 = vpop.f32.mrf.mxu0
    %v5513 = vadd.f32 0.0, %v5512
    %v5514 = vpop.f32.mrf.mxu0
    %5515 = vdwg.mxu0
    %v5517 = vrot.slane %v5513, 1
    %5518 = vrot.lane.b32.xlu0 %v5513, 64
    %v5519 = vpop.permute.xlu0 %5518
    %5520 = vrot.lane.b32.xlu0 %v5517, 64
    %v5521 = vpop.permute.xlu0 %5520
    %v5524 = vadd.f32 %v3387, %v5519
    %v5525 = vadd.f32 %v3392, %v5521
    %v5526 = vxor.u32 %v5436, 2147483648
    %v5527 = vxor.u32 %v5437, 2147483648
    %v5528 = vmul.f32 %v5526, 1.442695
    %v5529 = vpow.pop %v5528
    %v5530 = vmul.f32 %v5527, 1.442695
    %v5531 = vpow.pop %v5530
    %v5532 = vadd.f32 %v5529, 1.0
    %v5533 = vadd.f32 %v5531, 1.0
    %v5534 = vrcp.pop %v5532
    %v5535 = vmul.f32 1.0, %v5534
    %v5536 = vrcp.pop %v5533
    %v5537 = vmul.f32 1.0, %v5536
    %v5538 = vtanh.pop %v5436
    %v5539 = vtanh.pop %v5437
    %v5542 = vrot.slane %v5284, 7
    %v5543 = vrot.slane %v5285, 7
    %v5546 = vmul.f32 %v5535, %v5542
    %v5547 = vmul.f32 %v5537, %v5543
    %5550 = vrot.lane.b32.xlu0 %v5538, 96
    %v5551 = vpop.permute.xlu0 %5550
    %5552 = vrot.lane.b32.xlu0 %v5539, 96
    %v5553 = vpop.permute.xlu0 %5552
    %v5556 = vmul.f32 %v5535, %v5551
    %v5557 = vmul.f32 %v5537, %v5553
    %5560 = vrot.lane.b32.xlu0 %v5556, 16
    %v5561 = vpop.permute.xlu0 %5560
    %5562 = vrot.lane.b32.xlu0 %v5557, 16
    %v5563 = vpop.permute.xlu0 %5562
    %v5566 = vadd.f32 %v5546, %v5561
    %v5567 = vadd.f32 %v5547, %v5563
    %v5568 = vtanh.pop %v5566
    %v5569 = vtanh.pop %v5567
    %5572 = vrot.lane.b32.xlu0 %v5568, 32
    %v5573 = vpop.permute.xlu0 %5572
    %5574 = vrot.lane.b32.xlu0 %v5569, 32
    %v5575 = vpop.permute.xlu0 %5574
    %v5578 = vmul.f32 %v5535, %v5573
    %v5579 = vmul.f32 %v5537, %v5575
    %v5580 = vxor.u32 %v5524, 2147483648
    %v5581 = vxor.u32 %v5525, 2147483648
    %v5582 = vmul.f32 %v5580, 1.442695
    %v5583 = vpow.pop %v5582
    %v5584 = vmul.f32 %v5581, 1.442695
    %v5585 = vpow.pop %v5584
    %v5586 = vadd.f32 %v5583, 1.0
    %v5587 = vadd.f32 %v5585, 1.0
    %v5588 = vrcp.pop %v5586
    %v5589 = vmul.f32 1.0, %v5588
    %v5590 = vrcp.pop %v5587
    %v5591 = vmul.f32 1.0, %v5590
    %v5592 = vtanh.pop %v5524
    %v5593 = vtanh.pop %v5525
    %v5596 = vrot.slane %v5338, 1
    %v5597 = vrot.slane %v5339, 1
    %v5600 = vmul.f32 %v5589, %v5596
    %v5601 = vmul.f32 %v5591, %v5597
    %5604 = vrot.lane.b32.xlu0 %v5592, 96
    %v5605 = vpop.permute.xlu0 %5604
    %5606 = vrot.lane.b32.xlu0 %v5593, 96
    %v5607 = vpop.permute.xlu0 %5606
    %v5610 = vmul.f32 %v5589, %v5605
    %v5611 = vmul.f32 %v5591, %v5607
    %5614 = vrot.lane.b32.xlu0 %v5610, 16
    %v5615 = vpop.permute.xlu0 %5614
    %5616 = vrot.lane.b32.xlu0 %v5611, 16
    %v5617 = vpop.permute.xlu0 %5616
    %v5620 = vadd.f32 %v5600, %v5615
    %v5621 = vadd.f32 %v5601, %v5617
    %v5622 = vtanh.pop %v5620
    %v5623 = vtanh.pop %v5621
    %5626 = vrot.lane.b32.xlu0 %v5622, 32
    %v5627 = vpop.permute.xlu0 %5626
    %5628 = vrot.lane.b32.xlu0 %v5623, 32
    %v5629 = vpop.permute.xlu0 %5628
    %v5632 = vmul.f32 %v5589, %v5627
    %v5633 = vmul.f32 %v5591, %v5629
    %v5634 = vsel %vm3252, %v3602, %v3878
    %v5635 = vsel %vm3252, %v3603, %v3879
    %v5636 = vsel %vm3255, %v5634, %v4161
    %v5637 = vsel %vm3255, %v5635, %v4162
    %v5638 = vsel %vm3258, %v5636, %v4445
    %v5639 = vsel %vm3258, %v5637, %v4446
    %v5640 = vsel %vm3261, %v5638, %v4729
    %v5641 = vsel %vm3261, %v5639, %v4730
    %v5642 = vsel %vm3264, %v5640, %v5013
    %v5643 = vsel %vm3264, %v5641, %v5014
    %v5644 = vsel %vm3267, %v5642, %v5296
    %v5645 = vsel %vm3267, %v5643, %v5297
    %v5646 = vsel %vm3270, %v5644, %v5578
    %v5647 = vsel %vm3270, %v5645, %v5579
    %v5648 = vsel %vm3252, %v5632, %v5350
    %v5649 = vsel %vm3252, %v5633, %v5351
    %v5650 = vsel %vm3255, %v5648, %v5067
    %v5651 = vsel %vm3255, %v5649, %v5068
    %v5652 = vsel %vm3258, %v5650, %v4783
    %v5653 = vsel %vm3258, %v5651, %v4784
    %v5654 = vsel %vm3261, %v5652, %v4499
    %v5655 = vsel %vm3261, %v5653, %v4500
    %v5656 = vsel %vm3264, %v5654, %v4215
    %v5657 = vsel %vm3264, %v5655, %v4216
    %v5658 = vsel %vm3267, %v5656, %v3932
    %v5659 = vsel %vm3267, %v5657, %v3933
    %v5660 = vsel %vm3270, %v5658, %v3650
    %v5661 = vsel %vm3270, %v5659, %v3651
    %5664 = vrot.lane.b32.xlu0 %v5646, 80
    %v5665 = vpop.permute.xlu0 %5664
    %5666 = vrot.lane.b32.xlu0 %v5647, 80
    %v5667 = vpop.permute.xlu0 %5666
    %5672 = vrot.lane.b32.xlu0 %v5660, 32
    %v5673 = vpop.permute.xlu0 %5672
    %5674 = vrot.lane.b32.xlu0 %v5661, 32
    %v5675 = vpop.permute.xlu0 %5674
    %v5678 = vsel %vm1012, %v5665, %v5673
    %v5679 = vsel %vm1012, %v5667, %v5675
    %v5680 = vtanh.pop %v5678
    %v5681 = vtanh.pop %v5679
    %v5682 = vld [vmem:[%s3 + $0xc] sm:$0x1]
    %v5683 = vlaneseq
    %v5684 = vshrl.u32 %v5683, 7
    %v5685 = vsub.s32 0, %v5684
    %v5686 = vrot.slane %v5682, %v5685
    %v5687 = vmul.f32 %v5680, %v5686
    %v5688 = vmul.f32 %v5681, %v5686
    %v5689 = vsel %vm36, %v5687, 0.0
    %5690 = vadd.xlane.f32.xlu0 %v5689
    %v5691 = vpop.xlane.xlu0 %5690
    %v5692 = vsel %vm36, %v5688, 0.0
    %5693 = vadd.xlane.f32.xlu0 %v5692
    %v5694 = vpop.xlane.xlu0 %5693
    %v5697 = vlaneseq
    %v5698 = vand.u32 %v5697, 127
    %v5699 = vlaneseq
    %v5700 = vshrl.u32 %v5699, 7
    %v5701 = vsub.s32 %v5698, %v5700
    %v5702 = vrot.slane %v5691, %v5701
    %v5703 = vlaneseq
    %v5704 = vshrl.u32 %v5703, 7
    %v5705 = vsub.s32 %v5698, %v5704
    %v5706 = vrot.slane %v5694, %v5705
    %v5707 = vsel %vm1272, %v5706, %v5702
    %vm5709 = vcmask 58368
    %v5710 = vsel %vm5709, %v5707, -inf
    %5711 = vmax.xlane.f32.xlu0 %v5710
    %v5712 = vpop.xlane.xlu0 %5711
    %v5714 = vlaneseq
    %v5715 = vshrl.u32 %v5714, 7
    %v5716 = vsub.s32 0, %v5715
    %v5717 = vrot.slane %v5712, %v5716
    %v5718 = vlaneseq
    %v5719 = vshrl.u32 %v5718, 7
    %v5720 = vsub.s32 1, %v5719
    %v5721 = vrot.slane %v5712, %v5720
    %v5724 = vsub.f32 %v5691, %v5717
    %v5725 = vsub.f32 %v5694, %v5721
    %v5726 = vmul.f32 %v5724, 1.442695
    %v5727 = vpow.pop %v5726
    %v5728 = vmul.f32 %v5725, 1.442695
    %v5729 = vpow.pop %v5728
    %5732 = vset.pattern.permute.xlu0 0
    %5733 = vperm.xlu0 %5732, %v5727
    %v5734 = vpop.permute.xlu0 %5733
    %5735 = vset.pattern.permute.xlu0 0
    %5736 = vperm.xlu0 %5735, %v5729
    %v5737 = vpop.permute.xlu0 %5736
    %v5738 = vlaneseq
    %v5739 = vshrl.u32 %v5738, 7
    %v5740 = vsub.s32 %v5698, %v5739
    %v5741 = vrot.slane %v5734, %v5740
    %v5742 = vlaneseq
    %v5743 = vshrl.u32 %v5742, 7
    %v5744 = vsub.s32 %v5698, %v5743
    %v5745 = vrot.slane %v5737, %v5744
    %v5746 = vsel %vm1272, %v5745, %v5741
    %v5748 = vsel %vm5709, %v5746, 0.0
    %5749 = vadd.xlane.f32.xlu0 %v5748
    %v5750 = vpop.xlane.xlu0 %5749
    %v5751 = vrcp.pop %v5750
    %v5753 = vlaneseq
    %v5754 = vshrl.u32 %v5753, 7
    %v5755 = vsub.s32 0, %v5754
    %v5756 = vrot.slane %v5751, %v5755
    %v5757 = vlaneseq
    %v5758 = vshrl.u32 %v5757, 7
    %v5759 = vsub.s32 1, %v5758
    %v5760 = vrot.slane %v5751, %v5759
    %v5763 = vmul.f32 %v5727, %v5756
    %v5764 = vmul.f32 %v5729, %v5760
    %5766 = vset.pattern.permute.xlu0 0
    %5767 = vperm.xlu0 %5766, %v5763
    %v5768 = vpop.permute.xlu0 %5767
    %5771 = vset.pattern.permute.xlu0 0
    %5772 = vperm.xlu0 %5771, %v5764
    %v5773 = vpop.permute.xlu0 %5772
    %v5775 = vmul.f32 %v5678, %v5768
    %v5776 = vmul.f32 %v5679, %v5773
    %v5777 = vsel %vm36, %v5775, 0.0
    %v5778 = vrot.slane %v5777, 4
    %v5779 = vadd.f32 %v5777, %v5778
    %v5780 = vrot.slane %v5779, 2
    %v5781 = vadd.f32 %v5779, %v5780
    %v5782 = vrot.slane %v5781, 1
    %v5783 = vadd.f32 %v5781, %v5782
    %v5784 = vsel %vm36, %v5776, 0.0
    %v5785 = vrot.slane %v5784, 4
    %v5786 = vadd.f32 %v5784, %v5785
    %v5787 = vrot.slane %v5786, 2
    %v5788 = vadd.f32 %v5786, %v5787
    %v5789 = vrot.slane %v5788, 1
    %v5790 = vadd.f32 %v5788, %v5789
    %v5791 = vmax.f32 %v5783, 0.0
    %v5792 = vmax.f32 %v5790, 0.0
    %v5793 = vld [vmem:[#allocation2 + $0x120] sm:$0xff]
    %v5794 = vld [vmem:[#allocation2 + $0x128] sm:$0xff]
    %v5795 = vld [vmem:[#allocation2 + $0x130] sm:$0xff]
    %v5796 = vld [vmem:[#allocation2 + $0x138] sm:$0xff]
    %v5797 = vld [vmem:[%s3 + $0xd] sm:$0x1]
    %v5798 = vlaneseq
    %v5799 = vshrl.u32 %v5798, 7
    %v5800 = vsub.s32 0, %v5799
    %v5801 = vrot.slane %v5797, %v5800
    %v5804 = vsel %vm1272, %v5792, %v5791
    %v5805 = vsel %vm36, %v5804, 0
    %5807 = vmatprep.subr.mxu0 0.0
    %5808 = vmatpush1.msra.mxu0 0.0
    %5809 = vmatprep.subr.mxu0 0.0
    %5810 = vmatpush1.msra.mxu0 0.0
    %5811 = vmatprep.subr.mxu0 0.0
    %5812 = vmatpush1.msra.mxu0 0.0
    %5813 = vmatprep.subr.mxu0 0.0
    %5814 = vmatpush1.msra.mxu0 0.0
    %5815 = vmatprep.subr.mxu0 0.0
    %5816 = vmatpush1.msra.mxu0 0.0
    %5817 = vmatprep.subr.mxu0 0.0
    %5818 = vmatpush1.msra.mxu0 0.0
    %5819 = vmatprep.subr.mxu0 0.0
    %5820 = vmatpush1.msra.mxu0 0.0
    %5821 = vmatprep.subr.mxu0 0.0
    %5822 = vmatpush1.msra.mxu0 0.0
    %5823 = vmatprep.subr.mxu0 0.0
    %5824 = vmatpush1.msra.mxu0 0.0
    %5825 = vmatprep.subr.mxu0 0.0
    %5826 = vmatpush1.msra.mxu0 0.0
    %5827 = vmatprep.subr.mxu0 0.0
    %5828 = vmatpush1.msra.mxu0 0.0
    %5829 = vmatprep.subr.mxu0 0.0
    %5830 = vmatpush1.msra.mxu0 0.0
    %5831 = vmatprep.subr.mxu0 0.0
    %5832 = vmatpush1.msra.mxu0 %v5796
    %5833 = vmatprep.subr.mxu0 0.0
    %5834 = vmatpush1.msra.mxu0 %v5795
    %5835 = vmatprep.subr.mxu0 0.0
    %5836 = vmatpush1.msra.mxu0 %v5794
    %5837 = vmatprep.subr.mxu0 0.0
    %5838 = vmatpush1.msra.mxu0 %v5793
    %5839 = vmatprep.subr.mxu0 0.0
    %5840 = vmatpush2.msra.mxu0 0.0
    %5841 = vmatprep.subr.mxu0 0.0
    %5842 = vmatpush2.msra.mxu0 0.0
    %5843 = vmatprep.subr.mxu0 0.0
    %5844 = vmatpush2.msra.mxu0 0.0
    %5845 = vmatprep.subr.mxu0 0.0
    %5846 = vmatpush2.msra.mxu0 0.0
    %5847 = vmatprep.subr.mxu0 0.0
    %5848 = vmatpush2.msra.mxu0 0.0
    %5849 = vmatprep.subr.mxu0 0.0
    %5850 = vmatpush2.msra.mxu0 0.0
    %5851 = vmatprep.subr.mxu0 0.0
    %5852 = vmatpush2.msra.mxu0 0.0
    %5853 = vmatprep.subr.mxu0 0.0
    %5854 = vmatpush2.msra.mxu0 0.0
    %5855 = vmatprep.subr.mxu0 0.0
    %5856 = vmatpush2.msra.mxu0 0.0
    %5857 = vmatprep.subr.mxu0 0.0
    %5858 = vmatpush2.msra.mxu0 0.0
    %5859 = vmatprep.subr.mxu0 0.0
    %5860 = vmatpush2.msra.mxu0 0.0
    %5861 = vmatprep.subr.mxu0 0.0
    %5862 = vmatpush2.msra.mxu0 0.0
    %5863 = vmatprep.subr.mxu0 0.0
    %5864 = vmatpush2.msra.mxu0 0.0
    %5865 = vmatprep.subr.mxu0 0.0
    %5866 = vmatpush2.msra.mxu0 0.0
    %5867 = vmatprep.subr.mxu0 0.0
    %5868 = vmatpush2.msra.mxu0 0.0
    %5869 = vmatprep.subr.mxu0 0.0
    %5870 = vmatpush2.msra.mxu0 0.0
    %5871 = vmatprep.mubr.f32.mxu0 0.0
    %5872 = vmatmul.mubr.f32.gmra.mxu0 %v5805
    %v5873 = vpop.f32.mrf.mxu0
    %v5874 = vadd.f32 %v5801, %v5873
    %v5875 = vpop.f32.mrf.mxu0
    %5876 = vdwg.mxu0
    %5877 = vst [vmem:[#allocation5] sm:$0x3] %v5874
    // Predicated region
    $region22: #{forward.1} parent=1 // pred_check
      _
    $region23: #{forward.1} parent=1 // pred_check_branch
      %5879 = sbr.rel (0) target = $region25
    $region24: #{forward.1} parent=1 // pred_region
      %s5881 = ssub.s32 32, 32
      %5882 = vsyncadd [#allocation4], %s5881
      %s5884 = sshll.u32 [#allocation5], 4
      %s5885 = int_to_ptr.vmem [resolvable:$true] %s5884
      %5887 = dma.vmem_to_hbm [thread:$0]  %s5885, 32, %s4, [#allocation4]
    $region25: #{forward.1} parent=1 // pred_fallthru
      _
    // Predicated region
    $region26: #{forward.1} parent=1 // pred_check
      _
    $region27: #{forward.1} parent=1 // pred_check_branch
      %5889 = sbr.rel (0) target = $region29
    $region28: #{forward.1} parent=1 // pred_region
      %5890 = dma.done [#allocation4], 32
    $region29: #{forward.1} parent=1 // pred_fallthru
      _
    %5891 = vsyncpa [#allocation3], 1
    %5892 = vsyncpa [#allocation4], 1

</llo_original>
